<compile_context>
chip_gen: v7x
topology: tpu7x:2x2x1
jax: 0.10.0
libtpu: 0.0.40
codegen_flags: <defaults>
</compile_context>

<pallas_src>
import jax
import jax.numpy as jnp
from jax.experimental import pallas as pl
from jax.experimental.pallas import tpu as pltpu

LEAKY = 0.2
BN_EPS = 1e-5
LANE = 128          # per-position channel block for conv outputs (lane padding)


# ---------------------------------------------------------------------------
# Fused kernel (built as a closure over the static network dimensions)
# ---------------------------------------------------------------------------
def _make_kernel(n, c_in, h_in, w_in, fms):
    ho1, wo1 = h_in // 2, w_in // 2
    ho2, wo2 = ho1 // 2, wo1 // 2
    ho3, wo3 = ho2 // 2, wo2 // 2
    hp1, hp2, hp3 = h_in + 2, ho1 + 2, ho2 + 2
    cout3 = 4 * fms
    spots = ho3 * wo3

    def build_patches(a_ref, p_ref, hp, ho, wo, cblk):
        """im2col for a 3x3 / stride-2 / pad-1 conv, entirely in VMEM.

        a_ref: (n*hp, wq, 2*cblk) padded activation; lane index = parity*cblk+c
               (parity = padded-w % 2), so every 3x3 tap is a static slice.
        p_ref: (n*ho*wo, 9*cblk) patch rows; K order = (dy, dx, c).
        """
        for b in range(n):
            for oy in range(ho):
                pieces = []
                for dy in range(3):
                    r = b * hp + 2 * oy + dy
                    pieces.append(a_ref[r, 0:wo, :])            # dx = 0 and 1
                    pieces.append(a_ref[r, 1:1 + wo, 0:cblk])   # dx = 2
                g = b * ho + oy
                p_ref[g * wo:(g + 1) * wo, :] = jnp.concatenate(pieces, axis=-1)

    def conv_matmul(p_ref, w_ref, rows, use_bn):
        """(M, 9*Cin) @ (9*Cin, 128) on the MXU, fused BN + LeakyReLU."""
        y = jnp.dot(p_ref[...].astype(jnp.bfloat16), w_ref[...],
                    preferred_element_type=jnp.float32)
        if use_bn:
            inv_m = 1.0 / rows
            s1 = jnp.sum(y, axis=0, keepdims=True)              # one-pass stats
            s2 = jnp.sum(y * y, axis=0, keepdims=True)
            mean = s1 * inv_m
            var = jnp.maximum(s2 * inv_m - mean * mean, 0.0)
            y = (y - mean) * jax.lax.rsqrt(var + BN_EPS)        # gamma=1, beta=0
        return jnp.where(y >= 0.0, y, LEAKY * y)

    def scatter_rows(y, a_ref, hp_next, ho, wo):
        """Write activated conv output (M, 128) into the next stage's padded,
        parity-folded buffer (pad offset +1 on H and W).  128-lane aligned."""
        for b in range(n):
            for oy in range(ho):
                g = b * ho + oy
                r = b * hp_next + oy + 1
                for ox in range(wo):
                    m = g * wo + ox
                    wq, px = divmod(ox + 1, 2)
                    a_ref[r, wq:wq + 1, px * LANE:(px + 1) * LANE] = y[m:m + 1, :]

    def kernel(a1_ref, wk1_ref, wk2_ref, wk3_ref, w1_ref, w2_ref, w3_ref,
               out_ref, a2_ref, a3_ref, p1_ref, p2_ref, p3_ref, f_ref):
        # Zero the padded activation buffers (only their interiors get written).
        a2_ref[...] = jnp.zeros(a2_ref.shape, a2_ref.dtype)
        a3_ref[...] = jnp.zeros(a3_ref.shape, a3_ref.dtype)

        # ---- stage 1: Conv(c_in -> 16) + LeakyReLU ------------------------
        build_patches(a1_ref, p1_ref, hp1, ho1, wo1, c_in)
        y1 = conv_matmul(p1_ref, wk1_ref, n * ho1 * wo1, use_bn=False)
        scatter_rows(y1, a2_ref, hp2, ho1, wo1)

        # ---- stage 2: Conv(16 -> 32) + BN + LeakyReLU ---------------------
        build_patches(a2_ref, p2_ref, hp2, ho2, wo2, LANE)
        y2 = conv_matmul(p2_ref, wk2_ref, n * ho2 * wo2, use_bn=True)
        scatter_rows(y2, a3_ref, hp3, ho2, wo2)

        # ---- stage 3: Conv(32 -> 64) + BN + LeakyReLU ---------------------
        build_patches(a3_ref, p3_ref, hp3, ho3, wo3, LANE)
        y3 = conv_matmul(p3_ref, wk3_ref, n * ho3 * wo3, use_bn=True)

        # ---- flatten (PyTorch NCHW order is absorbed into the permuted lin1
        #      weight built by the wrapper) ---------------------------------
        for b in range(n):
            for p in range(spots):
                m = b * spots + p
                f_ref[b:b + 1, p * cout3:(p + 1) * cout3] = y3[m:m + 1, 0:cout3]

        # ---- fused MLP: 384 -> 64 -> 32 -> 1 -> sigmoid -------------------
        hdd = jnp.dot(f_ref[...].astype(jnp.bfloat16), w1_ref[...],
                      preferred_element_type=jnp.float32)
        hdd = jnp.where(hdd >= 0.0, hdd, LEAKY * hdd)
        hdd = jnp.dot(hdd.astype(jnp.bfloat16), w2_ref[...],
                      preferred_element_type=jnp.float32)
        hdd = jnp.where(hdd >= 0.0, hdd, LEAKY * hdd)
        logits = jnp.sum(hdd * w3_ref[...], axis=-1, keepdims=True)   # (n, 1)
        out_ref[...] = (1.0 / (1.0 + jnp.exp(-logits))).astype(out_ref.dtype)

    return kernel


# ---------------------------------------------------------------------------
# Wrapper: weight/input layout prep (tiny, one-time XLA ops) + pallas_call
# ---------------------------------------------------------------------------
def discriminator_forward(x, params):
    n, c_in, h_in, w_in = x.shape
    fms = params["conv1"].shape[0]
    ho1, wo1 = h_in // 2, w_in // 2
    ho2, wo2 = ho1 // 2, wo1 // 2
    ho3, wo3 = ho2 // 2, wo2 // 2
    cout3 = 4 * fms
    spots = ho3 * wo3
    assert spots * cout3 == params["lin1"].shape[1], "flatten size mismatch"

    # Input: NCHW -> padded NHWC with the W-parity folded into lanes:
    # element (b, hp, wp, c) lives at [b*(h+2)+hp, wp//2, (wp%2)*c_in + c].
    xt = jnp.transpose(x, (0, 2, 3, 1)).astype(jnp.float32)
    xp = jnp.pad(xt, ((0, 0), (1, 1), (1, 1), (0, 0)))
    a1 = xp.reshape(n * (h_in + 2), (w_in + 2) // 2, 2 * c_in)

    # Conv weights: torch (Cout, Cin, 3, 3) -> (9*cblk, 128), K = (dy, dx, ci),
    # zero rows for padded input channels, zero cols for padded output channels.
    def conv_w(wconv, cblk):
        cout, cin = wconv.shape[0], wconv.shape[1]
        wt = jnp.transpose(wconv, (2, 3, 1, 0))                 # (3, 3, cin, cout)
        full = jnp.zeros((3, 3, cblk, LANE), wconv.dtype)
        full = full.at[:, :, :cin, :cout].set(wt)
        return full.reshape(9 * cblk, LANE).astype(jnp.bfloat16)

    wk1 = conv_w(params["conv1"], c_in)                         # (9*c_in, 128)
    wk2 = conv_w(params["conv2"], LANE)                         # (1152, 128)
    wk3 = conv_w(params["conv3"], LANE)                         # (1152, 128)

    # Linear weights (torch layout (out, in)).  The kernel's flatten order is
    # (spatial p, channel c) while torch's NCHW flatten is (c, p), so permute
    # the lin1 rows accordingly; result is numerically identical to PyTorch.
    hid1 = params["lin1"].shape[0]
    w1p = (params["lin1"].T
           .reshape(cout3, spots, hid1)
           .transpose(1, 0, 2)
           .reshape(spots * cout3, hid1)
           .astype(jnp.bfloat16))                               # (384, 64)
    w2t = params["lin2"].T.astype(jnp.bfloat16)                 # (64, 32)
    w3r = params["lin3"].astype(jnp.float32)                    # (1, 32)

    kernel = _make_kernel(n, c_in, h_in, w_in, fms)
    vspec = pl.BlockSpec(memory_space=pltpu.MemorySpace.VMEM)

    return pl.pallas_call(
        kernel,
        out_shape=jax.ShapeDtypeStruct((n, 1), jnp.float32),
        in_specs=[vspec] * 7,
        out_specs=vspec,
        scratch_shapes=[
            pltpu.VMEM((n * (ho1 + 2), wo1 // 2 + 1, 2 * LANE), jnp.float32),  # act 1 (padded)
            pltpu.VMEM((n * (ho2 + 2), wo2 // 2 + 1, 2 * LANE), jnp.float32),  # act 2 (padded)
            pltpu.VMEM((n * ho1 * wo1, 9 * c_in), jnp.float32),                # im2col stage 1
            pltpu.VMEM((n * ho2 * wo2, 9 * LANE), jnp.float32),                # im2col stage 2
            pltpu.VMEM((n * ho3 * wo3, 9 * LANE), jnp.float32),                # im2col stage 3
            pltpu.VMEM((n, spots * cout3), jnp.float32),                       # flattened feats
        ],
    )(a1, wk1, wk2, wk3, w1p, w2t, w3r)


# ---------------------------------------------------------------------------
# Plain-JAX f32 reference (exact PyTorch semantics) for a self-check
# ---------------------------------------------------------------------------
def reference_forward(x, params):
    def conv(hh, wconv):
        return jax.lax.conv_general_dilated(
            hh, wconv, window_strides=(2, 2), padding=((1, 1), (1, 1)),
            dimension_numbers=("NCHW", "OIHW", "NCHW"))

    def lrelu(hh):
        return jnp.where(hh >= 0.0, hh, LEAKY * hh)

    def bn(hh):
        mean = jnp.mean(hh, axis=(0, 2, 3), keepdims=True)
        var = jnp.mean(jnp.square(hh - mean), axis=(0, 2, 3), keepdims=True)
        return (hh - mean) * jax.lax.rsqrt(var + BN_EPS)

    hh = lrelu(conv(x, params["conv1"]))
    hh = lrelu(bn(conv(hh, params["conv2"])))
    hh = lrelu(bn(conv(hh, params["conv3"])))
    feat = hh.reshape(hh.shape[0], -1)                   # torch NCHW flatten
    hh = lrelu(feat @ params["lin1"].T)
    hh = lrelu(hh @ params["lin2"].T)
    return jax.nn.sigmoid(hh @ params["lin3"].T)


def init_params(key, steps=1, nb_flow=2, fms=16):
    """Parameters in the native PyTorch layouts (conv: OIHW, linear: (out, in))."""
    cin = steps * nb_flow
    ks = jax.random.split(key, 6)
    s = 0.1
    return {
        "conv1": s * jax.random.normal(ks[0], (fms, cin, 3, 3), jnp.float32),
        "conv2": s * jax.random.normal(ks[1], (2 * fms, fms, 3, 3), jnp.float32),
        "conv3": s * jax.random.normal(ks[2], (4 * fms, 2 * fms, 3, 3), jnp.float32),
        "lin1": s * jax.random.normal(ks[3], (64, 4 * fms * 3 * 2), jnp.float32),
        "lin2": s * jax.random.normal(ks[4], (32, 64), jnp.float32),
        "lin3": s * jax.random.normal(ks[5], (1, 32), jnp.float32),
    }


if __name__ == "__main__":
    key = jax.random.PRNGKey(0)
    k_param, k_x = jax.random.split(key)
    params = init_params(k_param, steps=1, nb_flow=2)

    # NCHW input; spatial 24x16 so three stride-2 convs give the module's
    # hard-coded 64*3*2 flatten.
    x = jax.random.normal(k_x, (2, 2, 24, 16), dtype=jnp.float32)

    out = jax.jit(discriminator_forward)(x, params)
    out = jax.block_until_ready(out)
    ref = reference_forward(x, params)

    assert out.shape == (2, 1)
    assert bool(jnp.all(jnp.isfinite(out)))
    assert bool(jnp.all((out >= 0.0) & (out <= 1.0)))
    # bf16 MXU inputs (f32 accumulation) -> small drift vs the f32 reference.
    assert bool(jnp.allclose(out, ref, atol=3e-2)), (out, ref)
    print("KERNEL_OK")
</pallas_src>

<mosaic_0001>
module attributes {stable_mosaic.version = 11 : i64} {
  func.func @kernel(%arg0: memref<52x9x4xf32, #tpu.memory_space<vmem>>, %arg1: memref<18x128xbf16, #tpu.memory_space<vmem>>, %arg2: memref<1152x128xbf16, #tpu.memory_space<vmem>>, %arg3: memref<1152x128xbf16, #tpu.memory_space<vmem>>, %arg4: memref<384x64xbf16, #tpu.memory_space<vmem>>, %arg5: memref<64x32xbf16, #tpu.memory_space<vmem>>, %arg6: memref<1x32xf32, #tpu.memory_space<vmem>>, %arg7: memref<2x1xf32, #tpu.memory_space<vmem>>, %arg8: memref<28x5x256xf32, #tpu.memory_space<vmem>>, %arg9: memref<16x3x256xf32, #tpu.memory_space<vmem>>, %arg10: memref<192x18xf32, #tpu.memory_space<vmem>>, %arg11: memref<48x1152xf32, #tpu.memory_space<vmem>>, %arg12: memref<12x1152xf32, #tpu.memory_space<vmem>>, %arg13: memref<2x384xf32, #tpu.memory_space<vmem>>) attributes {dimension_semantics = [], scalar_prefetch = 0 : i64, scratch_operands = 6 : i64, tpu.core_type = #tpu.core_type<tc>} {
    %cst = arith.constant 0.000000e+00 : f32
    %0 = vector.broadcast %cst : f32 to vector<28x5x256xf32>
    %c0 = arith.constant 0 : index
    %c0_0 = arith.constant 0 : index
    %c0_1 = arith.constant 0 : index
    %1 = vector.load %arg8[%c0, %c0_0, %c0_1] : memref<28x5x256xf32, #tpu.memory_space<vmem>>, vector<28x5x256xf32>
    tpu.vector_store %arg8[%c0, %c0_0, %c0_1], %0 {strides = array<i32>} : memref<28x5x256xf32, #tpu.memory_space<vmem>>, vector<28x5x256xf32>,
    %cst_2 = arith.constant 0.000000e+00 : f32
    %2 = vector.broadcast %cst_2 : f32 to vector<16x3x256xf32>
    %c0_3 = arith.constant 0 : index
    %c0_4 = arith.constant 0 : index
    %c0_5 = arith.constant 0 : index
    %3 = vector.load %arg9[%c0_3, %c0_4, %c0_5] : memref<16x3x256xf32, #tpu.memory_space<vmem>>, vector<16x3x256xf32>
    tpu.vector_store %arg9[%c0_3, %c0_4, %c0_5], %2 {strides = array<i32>} : memref<16x3x256xf32, #tpu.memory_space<vmem>>, vector<16x3x256xf32>,
    %c0_6 = arith.constant 0 : index
    %c0_7 = arith.constant 0 : index
    %c0_8 = arith.constant 0 : index
    %4 = vector.load %arg0[%c0_6, %c0_7, %c0_8] : memref<52x9x4xf32, #tpu.memory_space<vmem>>, vector<1x8x4xf32>
    %5 = vector.shape_cast %4 : vector<1x8x4xf32> to vector<8x4xf32>
    %c0_9 = arith.constant 0 : index
    %c1 = arith.constant 1 : index
    %c0_10 = arith.constant 0 : index
    %6 = vector.load %arg0[%c0_9, %c1, %c0_10] : memref<52x9x4xf32, #tpu.memory_space<vmem>>, vector<1x8x2xf32>
    %7 = vector.shape_cast %6 : vector<1x8x2xf32> to vector<8x2xf32>
    %c1_11 = arith.constant 1 : index
    %c0_12 = arith.constant 0 : index
    %c0_13 = arith.constant 0 : index
    %8 = vector.load %arg0[%c1_11, %c0_12, %c0_13] : memref<52x9x4xf32, #tpu.memory_space<vmem>>, vector<1x8x4xf32>
    %9 = vector.shape_cast %8 : vector<1x8x4xf32> to vector<8x4xf32>
    %c1_14 = arith.constant 1 : index
    %c1_15 = arith.constant 1 : index
    %c0_16 = arith.constant 0 : index
    %10 = vector.load %arg0[%c1_14, %c1_15, %c0_16] : memref<52x9x4xf32, #tpu.memory_space<vmem>>, vector<1x8x2xf32>
    %11 = vector.shape_cast %10 : vector<1x8x2xf32> to vector<8x2xf32>
    %c2 = arith.constant 2 : index
    %c0_17 = arith.constant 0 : index
    %c0_18 = arith.constant 0 : index
    %12 = vector.load %arg0[%c2, %c0_17, %c0_18] : memref<52x9x4xf32, #tpu.memory_space<vmem>>, vector<1x8x4xf32>
    %13 = vector.shape_cast %12 : vector<1x8x4xf32> to vector<8x4xf32>
    %c2_19 = arith.constant 2 : index
    %c1_20 = arith.constant 1 : index
    %c0_21 = arith.constant 0 : index
    %14 = vector.load %arg0[%c2_19, %c1_20, %c0_21] : memref<52x9x4xf32, #tpu.memory_space<vmem>>, vector<1x8x2xf32>
    %15 = vector.shape_cast %14 : vector<1x8x2xf32> to vector<8x2xf32>
    %16 = tpu.concatenate %5, %7, %9, %11, %13, %15 in 1 : vector<8x4xf32>, vector<8x2xf32>, vector<8x4xf32>, vector<8x2xf32>, vector<8x4xf32>, vector<8x2xf32> -> vector<8x18xf32>
    %c0_22 = arith.constant 0 : index
    %c0_23 = arith.constant 0 : index
    %17 = vector.load %arg10[%c0_22, %c0_23] : memref<192x18xf32, #tpu.memory_space<vmem>>, vector<8x18xf32>
    tpu.vector_store %arg10[%c0_22, %c0_23], %16 {strides = array<i32>} : memref<192x18xf32, #tpu.memory_space<vmem>>, vector<8x18xf32>,
    %c2_24 = arith.constant 2 : index
    %c0_25 = arith.constant 0 : index
    %c0_26 = arith.constant 0 : index
    %18 = vector.load %arg0[%c2_24, %c0_25, %c0_26] : memref<52x9x4xf32, #tpu.memory_space<vmem>>, vector<1x8x4xf32>
    %19 = vector.shape_cast %18 : vector<1x8x4xf32> to vector<8x4xf32>
    %c2_27 = arith.constant 2 : index
    %c1_28 = arith.constant 1 : index
    %c0_29 = arith.constant 0 : index
    %20 = vector.load %arg0[%c2_27, %c1_28, %c0_29] : memref<52x9x4xf32, #tpu.memory_space<vmem>>, vector<1x8x2xf32>
    %21 = vector.shape_cast %20 : vector<1x8x2xf32> to vector<8x2xf32>
    %c3 = arith.constant 3 : index
    %c0_30 = arith.constant 0 : index
    %c0_31 = arith.constant 0 : index
    %22 = vector.load %arg0[%c3, %c0_30, %c0_31] : memref<52x9x4xf32, #tpu.memory_space<vmem>>, vector<1x8x4xf32>
    %23 = vector.shape_cast %22 : vector<1x8x4xf32> to vector<8x4xf32>
    %c3_32 = arith.constant 3 : index
    %c1_33 = arith.constant 1 : index
    %c0_34 = arith.constant 0 : index
    %24 = vector.load %arg0[%c3_32, %c1_33, %c0_34] : memref<52x9x4xf32, #tpu.memory_space<vmem>>, vector<1x8x2xf32>
    %25 = vector.shape_cast %24 : vector<1x8x2xf32> to vector<8x2xf32>
    %c4 = arith.constant 4 : index
    %c0_35 = arith.constant 0 : index
    %c0_36 = arith.constant 0 : index
    %26 = vector.load %arg0[%c4, %c0_35, %c0_36] : memref<52x9x4xf32, #tpu.memory_space<vmem>>, vector<1x8x4xf32>
    %27 = vector.shape_cast %26 : vector<1x8x4xf32> to vector<8x4xf32>
    %c4_37 = arith.constant 4 : index
    %c1_38 = arith.constant 1 : index
    %c0_39 = arith.constant 0 : index
    %28 = vector.load %arg0[%c4_37, %c1_38, %c0_39] : memref<52x9x4xf32, #tpu.memory_space<vmem>>, vector<1x8x2xf32>
    %29 = vector.shape_cast %28 : vector<1x8x2xf32> to vector<8x2xf32>
    %30 = tpu.concatenate %19, %21, %23, %25, %27, %29 in 1 : vector<8x4xf32>, vector<8x2xf32>, vector<8x4xf32>, vector<8x2xf32>, vector<8x4xf32>, vector<8x2xf32> -> vector<8x18xf32>
    %c8 = arith.constant 8 : index
    %c0_40 = arith.constant 0 : index
    %31 = vector.load %arg10[%c8, %c0_40] : memref<192x18xf32, #tpu.memory_space<vmem>>, vector<8x18xf32>
    tpu.vector_store %arg10[%c8, %c0_40], %30 {strides = array<i32>} : memref<192x18xf32, #tpu.memory_space<vmem>>, vector<8x18xf32>,
    %c4_41 = arith.constant 4 : index
    %c0_42 = arith.constant 0 : index
    %c0_43 = arith.constant 0 : index
    %32 = vector.load %arg0[%c4_41, %c0_42, %c0_43] : memref<52x9x4xf32, #tpu.memory_space<vmem>>, vector<1x8x4xf32>
    %33 = vector.shape_cast %32 : vector<1x8x4xf32> to vector<8x4xf32>
    %c4_44 = arith.constant 4 : index
    %c1_45 = arith.constant 1 : index
    %c0_46 = arith.constant 0 : index
    %34 = vector.load %arg0[%c4_44, %c1_45, %c0_46] : memref<52x9x4xf32, #tpu.memory_space<vmem>>, vector<1x8x2xf32>
    %35 = vector.shape_cast %34 : vector<1x8x2xf32> to vector<8x2xf32>
    %c5 = arith.constant 5 : index
    %c0_47 = arith.constant 0 : index
    %c0_48 = arith.constant 0 : index
    %36 = vector.load %arg0[%c5, %c0_47, %c0_48] : memref<52x9x4xf32, #tpu.memory_space<vmem>>, vector<1x8x4xf32>
    %37 = vector.shape_cast %36 : vector<1x8x4xf32> to vector<8x4xf32>
    %c5_49 = arith.constant 5 : index
    %c1_50 = arith.constant 1 : index
    %c0_51 = arith.constant 0 : index
    %38 = vector.load %arg0[%c5_49, %c1_50, %c0_51] : memref<52x9x4xf32, #tpu.memory_space<vmem>>, vector<1x8x2xf32>
    %39 = vector.shape_cast %38 : vector<1x8x2xf32> to vector<8x2xf32>
    %c6 = arith.constant 6 : index
    %c0_52 = arith.constant 0 : index
    %c0_53 = arith.constant 0 : index
    %40 = vector.load %arg0[%c6, %c0_52, %c0_53] : memref<52x9x4xf32, #tpu.memory_space<vmem>>, vector<1x8x4xf32>
    %41 = vector.shape_cast %40 : vector<1x8x4xf32> to vector<8x4xf32>
    %c6_54 = arith.constant 6 : index
    %c1_55 = arith.constant 1 : index
    %c0_56 = arith.constant 0 : index
    %42 = vector.load %arg0[%c6_54, %c1_55, %c0_56] : memref<52x9x4xf32, #tpu.memory_space<vmem>>, vector<1x8x2xf32>
    %43 = vector.shape_cast %42 : vector<1x8x2xf32> to vector<8x2xf32>
    %44 = tpu.concatenate %33, %35, %37, %39, %41, %43 in 1 : vector<8x4xf32>, vector<8x2xf32>, vector<8x4xf32>, vector<8x2xf32>, vector<8x4xf32>, vector<8x2xf32> -> vector<8x18xf32>
    %c16 = arith.constant 16 : index
    %c0_57 = arith.constant 0 : index
    %45 = vector.load %arg10[%c16, %c0_57] : memref<192x18xf32, #tpu.memory_space<vmem>>, vector<8x18xf32>
    tpu.vector_store %arg10[%c16, %c0_57], %44 {strides = array<i32>} : memref<192x18xf32, #tpu.memory_space<vmem>>, vector<8x18xf32>,
    %c6_58 = arith.constant 6 : index
    %c0_59 = arith.constant 0 : index
    %c0_60 = arith.constant 0 : index
    %46 = vector.load %arg0[%c6_58, %c0_59, %c0_60] : memref<52x9x4xf32, #tpu.memory_space<vmem>>, vector<1x8x4xf32>
    %47 = vector.shape_cast %46 : vector<1x8x4xf32> to vector<8x4xf32>
    %c6_61 = arith.constant 6 : index
    %c1_62 = arith.constant 1 : index
    %c0_63 = arith.constant 0 : index
    %48 = vector.load %arg0[%c6_61, %c1_62, %c0_63] : memref<52x9x4xf32, #tpu.memory_space<vmem>>, vector<1x8x2xf32>
    %49 = vector.shape_cast %48 : vector<1x8x2xf32> to vector<8x2xf32>
    %c7 = arith.constant 7 : index
    %c0_64 = arith.constant 0 : index
    %c0_65 = arith.constant 0 : index
    %50 = vector.load %arg0[%c7, %c0_64, %c0_65] : memref<52x9x4xf32, #tpu.memory_space<vmem>>, vector<1x8x4xf32>
    %51 = vector.shape_cast %50 : vector<1x8x4xf32> to vector<8x4xf32>
    %c7_66 = arith.constant 7 : index
    %c1_67 = arith.constant 1 : index
    %c0_68 = arith.constant 0 : index
    %52 = vector.load %arg0[%c7_66, %c1_67, %c0_68] : memref<52x9x4xf32, #tpu.memory_space<vmem>>, vector<1x8x2xf32>
    %53 = vector.shape_cast %52 : vector<1x8x2xf32> to vector<8x2xf32>
    %c8_69 = arith.constant 8 : index
    %c0_70 = arith.constant 0 : index
    %c0_71 = arith.constant 0 : index
    %54 = vector.load %arg0[%c8_69, %c0_70, %c0_71] : memref<52x9x4xf32, #tpu.memory_space<vmem>>, vector<1x8x4xf32>
    %55 = vector.shape_cast %54 : vector<1x8x4xf32> to vector<8x4xf32>
    %c8_72 = arith.constant 8 : index
    %c1_73 = arith.constant 1 : index
    %c0_74 = arith.constant 0 : index
    %56 = vector.load %arg0[%c8_72, %c1_73, %c0_74] : memref<52x9x4xf32, #tpu.memory_space<vmem>>, vector<1x8x2xf32>
    %57 = vector.shape_cast %56 : vector<1x8x2xf32> to vector<8x2xf32>
    %58 = tpu.concatenate %47, %49, %51, %53, %55, %57 in 1 : vector<8x4xf32>, vector<8x2xf32>, vector<8x4xf32>, vector<8x2xf32>, vector<8x4xf32>, vector<8x2xf32> -> vector<8x18xf32>
    %c24 = arith.constant 24 : index
    %c0_75 = arith.constant 0 : index
    %59 = vector.load %arg10[%c24, %c0_75] : memref<192x18xf32, #tpu.memory_space<vmem>>, vector<8x18xf32>
    tpu.vector_store %arg10[%c24, %c0_75], %58 {strides = array<i32>} : memref<192x18xf32, #tpu.memory_space<vmem>>, vector<8x18xf32>,
    %c8_76 = arith.constant 8 : index
    %c0_77 = arith.constant 0 : index
    %c0_78 = arith.constant 0 : index
    %60 = vector.load %arg0[%c8_76, %c0_77, %c0_78] : memref<52x9x4xf32, #tpu.memory_space<vmem>>, vector<1x8x4xf32>
    %61 = vector.shape_cast %60 : vector<1x8x4xf32> to vector<8x4xf32>
    %c8_79 = arith.constant 8 : index
    %c1_80 = arith.constant 1 : index
    %c0_81 = arith.constant 0 : index
    %62 = vector.load %arg0[%c8_79, %c1_80, %c0_81] : memref<52x9x4xf32, #tpu.memory_space<vmem>>, vector<1x8x2xf32>
    %63 = vector.shape_cast %62 : vector<1x8x2xf32> to vector<8x2xf32>
    %c9 = arith.constant 9 : index
    %c0_82 = arith.constant 0 : index
    %c0_83 = arith.constant 0 : index
    %64 = vector.load %arg0[%c9, %c0_82, %c0_83] : memref<52x9x4xf32, #tpu.memory_space<vmem>>, vector<1x8x4xf32>
    %65 = vector.shape_cast %64 : vector<1x8x4xf32> to vector<8x4xf32>
    %c9_84 = arith.constant 9 : index
    %c1_85 = arith.constant 1 : index
    %c0_86 = arith.constant 0 : index
    %66 = vector.load %arg0[%c9_84, %c1_85, %c0_86] : memref<52x9x4xf32, #tpu.memory_space<vmem>>, vector<1x8x2xf32>
    %67 = vector.shape_cast %66 : vector<1x8x2xf32> to vector<8x2xf32>
    %c10 = arith.constant 10 : index
    %c0_87 = arith.constant 0 : index
    %c0_88 = arith.constant 0 : index
    %68 = vector.load %arg0[%c10, %c0_87, %c0_88] : memref<52x9x4xf32, #tpu.memory_space<vmem>>, vector<1x8x4xf32>
    %69 = vector.shape_cast %68 : vector<1x8x4xf32> to vector<8x4xf32>
    %c10_89 = arith.constant 10 : index
    %c1_90 = arith.constant 1 : index
    %c0_91 = arith.constant 0 : index
    %70 = vector.load %arg0[%c10_89, %c1_90, %c0_91] : memref<52x9x4xf32, #tpu.memory_space<vmem>>, vector<1x8x2xf32>
    %71 = vector.shape_cast %70 : vector<1x8x2xf32> to vector<8x2xf32>
    %72 = tpu.concatenate %61, %63, %65, %67, %69, %71 in 1 : vector<8x4xf32>, vector<8x2xf32>, vector<8x4xf32>, vector<8x2xf32>, vector<8x4xf32>, vector<8x2xf32> -> vector<8x18xf32>
    %c32 = arith.constant 32 : index
    %c0_92 = arith.constant 0 : index
    %73 = vector.load %arg10[%c32, %c0_92] : memref<192x18xf32, #tpu.memory_space<vmem>>, vector<8x18xf32>
    tpu.vector_store %arg10[%c32, %c0_92], %72 {strides = array<i32>} : memref<192x18xf32, #tpu.memory_space<vmem>>, vector<8x18xf32>,
    %c10_93 = arith.constant 10 : index
    %c0_94 = arith.constant 0 : index
    %c0_95 = arith.constant 0 : index
    %74 = vector.load %arg0[%c10_93, %c0_94, %c0_95] : memref<52x9x4xf32, #tpu.memory_space<vmem>>, vector<1x8x4xf32>
    %75 = vector.shape_cast %74 : vector<1x8x4xf32> to vector<8x4xf32>
    %c10_96 = arith.constant 10 : index
    %c1_97 = arith.constant 1 : index
    %c0_98 = arith.constant 0 : index
    %76 = vector.load %arg0[%c10_96, %c1_97, %c0_98] : memref<52x9x4xf32, #tpu.memory_space<vmem>>, vector<1x8x2xf32>
    %77 = vector.shape_cast %76 : vector<1x8x2xf32> to vector<8x2xf32>
    %c11 = arith.constant 11 : index
    %c0_99 = arith.constant 0 : index
    %c0_100 = arith.constant 0 : index
    %78 = vector.load %arg0[%c11, %c0_99, %c0_100] : memref<52x9x4xf32, #tpu.memory_space<vmem>>, vector<1x8x4xf32>
    %79 = vector.shape_cast %78 : vector<1x8x4xf32> to vector<8x4xf32>
    %c11_101 = arith.constant 11 : index
    %c1_102 = arith.constant 1 : index
    %c0_103 = arith.constant 0 : index
    %80 = vector.load %arg0[%c11_101, %c1_102, %c0_103] : memref<52x9x4xf32, #tpu.memory_space<vmem>>, vector<1x8x2xf32>
    %81 = vector.shape_cast %80 : vector<1x8x2xf32> to vector<8x2xf32>
    %c12 = arith.constant 12 : index
    %c0_104 = arith.constant 0 : index
    %c0_105 = arith.constant 0 : index
    %82 = vector.load %arg0[%c12, %c0_104, %c0_105] : memref<52x9x4xf32, #tpu.memory_space<vmem>>, vector<1x8x4xf32>
    %83 = vector.shape_cast %82 : vector<1x8x4xf32> to vector<8x4xf32>
    %c12_106 = arith.constant 12 : index
    %c1_107 = arith.constant 1 : index
    %c0_108 = arith.constant 0 : index
    %84 = vector.load %arg0[%c12_106, %c1_107, %c0_108] : memref<52x9x4xf32, #tpu.memory_space<vmem>>, vector<1x8x2xf32>
    %85 = vector.shape_cast %84 : vector<1x8x2xf32> to vector<8x2xf32>
    %86 = tpu.concatenate %75, %77, %79, %81, %83, %85 in 1 : vector<8x4xf32>, vector<8x2xf32>, vector<8x4xf32>, vector<8x2xf32>, vector<8x4xf32>, vector<8x2xf32> -> vector<8x18xf32>
    %c40 = arith.constant 40 : index
    %c0_109 = arith.constant 0 : index
    %87 = vector.load %arg10[%c40, %c0_109] : memref<192x18xf32, #tpu.memory_space<vmem>>, vector<8x18xf32>
    tpu.vector_store %arg10[%c40, %c0_109], %86 {strides = array<i32>} : memref<192x18xf32, #tpu.memory_space<vmem>>, vector<8x18xf32>,
    %c12_110 = arith.constant 12 : index
    %c0_111 = arith.constant 0 : index
    %c0_112 = arith.constant 0 : index
    %88 = vector.load %arg0[%c12_110, %c0_111, %c0_112] : memref<52x9x4xf32, #tpu.memory_space<vmem>>, vector<1x8x4xf32>
    %89 = vector.shape_cast %88 : vector<1x8x4xf32> to vector<8x4xf32>
    %c12_113 = arith.constant 12 : index
    %c1_114 = arith.constant 1 : index
    %c0_115 = arith.constant 0 : index
    %90 = vector.load %arg0[%c12_113, %c1_114, %c0_115] : memref<52x9x4xf32, #tpu.memory_space<vmem>>, vector<1x8x2xf32>
    %91 = vector.shape_cast %90 : vector<1x8x2xf32> to vector<8x2xf32>
    %c13 = arith.constant 13 : index
    %c0_116 = arith.constant 0 : index
    %c0_117 = arith.constant 0 : index
    %92 = vector.load %arg0[%c13, %c0_116, %c0_117] : memref<52x9x4xf32, #tpu.memory_space<vmem>>, vector<1x8x4xf32>
    %93 = vector.shape_cast %92 : vector<1x8x4xf32> to vector<8x4xf32>
    %c13_118 = arith.constant 13 : index
    %c1_119 = arith.constant 1 : index
    %c0_120 = arith.constant 0 : index
    %94 = vector.load %arg0[%c13_118, %c1_119, %c0_120] : memref<52x9x4xf32, #tpu.memory_space<vmem>>, vector<1x8x2xf32>
    %95 = vector.shape_cast %94 : vector<1x8x2xf32> to vector<8x2xf32>
    %c14 = arith.constant 14 : index
    %c0_121 = arith.constant 0 : index
    %c0_122 = arith.constant 0 : index
    %96 = vector.load %arg0[%c14, %c0_121, %c0_122] : memref<52x9x4xf32, #tpu.memory_space<vmem>>, vector<1x8x4xf32>
    %97 = vector.shape_cast %96 : vector<1x8x4xf32> to vector<8x4xf32>
    %c14_123 = arith.constant 14 : index
    %c1_124 = arith.constant 1 : index
    %c0_125 = arith.constant 0 : index
    %98 = vector.load %arg0[%c14_123, %c1_124, %c0_125] : memref<52x9x4xf32, #tpu.memory_space<vmem>>, vector<1x8x2xf32>
    %99 = vector.shape_cast %98 : vector<1x8x2xf32> to vector<8x2xf32>
    %100 = tpu.concatenate %89, %91, %93, %95, %97, %99 in 1 : vector<8x4xf32>, vector<8x2xf32>, vector<8x4xf32>, vector<8x2xf32>, vector<8x4xf32>, vector<8x2xf32> -> vector<8x18xf32>
    %c48 = arith.constant 48 : index
    %c0_126 = arith.constant 0 : index
    %101 = vector.load %arg10[%c48, %c0_126] : memref<192x18xf32, #tpu.memory_space<vmem>>, vector<8x18xf32>
    tpu.vector_store %arg10[%c48, %c0_126], %100 {strides = array<i32>} : memref<192x18xf32, #tpu.memory_space<vmem>>, vector<8x18xf32>,
    %c14_127 = arith.constant 14 : index
    %c0_128 = arith.constant 0 : index
    %c0_129 = arith.constant 0 : index
    %102 = vector.load %arg0[%c14_127, %c0_128, %c0_129] : memref<52x9x4xf32, #tpu.memory_space<vmem>>, vector<1x8x4xf32>
    %103 = vector.shape_cast %102 : vector<1x8x4xf32> to vector<8x4xf32>
    %c14_130 = arith.constant 14 : index
    %c1_131 = arith.constant 1 : index
    %c0_132 = arith.constant 0 : index
    %104 = vector.load %arg0[%c14_130, %c1_131, %c0_132] : memref<52x9x4xf32, #tpu.memory_space<vmem>>, vector<1x8x2xf32>
    %105 = vector.shape_cast %104 : vector<1x8x2xf32> to vector<8x2xf32>
    %c15 = arith.constant 15 : index
    %c0_133 = arith.constant 0 : index
    %c0_134 = arith.constant 0 : index
    %106 = vector.load %arg0[%c15, %c0_133, %c0_134] : memref<52x9x4xf32, #tpu.memory_space<vmem>>, vector<1x8x4xf32>
    %107 = vector.shape_cast %106 : vector<1x8x4xf32> to vector<8x4xf32>
    %c15_135 = arith.constant 15 : index
    %c1_136 = arith.constant 1 : index
    %c0_137 = arith.constant 0 : index
    %108 = vector.load %arg0[%c15_135, %c1_136, %c0_137] : memref<52x9x4xf32, #tpu.memory_space<vmem>>, vector<1x8x2xf32>
    %109 = vector.shape_cast %108 : vector<1x8x2xf32> to vector<8x2xf32>
    %c16_138 = arith.constant 16 : index
    %c0_139 = arith.constant 0 : index
    %c0_140 = arith.constant 0 : index
    %110 = vector.load %arg0[%c16_138, %c0_139, %c0_140] : memref<52x9x4xf32, #tpu.memory_space<vmem>>, vector<1x8x4xf32>
    %111 = vector.shape_cast %110 : vector<1x8x4xf32> to vector<8x4xf32>
    %c16_141 = arith.constant 16 : index
    %c1_142 = arith.constant 1 : index
    %c0_143 = arith.constant 0 : index
    %112 = vector.load %arg0[%c16_141, %c1_142, %c0_143] : memref<52x9x4xf32, #tpu.memory_space<vmem>>, vector<1x8x2xf32>
    %113 = vector.shape_cast %112 : vector<1x8x2xf32> to vector<8x2xf32>
    %114 = tpu.concatenate %103, %105, %107, %109, %111, %113 in 1 : vector<8x4xf32>, vector<8x2xf32>, vector<8x4xf32>, vector<8x2xf32>, vector<8x4xf32>, vector<8x2xf32> -> vector<8x18xf32>
    %c56 = arith.constant 56 : index
    %c0_144 = arith.constant 0 : index
    %115 = vector.load %arg10[%c56, %c0_144] : memref<192x18xf32, #tpu.memory_space<vmem>>, vector<8x18xf32>
    tpu.vector_store %arg10[%c56, %c0_144], %114 {strides = array<i32>} : memref<192x18xf32, #tpu.memory_space<vmem>>, vector<8x18xf32>,
    %c16_145 = arith.constant 16 : index
    %c0_146 = arith.constant 0 : index
    %c0_147 = arith.constant 0 : index
    %116 = vector.load %arg0[%c16_145, %c0_146, %c0_147] : memref<52x9x4xf32, #tpu.memory_space<vmem>>, vector<1x8x4xf32>
    %117 = vector.shape_cast %116 : vector<1x8x4xf32> to vector<8x4xf32>
    %c16_148 = arith.constant 16 : index
    %c1_149 = arith.constant 1 : index
    %c0_150 = arith.constant 0 : index
    %118 = vector.load %arg0[%c16_148, %c1_149, %c0_150] : memref<52x9x4xf32, #tpu.memory_space<vmem>>, vector<1x8x2xf32>
    %119 = vector.shape_cast %118 : vector<1x8x2xf32> to vector<8x2xf32>
    %c17 = arith.constant 17 : index
    %c0_151 = arith.constant 0 : index
    %c0_152 = arith.constant 0 : index
    %120 = vector.load %arg0[%c17, %c0_151, %c0_152] : memref<52x9x4xf32, #tpu.memory_space<vmem>>, vector<1x8x4xf32>
    %121 = vector.shape_cast %120 : vector<1x8x4xf32> to vector<8x4xf32>
    %c17_153 = arith.constant 17 : index
    %c1_154 = arith.constant 1 : index
    %c0_155 = arith.constant 0 : index
    %122 = vector.load %arg0[%c17_153, %c1_154, %c0_155] : memref<52x9x4xf32, #tpu.memory_space<vmem>>, vector<1x8x2xf32>
    %123 = vector.shape_cast %122 : vector<1x8x2xf32> to vector<8x2xf32>
    %c18 = arith.constant 18 : index
    %c0_156 = arith.constant 0 : index
    %c0_157 = arith.constant 0 : index
    %124 = vector.load %arg0[%c18, %c0_156, %c0_157] : memref<52x9x4xf32, #tpu.memory_space<vmem>>, vector<1x8x4xf32>
    %125 = vector.shape_cast %124 : vector<1x8x4xf32> to vector<8x4xf32>
    %c18_158 = arith.constant 18 : index
    %c1_159 = arith.constant 1 : index
    %c0_160 = arith.constant 0 : index
    %126 = vector.load %arg0[%c18_158, %c1_159, %c0_160] : memref<52x9x4xf32, #tpu.memory_space<vmem>>, vector<1x8x2xf32>
    %127 = vector.shape_cast %126 : vector<1x8x2xf32> to vector<8x2xf32>
    %128 = tpu.concatenate %117, %119, %121, %123, %125, %127 in 1 : vector<8x4xf32>, vector<8x2xf32>, vector<8x4xf32>, vector<8x2xf32>, vector<8x4xf32>, vector<8x2xf32> -> vector<8x18xf32>
    %c64 = arith.constant 64 : index
    %c0_161 = arith.constant 0 : index
    %129 = vector.load %arg10[%c64, %c0_161] : memref<192x18xf32, #tpu.memory_space<vmem>>, vector<8x18xf32>
    tpu.vector_store %arg10[%c64, %c0_161], %128 {strides = array<i32>} : memref<192x18xf32, #tpu.memory_space<vmem>>, vector<8x18xf32>,
    %c18_162 = arith.constant 18 : index
    %c0_163 = arith.constant 0 : index
    %c0_164 = arith.constant 0 : index
    %130 = vector.load %arg0[%c18_162, %c0_163, %c0_164] : memref<52x9x4xf32, #tpu.memory_space<vmem>>, vector<1x8x4xf32>
    %131 = vector.shape_cast %130 : vector<1x8x4xf32> to vector<8x4xf32>
    %c18_165 = arith.constant 18 : index
    %c1_166 = arith.constant 1 : index
    %c0_167 = arith.constant 0 : index
    %132 = vector.load %arg0[%c18_165, %c1_166, %c0_167] : memref<52x9x4xf32, #tpu.memory_space<vmem>>, vector<1x8x2xf32>
    %133 = vector.shape_cast %132 : vector<1x8x2xf32> to vector<8x2xf32>
    %c19 = arith.constant 19 : index
    %c0_168 = arith.constant 0 : index
    %c0_169 = arith.constant 0 : index
    %134 = vector.load %arg0[%c19, %c0_168, %c0_169] : memref<52x9x4xf32, #tpu.memory_space<vmem>>, vector<1x8x4xf32>
    %135 = vector.shape_cast %134 : vector<1x8x4xf32> to vector<8x4xf32>
    %c19_170 = arith.constant 19 : index
    %c1_171 = arith.constant 1 : index
    %c0_172 = arith.constant 0 : index
    %136 = vector.load %arg0[%c19_170, %c1_171, %c0_172] : memref<52x9x4xf32, #tpu.memory_space<vmem>>, vector<1x8x2xf32>
    %137 = vector.shape_cast %136 : vector<1x8x2xf32> to vector<8x2xf32>
    %c20 = arith.constant 20 : index
    %c0_173 = arith.constant 0 : index
    %c0_174 = arith.constant 0 : index
    %138 = vector.load %arg0[%c20, %c0_173, %c0_174] : memref<52x9x4xf32, #tpu.memory_space<vmem>>, vector<1x8x4xf32>
    %139 = vector.shape_cast %138 : vector<1x8x4xf32> to vector<8x4xf32>
    %c20_175 = arith.constant 20 : index
    %c1_176 = arith.constant 1 : index
    %c0_177 = arith.constant 0 : index
    %140 = vector.load %arg0[%c20_175, %c1_176, %c0_177] : memref<52x9x4xf32, #tpu.memory_space<vmem>>, vector<1x8x2xf32>
    %141 = vector.shape_cast %140 : vector<1x8x2xf32> to vector<8x2xf32>
    %142 = tpu.concatenate %131, %133, %135, %137, %139, %141 in 1 : vector<8x4xf32>, vector<8x2xf32>, vector<8x4xf32>, vector<8x2xf32>, vector<8x4xf32>, vector<8x2xf32> -> vector<8x18xf32>
    %c72 = arith.constant 72 : index
    %c0_178 = arith.constant 0 : index
    %143 = vector.load %arg10[%c72, %c0_178] : memref<192x18xf32, #tpu.memory_space<vmem>>, vector<8x18xf32>
    tpu.vector_store %arg10[%c72, %c0_178], %142 {strides = array<i32>} : memref<192x18xf32, #tpu.memory_space<vmem>>, vector<8x18xf32>,
    %c20_179 = arith.constant 20 : index
    %c0_180 = arith.constant 0 : index
    %c0_181 = arith.constant 0 : index
    %144 = vector.load %arg0[%c20_179, %c0_180, %c0_181] : memref<52x9x4xf32, #tpu.memory_space<vmem>>, vector<1x8x4xf32>
    %145 = vector.shape_cast %144 : vector<1x8x4xf32> to vector<8x4xf32>
    %c20_182 = arith.constant 20 : index
    %c1_183 = arith.constant 1 : index
    %c0_184 = arith.constant 0 : index
    %146 = vector.load %arg0[%c20_182, %c1_183, %c0_184] : memref<52x9x4xf32, #tpu.memory_space<vmem>>, vector<1x8x2xf32>
    %147 = vector.shape_cast %146 : vector<1x8x2xf32> to vector<8x2xf32>
    %c21 = arith.constant 21 : index
    %c0_185 = arith.constant 0 : index
    %c0_186 = arith.constant 0 : index
    %148 = vector.load %arg0[%c21, %c0_185, %c0_186] : memref<52x9x4xf32, #tpu.memory_space<vmem>>, vector<1x8x4xf32>
    %149 = vector.shape_cast %148 : vector<1x8x4xf32> to vector<8x4xf32>
    %c21_187 = arith.constant 21 : index
    %c1_188 = arith.constant 1 : index
    %c0_189 = arith.constant 0 : index
    %150 = vector.load %arg0[%c21_187, %c1_188, %c0_189] : memref<52x9x4xf32, #tpu.memory_space<vmem>>, vector<1x8x2xf32>
    %151 = vector.shape_cast %150 : vector<1x8x2xf32> to vector<8x2xf32>
    %c22 = arith.constant 22 : index
    %c0_190 = arith.constant 0 : index
    %c0_191 = arith.constant 0 : index
    %152 = vector.load %arg0[%c22, %c0_190, %c0_191] : memref<52x9x4xf32, #tpu.memory_space<vmem>>, vector<1x8x4xf32>
    %153 = vector.shape_cast %152 : vector<1x8x4xf32> to vector<8x4xf32>
    %c22_192 = arith.constant 22 : index
    %c1_193 = arith.constant 1 : index
    %c0_194 = arith.constant 0 : index
    %154 = vector.load %arg0[%c22_192, %c1_193, %c0_194] : memref<52x9x4xf32, #tpu.memory_space<vmem>>, vector<1x8x2xf32>
    %155 = vector.shape_cast %154 : vector<1x8x2xf32> to vector<8x2xf32>
    %156 = tpu.concatenate %145, %147, %149, %151, %153, %155 in 1 : vector<8x4xf32>, vector<8x2xf32>, vector<8x4xf32>, vector<8x2xf32>, vector<8x4xf32>, vector<8x2xf32> -> vector<8x18xf32>
    %c80 = arith.constant 80 : index
    %c0_195 = arith.constant 0 : index
    %157 = vector.load %arg10[%c80, %c0_195] : memref<192x18xf32, #tpu.memory_space<vmem>>, vector<8x18xf32>
    tpu.vector_store %arg10[%c80, %c0_195], %156 {strides = array<i32>} : memref<192x18xf32, #tpu.memory_space<vmem>>, vector<8x18xf32>,
    %c22_196 = arith.constant 22 : index
    %c0_197 = arith.constant 0 : index
    %c0_198 = arith.constant 0 : index
    %158 = vector.load %arg0[%c22_196, %c0_197, %c0_198] : memref<52x9x4xf32, #tpu.memory_space<vmem>>, vector<1x8x4xf32>
    %159 = vector.shape_cast %158 : vector<1x8x4xf32> to vector<8x4xf32>
    %c22_199 = arith.constant 22 : index
    %c1_200 = arith.constant 1 : index
    %c0_201 = arith.constant 0 : index
    %160 = vector.load %arg0[%c22_199, %c1_200, %c0_201] : memref<52x9x4xf32, #tpu.memory_space<vmem>>, vector<1x8x2xf32>
    %161 = vector.shape_cast %160 : vector<1x8x2xf32> to vector<8x2xf32>
    %c23 = arith.constant 23 : index
    %c0_202 = arith.constant 0 : index
    %c0_203 = arith.constant 0 : index
    %162 = vector.load %arg0[%c23, %c0_202, %c0_203] : memref<52x9x4xf32, #tpu.memory_space<vmem>>, vector<1x8x4xf32>
    %163 = vector.shape_cast %162 : vector<1x8x4xf32> to vector<8x4xf32>
    %c23_204 = arith.constant 23 : index
    %c1_205 = arith.constant 1 : index
    %c0_206 = arith.constant 0 : index
    %164 = vector.load %arg0[%c23_204, %c1_205, %c0_206] : memref<52x9x4xf32, #tpu.memory_space<vmem>>, vector<1x8x2xf32>
    %165 = vector.shape_cast %164 : vector<1x8x2xf32> to vector<8x2xf32>
    %c24_207 = arith.constant 24 : index
    %c0_208 = arith.constant 0 : index
    %c0_209 = arith.constant 0 : index
    %166 = vector.load %arg0[%c24_207, %c0_208, %c0_209] : memref<52x9x4xf32, #tpu.memory_space<vmem>>, vector<1x8x4xf32>
    %167 = vector.shape_cast %166 : vector<1x8x4xf32> to vector<8x4xf32>
    %c24_210 = arith.constant 24 : index
    %c1_211 = arith.constant 1 : index
    %c0_212 = arith.constant 0 : index
    %168 = vector.load %arg0[%c24_210, %c1_211, %c0_212] : memref<52x9x4xf32, #tpu.memory_space<vmem>>, vector<1x8x2xf32>
    %169 = vector.shape_cast %168 : vector<1x8x2xf32> to vector<8x2xf32>
    %170 = tpu.concatenate %159, %161, %163, %165, %167, %169 in 1 : vector<8x4xf32>, vector<8x2xf32>, vector<8x4xf32>, vector<8x2xf32>, vector<8x4xf32>, vector<8x2xf32> -> vector<8x18xf32>
    %c88 = arith.constant 88 : index
    %c0_213 = arith.constant 0 : index
    %171 = vector.load %arg10[%c88, %c0_213] : memref<192x18xf32, #tpu.memory_space<vmem>>, vector<8x18xf32>
    tpu.vector_store %arg10[%c88, %c0_213], %170 {strides = array<i32>} : memref<192x18xf32, #tpu.memory_space<vmem>>, vector<8x18xf32>,
    %c26 = arith.constant 26 : index
    %c0_214 = arith.constant 0 : index
    %c0_215 = arith.constant 0 : index
    %172 = vector.load %arg0[%c26, %c0_214, %c0_215] : memref<52x9x4xf32, #tpu.memory_space<vmem>>, vector<1x8x4xf32>
    %173 = vector.shape_cast %172 : vector<1x8x4xf32> to vector<8x4xf32>
    %c26_216 = arith.constant 26 : index
    %c1_217 = arith.constant 1 : index
    %c0_218 = arith.constant 0 : index
    %174 = vector.load %arg0[%c26_216, %c1_217, %c0_218] : memref<52x9x4xf32, #tpu.memory_space<vmem>>, vector<1x8x2xf32>
    %175 = vector.shape_cast %174 : vector<1x8x2xf32> to vector<8x2xf32>
    %c27 = arith.constant 27 : index
    %c0_219 = arith.constant 0 : index
    %c0_220 = arith.constant 0 : index
    %176 = vector.load %arg0[%c27, %c0_219, %c0_220] : memref<52x9x4xf32, #tpu.memory_space<vmem>>, vector<1x8x4xf32>
    %177 = vector.shape_cast %176 : vector<1x8x4xf32> to vector<8x4xf32>
    %c27_221 = arith.constant 27 : index
    %c1_222 = arith.constant 1 : index
    %c0_223 = arith.constant 0 : index
    %178 = vector.load %arg0[%c27_221, %c1_222, %c0_223] : memref<52x9x4xf32, #tpu.memory_space<vmem>>, vector<1x8x2xf32>
    %179 = vector.shape_cast %178 : vector<1x8x2xf32> to vector<8x2xf32>
    %c28 = arith.constant 28 : index
    %c0_224 = arith.constant 0 : index
    %c0_225 = arith.constant 0 : index
    %180 = vector.load %arg0[%c28, %c0_224, %c0_225] : memref<52x9x4xf32, #tpu.memory_space<vmem>>, vector<1x8x4xf32>
    %181 = vector.shape_cast %180 : vector<1x8x4xf32> to vector<8x4xf32>
    %c28_226 = arith.constant 28 : index
    %c1_227 = arith.constant 1 : index
    %c0_228 = arith.constant 0 : index
    %182 = vector.load %arg0[%c28_226, %c1_227, %c0_228] : memref<52x9x4xf32, #tpu.memory_space<vmem>>, vector<1x8x2xf32>
    %183 = vector.shape_cast %182 : vector<1x8x2xf32> to vector<8x2xf32>
    %184 = tpu.concatenate %173, %175, %177, %179, %181, %183 in 1 : vector<8x4xf32>, vector<8x2xf32>, vector<8x4xf32>, vector<8x2xf32>, vector<8x4xf32>, vector<8x2xf32> -> vector<8x18xf32>
    %c96 = arith.constant 96 : index
    %c0_229 = arith.constant 0 : index
    %185 = vector.load %arg10[%c96, %c0_229] : memref<192x18xf32, #tpu.memory_space<vmem>>, vector<8x18xf32>
    tpu.vector_store %arg10[%c96, %c0_229], %184 {strides = array<i32>} : memref<192x18xf32, #tpu.memory_space<vmem>>, vector<8x18xf32>,
    %c28_230 = arith.constant 28 : index
    %c0_231 = arith.constant 0 : index
    %c0_232 = arith.constant 0 : index
    %186 = vector.load %arg0[%c28_230, %c0_231, %c0_232] : memref<52x9x4xf32, #tpu.memory_space<vmem>>, vector<1x8x4xf32>
    %187 = vector.shape_cast %186 : vector<1x8x4xf32> to vector<8x4xf32>
    %c28_233 = arith.constant 28 : index
    %c1_234 = arith.constant 1 : index
    %c0_235 = arith.constant 0 : index
    %188 = vector.load %arg0[%c28_233, %c1_234, %c0_235] : memref<52x9x4xf32, #tpu.memory_space<vmem>>, vector<1x8x2xf32>
    %189 = vector.shape_cast %188 : vector<1x8x2xf32> to vector<8x2xf32>
    %c29 = arith.constant 29 : index
    %c0_236 = arith.constant 0 : index
    %c0_237 = arith.constant 0 : index
    %190 = vector.load %arg0[%c29, %c0_236, %c0_237] : memref<52x9x4xf32, #tpu.memory_space<vmem>>, vector<1x8x4xf32>
    %191 = vector.shape_cast %190 : vector<1x8x4xf32> to vector<8x4xf32>
    %c29_238 = arith.constant 29 : index
    %c1_239 = arith.constant 1 : index
    %c0_240 = arith.constant 0 : index
    %192 = vector.load %arg0[%c29_238, %c1_239, %c0_240] : memref<52x9x4xf32, #tpu.memory_space<vmem>>, vector<1x8x2xf32>
    %193 = vector.shape_cast %192 : vector<1x8x2xf32> to vector<8x2xf32>
    %c30 = arith.constant 30 : index
    %c0_241 = arith.constant 0 : index
    %c0_242 = arith.constant 0 : index
    %194 = vector.load %arg0[%c30, %c0_241, %c0_242] : memref<52x9x4xf32, #tpu.memory_space<vmem>>, vector<1x8x4xf32>
    %195 = vector.shape_cast %194 : vector<1x8x4xf32> to vector<8x4xf32>
    %c30_243 = arith.constant 30 : index
    %c1_244 = arith.constant 1 : index
    %c0_245 = arith.constant 0 : index
    %196 = vector.load %arg0[%c30_243, %c1_244, %c0_245] : memref<52x9x4xf32, #tpu.memory_space<vmem>>, vector<1x8x2xf32>
    %197 = vector.shape_cast %196 : vector<1x8x2xf32> to vector<8x2xf32>
    %198 = tpu.concatenate %187, %189, %191, %193, %195, %197 in 1 : vector<8x4xf32>, vector<8x2xf32>, vector<8x4xf32>, vector<8x2xf32>, vector<8x4xf32>, vector<8x2xf32> -> vector<8x18xf32>
    %c104 = arith.constant 104 : index
    %c0_246 = arith.constant 0 : index
    %199 = vector.load %arg10[%c104, %c0_246] : memref<192x18xf32, #tpu.memory_space<vmem>>, vector<8x18xf32>
    tpu.vector_store %arg10[%c104, %c0_246], %198 {strides = array<i32>} : memref<192x18xf32, #tpu.memory_space<vmem>>, vector<8x18xf32>,
    %c30_247 = arith.constant 30 : index
    %c0_248 = arith.constant 0 : index
    %c0_249 = arith.constant 0 : index
    %200 = vector.load %arg0[%c30_247, %c0_248, %c0_249] : memref<52x9x4xf32, #tpu.memory_space<vmem>>, vector<1x8x4xf32>
    %201 = vector.shape_cast %200 : vector<1x8x4xf32> to vector<8x4xf32>
    %c30_250 = arith.constant 30 : index
    %c1_251 = arith.constant 1 : index
    %c0_252 = arith.constant 0 : index
    %202 = vector.load %arg0[%c30_250, %c1_251, %c0_252] : memref<52x9x4xf32, #tpu.memory_space<vmem>>, vector<1x8x2xf32>
    %203 = vector.shape_cast %202 : vector<1x8x2xf32> to vector<8x2xf32>
    %c31 = arith.constant 31 : index
    %c0_253 = arith.constant 0 : index
    %c0_254 = arith.constant 0 : index
    %204 = vector.load %arg0[%c31, %c0_253, %c0_254] : memref<52x9x4xf32, #tpu.memory_space<vmem>>, vector<1x8x4xf32>
    %205 = vector.shape_cast %204 : vector<1x8x4xf32> to vector<8x4xf32>
    %c31_255 = arith.constant 31 : index
    %c1_256 = arith.constant 1 : index
    %c0_257 = arith.constant 0 : index
    %206 = vector.load %arg0[%c31_255, %c1_256, %c0_257] : memref<52x9x4xf32, #tpu.memory_space<vmem>>, vector<1x8x2xf32>
    %207 = vector.shape_cast %206 : vector<1x8x2xf32> to vector<8x2xf32>
    %c32_258 = arith.constant 32 : index
    %c0_259 = arith.constant 0 : index
    %c0_260 = arith.constant 0 : index
    %208 = vector.load %arg0[%c32_258, %c0_259, %c0_260] : memref<52x9x4xf32, #tpu.memory_space<vmem>>, vector<1x8x4xf32>
    %209 = vector.shape_cast %208 : vector<1x8x4xf32> to vector<8x4xf32>
    %c32_261 = arith.constant 32 : index
    %c1_262 = arith.constant 1 : index
    %c0_263 = arith.constant 0 : index
    %210 = vector.load %arg0[%c32_261, %c1_262, %c0_263] : memref<52x9x4xf32, #tpu.memory_space<vmem>>, vector<1x8x2xf32>
    %211 = vector.shape_cast %210 : vector<1x8x2xf32> to vector<8x2xf32>
    %212 = tpu.concatenate %201, %203, %205, %207, %209, %211 in 1 : vector<8x4xf32>, vector<8x2xf32>, vector<8x4xf32>, vector<8x2xf32>, vector<8x4xf32>, vector<8x2xf32> -> vector<8x18xf32>
    %c112 = arith.constant 112 : index
    %c0_264 = arith.constant 0 : index
    %213 = vector.load %arg10[%c112, %c0_264] : memref<192x18xf32, #tpu.memory_space<vmem>>, vector<8x18xf32>
    tpu.vector_store %arg10[%c112, %c0_264], %212 {strides = array<i32>} : memref<192x18xf32, #tpu.memory_space<vmem>>, vector<8x18xf32>,
    %c32_265 = arith.constant 32 : index
    %c0_266 = arith.constant 0 : index
    %c0_267 = arith.constant 0 : index
    %214 = vector.load %arg0[%c32_265, %c0_266, %c0_267] : memref<52x9x4xf32, #tpu.memory_space<vmem>>, vector<1x8x4xf32>
    %215 = vector.shape_cast %214 : vector<1x8x4xf32> to vector<8x4xf32>
    %c32_268 = arith.constant 32 : index
    %c1_269 = arith.constant 1 : index
    %c0_270 = arith.constant 0 : index
    %216 = vector.load %arg0[%c32_268, %c1_269, %c0_270] : memref<52x9x4xf32, #tpu.memory_space<vmem>>, vector<1x8x2xf32>
    %217 = vector.shape_cast %216 : vector<1x8x2xf32> to vector<8x2xf32>
    %c33 = arith.constant 33 : index
    %c0_271 = arith.constant 0 : index
    %c0_272 = arith.constant 0 : index
    %218 = vector.load %arg0[%c33, %c0_271, %c0_272] : memref<52x9x4xf32, #tpu.memory_space<vmem>>, vector<1x8x4xf32>
    %219 = vector.shape_cast %218 : vector<1x8x4xf32> to vector<8x4xf32>
    %c33_273 = arith.constant 33 : index
    %c1_274 = arith.constant 1 : index
    %c0_275 = arith.constant 0 : index
    %220 = vector.load %arg0[%c33_273, %c1_274, %c0_275] : memref<52x9x4xf32, #tpu.memory_space<vmem>>, vector<1x8x2xf32>
    %221 = vector.shape_cast %220 : vector<1x8x2xf32> to vector<8x2xf32>
    %c34 = arith.constant 34 : index
    %c0_276 = arith.constant 0 : index
    %c0_277 = arith.constant 0 : index
    %222 = vector.load %arg0[%c34, %c0_276, %c0_277] : memref<52x9x4xf32, #tpu.memory_space<vmem>>, vector<1x8x4xf32>
    %223 = vector.shape_cast %222 : vector<1x8x4xf32> to vector<8x4xf32>
    %c34_278 = arith.constant 34 : index
    %c1_279 = arith.constant 1 : index
    %c0_280 = arith.constant 0 : index
    %224 = vector.load %arg0[%c34_278, %c1_279, %c0_280] : memref<52x9x4xf32, #tpu.memory_space<vmem>>, vector<1x8x2xf32>
    %225 = vector.shape_cast %224 : vector<1x8x2xf32> to vector<8x2xf32>
    %226 = tpu.concatenate %215, %217, %219, %221, %223, %225 in 1 : vector<8x4xf32>, vector<8x2xf32>, vector<8x4xf32>, vector<8x2xf32>, vector<8x4xf32>, vector<8x2xf32> -> vector<8x18xf32>
    %c120 = arith.constant 120 : index
    %c0_281 = arith.constant 0 : index
    %227 = vector.load %arg10[%c120, %c0_281] : memref<192x18xf32, #tpu.memory_space<vmem>>, vector<8x18xf32>
    tpu.vector_store %arg10[%c120, %c0_281], %226 {strides = array<i32>} : memref<192x18xf32, #tpu.memory_space<vmem>>, vector<8x18xf32>,
    %c34_282 = arith.constant 34 : index
    %c0_283 = arith.constant 0 : index
    %c0_284 = arith.constant 0 : index
    %228 = vector.load %arg0[%c34_282, %c0_283, %c0_284] : memref<52x9x4xf32, #tpu.memory_space<vmem>>, vector<1x8x4xf32>
    %229 = vector.shape_cast %228 : vector<1x8x4xf32> to vector<8x4xf32>
    %c34_285 = arith.constant 34 : index
    %c1_286 = arith.constant 1 : index
    %c0_287 = arith.constant 0 : index
    %230 = vector.load %arg0[%c34_285, %c1_286, %c0_287] : memref<52x9x4xf32, #tpu.memory_space<vmem>>, vector<1x8x2xf32>
    %231 = vector.shape_cast %230 : vector<1x8x2xf32> to vector<8x2xf32>
    %c35 = arith.constant 35 : index
    %c0_288 = arith.constant 0 : index
    %c0_289 = arith.constant 0 : index
    %232 = vector.load %arg0[%c35, %c0_288, %c0_289] : memref<52x9x4xf32, #tpu.memory_space<vmem>>, vector<1x8x4xf32>
    %233 = vector.shape_cast %232 : vector<1x8x4xf32> to vector<8x4xf32>
    %c35_290 = arith.constant 35 : index
    %c1_291 = arith.constant 1 : index
    %c0_292 = arith.constant 0 : index
    %234 = vector.load %arg0[%c35_290, %c1_291, %c0_292] : memref<52x9x4xf32, #tpu.memory_space<vmem>>, vector<1x8x2xf32>
    %235 = vector.shape_cast %234 : vector<1x8x2xf32> to vector<8x2xf32>
    %c36 = arith.constant 36 : index
    %c0_293 = arith.constant 0 : index
    %c0_294 = arith.constant 0 : index
    %236 = vector.load %arg0[%c36, %c0_293, %c0_294] : memref<52x9x4xf32, #tpu.memory_space<vmem>>, vector<1x8x4xf32>
    %237 = vector.shape_cast %236 : vector<1x8x4xf32> to vector<8x4xf32>
    %c36_295 = arith.constant 36 : index
    %c1_296 = arith.constant 1 : index
    %c0_297 = arith.constant 0 : index
    %238 = vector.load %arg0[%c36_295, %c1_296, %c0_297] : memref<52x9x4xf32, #tpu.memory_space<vmem>>, vector<1x8x2xf32>
    %239 = vector.shape_cast %238 : vector<1x8x2xf32> to vector<8x2xf32>
    %240 = tpu.concatenate %229, %231, %233, %235, %237, %239 in 1 : vector<8x4xf32>, vector<8x2xf32>, vector<8x4xf32>, vector<8x2xf32>, vector<8x4xf32>, vector<8x2xf32> -> vector<8x18xf32>
    %c128 = arith.constant 128 : index
    %c0_298 = arith.constant 0 : index
    %241 = vector.load %arg10[%c128, %c0_298] : memref<192x18xf32, #tpu.memory_space<vmem>>, vector<8x18xf32>
    tpu.vector_store %arg10[%c128, %c0_298], %240 {strides = array<i32>} : memref<192x18xf32, #tpu.memory_space<vmem>>, vector<8x18xf32>,
    %c36_299 = arith.constant 36 : index
    %c0_300 = arith.constant 0 : index
    %c0_301 = arith.constant 0 : index
    %242 = vector.load %arg0[%c36_299, %c0_300, %c0_301] : memref<52x9x4xf32, #tpu.memory_space<vmem>>, vector<1x8x4xf32>
    %243 = vector.shape_cast %242 : vector<1x8x4xf32> to vector<8x4xf32>
    %c36_302 = arith.constant 36 : index
    %c1_303 = arith.constant 1 : index
    %c0_304 = arith.constant 0 : index
    %244 = vector.load %arg0[%c36_302, %c1_303, %c0_304] : memref<52x9x4xf32, #tpu.memory_space<vmem>>, vector<1x8x2xf32>
    %245 = vector.shape_cast %244 : vector<1x8x2xf32> to vector<8x2xf32>
    %c37 = arith.constant 37 : index
    %c0_305 = arith.constant 0 : index
    %c0_306 = arith.constant 0 : index
    %246 = vector.load %arg0[%c37, %c0_305, %c0_306] : memref<52x9x4xf32, #tpu.memory_space<vmem>>, vector<1x8x4xf32>
    %247 = vector.shape_cast %246 : vector<1x8x4xf32> to vector<8x4xf32>
    %c37_307 = arith.constant 37 : index
    %c1_308 = arith.constant 1 : index
    %c0_309 = arith.constant 0 : index
    %248 = vector.load %arg0[%c37_307, %c1_308, %c0_309] : memref<52x9x4xf32, #tpu.memory_space<vmem>>, vector<1x8x2xf32>
    %249 = vector.shape_cast %248 : vector<1x8x2xf32> to vector<8x2xf32>
    %c38 = arith.constant 38 : index
    %c0_310 = arith.constant 0 : index
    %c0_311 = arith.constant 0 : index
    %250 = vector.load %arg0[%c38, %c0_310, %c0_311] : memref<52x9x4xf32, #tpu.memory_space<vmem>>, vector<1x8x4xf32>
    %251 = vector.shape_cast %250 : vector<1x8x4xf32> to vector<8x4xf32>
    %c38_312 = arith.constant 38 : index
    %c1_313 = arith.constant 1 : index
    %c0_314 = arith.constant 0 : index
    %252 = vector.load %arg0[%c38_312, %c1_313, %c0_314] : memref<52x9x4xf32, #tpu.memory_space<vmem>>, vector<1x8x2xf32>
    %253 = vector.shape_cast %252 : vector<1x8x2xf32> to vector<8x2xf32>
    %254 = tpu.concatenate %243, %245, %247, %249, %251, %253 in 1 : vector<8x4xf32>, vector<8x2xf32>, vector<8x4xf32>, vector<8x2xf32>, vector<8x4xf32>, vector<8x2xf32> -> vector<8x18xf32>
    %c136 = arith.constant 136 : index
    %c0_315 = arith.constant 0 : index
    %255 = vector.load %arg10[%c136, %c0_315] : memref<192x18xf32, #tpu.memory_space<vmem>>, vector<8x18xf32>
    tpu.vector_store %arg10[%c136, %c0_315], %254 {strides = array<i32>} : memref<192x18xf32, #tpu.memory_space<vmem>>, vector<8x18xf32>,
    %c38_316 = arith.constant 38 : index
    %c0_317 = arith.constant 0 : index
    %c0_318 = arith.constant 0 : index
    %256 = vector.load %arg0[%c38_316, %c0_317, %c0_318] : memref<52x9x4xf32, #tpu.memory_space<vmem>>, vector<1x8x4xf32>
    %257 = vector.shape_cast %256 : vector<1x8x4xf32> to vector<8x4xf32>
    %c38_319 = arith.constant 38 : index
    %c1_320 = arith.constant 1 : index
    %c0_321 = arith.constant 0 : index
    %258 = vector.load %arg0[%c38_319, %c1_320, %c0_321] : memref<52x9x4xf32, #tpu.memory_space<vmem>>, vector<1x8x2xf32>
    %259 = vector.shape_cast %258 : vector<1x8x2xf32> to vector<8x2xf32>
    %c39 = arith.constant 39 : index
    %c0_322 = arith.constant 0 : index
    %c0_323 = arith.constant 0 : index
    %260 = vector.load %arg0[%c39, %c0_322, %c0_323] : memref<52x9x4xf32, #tpu.memory_space<vmem>>, vector<1x8x4xf32>
    %261 = vector.shape_cast %260 : vector<1x8x4xf32> to vector<8x4xf32>
    %c39_324 = arith.constant 39 : index
    %c1_325 = arith.constant 1 : index
    %c0_326 = arith.constant 0 : index
    %262 = vector.load %arg0[%c39_324, %c1_325, %c0_326] : memref<52x9x4xf32, #tpu.memory_space<vmem>>, vector<1x8x2xf32>
    %263 = vector.shape_cast %262 : vector<1x8x2xf32> to vector<8x2xf32>
    %c40_327 = arith.constant 40 : index
    %c0_328 = arith.constant 0 : index
    %c0_329 = arith.constant 0 : index
    %264 = vector.load %arg0[%c40_327, %c0_328, %c0_329] : memref<52x9x4xf32, #tpu.memory_space<vmem>>, vector<1x8x4xf32>
    %265 = vector.shape_cast %264 : vector<1x8x4xf32> to vector<8x4xf32>
    %c40_330 = arith.constant 40 : index
    %c1_331 = arith.constant 1 : index
    %c0_332 = arith.constant 0 : index
    %266 = vector.load %arg0[%c40_330, %c1_331, %c0_332] : memref<52x9x4xf32, #tpu.memory_space<vmem>>, vector<1x8x2xf32>
    %267 = vector.shape_cast %266 : vector<1x8x2xf32> to vector<8x2xf32>
    %268 = tpu.concatenate %257, %259, %261, %263, %265, %267 in 1 : vector<8x4xf32>, vector<8x2xf32>, vector<8x4xf32>, vector<8x2xf32>, vector<8x4xf32>, vector<8x2xf32> -> vector<8x18xf32>
    %c144 = arith.constant 144 : index
    %c0_333 = arith.constant 0 : index
    %269 = vector.load %arg10[%c144, %c0_333] : memref<192x18xf32, #tpu.memory_space<vmem>>, vector<8x18xf32>
    tpu.vector_store %arg10[%c144, %c0_333], %268 {strides = array<i32>} : memref<192x18xf32, #tpu.memory_space<vmem>>, vector<8x18xf32>,
    %c40_334 = arith.constant 40 : index
    %c0_335 = arith.constant 0 : index
    %c0_336 = arith.constant 0 : index
    %270 = vector.load %arg0[%c40_334, %c0_335, %c0_336] : memref<52x9x4xf32, #tpu.memory_space<vmem>>, vector<1x8x4xf32>
    %271 = vector.shape_cast %270 : vector<1x8x4xf32> to vector<8x4xf32>
    %c40_337 = arith.constant 40 : index
    %c1_338 = arith.constant 1 : index
    %c0_339 = arith.constant 0 : index
    %272 = vector.load %arg0[%c40_337, %c1_338, %c0_339] : memref<52x9x4xf32, #tpu.memory_space<vmem>>, vector<1x8x2xf32>
    %273 = vector.shape_cast %272 : vector<1x8x2xf32> to vector<8x2xf32>
    %c41 = arith.constant 41 : index
    %c0_340 = arith.constant 0 : index
    %c0_341 = arith.constant 0 : index
    %274 = vector.load %arg0[%c41, %c0_340, %c0_341] : memref<52x9x4xf32, #tpu.memory_space<vmem>>, vector<1x8x4xf32>
    %275 = vector.shape_cast %274 : vector<1x8x4xf32> to vector<8x4xf32>
    %c41_342 = arith.constant 41 : index
    %c1_343 = arith.constant 1 : index
    %c0_344 = arith.constant 0 : index
    %276 = vector.load %arg0[%c41_342, %c1_343, %c0_344] : memref<52x9x4xf32, #tpu.memory_space<vmem>>, vector<1x8x2xf32>
    %277 = vector.shape_cast %276 : vector<1x8x2xf32> to vector<8x2xf32>
    %c42 = arith.constant 42 : index
    %c0_345 = arith.constant 0 : index
    %c0_346 = arith.constant 0 : index
    %278 = vector.load %arg0[%c42, %c0_345, %c0_346] : memref<52x9x4xf32, #tpu.memory_space<vmem>>, vector<1x8x4xf32>
    %279 = vector.shape_cast %278 : vector<1x8x4xf32> to vector<8x4xf32>
    %c42_347 = arith.constant 42 : index
    %c1_348 = arith.constant 1 : index
    %c0_349 = arith.constant 0 : index
    %280 = vector.load %arg0[%c42_347, %c1_348, %c0_349] : memref<52x9x4xf32, #tpu.memory_space<vmem>>, vector<1x8x2xf32>
    %281 = vector.shape_cast %280 : vector<1x8x2xf32> to vector<8x2xf32>
    %282 = tpu.concatenate %271, %273, %275, %277, %279, %281 in 1 : vector<8x4xf32>, vector<8x2xf32>, vector<8x4xf32>, vector<8x2xf32>, vector<8x4xf32>, vector<8x2xf32> -> vector<8x18xf32>
    %c152 = arith.constant 152 : index
    %c0_350 = arith.constant 0 : index
    %283 = vector.load %arg10[%c152, %c0_350] : memref<192x18xf32, #tpu.memory_space<vmem>>, vector<8x18xf32>
    tpu.vector_store %arg10[%c152, %c0_350], %282 {strides = array<i32>} : memref<192x18xf32, #tpu.memory_space<vmem>>, vector<8x18xf32>,
    %c42_351 = arith.constant 42 : index
    %c0_352 = arith.constant 0 : index
    %c0_353 = arith.constant 0 : index
    %284 = vector.load %arg0[%c42_351, %c0_352, %c0_353] : memref<52x9x4xf32, #tpu.memory_space<vmem>>, vector<1x8x4xf32>
    %285 = vector.shape_cast %284 : vector<1x8x4xf32> to vector<8x4xf32>
    %c42_354 = arith.constant 42 : index
    %c1_355 = arith.constant 1 : index
    %c0_356 = arith.constant 0 : index
    %286 = vector.load %arg0[%c42_354, %c1_355, %c0_356] : memref<52x9x4xf32, #tpu.memory_space<vmem>>, vector<1x8x2xf32>
    %287 = vector.shape_cast %286 : vector<1x8x2xf32> to vector<8x2xf32>
    %c43 = arith.constant 43 : index
    %c0_357 = arith.constant 0 : index
    %c0_358 = arith.constant 0 : index
    %288 = vector.load %arg0[%c43, %c0_357, %c0_358] : memref<52x9x4xf32, #tpu.memory_space<vmem>>, vector<1x8x4xf32>
    %289 = vector.shape_cast %288 : vector<1x8x4xf32> to vector<8x4xf32>
    %c43_359 = arith.constant 43 : index
    %c1_360 = arith.constant 1 : index
    %c0_361 = arith.constant 0 : index
    %290 = vector.load %arg0[%c43_359, %c1_360, %c0_361] : memref<52x9x4xf32, #tpu.memory_space<vmem>>, vector<1x8x2xf32>
    %291 = vector.shape_cast %290 : vector<1x8x2xf32> to vector<8x2xf32>
    %c44 = arith.constant 44 : index
    %c0_362 = arith.constant 0 : index
    %c0_363 = arith.constant 0 : index
    %292 = vector.load %arg0[%c44, %c0_362, %c0_363] : memref<52x9x4xf32, #tpu.memory_space<vmem>>, vector<1x8x4xf32>
    %293 = vector.shape_cast %292 : vector<1x8x4xf32> to vector<8x4xf32>
    %c44_364 = arith.constant 44 : index
    %c1_365 = arith.constant 1 : index
    %c0_366 = arith.constant 0 : index
    %294 = vector.load %arg0[%c44_364, %c1_365, %c0_366] : memref<52x9x4xf32, #tpu.memory_space<vmem>>, vector<1x8x2xf32>
    %295 = vector.shape_cast %294 : vector<1x8x2xf32> to vector<8x2xf32>
    %296 = tpu.concatenate %285, %287, %289, %291, %293, %295 in 1 : vector<8x4xf32>, vector<8x2xf32>, vector<8x4xf32>, vector<8x2xf32>, vector<8x4xf32>, vector<8x2xf32> -> vector<8x18xf32>
    %c160 = arith.constant 160 : index
    %c0_367 = arith.constant 0 : index
    %297 = vector.load %arg10[%c160, %c0_367] : memref<192x18xf32, #tpu.memory_space<vmem>>, vector<8x18xf32>
    tpu.vector_store %arg10[%c160, %c0_367], %296 {strides = array<i32>} : memref<192x18xf32, #tpu.memory_space<vmem>>, vector<8x18xf32>,
    %c44_368 = arith.constant 44 : index
    %c0_369 = arith.constant 0 : index
    %c0_370 = arith.constant 0 : index
    %298 = vector.load %arg0[%c44_368, %c0_369, %c0_370] : memref<52x9x4xf32, #tpu.memory_space<vmem>>, vector<1x8x4xf32>
    %299 = vector.shape_cast %298 : vector<1x8x4xf32> to vector<8x4xf32>
    %c44_371 = arith.constant 44 : index
    %c1_372 = arith.constant 1 : index
    %c0_373 = arith.constant 0 : index
    %300 = vector.load %arg0[%c44_371, %c1_372, %c0_373] : memref<52x9x4xf32, #tpu.memory_space<vmem>>, vector<1x8x2xf32>
    %301 = vector.shape_cast %300 : vector<1x8x2xf32> to vector<8x2xf32>
    %c45 = arith.constant 45 : index
    %c0_374 = arith.constant 0 : index
    %c0_375 = arith.constant 0 : index
    %302 = vector.load %arg0[%c45, %c0_374, %c0_375] : memref<52x9x4xf32, #tpu.memory_space<vmem>>, vector<1x8x4xf32>
    %303 = vector.shape_cast %302 : vector<1x8x4xf32> to vector<8x4xf32>
    %c45_376 = arith.constant 45 : index
    %c1_377 = arith.constant 1 : index
    %c0_378 = arith.constant 0 : index
    %304 = vector.load %arg0[%c45_376, %c1_377, %c0_378] : memref<52x9x4xf32, #tpu.memory_space<vmem>>, vector<1x8x2xf32>
    %305 = vector.shape_cast %304 : vector<1x8x2xf32> to vector<8x2xf32>
    %c46 = arith.constant 46 : index
    %c0_379 = arith.constant 0 : index
    %c0_380 = arith.constant 0 : index
    %306 = vector.load %arg0[%c46, %c0_379, %c0_380] : memref<52x9x4xf32, #tpu.memory_space<vmem>>, vector<1x8x4xf32>
    %307 = vector.shape_cast %306 : vector<1x8x4xf32> to vector<8x4xf32>
    %c46_381 = arith.constant 46 : index
    %c1_382 = arith.constant 1 : index
    %c0_383 = arith.constant 0 : index
    %308 = vector.load %arg0[%c46_381, %c1_382, %c0_383] : memref<52x9x4xf32, #tpu.memory_space<vmem>>, vector<1x8x2xf32>
    %309 = vector.shape_cast %308 : vector<1x8x2xf32> to vector<8x2xf32>
    %310 = tpu.concatenate %299, %301, %303, %305, %307, %309 in 1 : vector<8x4xf32>, vector<8x2xf32>, vector<8x4xf32>, vector<8x2xf32>, vector<8x4xf32>, vector<8x2xf32> -> vector<8x18xf32>
    %c168 = arith.constant 168 : index
    %c0_384 = arith.constant 0 : index
    %311 = vector.load %arg10[%c168, %c0_384] : memref<192x18xf32, #tpu.memory_space<vmem>>, vector<8x18xf32>
    tpu.vector_store %arg10[%c168, %c0_384], %310 {strides = array<i32>} : memref<192x18xf32, #tpu.memory_space<vmem>>, vector<8x18xf32>,
    %c46_385 = arith.constant 46 : index
    %c0_386 = arith.constant 0 : index
    %c0_387 = arith.constant 0 : index
    %312 = vector.load %arg0[%c46_385, %c0_386, %c0_387] : memref<52x9x4xf32, #tpu.memory_space<vmem>>, vector<1x8x4xf32>
    %313 = vector.shape_cast %312 : vector<1x8x4xf32> to vector<8x4xf32>
    %c46_388 = arith.constant 46 : index
    %c1_389 = arith.constant 1 : index
    %c0_390 = arith.constant 0 : index
    %314 = vector.load %arg0[%c46_388, %c1_389, %c0_390] : memref<52x9x4xf32, #tpu.memory_space<vmem>>, vector<1x8x2xf32>
    %315 = vector.shape_cast %314 : vector<1x8x2xf32> to vector<8x2xf32>
    %c47 = arith.constant 47 : index
    %c0_391 = arith.constant 0 : index
    %c0_392 = arith.constant 0 : index
    %316 = vector.load %arg0[%c47, %c0_391, %c0_392] : memref<52x9x4xf32, #tpu.memory_space<vmem>>, vector<1x8x4xf32>
    %317 = vector.shape_cast %316 : vector<1x8x4xf32> to vector<8x4xf32>
    %c47_393 = arith.constant 47 : index
    %c1_394 = arith.constant 1 : index
    %c0_395 = arith.constant 0 : index
    %318 = vector.load %arg0[%c47_393, %c1_394, %c0_395] : memref<52x9x4xf32, #tpu.memory_space<vmem>>, vector<1x8x2xf32>
    %319 = vector.shape_cast %318 : vector<1x8x2xf32> to vector<8x2xf32>
    %c48_396 = arith.constant 48 : index
    %c0_397 = arith.constant 0 : index
    %c0_398 = arith.constant 0 : index
    %320 = vector.load %arg0[%c48_396, %c0_397, %c0_398] : memref<52x9x4xf32, #tpu.memory_space<vmem>>, vector<1x8x4xf32>
    %321 = vector.shape_cast %320 : vector<1x8x4xf32> to vector<8x4xf32>
    %c48_399 = arith.constant 48 : index
    %c1_400 = arith.constant 1 : index
    %c0_401 = arith.constant 0 : index
    %322 = vector.load %arg0[%c48_399, %c1_400, %c0_401] : memref<52x9x4xf32, #tpu.memory_space<vmem>>, vector<1x8x2xf32>
    %323 = vector.shape_cast %322 : vector<1x8x2xf32> to vector<8x2xf32>
    %324 = tpu.concatenate %313, %315, %317, %319, %321, %323 in 1 : vector<8x4xf32>, vector<8x2xf32>, vector<8x4xf32>, vector<8x2xf32>, vector<8x4xf32>, vector<8x2xf32> -> vector<8x18xf32>
    %c176 = arith.constant 176 : index
    %c0_402 = arith.constant 0 : index
    %325 = vector.load %arg10[%c176, %c0_402] : memref<192x18xf32, #tpu.memory_space<vmem>>, vector<8x18xf32>
    tpu.vector_store %arg10[%c176, %c0_402], %324 {strides = array<i32>} : memref<192x18xf32, #tpu.memory_space<vmem>>, vector<8x18xf32>,
    %c48_403 = arith.constant 48 : index
    %c0_404 = arith.constant 0 : index
    %c0_405 = arith.constant 0 : index
    %326 = vector.load %arg0[%c48_403, %c0_404, %c0_405] : memref<52x9x4xf32, #tpu.memory_space<vmem>>, vector<1x8x4xf32>
    %327 = vector.shape_cast %326 : vector<1x8x4xf32> to vector<8x4xf32>
    %c48_406 = arith.constant 48 : index
    %c1_407 = arith.constant 1 : index
    %c0_408 = arith.constant 0 : index
    %328 = vector.load %arg0[%c48_406, %c1_407, %c0_408] : memref<52x9x4xf32, #tpu.memory_space<vmem>>, vector<1x8x2xf32>
    %329 = vector.shape_cast %328 : vector<1x8x2xf32> to vector<8x2xf32>
    %c49 = arith.constant 49 : index
    %c0_409 = arith.constant 0 : index
    %c0_410 = arith.constant 0 : index
    %330 = vector.load %arg0[%c49, %c0_409, %c0_410] : memref<52x9x4xf32, #tpu.memory_space<vmem>>, vector<1x8x4xf32>
    %331 = vector.shape_cast %330 : vector<1x8x4xf32> to vector<8x4xf32>
    %c49_411 = arith.constant 49 : index
    %c1_412 = arith.constant 1 : index
    %c0_413 = arith.constant 0 : index
    %332 = vector.load %arg0[%c49_411, %c1_412, %c0_413] : memref<52x9x4xf32, #tpu.memory_space<vmem>>, vector<1x8x2xf32>
    %333 = vector.shape_cast %332 : vector<1x8x2xf32> to vector<8x2xf32>
    %c50 = arith.constant 50 : index
    %c0_414 = arith.constant 0 : index
    %c0_415 = arith.constant 0 : index
    %334 = vector.load %arg0[%c50, %c0_414, %c0_415] : memref<52x9x4xf32, #tpu.memory_space<vmem>>, vector<1x8x4xf32>
    %335 = vector.shape_cast %334 : vector<1x8x4xf32> to vector<8x4xf32>
    %c50_416 = arith.constant 50 : index
    %c1_417 = arith.constant 1 : index
    %c0_418 = arith.constant 0 : index
    %336 = vector.load %arg0[%c50_416, %c1_417, %c0_418] : memref<52x9x4xf32, #tpu.memory_space<vmem>>, vector<1x8x2xf32>
    %337 = vector.shape_cast %336 : vector<1x8x2xf32> to vector<8x2xf32>
    %338 = tpu.concatenate %327, %329, %331, %333, %335, %337 in 1 : vector<8x4xf32>, vector<8x2xf32>, vector<8x4xf32>, vector<8x2xf32>, vector<8x4xf32>, vector<8x2xf32> -> vector<8x18xf32>
    %c184 = arith.constant 184 : index
    %c0_419 = arith.constant 0 : index
    %339 = vector.load %arg10[%c184, %c0_419] : memref<192x18xf32, #tpu.memory_space<vmem>>, vector<8x18xf32>
    tpu.vector_store %arg10[%c184, %c0_419], %338 {strides = array<i32>} : memref<192x18xf32, #tpu.memory_space<vmem>>, vector<8x18xf32>,
    %c0_420 = arith.constant 0 : index
    %c0_421 = arith.constant 0 : index
    %340 = vector.load %arg10[%c0_420, %c0_421] : memref<192x18xf32, #tpu.memory_space<vmem>>, vector<192x18xf32>
    %341 = arith.truncf %340 : vector<192x18xf32> to vector<192x18xbf16>
    %c0_422 = arith.constant 0 : index
    %c0_423 = arith.constant 0 : index
    %342 = vector.load %arg1[%c0_422, %c0_423] : memref<18x128xbf16, #tpu.memory_space<vmem>>, vector<18x128xbf16>
    %cst_424 = arith.constant dense<0.000000e+00> : vector<192x128xf32>
    %343 = tpu.matmul %341, %342, %cst_424 {dimension_numbers = #tpu.dot_dimension_numbers<[1], [0], [0], [1], [0, 0, 1, 1], [], []>} : vector<192x18xbf16>, vector<18x128xbf16>, vector<192x128xf32> -> vector<192x128xf32>
    %cst_425 = arith.constant 0.000000e+00 : f32
    %344 = vector.broadcast %cst_425 : f32 to vector<192x128xf32>
    %345 = arith.cmpf oge, %343, %344 : vector<192x128xf32>
    %cst_426 = arith.constant 2.000000e-01 : f32
    %346 = vector.broadcast %cst_426 : f32 to vector<192x128xf32>
    %347 = arith.mulf %346, %343 : vector<192x128xf32>
    %348 = arith.select %345, %343, %347 : vector<192x128xi1>, vector<192x128xf32>
    %349 = vector.extract_strided_slice %348 {offsets = [0, 0], sizes = [1, 128], strides = [1, 1]} : vector<192x128xf32> to vector<1x128xf32>
    %c1_427 = arith.constant 1 : index
    %c0_428 = arith.constant 0 : index
    %c128_429 = arith.constant 128 : index
    %350 = vector.load %arg8[%c1_427, %c0_428, %c128_429] : memref<28x5x256xf32, #tpu.memory_space<vmem>>, vector<1x1x128xf32>
    %351 = vector.shape_cast %350 : vector<1x1x128xf32> to vector<1x128xf32>
    %352 = vector.shape_cast %349 : vector<1x128xf32> to vector<1x1x128xf32>
    tpu.vector_store %arg8[%c1_427, %c0_428, %c128_429], %352 {strides = array<i32>} : memref<28x5x256xf32, #tpu.memory_space<vmem>>, vector<1x1x128xf32>,
    %353 = vector.extract_strided_slice %348 {offsets = [1, 0], sizes = [1, 128], strides = [1, 1]} : vector<192x128xf32> to vector<1x128xf32>
    %c1_430 = arith.constant 1 : index
    %c1_431 = arith.constant 1 : index
    %c0_432 = arith.constant 0 : index
    %354 = vector.load %arg8[%c1_430, %c1_431, %c0_432] : memref<28x5x256xf32, #tpu.memory_space<vmem>>, vector<1x1x128xf32>
    %355 = vector.shape_cast %354 : vector<1x1x128xf32> to vector<1x128xf32>
    %356 = vector.shape_cast %353 : vector<1x128xf32> to vector<1x1x128xf32>
    tpu.vector_store %arg8[%c1_430, %c1_431, %c0_432], %356 {strides = array<i32>} : memref<28x5x256xf32, #tpu.memory_space<vmem>>, vector<1x1x128xf32>,
    %357 = vector.extract_strided_slice %348 {offsets = [2, 0], sizes = [1, 128], strides = [1, 1]} : vector<192x128xf32> to vector<1x128xf32>
    %c1_433 = arith.constant 1 : index
    %c1_434 = arith.constant 1 : index
    %c128_435 = arith.constant 128 : index
    %358 = vector.load %arg8[%c1_433, %c1_434, %c128_435] : memref<28x5x256xf32, #tpu.memory_space<vmem>>, vector<1x1x128xf32>
    %359 = vector.shape_cast %358 : vector<1x1x128xf32> to vector<1x128xf32>
    %360 = vector.shape_cast %357 : vector<1x128xf32> to vector<1x1x128xf32>
    tpu.vector_store %arg8[%c1_433, %c1_434, %c128_435], %360 {strides = array<i32>} : memref<28x5x256xf32, #tpu.memory_space<vmem>>, vector<1x1x128xf32>,
    %361 = vector.extract_strided_slice %348 {offsets = [3, 0], sizes = [1, 128], strides = [1, 1]} : vector<192x128xf32> to vector<1x128xf32>
    %c1_436 = arith.constant 1 : index
    %c2_437 = arith.constant 2 : index
    %c0_438 = arith.constant 0 : index
    %362 = vector.load %arg8[%c1_436, %c2_437, %c0_438] : memref<28x5x256xf32, #tpu.memory_space<vmem>>, vector<1x1x128xf32>
    %363 = vector.shape_cast %362 : vector<1x1x128xf32> to vector<1x128xf32>
    %364 = vector.shape_cast %361 : vector<1x128xf32> to vector<1x1x128xf32>
    tpu.vector_store %arg8[%c1_436, %c2_437, %c0_438], %364 {strides = array<i32>} : memref<28x5x256xf32, #tpu.memory_space<vmem>>, vector<1x1x128xf32>,
    %365 = vector.extract_strided_slice %348 {offsets = [4, 0], sizes = [1, 128], strides = [1, 1]} : vector<192x128xf32> to vector<1x128xf32>
    %c1_439 = arith.constant 1 : index
    %c2_440 = arith.constant 2 : index
    %c128_441 = arith.constant 128 : index
    %366 = vector.load %arg8[%c1_439, %c2_440, %c128_441] : memref<28x5x256xf32, #tpu.memory_space<vmem>>, vector<1x1x128xf32>
    %367 = vector.shape_cast %366 : vector<1x1x128xf32> to vector<1x128xf32>
    %368 = vector.shape_cast %365 : vector<1x128xf32> to vector<1x1x128xf32>
    tpu.vector_store %arg8[%c1_439, %c2_440, %c128_441], %368 {strides = array<i32>} : memref<28x5x256xf32, #tpu.memory_space<vmem>>, vector<1x1x128xf32>,
    %369 = vector.extract_strided_slice %348 {offsets = [5, 0], sizes = [1, 128], strides = [1, 1]} : vector<192x128xf32> to vector<1x128xf32>
    %c1_442 = arith.constant 1 : index
    %c3_443 = arith.constant 3 : index
    %c0_444 = arith.constant 0 : index
    %370 = vector.load %arg8[%c1_442, %c3_443, %c0_444] : memref<28x5x256xf32, #tpu.memory_space<vmem>>, vector<1x1x128xf32>
    %371 = vector.shape_cast %370 : vector<1x1x128xf32> to vector<1x128xf32>
    %372 = vector.shape_cast %369 : vector<1x128xf32> to vector<1x1x128xf32>
    tpu.vector_store %arg8[%c1_442, %c3_443, %c0_444], %372 {strides = array<i32>} : memref<28x5x256xf32, #tpu.memory_space<vmem>>, vector<1x1x128xf32>,
    %373 = vector.extract_strided_slice %348 {offsets = [6, 0], sizes = [1, 128], strides = [1, 1]} : vector<192x128xf32> to vector<1x128xf32>
    %c1_445 = arith.constant 1 : index
    %c3_446 = arith.constant 3 : index
    %c128_447 = arith.constant 128 : index
    %374 = vector.load %arg8[%c1_445, %c3_446, %c128_447] : memref<28x5x256xf32, #tpu.memory_space<vmem>>, vector<1x1x128xf32>
    %375 = vector.shape_cast %374 : vector<1x1x128xf32> to vector<1x128xf32>
    %376 = vector.shape_cast %373 : vector<1x128xf32> to vector<1x1x128xf32>
    tpu.vector_store %arg8[%c1_445, %c3_446, %c128_447], %376 {strides = array<i32>} : memref<28x5x256xf32, #tpu.memory_space<vmem>>, vector<1x1x128xf32>,
    %377 = vector.extract_strided_slice %348 {offsets = [7, 0], sizes = [1, 128], strides = [1, 1]} : vector<192x128xf32> to vector<1x128xf32>
    %c1_448 = arith.constant 1 : index
    %c4_449 = arith.constant 4 : index
    %c0_450 = arith.constant 0 : index
    %378 = vector.load %arg8[%c1_448, %c4_449, %c0_450] : memref<28x5x256xf32, #tpu.memory_space<vmem>>, vector<1x1x128xf32>
    %379 = vector.shape_cast %378 : vector<1x1x128xf32> to vector<1x128xf32>
    %380 = vector.shape_cast %377 : vector<1x128xf32> to vector<1x1x128xf32>
    tpu.vector_store %arg8[%c1_448, %c4_449, %c0_450], %380 {strides = array<i32>} : memref<28x5x256xf32, #tpu.memory_space<vmem>>, vector<1x1x128xf32>,
    %381 = vector.extract_strided_slice %348 {offsets = [8, 0], sizes = [1, 128], strides = [1, 1]} : vector<192x128xf32> to vector<1x128xf32>
    %c2_451 = arith.constant 2 : index
    %c0_452 = arith.constant 0 : index
    %c128_453 = arith.constant 128 : index
    %382 = vector.load %arg8[%c2_451, %c0_452, %c128_453] : memref<28x5x256xf32, #tpu.memory_space<vmem>>, vector<1x1x128xf32>
    %383 = vector.shape_cast %382 : vector<1x1x128xf32> to vector<1x128xf32>
    %384 = vector.shape_cast %381 : vector<1x128xf32> to vector<1x1x128xf32>
    tpu.vector_store %arg8[%c2_451, %c0_452, %c128_453], %384 {strides = array<i32>} : memref<28x5x256xf32, #tpu.memory_space<vmem>>, vector<1x1x128xf32>,
    %385 = vector.extract_strided_slice %348 {offsets = [9, 0], sizes = [1, 128], strides = [1, 1]} : vector<192x128xf32> to vector<1x128xf32>
    %c2_454 = arith.constant 2 : index
    %c1_455 = arith.constant 1 : index
    %c0_456 = arith.constant 0 : index
    %386 = vector.load %arg8[%c2_454, %c1_455, %c0_456] : memref<28x5x256xf32, #tpu.memory_space<vmem>>, vector<1x1x128xf32>
    %387 = vector.shape_cast %386 : vector<1x1x128xf32> to vector<1x128xf32>
    %388 = vector.shape_cast %385 : vector<1x128xf32> to vector<1x1x128xf32>
    tpu.vector_store %arg8[%c2_454, %c1_455, %c0_456], %388 {strides = array<i32>} : memref<28x5x256xf32, #tpu.memory_space<vmem>>, vector<1x1x128xf32>,
    %389 = vector.extract_strided_slice %348 {offsets = [10, 0], sizes = [1, 128], strides = [1, 1]} : vector<192x128xf32> to vector<1x128xf32>
    %c2_457 = arith.constant 2 : index
    %c1_458 = arith.constant 1 : index
    %c128_459 = arith.constant 128 : index
    %390 = vector.load %arg8[%c2_457, %c1_458, %c128_459] : memref<28x5x256xf32, #tpu.memory_space<vmem>>, vector<1x1x128xf32>
    %391 = vector.shape_cast %390 : vector<1x1x128xf32> to vector<1x128xf32>
    %392 = vector.shape_cast %389 : vector<1x128xf32> to vector<1x1x128xf32>
    tpu.vector_store %arg8[%c2_457, %c1_458, %c128_459], %392 {strides = array<i32>} : memref<28x5x256xf32, #tpu.memory_space<vmem>>, vector<1x1x128xf32>,
    %393 = vector.extract_strided_slice %348 {offsets = [11, 0], sizes = [1, 128], strides = [1, 1]} : vector<192x128xf32> to vector<1x128xf32>
    %c2_460 = arith.constant 2 : index
    %c2_461 = arith.constant 2 : index
    %c0_462 = arith.constant 0 : index
    %394 = vector.load %arg8[%c2_460, %c2_461, %c0_462] : memref<28x5x256xf32, #tpu.memory_space<vmem>>, vector<1x1x128xf32>
    %395 = vector.shape_cast %394 : vector<1x1x128xf32> to vector<1x128xf32>
    %396 = vector.shape_cast %393 : vector<1x128xf32> to vector<1x1x128xf32>
    tpu.vector_store %arg8[%c2_460, %c2_461, %c0_462], %396 {strides = array<i32>} : memref<28x5x256xf32, #tpu.memory_space<vmem>>, vector<1x1x128xf32>,
    %397 = vector.extract_strided_slice %348 {offsets = [12, 0], sizes = [1, 128], strides = [1, 1]} : vector<192x128xf32> to vector<1x128xf32>
    %c2_463 = arith.constant 2 : index
    %c2_464 = arith.constant 2 : index
    %c128_465 = arith.constant 128 : index
    %398 = vector.load %arg8[%c2_463, %c2_464, %c128_465] : memref<28x5x256xf32, #tpu.memory_space<vmem>>, vector<1x1x128xf32>
    %399 = vector.shape_cast %398 : vector<1x1x128xf32> to vector<1x128xf32>
    %400 = vector.shape_cast %397 : vector<1x128xf32> to vector<1x1x128xf32>
    tpu.vector_store %arg8[%c2_463, %c2_464, %c128_465], %400 {strides = array<i32>} : memref<28x5x256xf32, #tpu.memory_space<vmem>>, vector<1x1x128xf32>,
    %401 = vector.extract_strided_slice %348 {offsets = [13, 0], sizes = [1, 128], strides = [1, 1]} : vector<192x128xf32> to vector<1x128xf32>
    %c2_466 = arith.constant 2 : index
    %c3_467 = arith.constant 3 : index
    %c0_468 = arith.constant 0 : index
    %402 = vector.load %arg8[%c2_466, %c3_467, %c0_468] : memref<28x5x256xf32, #tpu.memory_space<vmem>>, vector<1x1x128xf32>
    %403 = vector.shape_cast %402 : vector<1x1x128xf32> to vector<1x128xf32>
    %404 = vector.shape_cast %401 : vector<1x128xf32> to vector<1x1x128xf32>
    tpu.vector_store %arg8[%c2_466, %c3_467, %c0_468], %404 {strides = array<i32>} : memref<28x5x256xf32, #tpu.memory_space<vmem>>, vector<1x1x128xf32>,
    %405 = vector.extract_strided_slice %348 {offsets = [14, 0], sizes = [1, 128], strides = [1, 1]} : vector<192x128xf32> to vector<1x128xf32>
    %c2_469 = arith.constant 2 : index
    %c3_470 = arith.constant 3 : index
    %c128_471 = arith.constant 128 : index
    %406 = vector.load %arg8[%c2_469, %c3_470, %c128_471] : memref<28x5x256xf32, #tpu.memory_space<vmem>>, vector<1x1x128xf32>
    %407 = vector.shape_cast %406 : vector<1x1x128xf32> to vector<1x128xf32>
    %408 = vector.shape_cast %405 : vector<1x128xf32> to vector<1x1x128xf32>
    tpu.vector_store %arg8[%c2_469, %c3_470, %c128_471], %408 {strides = array<i32>} : memref<28x5x256xf32, #tpu.memory_space<vmem>>, vector<1x1x128xf32>,
    %409 = vector.extract_strided_slice %348 {offsets = [15, 0], sizes = [1, 128], strides = [1, 1]} : vector<192x128xf32> to vector<1x128xf32>
    %c2_472 = arith.constant 2 : index
    %c4_473 = arith.constant 4 : index
    %c0_474 = arith.constant 0 : index
    %410 = vector.load %arg8[%c2_472, %c4_473, %c0_474] : memref<28x5x256xf32, #tpu.memory_space<vmem>>, vector<1x1x128xf32>
    %411 = vector.shape_cast %410 : vector<1x1x128xf32> to vector<1x128xf32>
    %412 = vector.shape_cast %409 : vector<1x128xf32> to vector<1x1x128xf32>
    tpu.vector_store %arg8[%c2_472, %c4_473, %c0_474], %412 {strides = array<i32>} : memref<28x5x256xf32, #tpu.memory_space<vmem>>, vector<1x1x128xf32>,
    %413 = vector.extract_strided_slice %348 {offsets = [16, 0], sizes = [1, 128], strides = [1, 1]} : vector<192x128xf32> to vector<1x128xf32>
    %c3_475 = arith.constant 3 : index
    %c0_476 = arith.constant 0 : index
    %c128_477 = arith.constant 128 : index
    %414 = vector.load %arg8[%c3_475, %c0_476, %c128_477] : memref<28x5x256xf32, #tpu.memory_space<vmem>>, vector<1x1x128xf32>
    %415 = vector.shape_cast %414 : vector<1x1x128xf32> to vector<1x128xf32>
    %416 = vector.shape_cast %413 : vector<1x128xf32> to vector<1x1x128xf32>
    tpu.vector_store %arg8[%c3_475, %c0_476, %c128_477], %416 {strides = array<i32>} : memref<28x5x256xf32, #tpu.memory_space<vmem>>, vector<1x1x128xf32>,
    %417 = vector.extract_strided_slice %348 {offsets = [17, 0], sizes = [1, 128], strides = [1, 1]} : vector<192x128xf32> to vector<1x128xf32>
    %c3_478 = arith.constant 3 : index
    %c1_479 = arith.constant 1 : index
    %c0_480 = arith.constant 0 : index
    %418 = vector.load %arg8[%c3_478, %c1_479, %c0_480] : memref<28x5x256xf32, #tpu.memory_space<vmem>>, vector<1x1x128xf32>
    %419 = vector.shape_cast %418 : vector<1x1x128xf32> to vector<1x128xf32>
    %420 = vector.shape_cast %417 : vector<1x128xf32> to vector<1x1x128xf32>
    tpu.vector_store %arg8[%c3_478, %c1_479, %c0_480], %420 {strides = array<i32>} : memref<28x5x256xf32, #tpu.memory_space<vmem>>, vector<1x1x128xf32>,
    %421 = vector.extract_strided_slice %348 {offsets = [18, 0], sizes = [1, 128], strides = [1, 1]} : vector<192x128xf32> to vector<1x128xf32>
    %c3_481 = arith.constant 3 : index
    %c1_482 = arith.constant 1 : index
    %c128_483 = arith.constant 128 : index
    %422 = vector.load %arg8[%c3_481, %c1_482, %c128_483] : memref<28x5x256xf32, #tpu.memory_space<vmem>>, vector<1x1x128xf32>
    %423 = vector.shape_cast %422 : vector<1x1x128xf32> to vector<1x128xf32>
    %424 = vector.shape_cast %421 : vector<1x128xf32> to vector<1x1x128xf32>
    tpu.vector_store %arg8[%c3_481, %c1_482, %c128_483], %424 {strides = array<i32>} : memref<28x5x256xf32, #tpu.memory_space<vmem>>, vector<1x1x128xf32>,
    %425 = vector.extract_strided_slice %348 {offsets = [19, 0], sizes = [1, 128], strides = [1, 1]} : vector<192x128xf32> to vector<1x128xf32>
    %c3_484 = arith.constant 3 : index
    %c2_485 = arith.constant 2 : index
    %c0_486 = arith.constant 0 : index
    %426 = vector.load %arg8[%c3_484, %c2_485, %c0_486] : memref<28x5x256xf32, #tpu.memory_space<vmem>>, vector<1x1x128xf32>
    %427 = vector.shape_cast %426 : vector<1x1x128xf32> to vector<1x128xf32>
    %428 = vector.shape_cast %425 : vector<1x128xf32> to vector<1x1x128xf32>
    tpu.vector_store %arg8[%c3_484, %c2_485, %c0_486], %428 {strides = array<i32>} : memref<28x5x256xf32, #tpu.memory_space<vmem>>, vector<1x1x128xf32>,
    %429 = vector.extract_strided_slice %348 {offsets = [20, 0], sizes = [1, 128], strides = [1, 1]} : vector<192x128xf32> to vector<1x128xf32>
    %c3_487 = arith.constant 3 : index
    %c2_488 = arith.constant 2 : index
    %c128_489 = arith.constant 128 : index
    %430 = vector.load %arg8[%c3_487, %c2_488, %c128_489] : memref<28x5x256xf32, #tpu.memory_space<vmem>>, vector<1x1x128xf32>
    %431 = vector.shape_cast %430 : vector<1x1x128xf32> to vector<1x128xf32>
    %432 = vector.shape_cast %429 : vector<1x128xf32> to vector<1x1x128xf32>
    tpu.vector_store %arg8[%c3_487, %c2_488, %c128_489], %432 {strides = array<i32>} : memref<28x5x256xf32, #tpu.memory_space<vmem>>, vector<1x1x128xf32>,
    %433 = vector.extract_strided_slice %348 {offsets = [21, 0], sizes = [1, 128], strides = [1, 1]} : vector<192x128xf32> to vector<1x128xf32>
    %c3_490 = arith.constant 3 : index
    %c3_491 = arith.constant 3 : index
    %c0_492 = arith.constant 0 : index
    %434 = vector.load %arg8[%c3_490, %c3_491, %c0_492] : memref<28x5x256xf32, #tpu.memory_space<vmem>>, vector<1x1x128xf32>
    %435 = vector.shape_cast %434 : vector<1x1x128xf32> to vector<1x128xf32>
    %436 = vector.shape_cast %433 : vector<1x128xf32> to vector<1x1x128xf32>
    tpu.vector_store %arg8[%c3_490, %c3_491, %c0_492], %436 {strides = array<i32>} : memref<28x5x256xf32, #tpu.memory_space<vmem>>, vector<1x1x128xf32>,
    %437 = vector.extract_strided_slice %348 {offsets = [22, 0], sizes = [1, 128], strides = [1, 1]} : vector<192x128xf32> to vector<1x128xf32>
    %c3_493 = arith.constant 3 : index
    %c3_494 = arith.constant 3 : index
    %c128_495 = arith.constant 128 : index
    %438 = vector.load %arg8[%c3_493, %c3_494, %c128_495] : memref<28x5x256xf32, #tpu.memory_space<vmem>>, vector<1x1x128xf32>
    %439 = vector.shape_cast %438 : vector<1x1x128xf32> to vector<1x128xf32>
    %440 = vector.shape_cast %437 : vector<1x128xf32> to vector<1x1x128xf32>
    tpu.vector_store %arg8[%c3_493, %c3_494, %c128_495], %440 {strides = array<i32>} : memref<28x5x256xf32, #tpu.memory_space<vmem>>, vector<1x1x128xf32>,
    %441 = vector.extract_strided_slice %348 {offsets = [23, 0], sizes = [1, 128], strides = [1, 1]} : vector<192x128xf32> to vector<1x128xf32>
    %c3_496 = arith.constant 3 : index
    %c4_497 = arith.constant 4 : index
    %c0_498 = arith.constant 0 : index
    %442 = vector.load %arg8[%c3_496, %c4_497, %c0_498] : memref<28x5x256xf32, #tpu.memory_space<vmem>>, vector<1x1x128xf32>
    %443 = vector.shape_cast %442 : vector<1x1x128xf32> to vector<1x128xf32>
    %444 = vector.shape_cast %441 : vector<1x128xf32> to vector<1x1x128xf32>
    tpu.vector_store %arg8[%c3_496, %c4_497, %c0_498], %444 {strides = array<i32>} : memref<28x5x256xf32, #tpu.memory_space<vmem>>, vector<1x1x128xf32>,
    %445 = vector.extract_strided_slice %348 {offsets = [24, 0], sizes = [1, 128], strides = [1, 1]} : vector<192x128xf32> to vector<1x128xf32>
    %c4_499 = arith.constant 4 : index
    %c0_500 = arith.constant 0 : index
    %c128_501 = arith.constant 128 : index
    %446 = vector.load %arg8[%c4_499, %c0_500, %c128_501] : memref<28x5x256xf32, #tpu.memory_space<vmem>>, vector<1x1x128xf32>
    %447 = vector.shape_cast %446 : vector<1x1x128xf32> to vector<1x128xf32>
    %448 = vector.shape_cast %445 : vector<1x128xf32> to vector<1x1x128xf32>
    tpu.vector_store %arg8[%c4_499, %c0_500, %c128_501], %448 {strides = array<i32>} : memref<28x5x256xf32, #tpu.memory_space<vmem>>, vector<1x1x128xf32>,
    %449 = vector.extract_strided_slice %348 {offsets = [25, 0], sizes = [1, 128], strides = [1, 1]} : vector<192x128xf32> to vector<1x128xf32>
    %c4_502 = arith.constant 4 : index
    %c1_503 = arith.constant 1 : index
    %c0_504 = arith.constant 0 : index
    %450 = vector.load %arg8[%c4_502, %c1_503, %c0_504] : memref<28x5x256xf32, #tpu.memory_space<vmem>>, vector<1x1x128xf32>
    %451 = vector.shape_cast %450 : vector<1x1x128xf32> to vector<1x128xf32>
    %452 = vector.shape_cast %449 : vector<1x128xf32> to vector<1x1x128xf32>
    tpu.vector_store %arg8[%c4_502, %c1_503, %c0_504], %452 {strides = array<i32>} : memref<28x5x256xf32, #tpu.memory_space<vmem>>, vector<1x1x128xf32>,
    %453 = vector.extract_strided_slice %348 {offsets = [26, 0], sizes = [1, 128], strides = [1, 1]} : vector<192x128xf32> to vector<1x128xf32>
    %c4_505 = arith.constant 4 : index
    %c1_506 = arith.constant 1 : index
    %c128_507 = arith.constant 128 : index
    %454 = vector.load %arg8[%c4_505, %c1_506, %c128_507] : memref<28x5x256xf32, #tpu.memory_space<vmem>>, vector<1x1x128xf32>
    %455 = vector.shape_cast %454 : vector<1x1x128xf32> to vector<1x128xf32>
    %456 = vector.shape_cast %453 : vector<1x128xf32> to vector<1x1x128xf32>
    tpu.vector_store %arg8[%c4_505, %c1_506, %c128_507], %456 {strides = array<i32>} : memref<28x5x256xf32, #tpu.memory_space<vmem>>, vector<1x1x128xf32>,
    %457 = vector.extract_strided_slice %348 {offsets = [27, 0], sizes = [1, 128], strides = [1, 1]} : vector<192x128xf32> to vector<1x128xf32>
    %c4_508 = arith.constant 4 : index
    %c2_509 = arith.constant 2 : index
    %c0_510 = arith.constant 0 : index
    %458 = vector.load %arg8[%c4_508, %c2_509, %c0_510] : memref<28x5x256xf32, #tpu.memory_space<vmem>>, vector<1x1x128xf32>
    %459 = vector.shape_cast %458 : vector<1x1x128xf32> to vector<1x128xf32>
    %460 = vector.shape_cast %457 : vector<1x128xf32> to vector<1x1x128xf32>
    tpu.vector_store %arg8[%c4_508, %c2_509, %c0_510], %460 {strides = array<i32>} : memref<28x5x256xf32, #tpu.memory_space<vmem>>, vector<1x1x128xf32>,
    %461 = vector.extract_strided_slice %348 {offsets = [28, 0], sizes = [1, 128], strides = [1, 1]} : vector<192x128xf32> to vector<1x128xf32>
    %c4_511 = arith.constant 4 : index
    %c2_512 = arith.constant 2 : index
    %c128_513 = arith.constant 128 : index
    %462 = vector.load %arg8[%c4_511, %c2_512, %c128_513] : memref<28x5x256xf32, #tpu.memory_space<vmem>>, vector<1x1x128xf32>
    %463 = vector.shape_cast %462 : vector<1x1x128xf32> to vector<1x128xf32>
    %464 = vector.shape_cast %461 : vector<1x128xf32> to vector<1x1x128xf32>
    tpu.vector_store %arg8[%c4_511, %c2_512, %c128_513], %464 {strides = array<i32>} : memref<28x5x256xf32, #tpu.memory_space<vmem>>, vector<1x1x128xf32>,
    %465 = vector.extract_strided_slice %348 {offsets = [29, 0], sizes = [1, 128], strides = [1, 1]} : vector<192x128xf32> to vector<1x128xf32>
    %c4_514 = arith.constant 4 : index
    %c3_515 = arith.constant 3 : index
    %c0_516 = arith.constant 0 : index
    %466 = vector.load %arg8[%c4_514, %c3_515, %c0_516] : memref<28x5x256xf32, #tpu.memory_space<vmem>>, vector<1x1x128xf32>
    %467 = vector.shape_cast %466 : vector<1x1x128xf32> to vector<1x128xf32>
    %468 = vector.shape_cast %465 : vector<1x128xf32> to vector<1x1x128xf32>
    tpu.vector_store %arg8[%c4_514, %c3_515, %c0_516], %468 {strides = array<i32>} : memref<28x5x256xf32, #tpu.memory_space<vmem>>, vector<1x1x128xf32>,
    %469 = vector.extract_strided_slice %348 {offsets = [30, 0], sizes = [1, 128], strides = [1, 1]} : vector<192x128xf32> to vector<1x128xf32>
    %c4_517 = arith.constant 4 : index
    %c3_518 = arith.constant 3 : index
    %c128_519 = arith.constant 128 : index
    %470 = vector.load %arg8[%c4_517, %c3_518, %c128_519] : memref<28x5x256xf32, #tpu.memory_space<vmem>>, vector<1x1x128xf32>
    %471 = vector.shape_cast %470 : vector<1x1x128xf32> to vector<1x128xf32>
    %472 = vector.shape_cast %469 : vector<1x128xf32> to vector<1x1x128xf32>
    tpu.vector_store %arg8[%c4_517, %c3_518, %c128_519], %472 {strides = array<i32>} : memref<28x5x256xf32, #tpu.memory_space<vmem>>, vector<1x1x128xf32>,
    %473 = vector.extract_strided_slice %348 {offsets = [31, 0], sizes = [1, 128], strides = [1, 1]} : vector<192x128xf32> to vector<1x128xf32>
    %c4_520 = arith.constant 4 : index
    %c4_521 = arith.constant 4 : index
    %c0_522 = arith.constant 0 : index
    %474 = vector.load %arg8[%c4_520, %c4_521, %c0_522] : memref<28x5x256xf32, #tpu.memory_space<vmem>>, vector<1x1x128xf32>
    %475 = vector.shape_cast %474 : vector<1x1x128xf32> to vector<1x128xf32>
    %476 = vector.shape_cast %473 : vector<1x128xf32> to vector<1x1x128xf32>
    tpu.vector_store %arg8[%c4_520, %c4_521, %c0_522], %476 {strides = array<i32>} : memref<28x5x256xf32, #tpu.memory_space<vmem>>, vector<1x1x128xf32>,
    %477 = vector.extract_strided_slice %348 {offsets = [32, 0], sizes = [1, 128], strides = [1, 1]} : vector<192x128xf32> to vector<1x128xf32>
    %c5_523 = arith.constant 5 : index
    %c0_524 = arith.constant 0 : index
    %c128_525 = arith.constant 128 : index
    %478 = vector.load %arg8[%c5_523, %c0_524, %c128_525] : memref<28x5x256xf32, #tpu.memory_space<vmem>>, vector<1x1x128xf32>
    %479 = vector.shape_cast %478 : vector<1x1x128xf32> to vector<1x128xf32>
    %480 = vector.shape_cast %477 : vector<1x128xf32> to vector<1x1x128xf32>
    tpu.vector_store %arg8[%c5_523, %c0_524, %c128_525], %480 {strides = array<i32>} : memref<28x5x256xf32, #tpu.memory_space<vmem>>, vector<1x1x128xf32>,
    %481 = vector.extract_strided_slice %348 {offsets = [33, 0], sizes = [1, 128], strides = [1, 1]} : vector<192x128xf32> to vector<1x128xf32>
    %c5_526 = arith.constant 5 : index
    %c1_527 = arith.constant 1 : index
    %c0_528 = arith.constant 0 : index
    %482 = vector.load %arg8[%c5_526, %c1_527, %c0_528] : memref<28x5x256xf32, #tpu.memory_space<vmem>>, vector<1x1x128xf32>
    %483 = vector.shape_cast %482 : vector<1x1x128xf32> to vector<1x128xf32>
    %484 = vector.shape_cast %481 : vector<1x128xf32> to vector<1x1x128xf32>
    tpu.vector_store %arg8[%c5_526, %c1_527, %c0_528], %484 {strides = array<i32>} : memref<28x5x256xf32, #tpu.memory_space<vmem>>, vector<1x1x128xf32>,
    %485 = vector.extract_strided_slice %348 {offsets = [34, 0], sizes = [1, 128], strides = [1, 1]} : vector<192x128xf32> to vector<1x128xf32>
    %c5_529 = arith.constant 5 : index
    %c1_530 = arith.constant 1 : index
    %c128_531 = arith.constant 128 : index
    %486 = vector.load %arg8[%c5_529, %c1_530, %c128_531] : memref<28x5x256xf32, #tpu.memory_space<vmem>>, vector<1x1x128xf32>
    %487 = vector.shape_cast %486 : vector<1x1x128xf32> to vector<1x128xf32>
    %488 = vector.shape_cast %485 : vector<1x128xf32> to vector<1x1x128xf32>
    tpu.vector_store %arg8[%c5_529, %c1_530, %c128_531], %488 {strides = array<i32>} : memref<28x5x256xf32, #tpu.memory_space<vmem>>, vector<1x1x128xf32>,
    %489 = vector.extract_strided_slice %348 {offsets = [35, 0], sizes = [1, 128], strides = [1, 1]} : vector<192x128xf32> to vector<1x128xf32>
    %c5_532 = arith.constant 5 : index
    %c2_533 = arith.constant 2 : index
    %c0_534 = arith.constant 0 : index
    %490 = vector.load %arg8[%c5_532, %c2_533, %c0_534] : memref<28x5x256xf32, #tpu.memory_space<vmem>>, vector<1x1x128xf32>
    %491 = vector.shape_cast %490 : vector<1x1x128xf32> to vector<1x128xf32>
    %492 = vector.shape_cast %489 : vector<1x128xf32> to vector<1x1x128xf32>
    tpu.vector_store %arg8[%c5_532, %c2_533, %c0_534], %492 {strides = array<i32>} : memref<28x5x256xf32, #tpu.memory_space<vmem>>, vector<1x1x128xf32>,
    %493 = vector.extract_strided_slice %348 {offsets = [36, 0], sizes = [1, 128], strides = [1, 1]} : vector<192x128xf32> to vector<1x128xf32>
    %c5_535 = arith.constant 5 : index
    %c2_536 = arith.constant 2 : index
    %c128_537 = arith.constant 128 : index
    %494 = vector.load %arg8[%c5_535, %c2_536, %c128_537] : memref<28x5x256xf32, #tpu.memory_space<vmem>>, vector<1x1x128xf32>
    %495 = vector.shape_cast %494 : vector<1x1x128xf32> to vector<1x128xf32>
    %496 = vector.shape_cast %493 : vector<1x128xf32> to vector<1x1x128xf32>
    tpu.vector_store %arg8[%c5_535, %c2_536, %c128_537], %496 {strides = array<i32>} : memref<28x5x256xf32, #tpu.memory_space<vmem>>, vector<1x1x128xf32>,
    %497 = vector.extract_strided_slice %348 {offsets = [37, 0], sizes = [1, 128], strides = [1, 1]} : vector<192x128xf32> to vector<1x128xf32>
    %c5_538 = arith.constant 5 : index
    %c3_539 = arith.constant 3 : index
    %c0_540 = arith.constant 0 : index
    %498 = vector.load %arg8[%c5_538, %c3_539, %c0_540] : memref<28x5x256xf32, #tpu.memory_space<vmem>>, vector<1x1x128xf32>
    %499 = vector.shape_cast %498 : vector<1x1x128xf32> to vector<1x128xf32>
    %500 = vector.shape_cast %497 : vector<1x128xf32> to vector<1x1x128xf32>
    tpu.vector_store %arg8[%c5_538, %c3_539, %c0_540], %500 {strides = array<i32>} : memref<28x5x256xf32, #tpu.memory_space<vmem>>, vector<1x1x128xf32>,
    %501 = vector.extract_strided_slice %348 {offsets = [38, 0], sizes = [1, 128], strides = [1, 1]} : vector<192x128xf32> to vector<1x128xf32>
    %c5_541 = arith.constant 5 : index
    %c3_542 = arith.constant 3 : index
    %c128_543 = arith.constant 128 : index
    %502 = vector.load %arg8[%c5_541, %c3_542, %c128_543] : memref<28x5x256xf32, #tpu.memory_space<vmem>>, vector<1x1x128xf32>
    %503 = vector.shape_cast %502 : vector<1x1x128xf32> to vector<1x128xf32>
    %504 = vector.shape_cast %501 : vector<1x128xf32> to vector<1x1x128xf32>
    tpu.vector_store %arg8[%c5_541, %c3_542, %c128_543], %504 {strides = array<i32>} : memref<28x5x256xf32, #tpu.memory_space<vmem>>, vector<1x1x128xf32>,
    %505 = vector.extract_strided_slice %348 {offsets = [39, 0], sizes = [1, 128], strides = [1, 1]} : vector<192x128xf32> to vector<1x128xf32>
    %c5_544 = arith.constant 5 : index
    %c4_545 = arith.constant 4 : index
    %c0_546 = arith.constant 0 : index
    %506 = vector.load %arg8[%c5_544, %c4_545, %c0_546] : memref<28x5x256xf32, #tpu.memory_space<vmem>>, vector<1x1x128xf32>
    %507 = vector.shape_cast %506 : vector<1x1x128xf32> to vector<1x128xf32>
    %508 = vector.shape_cast %505 : vector<1x128xf32> to vector<1x1x128xf32>
    tpu.vector_store %arg8[%c5_544, %c4_545, %c0_546], %508 {strides = array<i32>} : memref<28x5x256xf32, #tpu.memory_space<vmem>>, vector<1x1x128xf32>,
    %509 = vector.extract_strided_slice %348 {offsets = [40, 0], sizes = [1, 128], strides = [1, 1]} : vector<192x128xf32> to vector<1x128xf32>
    %c6_547 = arith.constant 6 : index
    %c0_548 = arith.constant 0 : index
    %c128_549 = arith.constant 128 : index
    %510 = vector.load %arg8[%c6_547, %c0_548, %c128_549] : memref<28x5x256xf32, #tpu.memory_space<vmem>>, vector<1x1x128xf32>
    %511 = vector.shape_cast %510 : vector<1x1x128xf32> to vector<1x128xf32>
    %512 = vector.shape_cast %509 : vector<1x128xf32> to vector<1x1x128xf32>
    tpu.vector_store %arg8[%c6_547, %c0_548, %c128_549], %512 {strides = array<i32>} : memref<28x5x256xf32, #tpu.memory_space<vmem>>, vector<1x1x128xf32>,
    %513 = vector.extract_strided_slice %348 {offsets = [41, 0], sizes = [1, 128], strides = [1, 1]} : vector<192x128xf32> to vector<1x128xf32>
    %c6_550 = arith.constant 6 : index
    %c1_551 = arith.constant 1 : index
    %c0_552 = arith.constant 0 : index
    %514 = vector.load %arg8[%c6_550, %c1_551, %c0_552] : memref<28x5x256xf32, #tpu.memory_space<vmem>>, vector<1x1x128xf32>
    %515 = vector.shape_cast %514 : vector<1x1x128xf32> to vector<1x128xf32>
    %516 = vector.shape_cast %513 : vector<1x128xf32> to vector<1x1x128xf32>
    tpu.vector_store %arg8[%c6_550, %c1_551, %c0_552], %516 {strides = array<i32>} : memref<28x5x256xf32, #tpu.memory_space<vmem>>, vector<1x1x128xf32>,
    %517 = vector.extract_strided_slice %348 {offsets = [42, 0], sizes = [1, 128], strides = [1, 1]} : vector<192x128xf32> to vector<1x128xf32>
    %c6_553 = arith.constant 6 : index
    %c1_554 = arith.constant 1 : index
    %c128_555 = arith.constant 128 : index
    %518 = vector.load %arg8[%c6_553, %c1_554, %c128_555] : memref<28x5x256xf32, #tpu.memory_space<vmem>>, vector<1x1x128xf32>
    %519 = vector.shape_cast %518 : vector<1x1x128xf32> to vector<1x128xf32>
    %520 = vector.shape_cast %517 : vector<1x128xf32> to vector<1x1x128xf32>
    tpu.vector_store %arg8[%c6_553, %c1_554, %c128_555], %520 {strides = array<i32>} : memref<28x5x256xf32, #tpu.memory_space<vmem>>, vector<1x1x128xf32>,
    %521 = vector.extract_strided_slice %348 {offsets = [43, 0], sizes = [1, 128], strides = [1, 1]} : vector<192x128xf32> to vector<1x128xf32>
    %c6_556 = arith.constant 6 : index
    %c2_557 = arith.constant 2 : index
    %c0_558 = arith.constant 0 : index
    %522 = vector.load %arg8[%c6_556, %c2_557, %c0_558] : memref<28x5x256xf32, #tpu.memory_space<vmem>>, vector<1x1x128xf32>
    %523 = vector.shape_cast %522 : vector<1x1x128xf32> to vector<1x128xf32>
    %524 = vector.shape_cast %521 : vector<1x128xf32> to vector<1x1x128xf32>
    tpu.vector_store %arg8[%c6_556, %c2_557, %c0_558], %524 {strides = array<i32>} : memref<28x5x256xf32, #tpu.memory_space<vmem>>, vector<1x1x128xf32>,
    %525 = vector.extract_strided_slice %348 {offsets = [44, 0], sizes = [1, 128], strides = [1, 1]} : vector<192x128xf32> to vector<1x128xf32>
    %c6_559 = arith.constant 6 : index
    %c2_560 = arith.constant 2 : index
    %c128_561 = arith.constant 128 : index
    %526 = vector.load %arg8[%c6_559, %c2_560, %c128_561] : memref<28x5x256xf32, #tpu.memory_space<vmem>>, vector<1x1x128xf32>
    %527 = vector.shape_cast %526 : vector<1x1x128xf32> to vector<1x128xf32>
    %528 = vector.shape_cast %525 : vector<1x128xf32> to vector<1x1x128xf32>
    tpu.vector_store %arg8[%c6_559, %c2_560, %c128_561], %528 {strides = array<i32>} : memref<28x5x256xf32, #tpu.memory_space<vmem>>, vector<1x1x128xf32>,
    %529 = vector.extract_strided_slice %348 {offsets = [45, 0], sizes = [1, 128], strides = [1, 1]} : vector<192x128xf32> to vector<1x128xf32>
    %c6_562 = arith.constant 6 : index
    %c3_563 = arith.constant 3 : index
    %c0_564 = arith.constant 0 : index
    %530 = vector.load %arg8[%c6_562, %c3_563, %c0_564] : memref<28x5x256xf32, #tpu.memory_space<vmem>>, vector<1x1x128xf32>
    %531 = vector.shape_cast %530 : vector<1x1x128xf32> to vector<1x128xf32>
    %532 = vector.shape_cast %529 : vector<1x128xf32> to vector<1x1x128xf32>
    tpu.vector_store %arg8[%c6_562, %c3_563, %c0_564], %532 {strides = array<i32>} : memref<28x5x256xf32, #tpu.memory_space<vmem>>, vector<1x1x128xf32>,
    %533 = vector.extract_strided_slice %348 {offsets = [46, 0], sizes = [1, 128], strides = [1, 1]} : vector<192x128xf32> to vector<1x128xf32>
    %c6_565 = arith.constant 6 : index
    %c3_566 = arith.constant 3 : index
    %c128_567 = arith.constant 128 : index
    %534 = vector.load %arg8[%c6_565, %c3_566, %c128_567] : memref<28x5x256xf32, #tpu.memory_space<vmem>>, vector<1x1x128xf32>
    %535 = vector.shape_cast %534 : vector<1x1x128xf32> to vector<1x128xf32>
    %536 = vector.shape_cast %533 : vector<1x128xf32> to vector<1x1x128xf32>
    tpu.vector_store %arg8[%c6_565, %c3_566, %c128_567], %536 {strides = array<i32>} : memref<28x5x256xf32, #tpu.memory_space<vmem>>, vector<1x1x128xf32>,
    %537 = vector.extract_strided_slice %348 {offsets = [47, 0], sizes = [1, 128], strides = [1, 1]} : vector<192x128xf32> to vector<1x128xf32>
    %c6_568 = arith.constant 6 : index
    %c4_569 = arith.constant 4 : index
    %c0_570 = arith.constant 0 : index
    %538 = vector.load %arg8[%c6_568, %c4_569, %c0_570] : memref<28x5x256xf32, #tpu.memory_space<vmem>>, vector<1x1x128xf32>
    %539 = vector.shape_cast %538 : vector<1x1x128xf32> to vector<1x128xf32>
    %540 = vector.shape_cast %537 : vector<1x128xf32> to vector<1x1x128xf32>
    tpu.vector_store %arg8[%c6_568, %c4_569, %c0_570], %540 {strides = array<i32>} : memref<28x5x256xf32, #tpu.memory_space<vmem>>, vector<1x1x128xf32>,
    %541 = vector.extract_strided_slice %348 {offsets = [48, 0], sizes = [1, 128], strides = [1, 1]} : vector<192x128xf32> to vector<1x128xf32>
    %c7_571 = arith.constant 7 : index
    %c0_572 = arith.constant 0 : index
    %c128_573 = arith.constant 128 : index
    %542 = vector.load %arg8[%c7_571, %c0_572, %c128_573] : memref<28x5x256xf32, #tpu.memory_space<vmem>>, vector<1x1x128xf32>
    %543 = vector.shape_cast %542 : vector<1x1x128xf32> to vector<1x128xf32>
    %544 = vector.shape_cast %541 : vector<1x128xf32> to vector<1x1x128xf32>
    tpu.vector_store %arg8[%c7_571, %c0_572, %c128_573], %544 {strides = array<i32>} : memref<28x5x256xf32, #tpu.memory_space<vmem>>, vector<1x1x128xf32>,
    %545 = vector.extract_strided_slice %348 {offsets = [49, 0], sizes = [1, 128], strides = [1, 1]} : vector<192x128xf32> to vector<1x128xf32>
    %c7_574 = arith.constant 7 : index
    %c1_575 = arith.constant 1 : index
    %c0_576 = arith.constant 0 : index
    %546 = vector.load %arg8[%c7_574, %c1_575, %c0_576] : memref<28x5x256xf32, #tpu.memory_space<vmem>>, vector<1x1x128xf32>
    %547 = vector.shape_cast %546 : vector<1x1x128xf32> to vector<1x128xf32>
    %548 = vector.shape_cast %545 : vector<1x128xf32> to vector<1x1x128xf32>
    tpu.vector_store %arg8[%c7_574, %c1_575, %c0_576], %548 {strides = array<i32>} : memref<28x5x256xf32, #tpu.memory_space<vmem>>, vector<1x1x128xf32>,
    %549 = vector.extract_strided_slice %348 {offsets = [50, 0], sizes = [1, 128], strides = [1, 1]} : vector<192x128xf32> to vector<1x128xf32>
    %c7_577 = arith.constant 7 : index
    %c1_578 = arith.constant 1 : index
    %c128_579 = arith.constant 128 : index
    %550 = vector.load %arg8[%c7_577, %c1_578, %c128_579] : memref<28x5x256xf32, #tpu.memory_space<vmem>>, vector<1x1x128xf32>
    %551 = vector.shape_cast %550 : vector<1x1x128xf32> to vector<1x128xf32>
    %552 = vector.shape_cast %549 : vector<1x128xf32> to vector<1x1x128xf32>
    tpu.vector_store %arg8[%c7_577, %c1_578, %c128_579], %552 {strides = array<i32>} : memref<28x5x256xf32, #tpu.memory_space<vmem>>, vector<1x1x128xf32>,
    %553 = vector.extract_strided_slice %348 {offsets = [51, 0], sizes = [1, 128], strides = [1, 1]} : vector<192x128xf32> to vector<1x128xf32>
    %c7_580 = arith.constant 7 : index
    %c2_581 = arith.constant 2 : index
    %c0_582 = arith.constant 0 : index
    %554 = vector.load %arg8[%c7_580, %c2_581, %c0_582] : memref<28x5x256xf32, #tpu.memory_space<vmem>>, vector<1x1x128xf32>
    %555 = vector.shape_cast %554 : vector<1x1x128xf32> to vector<1x128xf32>
    %556 = vector.shape_cast %553 : vector<1x128xf32> to vector<1x1x128xf32>
    tpu.vector_store %arg8[%c7_580, %c2_581, %c0_582], %556 {strides = array<i32>} : memref<28x5x256xf32, #tpu.memory_space<vmem>>, vector<1x1x128xf32>,
    %557 = vector.extract_strided_slice %348 {offsets = [52, 0], sizes = [1, 128], strides = [1, 1]} : vector<192x128xf32> to vector<1x128xf32>
    %c7_583 = arith.constant 7 : index
    %c2_584 = arith.constant 2 : index
    %c128_585 = arith.constant 128 : index
    %558 = vector.load %arg8[%c7_583, %c2_584, %c128_585] : memref<28x5x256xf32, #tpu.memory_space<vmem>>, vector<1x1x128xf32>
    %559 = vector.shape_cast %558 : vector<1x1x128xf32> to vector<1x128xf32>
    %560 = vector.shape_cast %557 : vector<1x128xf32> to vector<1x1x128xf32>
    tpu.vector_store %arg8[%c7_583, %c2_584, %c128_585], %560 {strides = array<i32>} : memref<28x5x256xf32, #tpu.memory_space<vmem>>, vector<1x1x128xf32>,
    %561 = vector.extract_strided_slice %348 {offsets = [53, 0], sizes = [1, 128], strides = [1, 1]} : vector<192x128xf32> to vector<1x128xf32>
    %c7_586 = arith.constant 7 : index
    %c3_587 = arith.constant 3 : index
    %c0_588 = arith.constant 0 : index
    %562 = vector.load %arg8[%c7_586, %c3_587, %c0_588] : memref<28x5x256xf32, #tpu.memory_space<vmem>>, vector<1x1x128xf32>
    %563 = vector.shape_cast %562 : vector<1x1x128xf32> to vector<1x128xf32>
    %564 = vector.shape_cast %561 : vector<1x128xf32> to vector<1x1x128xf32>
    tpu.vector_store %arg8[%c7_586, %c3_587, %c0_588], %564 {strides = array<i32>} : memref<28x5x256xf32, #tpu.memory_space<vmem>>, vector<1x1x128xf32>,
    %565 = vector.extract_strided_slice %348 {offsets = [54, 0], sizes = [1, 128], strides = [1, 1]} : vector<192x128xf32> to vector<1x128xf32>
    %c7_589 = arith.constant 7 : index
    %c3_590 = arith.constant 3 : index
    %c128_591 = arith.constant 128 : index
    %566 = vector.load %arg8[%c7_589, %c3_590, %c128_591] : memref<28x5x256xf32, #tpu.memory_space<vmem>>, vector<1x1x128xf32>
    %567 = vector.shape_cast %566 : vector<1x1x128xf32> to vector<1x128xf32>
    %568 = vector.shape_cast %565 : vector<1x128xf32> to vector<1x1x128xf32>
    tpu.vector_store %arg8[%c7_589, %c3_590, %c128_591], %568 {strides = array<i32>} : memref<28x5x256xf32, #tpu.memory_space<vmem>>, vector<1x1x128xf32>,
    %569 = vector.extract_strided_slice %348 {offsets = [55, 0], sizes = [1, 128], strides = [1, 1]} : vector<192x128xf32> to vector<1x128xf32>
    %c7_592 = arith.constant 7 : index
    %c4_593 = arith.constant 4 : index
    %c0_594 = arith.constant 0 : index
    %570 = vector.load %arg8[%c7_592, %c4_593, %c0_594] : memref<28x5x256xf32, #tpu.memory_space<vmem>>, vector<1x1x128xf32>
    %571 = vector.shape_cast %570 : vector<1x1x128xf32> to vector<1x128xf32>
    %572 = vector.shape_cast %569 : vector<1x128xf32> to vector<1x1x128xf32>
    tpu.vector_store %arg8[%c7_592, %c4_593, %c0_594], %572 {strides = array<i32>} : memref<28x5x256xf32, #tpu.memory_space<vmem>>, vector<1x1x128xf32>,
    %573 = vector.extract_strided_slice %348 {offsets = [56, 0], sizes = [1, 128], strides = [1, 1]} : vector<192x128xf32> to vector<1x128xf32>
    %c8_595 = arith.constant 8 : index
    %c0_596 = arith.constant 0 : index
    %c128_597 = arith.constant 128 : index
    %574 = vector.load %arg8[%c8_595, %c0_596, %c128_597] : memref<28x5x256xf32, #tpu.memory_space<vmem>>, vector<1x1x128xf32>
    %575 = vector.shape_cast %574 : vector<1x1x128xf32> to vector<1x128xf32>
    %576 = vector.shape_cast %573 : vector<1x128xf32> to vector<1x1x128xf32>
    tpu.vector_store %arg8[%c8_595, %c0_596, %c128_597], %576 {strides = array<i32>} : memref<28x5x256xf32, #tpu.memory_space<vmem>>, vector<1x1x128xf32>,
    %577 = vector.extract_strided_slice %348 {offsets = [57, 0], sizes = [1, 128], strides = [1, 1]} : vector<192x128xf32> to vector<1x128xf32>
    %c8_598 = arith.constant 8 : index
    %c1_599 = arith.constant 1 : index
    %c0_600 = arith.constant 0 : index
    %578 = vector.load %arg8[%c8_598, %c1_599, %c0_600] : memref<28x5x256xf32, #tpu.memory_space<vmem>>, vector<1x1x128xf32>
    %579 = vector.shape_cast %578 : vector<1x1x128xf32> to vector<1x128xf32>
    %580 = vector.shape_cast %577 : vector<1x128xf32> to vector<1x1x128xf32>
    tpu.vector_store %arg8[%c8_598, %c1_599, %c0_600], %580 {strides = array<i32>} : memref<28x5x256xf32, #tpu.memory_space<vmem>>, vector<1x1x128xf32>,
    %581 = vector.extract_strided_slice %348 {offsets = [58, 0], sizes = [1, 128], strides = [1, 1]} : vector<192x128xf32> to vector<1x128xf32>
    %c8_601 = arith.constant 8 : index
    %c1_602 = arith.constant 1 : index
    %c128_603 = arith.constant 128 : index
    %582 = vector.load %arg8[%c8_601, %c1_602, %c128_603] : memref<28x5x256xf32, #tpu.memory_space<vmem>>, vector<1x1x128xf32>
    %583 = vector.shape_cast %582 : vector<1x1x128xf32> to vector<1x128xf32>
    %584 = vector.shape_cast %581 : vector<1x128xf32> to vector<1x1x128xf32>
    tpu.vector_store %arg8[%c8_601, %c1_602, %c128_603], %584 {strides = array<i32>} : memref<28x5x256xf32, #tpu.memory_space<vmem>>, vector<1x1x128xf32>,
    %585 = vector.extract_strided_slice %348 {offsets = [59, 0], sizes = [1, 128], strides = [1, 1]} : vector<192x128xf32> to vector<1x128xf32>
    %c8_604 = arith.constant 8 : index
    %c2_605 = arith.constant 2 : index
    %c0_606 = arith.constant 0 : index
    %586 = vector.load %arg8[%c8_604, %c2_605, %c0_606] : memref<28x5x256xf32, #tpu.memory_space<vmem>>, vector<1x1x128xf32>
    %587 = vector.shape_cast %586 : vector<1x1x128xf32> to vector<1x128xf32>
    %588 = vector.shape_cast %585 : vector<1x128xf32> to vector<1x1x128xf32>
    tpu.vector_store %arg8[%c8_604, %c2_605, %c0_606], %588 {strides = array<i32>} : memref<28x5x256xf32, #tpu.memory_space<vmem>>, vector<1x1x128xf32>,
    %589 = vector.extract_strided_slice %348 {offsets = [60, 0], sizes = [1, 128], strides = [1, 1]} : vector<192x128xf32> to vector<1x128xf32>
    %c8_607 = arith.constant 8 : index
    %c2_608 = arith.constant 2 : index
    %c128_609 = arith.constant 128 : index
    %590 = vector.load %arg8[%c8_607, %c2_608, %c128_609] : memref<28x5x256xf32, #tpu.memory_space<vmem>>, vector<1x1x128xf32>
    %591 = vector.shape_cast %590 : vector<1x1x128xf32> to vector<1x128xf32>
    %592 = vector.shape_cast %589 : vector<1x128xf32> to vector<1x1x128xf32>
    tpu.vector_store %arg8[%c8_607, %c2_608, %c128_609], %592 {strides = array<i32>} : memref<28x5x256xf32, #tpu.memory_space<vmem>>, vector<1x1x128xf32>,
    %593 = vector.extract_strided_slice %348 {offsets = [61, 0], sizes = [1, 128], strides = [1, 1]} : vector<192x128xf32> to vector<1x128xf32>
    %c8_610 = arith.constant 8 : index
    %c3_611 = arith.constant 3 : index
    %c0_612 = arith.constant 0 : index
    %594 = vector.load %arg8[%c8_610, %c3_611, %c0_612] : memref<28x5x256xf32, #tpu.memory_space<vmem>>, vector<1x1x128xf32>
    %595 = vector.shape_cast %594 : vector<1x1x128xf32> to vector<1x128xf32>
    %596 = vector.shape_cast %593 : vector<1x128xf32> to vector<1x1x128xf32>
    tpu.vector_store %arg8[%c8_610, %c3_611, %c0_612], %596 {strides = array<i32>} : memref<28x5x256xf32, #tpu.memory_space<vmem>>, vector<1x1x128xf32>,
    %597 = vector.extract_strided_slice %348 {offsets = [62, 0], sizes = [1, 128], strides = [1, 1]} : vector<192x128xf32> to vector<1x128xf32>
    %c8_613 = arith.constant 8 : index
    %c3_614 = arith.constant 3 : index
    %c128_615 = arith.constant 128 : index
    %598 = vector.load %arg8[%c8_613, %c3_614, %c128_615] : memref<28x5x256xf32, #tpu.memory_space<vmem>>, vector<1x1x128xf32>
    %599 = vector.shape_cast %598 : vector<1x1x128xf32> to vector<1x128xf32>
    %600 = vector.shape_cast %597 : vector<1x128xf32> to vector<1x1x128xf32>
    tpu.vector_store %arg8[%c8_613, %c3_614, %c128_615], %600 {strides = array<i32>} : memref<28x5x256xf32, #tpu.memory_space<vmem>>, vector<1x1x128xf32>,
    %601 = vector.extract_strided_slice %348 {offsets = [63, 0], sizes = [1, 128], strides = [1, 1]} : vector<192x128xf32> to vector<1x128xf32>
    %c8_616 = arith.constant 8 : index
    %c4_617 = arith.constant 4 : index
    %c0_618 = arith.constant 0 : index
    %602 = vector.load %arg8[%c8_616, %c4_617, %c0_618] : memref<28x5x256xf32, #tpu.memory_space<vmem>>, vector<1x1x128xf32>
    %603 = vector.shape_cast %602 : vector<1x1x128xf32> to vector<1x128xf32>
    %604 = vector.shape_cast %601 : vector<1x128xf32> to vector<1x1x128xf32>
    tpu.vector_store %arg8[%c8_616, %c4_617, %c0_618], %604 {strides = array<i32>} : memref<28x5x256xf32, #tpu.memory_space<vmem>>, vector<1x1x128xf32>,
    %605 = vector.extract_strided_slice %348 {offsets = [64, 0], sizes = [1, 128], strides = [1, 1]} : vector<192x128xf32> to vector<1x128xf32>
    %c9_619 = arith.constant 9 : index
    %c0_620 = arith.constant 0 : index
    %c128_621 = arith.constant 128 : index
    %606 = vector.load %arg8[%c9_619, %c0_620, %c128_621] : memref<28x5x256xf32, #tpu.memory_space<vmem>>, vector<1x1x128xf32>
    %607 = vector.shape_cast %606 : vector<1x1x128xf32> to vector<1x128xf32>
    %608 = vector.shape_cast %605 : vector<1x128xf32> to vector<1x1x128xf32>
    tpu.vector_store %arg8[%c9_619, %c0_620, %c128_621], %608 {strides = array<i32>} : memref<28x5x256xf32, #tpu.memory_space<vmem>>, vector<1x1x128xf32>,
    %609 = vector.extract_strided_slice %348 {offsets = [65, 0], sizes = [1, 128], strides = [1, 1]} : vector<192x128xf32> to vector<1x128xf32>
    %c9_622 = arith.constant 9 : index
    %c1_623 = arith.constant 1 : index
    %c0_624 = arith.constant 0 : index
    %610 = vector.load %arg8[%c9_622, %c1_623, %c0_624] : memref<28x5x256xf32, #tpu.memory_space<vmem>>, vector<1x1x128xf32>
    %611 = vector.shape_cast %610 : vector<1x1x128xf32> to vector<1x128xf32>
    %612 = vector.shape_cast %609 : vector<1x128xf32> to vector<1x1x128xf32>
    tpu.vector_store %arg8[%c9_622, %c1_623, %c0_624], %612 {strides = array<i32>} : memref<28x5x256xf32, #tpu.memory_space<vmem>>, vector<1x1x128xf32>,
    %613 = vector.extract_strided_slice %348 {offsets = [66, 0], sizes = [1, 128], strides = [1, 1]} : vector<192x128xf32> to vector<1x128xf32>
    %c9_625 = arith.constant 9 : index
    %c1_626 = arith.constant 1 : index
    %c128_627 = arith.constant 128 : index
    %614 = vector.load %arg8[%c9_625, %c1_626, %c128_627] : memref<28x5x256xf32, #tpu.memory_space<vmem>>, vector<1x1x128xf32>
    %615 = vector.shape_cast %614 : vector<1x1x128xf32> to vector<1x128xf32>
    %616 = vector.shape_cast %613 : vector<1x128xf32> to vector<1x1x128xf32>
    tpu.vector_store %arg8[%c9_625, %c1_626, %c128_627], %616 {strides = array<i32>} : memref<28x5x256xf32, #tpu.memory_space<vmem>>, vector<1x1x128xf32>,
    %617 = vector.extract_strided_slice %348 {offsets = [67, 0], sizes = [1, 128], strides = [1, 1]} : vector<192x128xf32> to vector<1x128xf32>
    %c9_628 = arith.constant 9 : index
    %c2_629 = arith.constant 2 : index
    %c0_630 = arith.constant 0 : index
    %618 = vector.load %arg8[%c9_628, %c2_629, %c0_630] : memref<28x5x256xf32, #tpu.memory_space<vmem>>, vector<1x1x128xf32>
    %619 = vector.shape_cast %618 : vector<1x1x128xf32> to vector<1x128xf32>
    %620 = vector.shape_cast %617 : vector<1x128xf32> to vector<1x1x128xf32>
    tpu.vector_store %arg8[%c9_628, %c2_629, %c0_630], %620 {strides = array<i32>} : memref<28x5x256xf32, #tpu.memory_space<vmem>>, vector<1x1x128xf32>,
    %621 = vector.extract_strided_slice %348 {offsets = [68, 0], sizes = [1, 128], strides = [1, 1]} : vector<192x128xf32> to vector<1x128xf32>
    %c9_631 = arith.constant 9 : index
    %c2_632 = arith.constant 2 : index
    %c128_633 = arith.constant 128 : index
    %622 = vector.load %arg8[%c9_631, %c2_632, %c128_633] : memref<28x5x256xf32, #tpu.memory_space<vmem>>, vector<1x1x128xf32>
    %623 = vector.shape_cast %622 : vector<1x1x128xf32> to vector<1x128xf32>
    %624 = vector.shape_cast %621 : vector<1x128xf32> to vector<1x1x128xf32>
    tpu.vector_store %arg8[%c9_631, %c2_632, %c128_633], %624 {strides = array<i32>} : memref<28x5x256xf32, #tpu.memory_space<vmem>>, vector<1x1x128xf32>,
    %625 = vector.extract_strided_slice %348 {offsets = [69, 0], sizes = [1, 128], strides = [1, 1]} : vector<192x128xf32> to vector<1x128xf32>
    %c9_634 = arith.constant 9 : index
    %c3_635 = arith.constant 3 : index
    %c0_636 = arith.constant 0 : index
    %626 = vector.load %arg8[%c9_634, %c3_635, %c0_636] : memref<28x5x256xf32, #tpu.memory_space<vmem>>, vector<1x1x128xf32>
    %627 = vector.shape_cast %626 : vector<1x1x128xf32> to vector<1x128xf32>
    %628 = vector.shape_cast %625 : vector<1x128xf32> to vector<1x1x128xf32>
    tpu.vector_store %arg8[%c9_634, %c3_635, %c0_636], %628 {strides = array<i32>} : memref<28x5x256xf32, #tpu.memory_space<vmem>>, vector<1x1x128xf32>,
    %629 = vector.extract_strided_slice %348 {offsets = [70, 0], sizes = [1, 128], strides = [1, 1]} : vector<192x128xf32> to vector<1x128xf32>
    %c9_637 = arith.constant 9 : index
    %c3_638 = arith.constant 3 : index
    %c128_639 = arith.constant 128 : index
    %630 = vector.load %arg8[%c9_637, %c3_638, %c128_639] : memref<28x5x256xf32, #tpu.memory_space<vmem>>, vector<1x1x128xf32>
    %631 = vector.shape_cast %630 : vector<1x1x128xf32> to vector<1x128xf32>
    %632 = vector.shape_cast %629 : vector<1x128xf32> to vector<1x1x128xf32>
    tpu.vector_store %arg8[%c9_637, %c3_638, %c128_639], %632 {strides = array<i32>} : memref<28x5x256xf32, #tpu.memory_space<vmem>>, vector<1x1x128xf32>,
    %633 = vector.extract_strided_slice %348 {offsets = [71, 0], sizes = [1, 128], strides = [1, 1]} : vector<192x128xf32> to vector<1x128xf32>
    %c9_640 = arith.constant 9 : index
    %c4_641 = arith.constant 4 : index
    %c0_642 = arith.constant 0 : index
    %634 = vector.load %arg8[%c9_640, %c4_641, %c0_642] : memref<28x5x256xf32, #tpu.memory_space<vmem>>, vector<1x1x128xf32>
    %635 = vector.shape_cast %634 : vector<1x1x128xf32> to vector<1x128xf32>
    %636 = vector.shape_cast %633 : vector<1x128xf32> to vector<1x1x128xf32>
    tpu.vector_store %arg8[%c9_640, %c4_641, %c0_642], %636 {strides = array<i32>} : memref<28x5x256xf32, #tpu.memory_space<vmem>>, vector<1x1x128xf32>,
    %637 = vector.extract_strided_slice %348 {offsets = [72, 0], sizes = [1, 128], strides = [1, 1]} : vector<192x128xf32> to vector<1x128xf32>
    %c10_643 = arith.constant 10 : index
    %c0_644 = arith.constant 0 : index
    %c128_645 = arith.constant 128 : index
    %638 = vector.load %arg8[%c10_643, %c0_644, %c128_645] : memref<28x5x256xf32, #tpu.memory_space<vmem>>, vector<1x1x128xf32>
    %639 = vector.shape_cast %638 : vector<1x1x128xf32> to vector<1x128xf32>
    %640 = vector.shape_cast %637 : vector<1x128xf32> to vector<1x1x128xf32>
    tpu.vector_store %arg8[%c10_643, %c0_644, %c128_645], %640 {strides = array<i32>} : memref<28x5x256xf32, #tpu.memory_space<vmem>>, vector<1x1x128xf32>,
    %641 = vector.extract_strided_slice %348 {offsets = [73, 0], sizes = [1, 128], strides = [1, 1]} : vector<192x128xf32> to vector<1x128xf32>
    %c10_646 = arith.constant 10 : index
    %c1_647 = arith.constant 1 : index
    %c0_648 = arith.constant 0 : index
    %642 = vector.load %arg8[%c10_646, %c1_647, %c0_648] : memref<28x5x256xf32, #tpu.memory_space<vmem>>, vector<1x1x128xf32>
    %643 = vector.shape_cast %642 : vector<1x1x128xf32> to vector<1x128xf32>
    %644 = vector.shape_cast %641 : vector<1x128xf32> to vector<1x1x128xf32>
    tpu.vector_store %arg8[%c10_646, %c1_647, %c0_648], %644 {strides = array<i32>} : memref<28x5x256xf32, #tpu.memory_space<vmem>>, vector<1x1x128xf32>,
    %645 = vector.extract_strided_slice %348 {offsets = [74, 0], sizes = [1, 128], strides = [1, 1]} : vector<192x128xf32> to vector<1x128xf32>
    %c10_649 = arith.constant 10 : index
    %c1_650 = arith.constant 1 : index
    %c128_651 = arith.constant 128 : index
    %646 = vector.load %arg8[%c10_649, %c1_650, %c128_651] : memref<28x5x256xf32, #tpu.memory_space<vmem>>, vector<1x1x128xf32>
    %647 = vector.shape_cast %646 : vector<1x1x128xf32> to vector<1x128xf32>
    %648 = vector.shape_cast %645 : vector<1x128xf32> to vector<1x1x128xf32>
    tpu.vector_store %arg8[%c10_649, %c1_650, %c128_651], %648 {strides = array<i32>} : memref<28x5x256xf32, #tpu.memory_space<vmem>>, vector<1x1x128xf32>,
    %649 = vector.extract_strided_slice %348 {offsets = [75, 0], sizes = [1, 128], strides = [1, 1]} : vector<192x128xf32> to vector<1x128xf32>
    %c10_652 = arith.constant 10 : index
    %c2_653 = arith.constant 2 : index
    %c0_654 = arith.constant 0 : index
    %650 = vector.load %arg8[%c10_652, %c2_653, %c0_654] : memref<28x5x256xf32, #tpu.memory_space<vmem>>, vector<1x1x128xf32>
    %651 = vector.shape_cast %650 : vector<1x1x128xf32> to vector<1x128xf32>
    %652 = vector.shape_cast %649 : vector<1x128xf32> to vector<1x1x128xf32>
    tpu.vector_store %arg8[%c10_652, %c2_653, %c0_654], %652 {strides = array<i32>} : memref<28x5x256xf32, #tpu.memory_space<vmem>>, vector<1x1x128xf32>,
    %653 = vector.extract_strided_slice %348 {offsets = [76, 0], sizes = [1, 128], strides = [1, 1]} : vector<192x128xf32> to vector<1x128xf32>
    %c10_655 = arith.constant 10 : index
    %c2_656 = arith.constant 2 : index
    %c128_657 = arith.constant 128 : index
    %654 = vector.load %arg8[%c10_655, %c2_656, %c128_657] : memref<28x5x256xf32, #tpu.memory_space<vmem>>, vector<1x1x128xf32>
    %655 = vector.shape_cast %654 : vector<1x1x128xf32> to vector<1x128xf32>
    %656 = vector.shape_cast %653 : vector<1x128xf32> to vector<1x1x128xf32>
    tpu.vector_store %arg8[%c10_655, %c2_656, %c128_657], %656 {strides = array<i32>} : memref<28x5x256xf32, #tpu.memory_space<vmem>>, vector<1x1x128xf32>,
    %657 = vector.extract_strided_slice %348 {offsets = [77, 0], sizes = [1, 128], strides = [1, 1]} : vector<192x128xf32> to vector<1x128xf32>
    %c10_658 = arith.constant 10 : index
    %c3_659 = arith.constant 3 : index
    %c0_660 = arith.constant 0 : index
    %658 = vector.load %arg8[%c10_658, %c3_659, %c0_660] : memref<28x5x256xf32, #tpu.memory_space<vmem>>, vector<1x1x128xf32>
    %659 = vector.shape_cast %658 : vector<1x1x128xf32> to vector<1x128xf32>
    %660 = vector.shape_cast %657 : vector<1x128xf32> to vector<1x1x128xf32>
    tpu.vector_store %arg8[%c10_658, %c3_659, %c0_660], %660 {strides = array<i32>} : memref<28x5x256xf32, #tpu.memory_space<vmem>>, vector<1x1x128xf32>,
    %661 = vector.extract_strided_slice %348 {offsets = [78, 0], sizes = [1, 128], strides = [1, 1]} : vector<192x128xf32> to vector<1x128xf32>
    %c10_661 = arith.constant 10 : index
    %c3_662 = arith.constant 3 : index
    %c128_663 = arith.constant 128 : index
    %662 = vector.load %arg8[%c10_661, %c3_662, %c128_663] : memref<28x5x256xf32, #tpu.memory_space<vmem>>, vector<1x1x128xf32>
    %663 = vector.shape_cast %662 : vector<1x1x128xf32> to vector<1x128xf32>
    %664 = vector.shape_cast %661 : vector<1x128xf32> to vector<1x1x128xf32>
    tpu.vector_store %arg8[%c10_661, %c3_662, %c128_663], %664 {strides = array<i32>} : memref<28x5x256xf32, #tpu.memory_space<vmem>>, vector<1x1x128xf32>,
    %665 = vector.extract_strided_slice %348 {offsets = [79, 0], sizes = [1, 128], strides = [1, 1]} : vector<192x128xf32> to vector<1x128xf32>
    %c10_664 = arith.constant 10 : index
    %c4_665 = arith.constant 4 : index
    %c0_666 = arith.constant 0 : index
    %666 = vector.load %arg8[%c10_664, %c4_665, %c0_666] : memref<28x5x256xf32, #tpu.memory_space<vmem>>, vector<1x1x128xf32>
    %667 = vector.shape_cast %666 : vector<1x1x128xf32> to vector<1x128xf32>
    %668 = vector.shape_cast %665 : vector<1x128xf32> to vector<1x1x128xf32>
    tpu.vector_store %arg8[%c10_664, %c4_665, %c0_666], %668 {strides = array<i32>} : memref<28x5x256xf32, #tpu.memory_space<vmem>>, vector<1x1x128xf32>,
    %669 = vector.extract_strided_slice %348 {offsets = [80, 0], sizes = [1, 128], strides = [1, 1]} : vector<192x128xf32> to vector<1x128xf32>
    %c11_667 = arith.constant 11 : index
    %c0_668 = arith.constant 0 : index
    %c128_669 = arith.constant 128 : index
    %670 = vector.load %arg8[%c11_667, %c0_668, %c128_669] : memref<28x5x256xf32, #tpu.memory_space<vmem>>, vector<1x1x128xf32>
    %671 = vector.shape_cast %670 : vector<1x1x128xf32> to vector<1x128xf32>
    %672 = vector.shape_cast %669 : vector<1x128xf32> to vector<1x1x128xf32>
    tpu.vector_store %arg8[%c11_667, %c0_668, %c128_669], %672 {strides = array<i32>} : memref<28x5x256xf32, #tpu.memory_space<vmem>>, vector<1x1x128xf32>,
    %673 = vector.extract_strided_slice %348 {offsets = [81, 0], sizes = [1, 128], strides = [1, 1]} : vector<192x128xf32> to vector<1x128xf32>
    %c11_670 = arith.constant 11 : index
    %c1_671 = arith.constant 1 : index
    %c0_672 = arith.constant 0 : index
    %674 = vector.load %arg8[%c11_670, %c1_671, %c0_672] : memref<28x5x256xf32, #tpu.memory_space<vmem>>, vector<1x1x128xf32>
    %675 = vector.shape_cast %674 : vector<1x1x128xf32> to vector<1x128xf32>
    %676 = vector.shape_cast %673 : vector<1x128xf32> to vector<1x1x128xf32>
    tpu.vector_store %arg8[%c11_670, %c1_671, %c0_672], %676 {strides = array<i32>} : memref<28x5x256xf32, #tpu.memory_space<vmem>>, vector<1x1x128xf32>,
    %677 = vector.extract_strided_slice %348 {offsets = [82, 0], sizes = [1, 128], strides = [1, 1]} : vector<192x128xf32> to vector<1x128xf32>
    %c11_673 = arith.constant 11 : index
    %c1_674 = arith.constant 1 : index
    %c128_675 = arith.constant 128 : index
    %678 = vector.load %arg8[%c11_673, %c1_674, %c128_675] : memref<28x5x256xf32, #tpu.memory_space<vmem>>, vector<1x1x128xf32>
    %679 = vector.shape_cast %678 : vector<1x1x128xf32> to vector<1x128xf32>
    %680 = vector.shape_cast %677 : vector<1x128xf32> to vector<1x1x128xf32>
    tpu.vector_store %arg8[%c11_673, %c1_674, %c128_675], %680 {strides = array<i32>} : memref<28x5x256xf32, #tpu.memory_space<vmem>>, vector<1x1x128xf32>,
    %681 = vector.extract_strided_slice %348 {offsets = [83, 0], sizes = [1, 128], strides = [1, 1]} : vector<192x128xf32> to vector<1x128xf32>
    %c11_676 = arith.constant 11 : index
    %c2_677 = arith.constant 2 : index
    %c0_678 = arith.constant 0 : index
    %682 = vector.load %arg8[%c11_676, %c2_677, %c0_678] : memref<28x5x256xf32, #tpu.memory_space<vmem>>, vector<1x1x128xf32>
    %683 = vector.shape_cast %682 : vector<1x1x128xf32> to vector<1x128xf32>
    %684 = vector.shape_cast %681 : vector<1x128xf32> to vector<1x1x128xf32>
    tpu.vector_store %arg8[%c11_676, %c2_677, %c0_678], %684 {strides = array<i32>} : memref<28x5x256xf32, #tpu.memory_space<vmem>>, vector<1x1x128xf32>,
    %685 = vector.extract_strided_slice %348 {offsets = [84, 0], sizes = [1, 128], strides = [1, 1]} : vector<192x128xf32> to vector<1x128xf32>
    %c11_679 = arith.constant 11 : index
    %c2_680 = arith.constant 2 : index
    %c128_681 = arith.constant 128 : index
    %686 = vector.load %arg8[%c11_679, %c2_680, %c128_681] : memref<28x5x256xf32, #tpu.memory_space<vmem>>, vector<1x1x128xf32>
    %687 = vector.shape_cast %686 : vector<1x1x128xf32> to vector<1x128xf32>
    %688 = vector.shape_cast %685 : vector<1x128xf32> to vector<1x1x128xf32>
    tpu.vector_store %arg8[%c11_679, %c2_680, %c128_681], %688 {strides = array<i32>} : memref<28x5x256xf32, #tpu.memory_space<vmem>>, vector<1x1x128xf32>,
    %689 = vector.extract_strided_slice %348 {offsets = [85, 0], sizes = [1, 128], strides = [1, 1]} : vector<192x128xf32> to vector<1x128xf32>
    %c11_682 = arith.constant 11 : index
    %c3_683 = arith.constant 3 : index
    %c0_684 = arith.constant 0 : index
    %690 = vector.load %arg8[%c11_682, %c3_683, %c0_684] : memref<28x5x256xf32, #tpu.memory_space<vmem>>, vector<1x1x128xf32>
    %691 = vector.shape_cast %690 : vector<1x1x128xf32> to vector<1x128xf32>
    %692 = vector.shape_cast %689 : vector<1x128xf32> to vector<1x1x128xf32>
    tpu.vector_store %arg8[%c11_682, %c3_683, %c0_684], %692 {strides = array<i32>} : memref<28x5x256xf32, #tpu.memory_space<vmem>>, vector<1x1x128xf32>,
    %693 = vector.extract_strided_slice %348 {offsets = [86, 0], sizes = [1, 128], strides = [1, 1]} : vector<192x128xf32> to vector<1x128xf32>
    %c11_685 = arith.constant 11 : index
    %c3_686 = arith.constant 3 : index
    %c128_687 = arith.constant 128 : index
    %694 = vector.load %arg8[%c11_685, %c3_686, %c128_687] : memref<28x5x256xf32, #tpu.memory_space<vmem>>, vector<1x1x128xf32>
    %695 = vector.shape_cast %694 : vector<1x1x128xf32> to vector<1x128xf32>
    %696 = vector.shape_cast %693 : vector<1x128xf32> to vector<1x1x128xf32>
    tpu.vector_store %arg8[%c11_685, %c3_686, %c128_687], %696 {strides = array<i32>} : memref<28x5x256xf32, #tpu.memory_space<vmem>>, vector<1x1x128xf32>,
    %697 = vector.extract_strided_slice %348 {offsets = [87, 0], sizes = [1, 128], strides = [1, 1]} : vector<192x128xf32> to vector<1x128xf32>
    %c11_688 = arith.constant 11 : index
    %c4_689 = arith.constant 4 : index
    %c0_690 = arith.constant 0 : index
    %698 = vector.load %arg8[%c11_688, %c4_689, %c0_690] : memref<28x5x256xf32, #tpu.memory_space<vmem>>, vector<1x1x128xf32>
    %699 = vector.shape_cast %698 : vector<1x1x128xf32> to vector<1x128xf32>
    %700 = vector.shape_cast %697 : vector<1x128xf32> to vector<1x1x128xf32>
    tpu.vector_store %arg8[%c11_688, %c4_689, %c0_690], %700 {strides = array<i32>} : memref<28x5x256xf32, #tpu.memory_space<vmem>>, vector<1x1x128xf32>,
    %701 = vector.extract_strided_slice %348 {offsets = [88, 0], sizes = [1, 128], strides = [1, 1]} : vector<192x128xf32> to vector<1x128xf32>
    %c12_691 = arith.constant 12 : index
    %c0_692 = arith.constant 0 : index
    %c128_693 = arith.constant 128 : index
    %702 = vector.load %arg8[%c12_691, %c0_692, %c128_693] : memref<28x5x256xf32, #tpu.memory_space<vmem>>, vector<1x1x128xf32>
    %703 = vector.shape_cast %702 : vector<1x1x128xf32> to vector<1x128xf32>
    %704 = vector.shape_cast %701 : vector<1x128xf32> to vector<1x1x128xf32>
    tpu.vector_store %arg8[%c12_691, %c0_692, %c128_693], %704 {strides = array<i32>} : memref<28x5x256xf32, #tpu.memory_space<vmem>>, vector<1x1x128xf32>,
    %705 = vector.extract_strided_slice %348 {offsets = [89, 0], sizes = [1, 128], strides = [1, 1]} : vector<192x128xf32> to vector<1x128xf32>
    %c12_694 = arith.constant 12 : index
    %c1_695 = arith.constant 1 : index
    %c0_696 = arith.constant 0 : index
    %706 = vector.load %arg8[%c12_694, %c1_695, %c0_696] : memref<28x5x256xf32, #tpu.memory_space<vmem>>, vector<1x1x128xf32>
    %707 = vector.shape_cast %706 : vector<1x1x128xf32> to vector<1x128xf32>
    %708 = vector.shape_cast %705 : vector<1x128xf32> to vector<1x1x128xf32>
    tpu.vector_store %arg8[%c12_694, %c1_695, %c0_696], %708 {strides = array<i32>} : memref<28x5x256xf32, #tpu.memory_space<vmem>>, vector<1x1x128xf32>,
    %709 = vector.extract_strided_slice %348 {offsets = [90, 0], sizes = [1, 128], strides = [1, 1]} : vector<192x128xf32> to vector<1x128xf32>
    %c12_697 = arith.constant 12 : index
    %c1_698 = arith.constant 1 : index
    %c128_699 = arith.constant 128 : index
    %710 = vector.load %arg8[%c12_697, %c1_698, %c128_699] : memref<28x5x256xf32, #tpu.memory_space<vmem>>, vector<1x1x128xf32>
    %711 = vector.shape_cast %710 : vector<1x1x128xf32> to vector<1x128xf32>
    %712 = vector.shape_cast %709 : vector<1x128xf32> to vector<1x1x128xf32>
    tpu.vector_store %arg8[%c12_697, %c1_698, %c128_699], %712 {strides = array<i32>} : memref<28x5x256xf32, #tpu.memory_space<vmem>>, vector<1x1x128xf32>,
    %713 = vector.extract_strided_slice %348 {offsets = [91, 0], sizes = [1, 128], strides = [1, 1]} : vector<192x128xf32> to vector<1x128xf32>
    %c12_700 = arith.constant 12 : index
    %c2_701 = arith.constant 2 : index
    %c0_702 = arith.constant 0 : index
    %714 = vector.load %arg8[%c12_700, %c2_701, %c0_702] : memref<28x5x256xf32, #tpu.memory_space<vmem>>, vector<1x1x128xf32>
    %715 = vector.shape_cast %714 : vector<1x1x128xf32> to vector<1x128xf32>
    %716 = vector.shape_cast %713 : vector<1x128xf32> to vector<1x1x128xf32>
    tpu.vector_store %arg8[%c12_700, %c2_701, %c0_702], %716 {strides = array<i32>} : memref<28x5x256xf32, #tpu.memory_space<vmem>>, vector<1x1x128xf32>,
    %717 = vector.extract_strided_slice %348 {offsets = [92, 0], sizes = [1, 128], strides = [1, 1]} : vector<192x128xf32> to vector<1x128xf32>
    %c12_703 = arith.constant 12 : index
    %c2_704 = arith.constant 2 : index
    %c128_705 = arith.constant 128 : index
    %718 = vector.load %arg8[%c12_703, %c2_704, %c128_705] : memref<28x5x256xf32, #tpu.memory_space<vmem>>, vector<1x1x128xf32>
    %719 = vector.shape_cast %718 : vector<1x1x128xf32> to vector<1x128xf32>
    %720 = vector.shape_cast %717 : vector<1x128xf32> to vector<1x1x128xf32>
    tpu.vector_store %arg8[%c12_703, %c2_704, %c128_705], %720 {strides = array<i32>} : memref<28x5x256xf32, #tpu.memory_space<vmem>>, vector<1x1x128xf32>,
    %721 = vector.extract_strided_slice %348 {offsets = [93, 0], sizes = [1, 128], strides = [1, 1]} : vector<192x128xf32> to vector<1x128xf32>
    %c12_706 = arith.constant 12 : index
    %c3_707 = arith.constant 3 : index
    %c0_708 = arith.constant 0 : index
    %722 = vector.load %arg8[%c12_706, %c3_707, %c0_708] : memref<28x5x256xf32, #tpu.memory_space<vmem>>, vector<1x1x128xf32>
    %723 = vector.shape_cast %722 : vector<1x1x128xf32> to vector<1x128xf32>
    %724 = vector.shape_cast %721 : vector<1x128xf32> to vector<1x1x128xf32>
    tpu.vector_store %arg8[%c12_706, %c3_707, %c0_708], %724 {strides = array<i32>} : memref<28x5x256xf32, #tpu.memory_space<vmem>>, vector<1x1x128xf32>,
    %725 = vector.extract_strided_slice %348 {offsets = [94, 0], sizes = [1, 128], strides = [1, 1]} : vector<192x128xf32> to vector<1x128xf32>
    %c12_709 = arith.constant 12 : index
    %c3_710 = arith.constant 3 : index
    %c128_711 = arith.constant 128 : index
    %726 = vector.load %arg8[%c12_709, %c3_710, %c128_711] : memref<28x5x256xf32, #tpu.memory_space<vmem>>, vector<1x1x128xf32>
    %727 = vector.shape_cast %726 : vector<1x1x128xf32> to vector<1x128xf32>
    %728 = vector.shape_cast %725 : vector<1x128xf32> to vector<1x1x128xf32>
    tpu.vector_store %arg8[%c12_709, %c3_710, %c128_711], %728 {strides = array<i32>} : memref<28x5x256xf32, #tpu.memory_space<vmem>>, vector<1x1x128xf32>,
    %729 = vector.extract_strided_slice %348 {offsets = [95, 0], sizes = [1, 128], strides = [1, 1]} : vector<192x128xf32> to vector<1x128xf32>
    %c12_712 = arith.constant 12 : index
    %c4_713 = arith.constant 4 : index
    %c0_714 = arith.constant 0 : index
    %730 = vector.load %arg8[%c12_712, %c4_713, %c0_714] : memref<28x5x256xf32, #tpu.memory_space<vmem>>, vector<1x1x128xf32>
    %731 = vector.shape_cast %730 : vector<1x1x128xf32> to vector<1x128xf32>
    %732 = vector.shape_cast %729 : vector<1x128xf32> to vector<1x1x128xf32>
    tpu.vector_store %arg8[%c12_712, %c4_713, %c0_714], %732 {strides = array<i32>} : memref<28x5x256xf32, #tpu.memory_space<vmem>>, vector<1x1x128xf32>,
    %733 = vector.extract_strided_slice %348 {offsets = [96, 0], sizes = [1, 128], strides = [1, 1]} : vector<192x128xf32> to vector<1x128xf32>
    %c15_715 = arith.constant 15 : index
    %c0_716 = arith.constant 0 : index
    %c128_717 = arith.constant 128 : index
    %734 = vector.load %arg8[%c15_715, %c0_716, %c128_717] : memref<28x5x256xf32, #tpu.memory_space<vmem>>, vector<1x1x128xf32>
    %735 = vector.shape_cast %734 : vector<1x1x128xf32> to vector<1x128xf32>
    %736 = vector.shape_cast %733 : vector<1x128xf32> to vector<1x1x128xf32>
    tpu.vector_store %arg8[%c15_715, %c0_716, %c128_717], %736 {strides = array<i32>} : memref<28x5x256xf32, #tpu.memory_space<vmem>>, vector<1x1x128xf32>,
    %737 = vector.extract_strided_slice %348 {offsets = [97, 0], sizes = [1, 128], strides = [1, 1]} : vector<192x128xf32> to vector<1x128xf32>
    %c15_718 = arith.constant 15 : index
    %c1_719 = arith.constant 1 : index
    %c0_720 = arith.constant 0 : index
    %738 = vector.load %arg8[%c15_718, %c1_719, %c0_720] : memref<28x5x256xf32, #tpu.memory_space<vmem>>, vector<1x1x128xf32>
    %739 = vector.shape_cast %738 : vector<1x1x128xf32> to vector<1x128xf32>
    %740 = vector.shape_cast %737 : vector<1x128xf32> to vector<1x1x128xf32>
    tpu.vector_store %arg8[%c15_718, %c1_719, %c0_720], %740 {strides = array<i32>} : memref<28x5x256xf32, #tpu.memory_space<vmem>>, vector<1x1x128xf32>,
    %741 = vector.extract_strided_slice %348 {offsets = [98, 0], sizes = [1, 128], strides = [1, 1]} : vector<192x128xf32> to vector<1x128xf32>
    %c15_721 = arith.constant 15 : index
    %c1_722 = arith.constant 1 : index
    %c128_723 = arith.constant 128 : index
    %742 = vector.load %arg8[%c15_721, %c1_722, %c128_723] : memref<28x5x256xf32, #tpu.memory_space<vmem>>, vector<1x1x128xf32>
    %743 = vector.shape_cast %742 : vector<1x1x128xf32> to vector<1x128xf32>
    %744 = vector.shape_cast %741 : vector<1x128xf32> to vector<1x1x128xf32>
    tpu.vector_store %arg8[%c15_721, %c1_722, %c128_723], %744 {strides = array<i32>} : memref<28x5x256xf32, #tpu.memory_space<vmem>>, vector<1x1x128xf32>,
    %745 = vector.extract_strided_slice %348 {offsets = [99, 0], sizes = [1, 128], strides = [1, 1]} : vector<192x128xf32> to vector<1x128xf32>
    %c15_724 = arith.constant 15 : index
    %c2_725 = arith.constant 2 : index
    %c0_726 = arith.constant 0 : index
    %746 = vector.load %arg8[%c15_724, %c2_725, %c0_726] : memref<28x5x256xf32, #tpu.memory_space<vmem>>, vector<1x1x128xf32>
    %747 = vector.shape_cast %746 : vector<1x1x128xf32> to vector<1x128xf32>
    %748 = vector.shape_cast %745 : vector<1x128xf32> to vector<1x1x128xf32>
    tpu.vector_store %arg8[%c15_724, %c2_725, %c0_726], %748 {strides = array<i32>} : memref<28x5x256xf32, #tpu.memory_space<vmem>>, vector<1x1x128xf32>,
    %749 = vector.extract_strided_slice %348 {offsets = [100, 0], sizes = [1, 128], strides = [1, 1]} : vector<192x128xf32> to vector<1x128xf32>
    %c15_727 = arith.constant 15 : index
    %c2_728 = arith.constant 2 : index
    %c128_729 = arith.constant 128 : index
    %750 = vector.load %arg8[%c15_727, %c2_728, %c128_729] : memref<28x5x256xf32, #tpu.memory_space<vmem>>, vector<1x1x128xf32>
    %751 = vector.shape_cast %750 : vector<1x1x128xf32> to vector<1x128xf32>
    %752 = vector.shape_cast %749 : vector<1x128xf32> to vector<1x1x128xf32>
    tpu.vector_store %arg8[%c15_727, %c2_728, %c128_729], %752 {strides = array<i32>} : memref<28x5x256xf32, #tpu.memory_space<vmem>>, vector<1x1x128xf32>,
    %753 = vector.extract_strided_slice %348 {offsets = [101, 0], sizes = [1, 128], strides = [1, 1]} : vector<192x128xf32> to vector<1x128xf32>
    %c15_730 = arith.constant 15 : index
    %c3_731 = arith.constant 3 : index
    %c0_732 = arith.constant 0 : index
    %754 = vector.load %arg8[%c15_730, %c3_731, %c0_732] : memref<28x5x256xf32, #tpu.memory_space<vmem>>, vector<1x1x128xf32>
    %755 = vector.shape_cast %754 : vector<1x1x128xf32> to vector<1x128xf32>
    %756 = vector.shape_cast %753 : vector<1x128xf32> to vector<1x1x128xf32>
    tpu.vector_store %arg8[%c15_730, %c3_731, %c0_732], %756 {strides = array<i32>} : memref<28x5x256xf32, #tpu.memory_space<vmem>>, vector<1x1x128xf32>,
    %757 = vector.extract_strided_slice %348 {offsets = [102, 0], sizes = [1, 128], strides = [1, 1]} : vector<192x128xf32> to vector<1x128xf32>
    %c15_733 = arith.constant 15 : index
    %c3_734 = arith.constant 3 : index
    %c128_735 = arith.constant 128 : index
    %758 = vector.load %arg8[%c15_733, %c3_734, %c128_735] : memref<28x5x256xf32, #tpu.memory_space<vmem>>, vector<1x1x128xf32>
    %759 = vector.shape_cast %758 : vector<1x1x128xf32> to vector<1x128xf32>
    %760 = vector.shape_cast %757 : vector<1x128xf32> to vector<1x1x128xf32>
    tpu.vector_store %arg8[%c15_733, %c3_734, %c128_735], %760 {strides = array<i32>} : memref<28x5x256xf32, #tpu.memory_space<vmem>>, vector<1x1x128xf32>,
    %761 = vector.extract_strided_slice %348 {offsets = [103, 0], sizes = [1, 128], strides = [1, 1]} : vector<192x128xf32> to vector<1x128xf32>
    %c15_736 = arith.constant 15 : index
    %c4_737 = arith.constant 4 : index
    %c0_738 = arith.constant 0 : index
    %762 = vector.load %arg8[%c15_736, %c4_737, %c0_738] : memref<28x5x256xf32, #tpu.memory_space<vmem>>, vector<1x1x128xf32>
    %763 = vector.shape_cast %762 : vector<1x1x128xf32> to vector<1x128xf32>
    %764 = vector.shape_cast %761 : vector<1x128xf32> to vector<1x1x128xf32>
    tpu.vector_store %arg8[%c15_736, %c4_737, %c0_738], %764 {strides = array<i32>} : memref<28x5x256xf32, #tpu.memory_space<vmem>>, vector<1x1x128xf32>,
    %765 = vector.extract_strided_slice %348 {offsets = [104, 0], sizes = [1, 128], strides = [1, 1]} : vector<192x128xf32> to vector<1x128xf32>
    %c16_739 = arith.constant 16 : index
    %c0_740 = arith.constant 0 : index
    %c128_741 = arith.constant 128 : index
    %766 = vector.load %arg8[%c16_739, %c0_740, %c128_741] : memref<28x5x256xf32, #tpu.memory_space<vmem>>, vector<1x1x128xf32>
    %767 = vector.shape_cast %766 : vector<1x1x128xf32> to vector<1x128xf32>
    %768 = vector.shape_cast %765 : vector<1x128xf32> to vector<1x1x128xf32>
    tpu.vector_store %arg8[%c16_739, %c0_740, %c128_741], %768 {strides = array<i32>} : memref<28x5x256xf32, #tpu.memory_space<vmem>>, vector<1x1x128xf32>,
    %769 = vector.extract_strided_slice %348 {offsets = [105, 0], sizes = [1, 128], strides = [1, 1]} : vector<192x128xf32> to vector<1x128xf32>
    %c16_742 = arith.constant 16 : index
    %c1_743 = arith.constant 1 : index
    %c0_744 = arith.constant 0 : index
    %770 = vector.load %arg8[%c16_742, %c1_743, %c0_744] : memref<28x5x256xf32, #tpu.memory_space<vmem>>, vector<1x1x128xf32>
    %771 = vector.shape_cast %770 : vector<1x1x128xf32> to vector<1x128xf32>
    %772 = vector.shape_cast %769 : vector<1x128xf32> to vector<1x1x128xf32>
    tpu.vector_store %arg8[%c16_742, %c1_743, %c0_744], %772 {strides = array<i32>} : memref<28x5x256xf32, #tpu.memory_space<vmem>>, vector<1x1x128xf32>,
    %773 = vector.extract_strided_slice %348 {offsets = [106, 0], sizes = [1, 128], strides = [1, 1]} : vector<192x128xf32> to vector<1x128xf32>
    %c16_745 = arith.constant 16 : index
    %c1_746 = arith.constant 1 : index
    %c128_747 = arith.constant 128 : index
    %774 = vector.load %arg8[%c16_745, %c1_746, %c128_747] : memref<28x5x256xf32, #tpu.memory_space<vmem>>, vector<1x1x128xf32>
    %775 = vector.shape_cast %774 : vector<1x1x128xf32> to vector<1x128xf32>
    %776 = vector.shape_cast %773 : vector<1x128xf32> to vector<1x1x128xf32>
    tpu.vector_store %arg8[%c16_745, %c1_746, %c128_747], %776 {strides = array<i32>} : memref<28x5x256xf32, #tpu.memory_space<vmem>>, vector<1x1x128xf32>,
    %777 = vector.extract_strided_slice %348 {offsets = [107, 0], sizes = [1, 128], strides = [1, 1]} : vector<192x128xf32> to vector<1x128xf32>
    %c16_748 = arith.constant 16 : index
    %c2_749 = arith.constant 2 : index
    %c0_750 = arith.constant 0 : index
    %778 = vector.load %arg8[%c16_748, %c2_749, %c0_750] : memref<28x5x256xf32, #tpu.memory_space<vmem>>, vector<1x1x128xf32>
    %779 = vector.shape_cast %778 : vector<1x1x128xf32> to vector<1x128xf32>
    %780 = vector.shape_cast %777 : vector<1x128xf32> to vector<1x1x128xf32>
    tpu.vector_store %arg8[%c16_748, %c2_749, %c0_750], %780 {strides = array<i32>} : memref<28x5x256xf32, #tpu.memory_space<vmem>>, vector<1x1x128xf32>,
    %781 = vector.extract_strided_slice %348 {offsets = [108, 0], sizes = [1, 128], strides = [1, 1]} : vector<192x128xf32> to vector<1x128xf32>
    %c16_751 = arith.constant 16 : index
    %c2_752 = arith.constant 2 : index
    %c128_753 = arith.constant 128 : index
    %782 = vector.load %arg8[%c16_751, %c2_752, %c128_753] : memref<28x5x256xf32, #tpu.memory_space<vmem>>, vector<1x1x128xf32>
    %783 = vector.shape_cast %782 : vector<1x1x128xf32> to vector<1x128xf32>
    %784 = vector.shape_cast %781 : vector<1x128xf32> to vector<1x1x128xf32>
    tpu.vector_store %arg8[%c16_751, %c2_752, %c128_753], %784 {strides = array<i32>} : memref<28x5x256xf32, #tpu.memory_space<vmem>>, vector<1x1x128xf32>,
    %785 = vector.extract_strided_slice %348 {offsets = [109, 0], sizes = [1, 128], strides = [1, 1]} : vector<192x128xf32> to vector<1x128xf32>
    %c16_754 = arith.constant 16 : index
    %c3_755 = arith.constant 3 : index
    %c0_756 = arith.constant 0 : index
    %786 = vector.load %arg8[%c16_754, %c3_755, %c0_756] : memref<28x5x256xf32, #tpu.memory_space<vmem>>, vector<1x1x128xf32>
    %787 = vector.shape_cast %786 : vector<1x1x128xf32> to vector<1x128xf32>
    %788 = vector.shape_cast %785 : vector<1x128xf32> to vector<1x1x128xf32>
    tpu.vector_store %arg8[%c16_754, %c3_755, %c0_756], %788 {strides = array<i32>} : memref<28x5x256xf32, #tpu.memory_space<vmem>>, vector<1x1x128xf32>,
    %789 = vector.extract_strided_slice %348 {offsets = [110, 0], sizes = [1, 128], strides = [1, 1]} : vector<192x128xf32> to vector<1x128xf32>
    %c16_757 = arith.constant 16 : index
    %c3_758 = arith.constant 3 : index
    %c128_759 = arith.constant 128 : index
    %790 = vector.load %arg8[%c16_757, %c3_758, %c128_759] : memref<28x5x256xf32, #tpu.memory_space<vmem>>, vector<1x1x128xf32>
    %791 = vector.shape_cast %790 : vector<1x1x128xf32> to vector<1x128xf32>
    %792 = vector.shape_cast %789 : vector<1x128xf32> to vector<1x1x128xf32>
    tpu.vector_store %arg8[%c16_757, %c3_758, %c128_759], %792 {strides = array<i32>} : memref<28x5x256xf32, #tpu.memory_space<vmem>>, vector<1x1x128xf32>,
    %793 = vector.extract_strided_slice %348 {offsets = [111, 0], sizes = [1, 128], strides = [1, 1]} : vector<192x128xf32> to vector<1x128xf32>
    %c16_760 = arith.constant 16 : index
    %c4_761 = arith.constant 4 : index
    %c0_762 = arith.constant 0 : index
    %794 = vector.load %arg8[%c16_760, %c4_761, %c0_762] : memref<28x5x256xf32, #tpu.memory_space<vmem>>, vector<1x1x128xf32>
    %795 = vector.shape_cast %794 : vector<1x1x128xf32> to vector<1x128xf32>
    %796 = vector.shape_cast %793 : vector<1x128xf32> to vector<1x1x128xf32>
    tpu.vector_store %arg8[%c16_760, %c4_761, %c0_762], %796 {strides = array<i32>} : memref<28x5x256xf32, #tpu.memory_space<vmem>>, vector<1x1x128xf32>,
    %797 = vector.extract_strided_slice %348 {offsets = [112, 0], sizes = [1, 128], strides = [1, 1]} : vector<192x128xf32> to vector<1x128xf32>
    %c17_763 = arith.constant 17 : index
    %c0_764 = arith.constant 0 : index
    %c128_765 = arith.constant 128 : index
    %798 = vector.load %arg8[%c17_763, %c0_764, %c128_765] : memref<28x5x256xf32, #tpu.memory_space<vmem>>, vector<1x1x128xf32>
    %799 = vector.shape_cast %798 : vector<1x1x128xf32> to vector<1x128xf32>
    %800 = vector.shape_cast %797 : vector<1x128xf32> to vector<1x1x128xf32>
    tpu.vector_store %arg8[%c17_763, %c0_764, %c128_765], %800 {strides = array<i32>} : memref<28x5x256xf32, #tpu.memory_space<vmem>>, vector<1x1x128xf32>,
    %801 = vector.extract_strided_slice %348 {offsets = [113, 0], sizes = [1, 128], strides = [1, 1]} : vector<192x128xf32> to vector<1x128xf32>
    %c17_766 = arith.constant 17 : index
    %c1_767 = arith.constant 1 : index
    %c0_768 = arith.constant 0 : index
    %802 = vector.load %arg8[%c17_766, %c1_767, %c0_768] : memref<28x5x256xf32, #tpu.memory_space<vmem>>, vector<1x1x128xf32>
    %803 = vector.shape_cast %802 : vector<1x1x128xf32> to vector<1x128xf32>
    %804 = vector.shape_cast %801 : vector<1x128xf32> to vector<1x1x128xf32>
    tpu.vector_store %arg8[%c17_766, %c1_767, %c0_768], %804 {strides = array<i32>} : memref<28x5x256xf32, #tpu.memory_space<vmem>>, vector<1x1x128xf32>,
    %805 = vector.extract_strided_slice %348 {offsets = [114, 0], sizes = [1, 128], strides = [1, 1]} : vector<192x128xf32> to vector<1x128xf32>
    %c17_769 = arith.constant 17 : index
    %c1_770 = arith.constant 1 : index
    %c128_771 = arith.constant 128 : index
    %806 = vector.load %arg8[%c17_769, %c1_770, %c128_771] : memref<28x5x256xf32, #tpu.memory_space<vmem>>, vector<1x1x128xf32>
    %807 = vector.shape_cast %806 : vector<1x1x128xf32> to vector<1x128xf32>
    %808 = vector.shape_cast %805 : vector<1x128xf32> to vector<1x1x128xf32>
    tpu.vector_store %arg8[%c17_769, %c1_770, %c128_771], %808 {strides = array<i32>} : memref<28x5x256xf32, #tpu.memory_space<vmem>>, vector<1x1x128xf32>,
    %809 = vector.extract_strided_slice %348 {offsets = [115, 0], sizes = [1, 128], strides = [1, 1]} : vector<192x128xf32> to vector<1x128xf32>
    %c17_772 = arith.constant 17 : index
    %c2_773 = arith.constant 2 : index
    %c0_774 = arith.constant 0 : index
    %810 = vector.load %arg8[%c17_772, %c2_773, %c0_774] : memref<28x5x256xf32, #tpu.memory_space<vmem>>, vector<1x1x128xf32>
    %811 = vector.shape_cast %810 : vector<1x1x128xf32> to vector<1x128xf32>
    %812 = vector.shape_cast %809 : vector<1x128xf32> to vector<1x1x128xf32>
    tpu.vector_store %arg8[%c17_772, %c2_773, %c0_774], %812 {strides = array<i32>} : memref<28x5x256xf32, #tpu.memory_space<vmem>>, vector<1x1x128xf32>,
    %813 = vector.extract_strided_slice %348 {offsets = [116, 0], sizes = [1, 128], strides = [1, 1]} : vector<192x128xf32> to vector<1x128xf32>
    %c17_775 = arith.constant 17 : index
    %c2_776 = arith.constant 2 : index
    %c128_777 = arith.constant 128 : index
    %814 = vector.load %arg8[%c17_775, %c2_776, %c128_777] : memref<28x5x256xf32, #tpu.memory_space<vmem>>, vector<1x1x128xf32>
    %815 = vector.shape_cast %814 : vector<1x1x128xf32> to vector<1x128xf32>
    %816 = vector.shape_cast %813 : vector<1x128xf32> to vector<1x1x128xf32>
    tpu.vector_store %arg8[%c17_775, %c2_776, %c128_777], %816 {strides = array<i32>} : memref<28x5x256xf32, #tpu.memory_space<vmem>>, vector<1x1x128xf32>,
    %817 = vector.extract_strided_slice %348 {offsets = [117, 0], sizes = [1, 128], strides = [1, 1]} : vector<192x128xf32> to vector<1x128xf32>
    %c17_778 = arith.constant 17 : index
    %c3_779 = arith.constant 3 : index
    %c0_780 = arith.constant 0 : index
    %818 = vector.load %arg8[%c17_778, %c3_779, %c0_780] : memref<28x5x256xf32, #tpu.memory_space<vmem>>, vector<1x1x128xf32>
    %819 = vector.shape_cast %818 : vector<1x1x128xf32> to vector<1x128xf32>
    %820 = vector.shape_cast %817 : vector<1x128xf32> to vector<1x1x128xf32>
    tpu.vector_store %arg8[%c17_778, %c3_779, %c0_780], %820 {strides = array<i32>} : memref<28x5x256xf32, #tpu.memory_space<vmem>>, vector<1x1x128xf32>,
    %821 = vector.extract_strided_slice %348 {offsets = [118, 0], sizes = [1, 128], strides = [1, 1]} : vector<192x128xf32> to vector<1x128xf32>
    %c17_781 = arith.constant 17 : index
    %c3_782 = arith.constant 3 : index
    %c128_783 = arith.constant 128 : index
    %822 = vector.load %arg8[%c17_781, %c3_782, %c128_783] : memref<28x5x256xf32, #tpu.memory_space<vmem>>, vector<1x1x128xf32>
    %823 = vector.shape_cast %822 : vector<1x1x128xf32> to vector<1x128xf32>
    %824 = vector.shape_cast %821 : vector<1x128xf32> to vector<1x1x128xf32>
    tpu.vector_store %arg8[%c17_781, %c3_782, %c128_783], %824 {strides = array<i32>} : memref<28x5x256xf32, #tpu.memory_space<vmem>>, vector<1x1x128xf32>,
    %825 = vector.extract_strided_slice %348 {offsets = [119, 0], sizes = [1, 128], strides = [1, 1]} : vector<192x128xf32> to vector<1x128xf32>
    %c17_784 = arith.constant 17 : index
    %c4_785 = arith.constant 4 : index
    %c0_786 = arith.constant 0 : index
    %826 = vector.load %arg8[%c17_784, %c4_785, %c0_786] : memref<28x5x256xf32, #tpu.memory_space<vmem>>, vector<1x1x128xf32>
    %827 = vector.shape_cast %826 : vector<1x1x128xf32> to vector<1x128xf32>
    %828 = vector.shape_cast %825 : vector<1x128xf32> to vector<1x1x128xf32>
    tpu.vector_store %arg8[%c17_784, %c4_785, %c0_786], %828 {strides = array<i32>} : memref<28x5x256xf32, #tpu.memory_space<vmem>>, vector<1x1x128xf32>,
    %829 = vector.extract_strided_slice %348 {offsets = [120, 0], sizes = [1, 128], strides = [1, 1]} : vector<192x128xf32> to vector<1x128xf32>
    %c18_787 = arith.constant 18 : index
    %c0_788 = arith.constant 0 : index
    %c128_789 = arith.constant 128 : index
    %830 = vector.load %arg8[%c18_787, %c0_788, %c128_789] : memref<28x5x256xf32, #tpu.memory_space<vmem>>, vector<1x1x128xf32>
    %831 = vector.shape_cast %830 : vector<1x1x128xf32> to vector<1x128xf32>
    %832 = vector.shape_cast %829 : vector<1x128xf32> to vector<1x1x128xf32>
    tpu.vector_store %arg8[%c18_787, %c0_788, %c128_789], %832 {strides = array<i32>} : memref<28x5x256xf32, #tpu.memory_space<vmem>>, vector<1x1x128xf32>,
    %833 = vector.extract_strided_slice %348 {offsets = [121, 0], sizes = [1, 128], strides = [1, 1]} : vector<192x128xf32> to vector<1x128xf32>
    %c18_790 = arith.constant 18 : index
    %c1_791 = arith.constant 1 : index
    %c0_792 = arith.constant 0 : index
    %834 = vector.load %arg8[%c18_790, %c1_791, %c0_792] : memref<28x5x256xf32, #tpu.memory_space<vmem>>, vector<1x1x128xf32>
    %835 = vector.shape_cast %834 : vector<1x1x128xf32> to vector<1x128xf32>
    %836 = vector.shape_cast %833 : vector<1x128xf32> to vector<1x1x128xf32>
    tpu.vector_store %arg8[%c18_790, %c1_791, %c0_792], %836 {strides = array<i32>} : memref<28x5x256xf32, #tpu.memory_space<vmem>>, vector<1x1x128xf32>,
    %837 = vector.extract_strided_slice %348 {offsets = [122, 0], sizes = [1, 128], strides = [1, 1]} : vector<192x128xf32> to vector<1x128xf32>
    %c18_793 = arith.constant 18 : index
    %c1_794 = arith.constant 1 : index
    %c128_795 = arith.constant 128 : index
    %838 = vector.load %arg8[%c18_793, %c1_794, %c128_795] : memref<28x5x256xf32, #tpu.memory_space<vmem>>, vector<1x1x128xf32>
    %839 = vector.shape_cast %838 : vector<1x1x128xf32> to vector<1x128xf32>
    %840 = vector.shape_cast %837 : vector<1x128xf32> to vector<1x1x128xf32>
    tpu.vector_store %arg8[%c18_793, %c1_794, %c128_795], %840 {strides = array<i32>} : memref<28x5x256xf32, #tpu.memory_space<vmem>>, vector<1x1x128xf32>,
    %841 = vector.extract_strided_slice %348 {offsets = [123, 0], sizes = [1, 128], strides = [1, 1]} : vector<192x128xf32> to vector<1x128xf32>
    %c18_796 = arith.constant 18 : index
    %c2_797 = arith.constant 2 : index
    %c0_798 = arith.constant 0 : index
    %842 = vector.load %arg8[%c18_796, %c2_797, %c0_798] : memref<28x5x256xf32, #tpu.memory_space<vmem>>, vector<1x1x128xf32>
    %843 = vector.shape_cast %842 : vector<1x1x128xf32> to vector<1x128xf32>
    %844 = vector.shape_cast %841 : vector<1x128xf32> to vector<1x1x128xf32>
    tpu.vector_store %arg8[%c18_796, %c2_797, %c0_798], %844 {strides = array<i32>} : memref<28x5x256xf32, #tpu.memory_space<vmem>>, vector<1x1x128xf32>,
    %845 = vector.extract_strided_slice %348 {offsets = [124, 0], sizes = [1, 128], strides = [1, 1]} : vector<192x128xf32> to vector<1x128xf32>
    %c18_799 = arith.constant 18 : index
    %c2_800 = arith.constant 2 : index
    %c128_801 = arith.constant 128 : index
    %846 = vector.load %arg8[%c18_799, %c2_800, %c128_801] : memref<28x5x256xf32, #tpu.memory_space<vmem>>, vector<1x1x128xf32>
    %847 = vector.shape_cast %846 : vector<1x1x128xf32> to vector<1x128xf32>
    %848 = vector.shape_cast %845 : vector<1x128xf32> to vector<1x1x128xf32>
    tpu.vector_store %arg8[%c18_799, %c2_800, %c128_801], %848 {strides = array<i32>} : memref<28x5x256xf32, #tpu.memory_space<vmem>>, vector<1x1x128xf32>,
    %849 = vector.extract_strided_slice %348 {offsets = [125, 0], sizes = [1, 128], strides = [1, 1]} : vector<192x128xf32> to vector<1x128xf32>
    %c18_802 = arith.constant 18 : index
    %c3_803 = arith.constant 3 : index
    %c0_804 = arith.constant 0 : index
    %850 = vector.load %arg8[%c18_802, %c3_803, %c0_804] : memref<28x5x256xf32, #tpu.memory_space<vmem>>, vector<1x1x128xf32>
    %851 = vector.shape_cast %850 : vector<1x1x128xf32> to vector<1x128xf32>
    %852 = vector.shape_cast %849 : vector<1x128xf32> to vector<1x1x128xf32>
    tpu.vector_store %arg8[%c18_802, %c3_803, %c0_804], %852 {strides = array<i32>} : memref<28x5x256xf32, #tpu.memory_space<vmem>>, vector<1x1x128xf32>,
    %853 = vector.extract_strided_slice %348 {offsets = [126, 0], sizes = [1, 128], strides = [1, 1]} : vector<192x128xf32> to vector<1x128xf32>
    %c18_805 = arith.constant 18 : index
    %c3_806 = arith.constant 3 : index
    %c128_807 = arith.constant 128 : index
    %854 = vector.load %arg8[%c18_805, %c3_806, %c128_807] : memref<28x5x256xf32, #tpu.memory_space<vmem>>, vector<1x1x128xf32>
    %855 = vector.shape_cast %854 : vector<1x1x128xf32> to vector<1x128xf32>
    %856 = vector.shape_cast %853 : vector<1x128xf32> to vector<1x1x128xf32>
    tpu.vector_store %arg8[%c18_805, %c3_806, %c128_807], %856 {strides = array<i32>} : memref<28x5x256xf32, #tpu.memory_space<vmem>>, vector<1x1x128xf32>,
    %857 = vector.extract_strided_slice %348 {offsets = [127, 0], sizes = [1, 128], strides = [1, 1]} : vector<192x128xf32> to vector<1x128xf32>
    %c18_808 = arith.constant 18 : index
    %c4_809 = arith.constant 4 : index
    %c0_810 = arith.constant 0 : index
    %858 = vector.load %arg8[%c18_808, %c4_809, %c0_810] : memref<28x5x256xf32, #tpu.memory_space<vmem>>, vector<1x1x128xf32>
    %859 = vector.shape_cast %858 : vector<1x1x128xf32> to vector<1x128xf32>
    %860 = vector.shape_cast %857 : vector<1x128xf32> to vector<1x1x128xf32>
    tpu.vector_store %arg8[%c18_808, %c4_809, %c0_810], %860 {strides = array<i32>} : memref<28x5x256xf32, #tpu.memory_space<vmem>>, vector<1x1x128xf32>,
    %861 = vector.extract_strided_slice %348 {offsets = [128, 0], sizes = [1, 128], strides = [1, 1]} : vector<192x128xf32> to vector<1x128xf32>
    %c19_811 = arith.constant 19 : index
    %c0_812 = arith.constant 0 : index
    %c128_813 = arith.constant 128 : index
    %862 = vector.load %arg8[%c19_811, %c0_812, %c128_813] : memref<28x5x256xf32, #tpu.memory_space<vmem>>, vector<1x1x128xf32>
    %863 = vector.shape_cast %862 : vector<1x1x128xf32> to vector<1x128xf32>
    %864 = vector.shape_cast %861 : vector<1x128xf32> to vector<1x1x128xf32>
    tpu.vector_store %arg8[%c19_811, %c0_812, %c128_813], %864 {strides = array<i32>} : memref<28x5x256xf32, #tpu.memory_space<vmem>>, vector<1x1x128xf32>,
    %865 = vector.extract_strided_slice %348 {offsets = [129, 0], sizes = [1, 128], strides = [1, 1]} : vector<192x128xf32> to vector<1x128xf32>
    %c19_814 = arith.constant 19 : index
    %c1_815 = arith.constant 1 : index
    %c0_816 = arith.constant 0 : index
    %866 = vector.load %arg8[%c19_814, %c1_815, %c0_816] : memref<28x5x256xf32, #tpu.memory_space<vmem>>, vector<1x1x128xf32>
    %867 = vector.shape_cast %866 : vector<1x1x128xf32> to vector<1x128xf32>
    %868 = vector.shape_cast %865 : vector<1x128xf32> to vector<1x1x128xf32>
    tpu.vector_store %arg8[%c19_814, %c1_815, %c0_816], %868 {strides = array<i32>} : memref<28x5x256xf32, #tpu.memory_space<vmem>>, vector<1x1x128xf32>,
    %869 = vector.extract_strided_slice %348 {offsets = [130, 0], sizes = [1, 128], strides = [1, 1]} : vector<192x128xf32> to vector<1x128xf32>
    %c19_817 = arith.constant 19 : index
    %c1_818 = arith.constant 1 : index
    %c128_819 = arith.constant 128 : index
    %870 = vector.load %arg8[%c19_817, %c1_818, %c128_819] : memref<28x5x256xf32, #tpu.memory_space<vmem>>, vector<1x1x128xf32>
    %871 = vector.shape_cast %870 : vector<1x1x128xf32> to vector<1x128xf32>
    %872 = vector.shape_cast %869 : vector<1x128xf32> to vector<1x1x128xf32>
    tpu.vector_store %arg8[%c19_817, %c1_818, %c128_819], %872 {strides = array<i32>} : memref<28x5x256xf32, #tpu.memory_space<vmem>>, vector<1x1x128xf32>,
    %873 = vector.extract_strided_slice %348 {offsets = [131, 0], sizes = [1, 128], strides = [1, 1]} : vector<192x128xf32> to vector<1x128xf32>
    %c19_820 = arith.constant 19 : index
    %c2_821 = arith.constant 2 : index
    %c0_822 = arith.constant 0 : index
    %874 = vector.load %arg8[%c19_820, %c2_821, %c0_822] : memref<28x5x256xf32, #tpu.memory_space<vmem>>, vector<1x1x128xf32>
    %875 = vector.shape_cast %874 : vector<1x1x128xf32> to vector<1x128xf32>
    %876 = vector.shape_cast %873 : vector<1x128xf32> to vector<1x1x128xf32>
    tpu.vector_store %arg8[%c19_820, %c2_821, %c0_822], %876 {strides = array<i32>} : memref<28x5x256xf32, #tpu.memory_space<vmem>>, vector<1x1x128xf32>,
    %877 = vector.extract_strided_slice %348 {offsets = [132, 0], sizes = [1, 128], strides = [1, 1]} : vector<192x128xf32> to vector<1x128xf32>
    %c19_823 = arith.constant 19 : index
    %c2_824 = arith.constant 2 : index
    %c128_825 = arith.constant 128 : index
    %878 = vector.load %arg8[%c19_823, %c2_824, %c128_825] : memref<28x5x256xf32, #tpu.memory_space<vmem>>, vector<1x1x128xf32>
    %879 = vector.shape_cast %878 : vector<1x1x128xf32> to vector<1x128xf32>
    %880 = vector.shape_cast %877 : vector<1x128xf32> to vector<1x1x128xf32>
    tpu.vector_store %arg8[%c19_823, %c2_824, %c128_825], %880 {strides = array<i32>} : memref<28x5x256xf32, #tpu.memory_space<vmem>>, vector<1x1x128xf32>,
    %881 = vector.extract_strided_slice %348 {offsets = [133, 0], sizes = [1, 128], strides = [1, 1]} : vector<192x128xf32> to vector<1x128xf32>
    %c19_826 = arith.constant 19 : index
    %c3_827 = arith.constant 3 : index
    %c0_828 = arith.constant 0 : index
    %882 = vector.load %arg8[%c19_826, %c3_827, %c0_828] : memref<28x5x256xf32, #tpu.memory_space<vmem>>, vector<1x1x128xf32>
    %883 = vector.shape_cast %882 : vector<1x1x128xf32> to vector<1x128xf32>
    %884 = vector.shape_cast %881 : vector<1x128xf32> to vector<1x1x128xf32>
    tpu.vector_store %arg8[%c19_826, %c3_827, %c0_828], %884 {strides = array<i32>} : memref<28x5x256xf32, #tpu.memory_space<vmem>>, vector<1x1x128xf32>,
    %885 = vector.extract_strided_slice %348 {offsets = [134, 0], sizes = [1, 128], strides = [1, 1]} : vector<192x128xf32> to vector<1x128xf32>
    %c19_829 = arith.constant 19 : index
    %c3_830 = arith.constant 3 : index
    %c128_831 = arith.constant 128 : index
    %886 = vector.load %arg8[%c19_829, %c3_830, %c128_831] : memref<28x5x256xf32, #tpu.memory_space<vmem>>, vector<1x1x128xf32>
    %887 = vector.shape_cast %886 : vector<1x1x128xf32> to vector<1x128xf32>
    %888 = vector.shape_cast %885 : vector<1x128xf32> to vector<1x1x128xf32>
    tpu.vector_store %arg8[%c19_829, %c3_830, %c128_831], %888 {strides = array<i32>} : memref<28x5x256xf32, #tpu.memory_space<vmem>>, vector<1x1x128xf32>,
    %889 = vector.extract_strided_slice %348 {offsets = [135, 0], sizes = [1, 128], strides = [1, 1]} : vector<192x128xf32> to vector<1x128xf32>
    %c19_832 = arith.constant 19 : index
    %c4_833 = arith.constant 4 : index
    %c0_834 = arith.constant 0 : index
    %890 = vector.load %arg8[%c19_832, %c4_833, %c0_834] : memref<28x5x256xf32, #tpu.memory_space<vmem>>, vector<1x1x128xf32>
    %891 = vector.shape_cast %890 : vector<1x1x128xf32> to vector<1x128xf32>
    %892 = vector.shape_cast %889 : vector<1x128xf32> to vector<1x1x128xf32>
    tpu.vector_store %arg8[%c19_832, %c4_833, %c0_834], %892 {strides = array<i32>} : memref<28x5x256xf32, #tpu.memory_space<vmem>>, vector<1x1x128xf32>,
    %893 = vector.extract_strided_slice %348 {offsets = [136, 0], sizes = [1, 128], strides = [1, 1]} : vector<192x128xf32> to vector<1x128xf32>
    %c20_835 = arith.constant 20 : index
    %c0_836 = arith.constant 0 : index
    %c128_837 = arith.constant 128 : index
    %894 = vector.load %arg8[%c20_835, %c0_836, %c128_837] : memref<28x5x256xf32, #tpu.memory_space<vmem>>, vector<1x1x128xf32>
    %895 = vector.shape_cast %894 : vector<1x1x128xf32> to vector<1x128xf32>
    %896 = vector.shape_cast %893 : vector<1x128xf32> to vector<1x1x128xf32>
    tpu.vector_store %arg8[%c20_835, %c0_836, %c128_837], %896 {strides = array<i32>} : memref<28x5x256xf32, #tpu.memory_space<vmem>>, vector<1x1x128xf32>,
    %897 = vector.extract_strided_slice %348 {offsets = [137, 0], sizes = [1, 128], strides = [1, 1]} : vector<192x128xf32> to vector<1x128xf32>
    %c20_838 = arith.constant 20 : index
    %c1_839 = arith.constant 1 : index
    %c0_840 = arith.constant 0 : index
    %898 = vector.load %arg8[%c20_838, %c1_839, %c0_840] : memref<28x5x256xf32, #tpu.memory_space<vmem>>, vector<1x1x128xf32>
    %899 = vector.shape_cast %898 : vector<1x1x128xf32> to vector<1x128xf32>
    %900 = vector.shape_cast %897 : vector<1x128xf32> to vector<1x1x128xf32>
    tpu.vector_store %arg8[%c20_838, %c1_839, %c0_840], %900 {strides = array<i32>} : memref<28x5x256xf32, #tpu.memory_space<vmem>>, vector<1x1x128xf32>,
    %901 = vector.extract_strided_slice %348 {offsets = [138, 0], sizes = [1, 128], strides = [1, 1]} : vector<192x128xf32> to vector<1x128xf32>
    %c20_841 = arith.constant 20 : index
    %c1_842 = arith.constant 1 : index
    %c128_843 = arith.constant 128 : index
    %902 = vector.load %arg8[%c20_841, %c1_842, %c128_843] : memref<28x5x256xf32, #tpu.memory_space<vmem>>, vector<1x1x128xf32>
    %903 = vector.shape_cast %902 : vector<1x1x128xf32> to vector<1x128xf32>
    %904 = vector.shape_cast %901 : vector<1x128xf32> to vector<1x1x128xf32>
    tpu.vector_store %arg8[%c20_841, %c1_842, %c128_843], %904 {strides = array<i32>} : memref<28x5x256xf32, #tpu.memory_space<vmem>>, vector<1x1x128xf32>,
    %905 = vector.extract_strided_slice %348 {offsets = [139, 0], sizes = [1, 128], strides = [1, 1]} : vector<192x128xf32> to vector<1x128xf32>
    %c20_844 = arith.constant 20 : index
    %c2_845 = arith.constant 2 : index
    %c0_846 = arith.constant 0 : index
    %906 = vector.load %arg8[%c20_844, %c2_845, %c0_846] : memref<28x5x256xf32, #tpu.memory_space<vmem>>, vector<1x1x128xf32>
    %907 = vector.shape_cast %906 : vector<1x1x128xf32> to vector<1x128xf32>
    %908 = vector.shape_cast %905 : vector<1x128xf32> to vector<1x1x128xf32>
    tpu.vector_store %arg8[%c20_844, %c2_845, %c0_846], %908 {strides = array<i32>} : memref<28x5x256xf32, #tpu.memory_space<vmem>>, vector<1x1x128xf32>,
    %909 = vector.extract_strided_slice %348 {offsets = [140, 0], sizes = [1, 128], strides = [1, 1]} : vector<192x128xf32> to vector<1x128xf32>
    %c20_847 = arith.constant 20 : index
    %c2_848 = arith.constant 2 : index
    %c128_849 = arith.constant 128 : index
    %910 = vector.load %arg8[%c20_847, %c2_848, %c128_849] : memref<28x5x256xf32, #tpu.memory_space<vmem>>, vector<1x1x128xf32>
    %911 = vector.shape_cast %910 : vector<1x1x128xf32> to vector<1x128xf32>
    %912 = vector.shape_cast %909 : vector<1x128xf32> to vector<1x1x128xf32>
    tpu.vector_store %arg8[%c20_847, %c2_848, %c128_849], %912 {strides = array<i32>} : memref<28x5x256xf32, #tpu.memory_space<vmem>>, vector<1x1x128xf32>,
    %913 = vector.extract_strided_slice %348 {offsets = [141, 0], sizes = [1, 128], strides = [1, 1]} : vector<192x128xf32> to vector<1x128xf32>
    %c20_850 = arith.constant 20 : index
    %c3_851 = arith.constant 3 : index
    %c0_852 = arith.constant 0 : index
    %914 = vector.load %arg8[%c20_850, %c3_851, %c0_852] : memref<28x5x256xf32, #tpu.memory_space<vmem>>, vector<1x1x128xf32>
    %915 = vector.shape_cast %914 : vector<1x1x128xf32> to vector<1x128xf32>
    %916 = vector.shape_cast %913 : vector<1x128xf32> to vector<1x1x128xf32>
    tpu.vector_store %arg8[%c20_850, %c3_851, %c0_852], %916 {strides = array<i32>} : memref<28x5x256xf32, #tpu.memory_space<vmem>>, vector<1x1x128xf32>,
    %917 = vector.extract_strided_slice %348 {offsets = [142, 0], sizes = [1, 128], strides = [1, 1]} : vector<192x128xf32> to vector<1x128xf32>
    %c20_853 = arith.constant 20 : index
    %c3_854 = arith.constant 3 : index
    %c128_855 = arith.constant 128 : index
    %918 = vector.load %arg8[%c20_853, %c3_854, %c128_855] : memref<28x5x256xf32, #tpu.memory_space<vmem>>, vector<1x1x128xf32>
    %919 = vector.shape_cast %918 : vector<1x1x128xf32> to vector<1x128xf32>
    %920 = vector.shape_cast %917 : vector<1x128xf32> to vector<1x1x128xf32>
    tpu.vector_store %arg8[%c20_853, %c3_854, %c128_855], %920 {strides = array<i32>} : memref<28x5x256xf32, #tpu.memory_space<vmem>>, vector<1x1x128xf32>,
    %921 = vector.extract_strided_slice %348 {offsets = [143, 0], sizes = [1, 128], strides = [1, 1]} : vector<192x128xf32> to vector<1x128xf32>
    %c20_856 = arith.constant 20 : index
    %c4_857 = arith.constant 4 : index
    %c0_858 = arith.constant 0 : index
    %922 = vector.load %arg8[%c20_856, %c4_857, %c0_858] : memref<28x5x256xf32, #tpu.memory_space<vmem>>, vector<1x1x128xf32>
    %923 = vector.shape_cast %922 : vector<1x1x128xf32> to vector<1x128xf32>
    %924 = vector.shape_cast %921 : vector<1x128xf32> to vector<1x1x128xf32>
    tpu.vector_store %arg8[%c20_856, %c4_857, %c0_858], %924 {strides = array<i32>} : memref<28x5x256xf32, #tpu.memory_space<vmem>>, vector<1x1x128xf32>,
    %925 = vector.extract_strided_slice %348 {offsets = [144, 0], sizes = [1, 128], strides = [1, 1]} : vector<192x128xf32> to vector<1x128xf32>
    %c21_859 = arith.constant 21 : index
    %c0_860 = arith.constant 0 : index
    %c128_861 = arith.constant 128 : index
    %926 = vector.load %arg8[%c21_859, %c0_860, %c128_861] : memref<28x5x256xf32, #tpu.memory_space<vmem>>, vector<1x1x128xf32>
    %927 = vector.shape_cast %926 : vector<1x1x128xf32> to vector<1x128xf32>
    %928 = vector.shape_cast %925 : vector<1x128xf32> to vector<1x1x128xf32>
    tpu.vector_store %arg8[%c21_859, %c0_860, %c128_861], %928 {strides = array<i32>} : memref<28x5x256xf32, #tpu.memory_space<vmem>>, vector<1x1x128xf32>,
    %929 = vector.extract_strided_slice %348 {offsets = [145, 0], sizes = [1, 128], strides = [1, 1]} : vector<192x128xf32> to vector<1x128xf32>
    %c21_862 = arith.constant 21 : index
    %c1_863 = arith.constant 1 : index
    %c0_864 = arith.constant 0 : index
    %930 = vector.load %arg8[%c21_862, %c1_863, %c0_864] : memref<28x5x256xf32, #tpu.memory_space<vmem>>, vector<1x1x128xf32>
    %931 = vector.shape_cast %930 : vector<1x1x128xf32> to vector<1x128xf32>
    %932 = vector.shape_cast %929 : vector<1x128xf32> to vector<1x1x128xf32>
    tpu.vector_store %arg8[%c21_862, %c1_863, %c0_864], %932 {strides = array<i32>} : memref<28x5x256xf32, #tpu.memory_space<vmem>>, vector<1x1x128xf32>,
    %933 = vector.extract_strided_slice %348 {offsets = [146, 0], sizes = [1, 128], strides = [1, 1]} : vector<192x128xf32> to vector<1x128xf32>
    %c21_865 = arith.constant 21 : index
    %c1_866 = arith.constant 1 : index
    %c128_867 = arith.constant 128 : index
    %934 = vector.load %arg8[%c21_865, %c1_866, %c128_867] : memref<28x5x256xf32, #tpu.memory_space<vmem>>, vector<1x1x128xf32>
    %935 = vector.shape_cast %934 : vector<1x1x128xf32> to vector<1x128xf32>
    %936 = vector.shape_cast %933 : vector<1x128xf32> to vector<1x1x128xf32>
    tpu.vector_store %arg8[%c21_865, %c1_866, %c128_867], %936 {strides = array<i32>} : memref<28x5x256xf32, #tpu.memory_space<vmem>>, vector<1x1x128xf32>,
    %937 = vector.extract_strided_slice %348 {offsets = [147, 0], sizes = [1, 128], strides = [1, 1]} : vector<192x128xf32> to vector<1x128xf32>
    %c21_868 = arith.constant 21 : index
    %c2_869 = arith.constant 2 : index
    %c0_870 = arith.constant 0 : index
    %938 = vector.load %arg8[%c21_868, %c2_869, %c0_870] : memref<28x5x256xf32, #tpu.memory_space<vmem>>, vector<1x1x128xf32>
    %939 = vector.shape_cast %938 : vector<1x1x128xf32> to vector<1x128xf32>
    %940 = vector.shape_cast %937 : vector<1x128xf32> to vector<1x1x128xf32>
    tpu.vector_store %arg8[%c21_868, %c2_869, %c0_870], %940 {strides = array<i32>} : memref<28x5x256xf32, #tpu.memory_space<vmem>>, vector<1x1x128xf32>,
    %941 = vector.extract_strided_slice %348 {offsets = [148, 0], sizes = [1, 128], strides = [1, 1]} : vector<192x128xf32> to vector<1x128xf32>
    %c21_871 = arith.constant 21 : index
    %c2_872 = arith.constant 2 : index
    %c128_873 = arith.constant 128 : index
    %942 = vector.load %arg8[%c21_871, %c2_872, %c128_873] : memref<28x5x256xf32, #tpu.memory_space<vmem>>, vector<1x1x128xf32>
    %943 = vector.shape_cast %942 : vector<1x1x128xf32> to vector<1x128xf32>
    %944 = vector.shape_cast %941 : vector<1x128xf32> to vector<1x1x128xf32>
    tpu.vector_store %arg8[%c21_871, %c2_872, %c128_873], %944 {strides = array<i32>} : memref<28x5x256xf32, #tpu.memory_space<vmem>>, vector<1x1x128xf32>,
    %945 = vector.extract_strided_slice %348 {offsets = [149, 0], sizes = [1, 128], strides = [1, 1]} : vector<192x128xf32> to vector<1x128xf32>
    %c21_874 = arith.constant 21 : index
    %c3_875 = arith.constant 3 : index
    %c0_876 = arith.constant 0 : index
    %946 = vector.load %arg8[%c21_874, %c3_875, %c0_876] : memref<28x5x256xf32, #tpu.memory_space<vmem>>, vector<1x1x128xf32>
    %947 = vector.shape_cast %946 : vector<1x1x128xf32> to vector<1x128xf32>
    %948 = vector.shape_cast %945 : vector<1x128xf32> to vector<1x1x128xf32>
    tpu.vector_store %arg8[%c21_874, %c3_875, %c0_876], %948 {strides = array<i32>} : memref<28x5x256xf32, #tpu.memory_space<vmem>>, vector<1x1x128xf32>,
    %949 = vector.extract_strided_slice %348 {offsets = [150, 0], sizes = [1, 128], strides = [1, 1]} : vector<192x128xf32> to vector<1x128xf32>
    %c21_877 = arith.constant 21 : index
    %c3_878 = arith.constant 3 : index
    %c128_879 = arith.constant 128 : index
    %950 = vector.load %arg8[%c21_877, %c3_878, %c128_879] : memref<28x5x256xf32, #tpu.memory_space<vmem>>, vector<1x1x128xf32>
    %951 = vector.shape_cast %950 : vector<1x1x128xf32> to vector<1x128xf32>
    %952 = vector.shape_cast %949 : vector<1x128xf32> to vector<1x1x128xf32>
    tpu.vector_store %arg8[%c21_877, %c3_878, %c128_879], %952 {strides = array<i32>} : memref<28x5x256xf32, #tpu.memory_space<vmem>>, vector<1x1x128xf32>,
    %953 = vector.extract_strided_slice %348 {offsets = [151, 0], sizes = [1, 128], strides = [1, 1]} : vector<192x128xf32> to vector<1x128xf32>
    %c21_880 = arith.constant 21 : index
    %c4_881 = arith.constant 4 : index
    %c0_882 = arith.constant 0 : index
    %954 = vector.load %arg8[%c21_880, %c4_881, %c0_882] : memref<28x5x256xf32, #tpu.memory_space<vmem>>, vector<1x1x128xf32>
    %955 = vector.shape_cast %954 : vector<1x1x128xf32> to vector<1x128xf32>
    %956 = vector.shape_cast %953 : vector<1x128xf32> to vector<1x1x128xf32>
    tpu.vector_store %arg8[%c21_880, %c4_881, %c0_882], %956 {strides = array<i32>} : memref<28x5x256xf32, #tpu.memory_space<vmem>>, vector<1x1x128xf32>,
    %957 = vector.extract_strided_slice %348 {offsets = [152, 0], sizes = [1, 128], strides = [1, 1]} : vector<192x128xf32> to vector<1x128xf32>
    %c22_883 = arith.constant 22 : index
    %c0_884 = arith.constant 0 : index
    %c128_885 = arith.constant 128 : index
    %958 = vector.load %arg8[%c22_883, %c0_884, %c128_885] : memref<28x5x256xf32, #tpu.memory_space<vmem>>, vector<1x1x128xf32>
    %959 = vector.shape_cast %958 : vector<1x1x128xf32> to vector<1x128xf32>
    %960 = vector.shape_cast %957 : vector<1x128xf32> to vector<1x1x128xf32>
    tpu.vector_store %arg8[%c22_883, %c0_884, %c128_885], %960 {strides = array<i32>} : memref<28x5x256xf32, #tpu.memory_space<vmem>>, vector<1x1x128xf32>,
    %961 = vector.extract_strided_slice %348 {offsets = [153, 0], sizes = [1, 128], strides = [1, 1]} : vector<192x128xf32> to vector<1x128xf32>
    %c22_886 = arith.constant 22 : index
    %c1_887 = arith.constant 1 : index
    %c0_888 = arith.constant 0 : index
    %962 = vector.load %arg8[%c22_886, %c1_887, %c0_888] : memref<28x5x256xf32, #tpu.memory_space<vmem>>, vector<1x1x128xf32>
    %963 = vector.shape_cast %962 : vector<1x1x128xf32> to vector<1x128xf32>
    %964 = vector.shape_cast %961 : vector<1x128xf32> to vector<1x1x128xf32>
    tpu.vector_store %arg8[%c22_886, %c1_887, %c0_888], %964 {strides = array<i32>} : memref<28x5x256xf32, #tpu.memory_space<vmem>>, vector<1x1x128xf32>,
    %965 = vector.extract_strided_slice %348 {offsets = [154, 0], sizes = [1, 128], strides = [1, 1]} : vector<192x128xf32> to vector<1x128xf32>
    %c22_889 = arith.constant 22 : index
    %c1_890 = arith.constant 1 : index
    %c128_891 = arith.constant 128 : index
    %966 = vector.load %arg8[%c22_889, %c1_890, %c128_891] : memref<28x5x256xf32, #tpu.memory_space<vmem>>, vector<1x1x128xf32>
    %967 = vector.shape_cast %966 : vector<1x1x128xf32> to vector<1x128xf32>
    %968 = vector.shape_cast %965 : vector<1x128xf32> to vector<1x1x128xf32>
    tpu.vector_store %arg8[%c22_889, %c1_890, %c128_891], %968 {strides = array<i32>} : memref<28x5x256xf32, #tpu.memory_space<vmem>>, vector<1x1x128xf32>,
    %969 = vector.extract_strided_slice %348 {offsets = [155, 0], sizes = [1, 128], strides = [1, 1]} : vector<192x128xf32> to vector<1x128xf32>
    %c22_892 = arith.constant 22 : index
    %c2_893 = arith.constant 2 : index
    %c0_894 = arith.constant 0 : index
    %970 = vector.load %arg8[%c22_892, %c2_893, %c0_894] : memref<28x5x256xf32, #tpu.memory_space<vmem>>, vector<1x1x128xf32>
    %971 = vector.shape_cast %970 : vector<1x1x128xf32> to vector<1x128xf32>
    %972 = vector.shape_cast %969 : vector<1x128xf32> to vector<1x1x128xf32>
    tpu.vector_store %arg8[%c22_892, %c2_893, %c0_894], %972 {strides = array<i32>} : memref<28x5x256xf32, #tpu.memory_space<vmem>>, vector<1x1x128xf32>,
    %973 = vector.extract_strided_slice %348 {offsets = [156, 0], sizes = [1, 128], strides = [1, 1]} : vector<192x128xf32> to vector<1x128xf32>
    %c22_895 = arith.constant 22 : index
    %c2_896 = arith.constant 2 : index
    %c128_897 = arith.constant 128 : index
    %974 = vector.load %arg8[%c22_895, %c2_896, %c128_897] : memref<28x5x256xf32, #tpu.memory_space<vmem>>, vector<1x1x128xf32>
    %975 = vector.shape_cast %974 : vector<1x1x128xf32> to vector<1x128xf32>
    %976 = vector.shape_cast %973 : vector<1x128xf32> to vector<1x1x128xf32>
    tpu.vector_store %arg8[%c22_895, %c2_896, %c128_897], %976 {strides = array<i32>} : memref<28x5x256xf32, #tpu.memory_space<vmem>>, vector<1x1x128xf32>,
    %977 = vector.extract_strided_slice %348 {offsets = [157, 0], sizes = [1, 128], strides = [1, 1]} : vector<192x128xf32> to vector<1x128xf32>
    %c22_898 = arith.constant 22 : index
    %c3_899 = arith.constant 3 : index
    %c0_900 = arith.constant 0 : index
    %978 = vector.load %arg8[%c22_898, %c3_899, %c0_900] : memref<28x5x256xf32, #tpu.memory_space<vmem>>, vector<1x1x128xf32>
    %979 = vector.shape_cast %978 : vector<1x1x128xf32> to vector<1x128xf32>
    %980 = vector.shape_cast %977 : vector<1x128xf32> to vector<1x1x128xf32>
    tpu.vector_store %arg8[%c22_898, %c3_899, %c0_900], %980 {strides = array<i32>} : memref<28x5x256xf32, #tpu.memory_space<vmem>>, vector<1x1x128xf32>,
    %981 = vector.extract_strided_slice %348 {offsets = [158, 0], sizes = [1, 128], strides = [1, 1]} : vector<192x128xf32> to vector<1x128xf32>
    %c22_901 = arith.constant 22 : index
    %c3_902 = arith.constant 3 : index
    %c128_903 = arith.constant 128 : index
    %982 = vector.load %arg8[%c22_901, %c3_902, %c128_903] : memref<28x5x256xf32, #tpu.memory_space<vmem>>, vector<1x1x128xf32>
    %983 = vector.shape_cast %982 : vector<1x1x128xf32> to vector<1x128xf32>
    %984 = vector.shape_cast %981 : vector<1x128xf32> to vector<1x1x128xf32>
    tpu.vector_store %arg8[%c22_901, %c3_902, %c128_903], %984 {strides = array<i32>} : memref<28x5x256xf32, #tpu.memory_space<vmem>>, vector<1x1x128xf32>,
    %985 = vector.extract_strided_slice %348 {offsets = [159, 0], sizes = [1, 128], strides = [1, 1]} : vector<192x128xf32> to vector<1x128xf32>
    %c22_904 = arith.constant 22 : index
    %c4_905 = arith.constant 4 : index
    %c0_906 = arith.constant 0 : index
    %986 = vector.load %arg8[%c22_904, %c4_905, %c0_906] : memref<28x5x256xf32, #tpu.memory_space<vmem>>, vector<1x1x128xf32>
    %987 = vector.shape_cast %986 : vector<1x1x128xf32> to vector<1x128xf32>
    %988 = vector.shape_cast %985 : vector<1x128xf32> to vector<1x1x128xf32>
    tpu.vector_store %arg8[%c22_904, %c4_905, %c0_906], %988 {strides = array<i32>} : memref<28x5x256xf32, #tpu.memory_space<vmem>>, vector<1x1x128xf32>,
    %989 = vector.extract_strided_slice %348 {offsets = [160, 0], sizes = [1, 128], strides = [1, 1]} : vector<192x128xf32> to vector<1x128xf32>
    %c23_907 = arith.constant 23 : index
    %c0_908 = arith.constant 0 : index
    %c128_909 = arith.constant 128 : index
    %990 = vector.load %arg8[%c23_907, %c0_908, %c128_909] : memref<28x5x256xf32, #tpu.memory_space<vmem>>, vector<1x1x128xf32>
    %991 = vector.shape_cast %990 : vector<1x1x128xf32> to vector<1x128xf32>
    %992 = vector.shape_cast %989 : vector<1x128xf32> to vector<1x1x128xf32>
    tpu.vector_store %arg8[%c23_907, %c0_908, %c128_909], %992 {strides = array<i32>} : memref<28x5x256xf32, #tpu.memory_space<vmem>>, vector<1x1x128xf32>,
    %993 = vector.extract_strided_slice %348 {offsets = [161, 0], sizes = [1, 128], strides = [1, 1]} : vector<192x128xf32> to vector<1x128xf32>
    %c23_910 = arith.constant 23 : index
    %c1_911 = arith.constant 1 : index
    %c0_912 = arith.constant 0 : index
    %994 = vector.load %arg8[%c23_910, %c1_911, %c0_912] : memref<28x5x256xf32, #tpu.memory_space<vmem>>, vector<1x1x128xf32>
    %995 = vector.shape_cast %994 : vector<1x1x128xf32> to vector<1x128xf32>
    %996 = vector.shape_cast %993 : vector<1x128xf32> to vector<1x1x128xf32>
    tpu.vector_store %arg8[%c23_910, %c1_911, %c0_912], %996 {strides = array<i32>} : memref<28x5x256xf32, #tpu.memory_space<vmem>>, vector<1x1x128xf32>,
    %997 = vector.extract_strided_slice %348 {offsets = [162, 0], sizes = [1, 128], strides = [1, 1]} : vector<192x128xf32> to vector<1x128xf32>
    %c23_913 = arith.constant 23 : index
    %c1_914 = arith.constant 1 : index
    %c128_915 = arith.constant 128 : index
    %998 = vector.load %arg8[%c23_913, %c1_914, %c128_915] : memref<28x5x256xf32, #tpu.memory_space<vmem>>, vector<1x1x128xf32>
    %999 = vector.shape_cast %998 : vector<1x1x128xf32> to vector<1x128xf32>
    %1000 = vector.shape_cast %997 : vector<1x128xf32> to vector<1x1x128xf32>
    tpu.vector_store %arg8[%c23_913, %c1_914, %c128_915], %1000 {strides = array<i32>} : memref<28x5x256xf32, #tpu.memory_space<vmem>>, vector<1x1x128xf32>,
    %1001 = vector.extract_strided_slice %348 {offsets = [163, 0], sizes = [1, 128], strides = [1, 1]} : vector<192x128xf32> to vector<1x128xf32>
    %c23_916 = arith.constant 23 : index
    %c2_917 = arith.constant 2 : index
    %c0_918 = arith.constant 0 : index
    %1002 = vector.load %arg8[%c23_916, %c2_917, %c0_918] : memref<28x5x256xf32, #tpu.memory_space<vmem>>, vector<1x1x128xf32>
    %1003 = vector.shape_cast %1002 : vector<1x1x128xf32> to vector<1x128xf32>
    %1004 = vector.shape_cast %1001 : vector<1x128xf32> to vector<1x1x128xf32>
    tpu.vector_store %arg8[%c23_916, %c2_917, %c0_918], %1004 {strides = array<i32>} : memref<28x5x256xf32, #tpu.memory_space<vmem>>, vector<1x1x128xf32>,
    %1005 = vector.extract_strided_slice %348 {offsets = [164, 0], sizes = [1, 128], strides = [1, 1]} : vector<192x128xf32> to vector<1x128xf32>
    %c23_919 = arith.constant 23 : index
    %c2_920 = arith.constant 2 : index
    %c128_921 = arith.constant 128 : index
    %1006 = vector.load %arg8[%c23_919, %c2_920, %c128_921] : memref<28x5x256xf32, #tpu.memory_space<vmem>>, vector<1x1x128xf32>
    %1007 = vector.shape_cast %1006 : vector<1x1x128xf32> to vector<1x128xf32>
    %1008 = vector.shape_cast %1005 : vector<1x128xf32> to vector<1x1x128xf32>
    tpu.vector_store %arg8[%c23_919, %c2_920, %c128_921], %1008 {strides = array<i32>} : memref<28x5x256xf32, #tpu.memory_space<vmem>>, vector<1x1x128xf32>,
    %1009 = vector.extract_strided_slice %348 {offsets = [165, 0], sizes = [1, 128], strides = [1, 1]} : vector<192x128xf32> to vector<1x128xf32>
    %c23_922 = arith.constant 23 : index
    %c3_923 = arith.constant 3 : index
    %c0_924 = arith.constant 0 : index
    %1010 = vector.load %arg8[%c23_922, %c3_923, %c0_924] : memref<28x5x256xf32, #tpu.memory_space<vmem>>, vector<1x1x128xf32>
    %1011 = vector.shape_cast %1010 : vector<1x1x128xf32> to vector<1x128xf32>
    %1012 = vector.shape_cast %1009 : vector<1x128xf32> to vector<1x1x128xf32>
    tpu.vector_store %arg8[%c23_922, %c3_923, %c0_924], %1012 {strides = array<i32>} : memref<28x5x256xf32, #tpu.memory_space<vmem>>, vector<1x1x128xf32>,
    %1013 = vector.extract_strided_slice %348 {offsets = [166, 0], sizes = [1, 128], strides = [1, 1]} : vector<192x128xf32> to vector<1x128xf32>
    %c23_925 = arith.constant 23 : index
    %c3_926 = arith.constant 3 : index
    %c128_927 = arith.constant 128 : index
    %1014 = vector.load %arg8[%c23_925, %c3_926, %c128_927] : memref<28x5x256xf32, #tpu.memory_space<vmem>>, vector<1x1x128xf32>
    %1015 = vector.shape_cast %1014 : vector<1x1x128xf32> to vector<1x128xf32>
    %1016 = vector.shape_cast %1013 : vector<1x128xf32> to vector<1x1x128xf32>
    tpu.vector_store %arg8[%c23_925, %c3_926, %c128_927], %1016 {strides = array<i32>} : memref<28x5x256xf32, #tpu.memory_space<vmem>>, vector<1x1x128xf32>,
    %1017 = vector.extract_strided_slice %348 {offsets = [167, 0], sizes = [1, 128], strides = [1, 1]} : vector<192x128xf32> to vector<1x128xf32>
    %c23_928 = arith.constant 23 : index
    %c4_929 = arith.constant 4 : index
    %c0_930 = arith.constant 0 : index
    %1018 = vector.load %arg8[%c23_928, %c4_929, %c0_930] : memref<28x5x256xf32, #tpu.memory_space<vmem>>, vector<1x1x128xf32>
    %1019 = vector.shape_cast %1018 : vector<1x1x128xf32> to vector<1x128xf32>
    %1020 = vector.shape_cast %1017 : vector<1x128xf32> to vector<1x1x128xf32>
    tpu.vector_store %arg8[%c23_928, %c4_929, %c0_930], %1020 {strides = array<i32>} : memref<28x5x256xf32, #tpu.memory_space<vmem>>, vector<1x1x128xf32>,
    %1021 = vector.extract_strided_slice %348 {offsets = [168, 0], sizes = [1, 128], strides = [1, 1]} : vector<192x128xf32> to vector<1x128xf32>
    %c24_931 = arith.constant 24 : index
    %c0_932 = arith.constant 0 : index
    %c128_933 = arith.constant 128 : index
    %1022 = vector.load %arg8[%c24_931, %c0_932, %c128_933] : memref<28x5x256xf32, #tpu.memory_space<vmem>>, vector<1x1x128xf32>
    %1023 = vector.shape_cast %1022 : vector<1x1x128xf32> to vector<1x128xf32>
    %1024 = vector.shape_cast %1021 : vector<1x128xf32> to vector<1x1x128xf32>
    tpu.vector_store %arg8[%c24_931, %c0_932, %c128_933], %1024 {strides = array<i32>} : memref<28x5x256xf32, #tpu.memory_space<vmem>>, vector<1x1x128xf32>,
    %1025 = vector.extract_strided_slice %348 {offsets = [169, 0], sizes = [1, 128], strides = [1, 1]} : vector<192x128xf32> to vector<1x128xf32>
    %c24_934 = arith.constant 24 : index
    %c1_935 = arith.constant 1 : index
    %c0_936 = arith.constant 0 : index
    %1026 = vector.load %arg8[%c24_934, %c1_935, %c0_936] : memref<28x5x256xf32, #tpu.memory_space<vmem>>, vector<1x1x128xf32>
    %1027 = vector.shape_cast %1026 : vector<1x1x128xf32> to vector<1x128xf32>
    %1028 = vector.shape_cast %1025 : vector<1x128xf32> to vector<1x1x128xf32>
    tpu.vector_store %arg8[%c24_934, %c1_935, %c0_936], %1028 {strides = array<i32>} : memref<28x5x256xf32, #tpu.memory_space<vmem>>, vector<1x1x128xf32>,
    %1029 = vector.extract_strided_slice %348 {offsets = [170, 0], sizes = [1, 128], strides = [1, 1]} : vector<192x128xf32> to vector<1x128xf32>
    %c24_937 = arith.constant 24 : index
    %c1_938 = arith.constant 1 : index
    %c128_939 = arith.constant 128 : index
    %1030 = vector.load %arg8[%c24_937, %c1_938, %c128_939] : memref<28x5x256xf32, #tpu.memory_space<vmem>>, vector<1x1x128xf32>
    %1031 = vector.shape_cast %1030 : vector<1x1x128xf32> to vector<1x128xf32>
    %1032 = vector.shape_cast %1029 : vector<1x128xf32> to vector<1x1x128xf32>
    tpu.vector_store %arg8[%c24_937, %c1_938, %c128_939], %1032 {strides = array<i32>} : memref<28x5x256xf32, #tpu.memory_space<vmem>>, vector<1x1x128xf32>,
    %1033 = vector.extract_strided_slice %348 {offsets = [171, 0], sizes = [1, 128], strides = [1, 1]} : vector<192x128xf32> to vector<1x128xf32>
    %c24_940 = arith.constant 24 : index
    %c2_941 = arith.constant 2 : index
    %c0_942 = arith.constant 0 : index
    %1034 = vector.load %arg8[%c24_940, %c2_941, %c0_942] : memref<28x5x256xf32, #tpu.memory_space<vmem>>, vector<1x1x128xf32>
    %1035 = vector.shape_cast %1034 : vector<1x1x128xf32> to vector<1x128xf32>
    %1036 = vector.shape_cast %1033 : vector<1x128xf32> to vector<1x1x128xf32>
    tpu.vector_store %arg8[%c24_940, %c2_941, %c0_942], %1036 {strides = array<i32>} : memref<28x5x256xf32, #tpu.memory_space<vmem>>, vector<1x1x128xf32>,
    %1037 = vector.extract_strided_slice %348 {offsets = [172, 0], sizes = [1, 128], strides = [1, 1]} : vector<192x128xf32> to vector<1x128xf32>
    %c24_943 = arith.constant 24 : index
    %c2_944 = arith.constant 2 : index
    %c128_945 = arith.constant 128 : index
    %1038 = vector.load %arg8[%c24_943, %c2_944, %c128_945] : memref<28x5x256xf32, #tpu.memory_space<vmem>>, vector<1x1x128xf32>
    %1039 = vector.shape_cast %1038 : vector<1x1x128xf32> to vector<1x128xf32>
    %1040 = vector.shape_cast %1037 : vector<1x128xf32> to vector<1x1x128xf32>
    tpu.vector_store %arg8[%c24_943, %c2_944, %c128_945], %1040 {strides = array<i32>} : memref<28x5x256xf32, #tpu.memory_space<vmem>>, vector<1x1x128xf32>,
    %1041 = vector.extract_strided_slice %348 {offsets = [173, 0], sizes = [1, 128], strides = [1, 1]} : vector<192x128xf32> to vector<1x128xf32>
    %c24_946 = arith.constant 24 : index
    %c3_947 = arith.constant 3 : index
    %c0_948 = arith.constant 0 : index
    %1042 = vector.load %arg8[%c24_946, %c3_947, %c0_948] : memref<28x5x256xf32, #tpu.memory_space<vmem>>, vector<1x1x128xf32>
    %1043 = vector.shape_cast %1042 : vector<1x1x128xf32> to vector<1x128xf32>
    %1044 = vector.shape_cast %1041 : vector<1x128xf32> to vector<1x1x128xf32>
    tpu.vector_store %arg8[%c24_946, %c3_947, %c0_948], %1044 {strides = array<i32>} : memref<28x5x256xf32, #tpu.memory_space<vmem>>, vector<1x1x128xf32>,
    %1045 = vector.extract_strided_slice %348 {offsets = [174, 0], sizes = [1, 128], strides = [1, 1]} : vector<192x128xf32> to vector<1x128xf32>
    %c24_949 = arith.constant 24 : index
    %c3_950 = arith.constant 3 : index
    %c128_951 = arith.constant 128 : index
    %1046 = vector.load %arg8[%c24_949, %c3_950, %c128_951] : memref<28x5x256xf32, #tpu.memory_space<vmem>>, vector<1x1x128xf32>
    %1047 = vector.shape_cast %1046 : vector<1x1x128xf32> to vector<1x128xf32>
    %1048 = vector.shape_cast %1045 : vector<1x128xf32> to vector<1x1x128xf32>
    tpu.vector_store %arg8[%c24_949, %c3_950, %c128_951], %1048 {strides = array<i32>} : memref<28x5x256xf32, #tpu.memory_space<vmem>>, vector<1x1x128xf32>,
    %1049 = vector.extract_strided_slice %348 {offsets = [175, 0], sizes = [1, 128], strides = [1, 1]} : vector<192x128xf32> to vector<1x128xf32>
    %c24_952 = arith.constant 24 : index
    %c4_953 = arith.constant 4 : index
    %c0_954 = arith.constant 0 : index
    %1050 = vector.load %arg8[%c24_952, %c4_953, %c0_954] : memref<28x5x256xf32, #tpu.memory_space<vmem>>, vector<1x1x128xf32>
    %1051 = vector.shape_cast %1050 : vector<1x1x128xf32> to vector<1x128xf32>
    %1052 = vector.shape_cast %1049 : vector<1x128xf32> to vector<1x1x128xf32>
    tpu.vector_store %arg8[%c24_952, %c4_953, %c0_954], %1052 {strides = array<i32>} : memref<28x5x256xf32, #tpu.memory_space<vmem>>, vector<1x1x128xf32>,
    %1053 = vector.extract_strided_slice %348 {offsets = [176, 0], sizes = [1, 128], strides = [1, 1]} : vector<192x128xf32> to vector<1x128xf32>
    %c25 = arith.constant 25 : index
    %c0_955 = arith.constant 0 : index
    %c128_956 = arith.constant 128 : index
    %1054 = vector.load %arg8[%c25, %c0_955, %c128_956] : memref<28x5x256xf32, #tpu.memory_space<vmem>>, vector<1x1x128xf32>
    %1055 = vector.shape_cast %1054 : vector<1x1x128xf32> to vector<1x128xf32>
    %1056 = vector.shape_cast %1053 : vector<1x128xf32> to vector<1x1x128xf32>
    tpu.vector_store %arg8[%c25, %c0_955, %c128_956], %1056 {strides = array<i32>} : memref<28x5x256xf32, #tpu.memory_space<vmem>>, vector<1x1x128xf32>,
    %1057 = vector.extract_strided_slice %348 {offsets = [177, 0], sizes = [1, 128], strides = [1, 1]} : vector<192x128xf32> to vector<1x128xf32>
    %c25_957 = arith.constant 25 : index
    %c1_958 = arith.constant 1 : index
    %c0_959 = arith.constant 0 : index
    %1058 = vector.load %arg8[%c25_957, %c1_958, %c0_959] : memref<28x5x256xf32, #tpu.memory_space<vmem>>, vector<1x1x128xf32>
    %1059 = vector.shape_cast %1058 : vector<1x1x128xf32> to vector<1x128xf32>
    %1060 = vector.shape_cast %1057 : vector<1x128xf32> to vector<1x1x128xf32>
    tpu.vector_store %arg8[%c25_957, %c1_958, %c0_959], %1060 {strides = array<i32>} : memref<28x5x256xf32, #tpu.memory_space<vmem>>, vector<1x1x128xf32>,
    %1061 = vector.extract_strided_slice %348 {offsets = [178, 0], sizes = [1, 128], strides = [1, 1]} : vector<192x128xf32> to vector<1x128xf32>
    %c25_960 = arith.constant 25 : index
    %c1_961 = arith.constant 1 : index
    %c128_962 = arith.constant 128 : index
    %1062 = vector.load %arg8[%c25_960, %c1_961, %c128_962] : memref<28x5x256xf32, #tpu.memory_space<vmem>>, vector<1x1x128xf32>
    %1063 = vector.shape_cast %1062 : vector<1x1x128xf32> to vector<1x128xf32>
    %1064 = vector.shape_cast %1061 : vector<1x128xf32> to vector<1x1x128xf32>
    tpu.vector_store %arg8[%c25_960, %c1_961, %c128_962], %1064 {strides = array<i32>} : memref<28x5x256xf32, #tpu.memory_space<vmem>>, vector<1x1x128xf32>,
    %1065 = vector.extract_strided_slice %348 {offsets = [179, 0], sizes = [1, 128], strides = [1, 1]} : vector<192x128xf32> to vector<1x128xf32>
    %c25_963 = arith.constant 25 : index
    %c2_964 = arith.constant 2 : index
    %c0_965 = arith.constant 0 : index
    %1066 = vector.load %arg8[%c25_963, %c2_964, %c0_965] : memref<28x5x256xf32, #tpu.memory_space<vmem>>, vector<1x1x128xf32>
    %1067 = vector.shape_cast %1066 : vector<1x1x128xf32> to vector<1x128xf32>
    %1068 = vector.shape_cast %1065 : vector<1x128xf32> to vector<1x1x128xf32>
    tpu.vector_store %arg8[%c25_963, %c2_964, %c0_965], %1068 {strides = array<i32>} : memref<28x5x256xf32, #tpu.memory_space<vmem>>, vector<1x1x128xf32>,
    %1069 = vector.extract_strided_slice %348 {offsets = [180, 0], sizes = [1, 128], strides = [1, 1]} : vector<192x128xf32> to vector<1x128xf32>
    %c25_966 = arith.constant 25 : index
    %c2_967 = arith.constant 2 : index
    %c128_968 = arith.constant 128 : index
    %1070 = vector.load %arg8[%c25_966, %c2_967, %c128_968] : memref<28x5x256xf32, #tpu.memory_space<vmem>>, vector<1x1x128xf32>
    %1071 = vector.shape_cast %1070 : vector<1x1x128xf32> to vector<1x128xf32>
    %1072 = vector.shape_cast %1069 : vector<1x128xf32> to vector<1x1x128xf32>
    tpu.vector_store %arg8[%c25_966, %c2_967, %c128_968], %1072 {strides = array<i32>} : memref<28x5x256xf32, #tpu.memory_space<vmem>>, vector<1x1x128xf32>,
    %1073 = vector.extract_strided_slice %348 {offsets = [181, 0], sizes = [1, 128], strides = [1, 1]} : vector<192x128xf32> to vector<1x128xf32>
    %c25_969 = arith.constant 25 : index
    %c3_970 = arith.constant 3 : index
    %c0_971 = arith.constant 0 : index
    %1074 = vector.load %arg8[%c25_969, %c3_970, %c0_971] : memref<28x5x256xf32, #tpu.memory_space<vmem>>, vector<1x1x128xf32>
    %1075 = vector.shape_cast %1074 : vector<1x1x128xf32> to vector<1x128xf32>
    %1076 = vector.shape_cast %1073 : vector<1x128xf32> to vector<1x1x128xf32>
    tpu.vector_store %arg8[%c25_969, %c3_970, %c0_971], %1076 {strides = array<i32>} : memref<28x5x256xf32, #tpu.memory_space<vmem>>, vector<1x1x128xf32>,
    %1077 = vector.extract_strided_slice %348 {offsets = [182, 0], sizes = [1, 128], strides = [1, 1]} : vector<192x128xf32> to vector<1x128xf32>
    %c25_972 = arith.constant 25 : index
    %c3_973 = arith.constant 3 : index
    %c128_974 = arith.constant 128 : index
    %1078 = vector.load %arg8[%c25_972, %c3_973, %c128_974] : memref<28x5x256xf32, #tpu.memory_space<vmem>>, vector<1x1x128xf32>
    %1079 = vector.shape_cast %1078 : vector<1x1x128xf32> to vector<1x128xf32>
    %1080 = vector.shape_cast %1077 : vector<1x128xf32> to vector<1x1x128xf32>
    tpu.vector_store %arg8[%c25_972, %c3_973, %c128_974], %1080 {strides = array<i32>} : memref<28x5x256xf32, #tpu.memory_space<vmem>>, vector<1x1x128xf32>,
    %1081 = vector.extract_strided_slice %348 {offsets = [183, 0], sizes = [1, 128], strides = [1, 1]} : vector<192x128xf32> to vector<1x128xf32>
    %c25_975 = arith.constant 25 : index
    %c4_976 = arith.constant 4 : index
    %c0_977 = arith.constant 0 : index
    %1082 = vector.load %arg8[%c25_975, %c4_976, %c0_977] : memref<28x5x256xf32, #tpu.memory_space<vmem>>, vector<1x1x128xf32>
    %1083 = vector.shape_cast %1082 : vector<1x1x128xf32> to vector<1x128xf32>
    %1084 = vector.shape_cast %1081 : vector<1x128xf32> to vector<1x1x128xf32>
    tpu.vector_store %arg8[%c25_975, %c4_976, %c0_977], %1084 {strides = array<i32>} : memref<28x5x256xf32, #tpu.memory_space<vmem>>, vector<1x1x128xf32>,
    %1085 = vector.extract_strided_slice %348 {offsets = [184, 0], sizes = [1, 128], strides = [1, 1]} : vector<192x128xf32> to vector<1x128xf32>
    %c26_978 = arith.constant 26 : index
    %c0_979 = arith.constant 0 : index
    %c128_980 = arith.constant 128 : index
    %1086 = vector.load %arg8[%c26_978, %c0_979, %c128_980] : memref<28x5x256xf32, #tpu.memory_space<vmem>>, vector<1x1x128xf32>
    %1087 = vector.shape_cast %1086 : vector<1x1x128xf32> to vector<1x128xf32>
    %1088 = vector.shape_cast %1085 : vector<1x128xf32> to vector<1x1x128xf32>
    tpu.vector_store %arg8[%c26_978, %c0_979, %c128_980], %1088 {strides = array<i32>} : memref<28x5x256xf32, #tpu.memory_space<vmem>>, vector<1x1x128xf32>,
    %1089 = vector.extract_strided_slice %348 {offsets = [185, 0], sizes = [1, 128], strides = [1, 1]} : vector<192x128xf32> to vector<1x128xf32>
    %c26_981 = arith.constant 26 : index
    %c1_982 = arith.constant 1 : index
    %c0_983 = arith.constant 0 : index
    %1090 = vector.load %arg8[%c26_981, %c1_982, %c0_983] : memref<28x5x256xf32, #tpu.memory_space<vmem>>, vector<1x1x128xf32>
    %1091 = vector.shape_cast %1090 : vector<1x1x128xf32> to vector<1x128xf32>
    %1092 = vector.shape_cast %1089 : vector<1x128xf32> to vector<1x1x128xf32>
    tpu.vector_store %arg8[%c26_981, %c1_982, %c0_983], %1092 {strides = array<i32>} : memref<28x5x256xf32, #tpu.memory_space<vmem>>, vector<1x1x128xf32>,
    %1093 = vector.extract_strided_slice %348 {offsets = [186, 0], sizes = [1, 128], strides = [1, 1]} : vector<192x128xf32> to vector<1x128xf32>
    %c26_984 = arith.constant 26 : index
    %c1_985 = arith.constant 1 : index
    %c128_986 = arith.constant 128 : index
    %1094 = vector.load %arg8[%c26_984, %c1_985, %c128_986] : memref<28x5x256xf32, #tpu.memory_space<vmem>>, vector<1x1x128xf32>
    %1095 = vector.shape_cast %1094 : vector<1x1x128xf32> to vector<1x128xf32>
    %1096 = vector.shape_cast %1093 : vector<1x128xf32> to vector<1x1x128xf32>
    tpu.vector_store %arg8[%c26_984, %c1_985, %c128_986], %1096 {strides = array<i32>} : memref<28x5x256xf32, #tpu.memory_space<vmem>>, vector<1x1x128xf32>,
    %1097 = vector.extract_strided_slice %348 {offsets = [187, 0], sizes = [1, 128], strides = [1, 1]} : vector<192x128xf32> to vector<1x128xf32>
    %c26_987 = arith.constant 26 : index
    %c2_988 = arith.constant 2 : index
    %c0_989 = arith.constant 0 : index
    %1098 = vector.load %arg8[%c26_987, %c2_988, %c0_989] : memref<28x5x256xf32, #tpu.memory_space<vmem>>, vector<1x1x128xf32>
    %1099 = vector.shape_cast %1098 : vector<1x1x128xf32> to vector<1x128xf32>
    %1100 = vector.shape_cast %1097 : vector<1x128xf32> to vector<1x1x128xf32>
    tpu.vector_store %arg8[%c26_987, %c2_988, %c0_989], %1100 {strides = array<i32>} : memref<28x5x256xf32, #tpu.memory_space<vmem>>, vector<1x1x128xf32>,
    %1101 = vector.extract_strided_slice %348 {offsets = [188, 0], sizes = [1, 128], strides = [1, 1]} : vector<192x128xf32> to vector<1x128xf32>
    %c26_990 = arith.constant 26 : index
    %c2_991 = arith.constant 2 : index
    %c128_992 = arith.constant 128 : index
    %1102 = vector.load %arg8[%c26_990, %c2_991, %c128_992] : memref<28x5x256xf32, #tpu.memory_space<vmem>>, vector<1x1x128xf32>
    %1103 = vector.shape_cast %1102 : vector<1x1x128xf32> to vector<1x128xf32>
    %1104 = vector.shape_cast %1101 : vector<1x128xf32> to vector<1x1x128xf32>
    tpu.vector_store %arg8[%c26_990, %c2_991, %c128_992], %1104 {strides = array<i32>} : memref<28x5x256xf32, #tpu.memory_space<vmem>>, vector<1x1x128xf32>,
    %1105 = vector.extract_strided_slice %348 {offsets = [189, 0], sizes = [1, 128], strides = [1, 1]} : vector<192x128xf32> to vector<1x128xf32>
    %c26_993 = arith.constant 26 : index
    %c3_994 = arith.constant 3 : index
    %c0_995 = arith.constant 0 : index
    %1106 = vector.load %arg8[%c26_993, %c3_994, %c0_995] : memref<28x5x256xf32, #tpu.memory_space<vmem>>, vector<1x1x128xf32>
    %1107 = vector.shape_cast %1106 : vector<1x1x128xf32> to vector<1x128xf32>
    %1108 = vector.shape_cast %1105 : vector<1x128xf32> to vector<1x1x128xf32>
    tpu.vector_store %arg8[%c26_993, %c3_994, %c0_995], %1108 {strides = array<i32>} : memref<28x5x256xf32, #tpu.memory_space<vmem>>, vector<1x1x128xf32>,
    %1109 = vector.extract_strided_slice %348 {offsets = [190, 0], sizes = [1, 128], strides = [1, 1]} : vector<192x128xf32> to vector<1x128xf32>
    %c26_996 = arith.constant 26 : index
    %c3_997 = arith.constant 3 : index
    %c128_998 = arith.constant 128 : index
    %1110 = vector.load %arg8[%c26_996, %c3_997, %c128_998] : memref<28x5x256xf32, #tpu.memory_space<vmem>>, vector<1x1x128xf32>
    %1111 = vector.shape_cast %1110 : vector<1x1x128xf32> to vector<1x128xf32>
    %1112 = vector.shape_cast %1109 : vector<1x128xf32> to vector<1x1x128xf32>
    tpu.vector_store %arg8[%c26_996, %c3_997, %c128_998], %1112 {strides = array<i32>} : memref<28x5x256xf32, #tpu.memory_space<vmem>>, vector<1x1x128xf32>,
    %1113 = vector.extract_strided_slice %348 {offsets = [191, 0], sizes = [1, 128], strides = [1, 1]} : vector<192x128xf32> to vector<1x128xf32>
    %c26_999 = arith.constant 26 : index
    %c4_1000 = arith.constant 4 : index
    %c0_1001 = arith.constant 0 : index
    %1114 = vector.load %arg8[%c26_999, %c4_1000, %c0_1001] : memref<28x5x256xf32, #tpu.memory_space<vmem>>, vector<1x1x128xf32>
    %1115 = vector.shape_cast %1114 : vector<1x1x128xf32> to vector<1x128xf32>
    %1116 = vector.shape_cast %1113 : vector<1x128xf32> to vector<1x1x128xf32>
    tpu.vector_store %arg8[%c26_999, %c4_1000, %c0_1001], %1116 {strides = array<i32>} : memref<28x5x256xf32, #tpu.memory_space<vmem>>, vector<1x1x128xf32>,
    %c0_1002 = arith.constant 0 : index
    %c0_1003 = arith.constant 0 : index
    %c0_1004 = arith.constant 0 : index
    %1117 = vector.load %arg8[%c0_1002, %c0_1003, %c0_1004] : memref<28x5x256xf32, #tpu.memory_space<vmem>>, vector<1x4x256xf32>
    %1118 = vector.shape_cast %1117 : vector<1x4x256xf32> to vector<4x256xf32>
    %c0_1005 = arith.constant 0 : index
    %c1_1006 = arith.constant 1 : index
    %c0_1007 = arith.constant 0 : index
    %1119 = vector.load %arg8[%c0_1005, %c1_1006, %c0_1007] : memref<28x5x256xf32, #tpu.memory_space<vmem>>, vector<1x4x128xf32>
    %1120 = vector.shape_cast %1119 : vector<1x4x128xf32> to vector<4x128xf32>
    %c1_1008 = arith.constant 1 : index
    %c0_1009 = arith.constant 0 : index
    %c0_1010 = arith.constant 0 : index
    %1121 = vector.load %arg8[%c1_1008, %c0_1009, %c0_1010] : memref<28x5x256xf32, #tpu.memory_space<vmem>>, vector<1x4x256xf32>
    %1122 = vector.shape_cast %1121 : vector<1x4x256xf32> to vector<4x256xf32>
    %c1_1011 = arith.constant 1 : index
    %c1_1012 = arith.constant 1 : index
    %c0_1013 = arith.constant 0 : index
    %1123 = vector.load %arg8[%c1_1011, %c1_1012, %c0_1013] : memref<28x5x256xf32, #tpu.memory_space<vmem>>, vector<1x4x128xf32>
    %1124 = vector.shape_cast %1123 : vector<1x4x128xf32> to vector<4x128xf32>
    %c2_1014 = arith.constant 2 : index
    %c0_1015 = arith.constant 0 : index
    %c0_1016 = arith.constant 0 : index
    %1125 = vector.load %arg8[%c2_1014, %c0_1015, %c0_1016] : memref<28x5x256xf32, #tpu.memory_space<vmem>>, vector<1x4x256xf32>
    %1126 = vector.shape_cast %1125 : vector<1x4x256xf32> to vector<4x256xf32>
    %c2_1017 = arith.constant 2 : index
    %c1_1018 = arith.constant 1 : index
    %c0_1019 = arith.constant 0 : index
    %1127 = vector.load %arg8[%c2_1017, %c1_1018, %c0_1019] : memref<28x5x256xf32, #tpu.memory_space<vmem>>, vector<1x4x128xf32>
    %1128 = vector.shape_cast %1127 : vector<1x4x128xf32> to vector<4x128xf32>
    %1129 = tpu.concatenate %1118, %1120, %1122, %1124, %1126, %1128 in 1 : vector<4x256xf32>, vector<4x128xf32>, vector<4x256xf32>, vector<4x128xf32>, vector<4x256xf32>, vector<4x128xf32> -> vector<4x1152xf32>
    %c0_1020 = arith.constant 0 : index
    %c0_1021 = arith.constant 0 : index
    %1130 = vector.load %arg11[%c0_1020, %c0_1021] : memref<48x1152xf32, #tpu.memory_space<vmem>>, vector<4x1152xf32>
    tpu.vector_store %arg11[%c0_1020, %c0_1021], %1129 {strides = array<i32>} : memref<48x1152xf32, #tpu.memory_space<vmem>>, vector<4x1152xf32>,
    %c2_1022 = arith.constant 2 : index
    %c0_1023 = arith.constant 0 : index
    %c0_1024 = arith.constant 0 : index
    %1131 = vector.load %arg8[%c2_1022, %c0_1023, %c0_1024] : memref<28x5x256xf32, #tpu.memory_space<vmem>>, vector<1x4x256xf32>
    %1132 = vector.shape_cast %1131 : vector<1x4x256xf32> to vector<4x256xf32>
    %c2_1025 = arith.constant 2 : index
    %c1_1026 = arith.constant 1 : index
    %c0_1027 = arith.constant 0 : index
    %1133 = vector.load %arg8[%c2_1025, %c1_1026, %c0_1027] : memref<28x5x256xf32, #tpu.memory_space<vmem>>, vector<1x4x128xf32>
    %1134 = vector.shape_cast %1133 : vector<1x4x128xf32> to vector<4x128xf32>
    %c3_1028 = arith.constant 3 : index
    %c0_1029 = arith.constant 0 : index
    %c0_1030 = arith.constant 0 : index
    %1135 = vector.load %arg8[%c3_1028, %c0_1029, %c0_1030] : memref<28x5x256xf32, #tpu.memory_space<vmem>>, vector<1x4x256xf32>
    %1136 = vector.shape_cast %1135 : vector<1x4x256xf32> to vector<4x256xf32>
    %c3_1031 = arith.constant 3 : index
    %c1_1032 = arith.constant 1 : index
    %c0_1033 = arith.constant 0 : index
    %1137 = vector.load %arg8[%c3_1031, %c1_1032, %c0_1033] : memref<28x5x256xf32, #tpu.memory_space<vmem>>, vector<1x4x128xf32>
    %1138 = vector.shape_cast %1137 : vector<1x4x128xf32> to vector<4x128xf32>
    %c4_1034 = arith.constant 4 : index
    %c0_1035 = arith.constant 0 : index
    %c0_1036 = arith.constant 0 : index
    %1139 = vector.load %arg8[%c4_1034, %c0_1035, %c0_1036] : memref<28x5x256xf32, #tpu.memory_space<vmem>>, vector<1x4x256xf32>
    %1140 = vector.shape_cast %1139 : vector<1x4x256xf32> to vector<4x256xf32>
    %c4_1037 = arith.constant 4 : index
    %c1_1038 = arith.constant 1 : index
    %c0_1039 = arith.constant 0 : index
    %1141 = vector.load %arg8[%c4_1037, %c1_1038, %c0_1039] : memref<28x5x256xf32, #tpu.memory_space<vmem>>, vector<1x4x128xf32>
    %1142 = vector.shape_cast %1141 : vector<1x4x128xf32> to vector<4x128xf32>
    %1143 = tpu.concatenate %1132, %1134, %1136, %1138, %1140, %1142 in 1 : vector<4x256xf32>, vector<4x128xf32>, vector<4x256xf32>, vector<4x128xf32>, vector<4x256xf32>, vector<4x128xf32> -> vector<4x1152xf32>
    %c4_1040 = arith.constant 4 : index
    %c0_1041 = arith.constant 0 : index
    %1144 = vector.load %arg11[%c4_1040, %c0_1041] : memref<48x1152xf32, #tpu.memory_space<vmem>>, vector<4x1152xf32>
    tpu.vector_store %arg11[%c4_1040, %c0_1041], %1143 {strides = array<i32>} : memref<48x1152xf32, #tpu.memory_space<vmem>>, vector<4x1152xf32>,
    %c4_1042 = arith.constant 4 : index
    %c0_1043 = arith.constant 0 : index
    %c0_1044 = arith.constant 0 : index
    %1145 = vector.load %arg8[%c4_1042, %c0_1043, %c0_1044] : memref<28x5x256xf32, #tpu.memory_space<vmem>>, vector<1x4x256xf32>
    %1146 = vector.shape_cast %1145 : vector<1x4x256xf32> to vector<4x256xf32>
    %c4_1045 = arith.constant 4 : index
    %c1_1046 = arith.constant 1 : index
    %c0_1047 = arith.constant 0 : index
    %1147 = vector.load %arg8[%c4_1045, %c1_1046, %c0_1047] : memref<28x5x256xf32, #tpu.memory_space<vmem>>, vector<1x4x128xf32>
    %1148 = vector.shape_cast %1147 : vector<1x4x128xf32> to vector<4x128xf32>
    %c5_1048 = arith.constant 5 : index
    %c0_1049 = arith.constant 0 : index
    %c0_1050 = arith.constant 0 : index
    %1149 = vector.load %arg8[%c5_1048, %c0_1049, %c0_1050] : memref<28x5x256xf32, #tpu.memory_space<vmem>>, vector<1x4x256xf32>
    %1150 = vector.shape_cast %1149 : vector<1x4x256xf32> to vector<4x256xf32>
    %c5_1051 = arith.constant 5 : index
    %c1_1052 = arith.constant 1 : index
    %c0_1053 = arith.constant 0 : index
    %1151 = vector.load %arg8[%c5_1051, %c1_1052, %c0_1053] : memref<28x5x256xf32, #tpu.memory_space<vmem>>, vector<1x4x128xf32>
    %1152 = vector.shape_cast %1151 : vector<1x4x128xf32> to vector<4x128xf32>
    %c6_1054 = arith.constant 6 : index
    %c0_1055 = arith.constant 0 : index
    %c0_1056 = arith.constant 0 : index
    %1153 = vector.load %arg8[%c6_1054, %c0_1055, %c0_1056] : memref<28x5x256xf32, #tpu.memory_space<vmem>>, vector<1x4x256xf32>
    %1154 = vector.shape_cast %1153 : vector<1x4x256xf32> to vector<4x256xf32>
    %c6_1057 = arith.constant 6 : index
    %c1_1058 = arith.constant 1 : index
    %c0_1059 = arith.constant 0 : index
    %1155 = vector.load %arg8[%c6_1057, %c1_1058, %c0_1059] : memref<28x5x256xf32, #tpu.memory_space<vmem>>, vector<1x4x128xf32>
    %1156 = vector.shape_cast %1155 : vector<1x4x128xf32> to vector<4x128xf32>
    %1157 = tpu.concatenate %1146, %1148, %1150, %1152, %1154, %1156 in 1 : vector<4x256xf32>, vector<4x128xf32>, vector<4x256xf32>, vector<4x128xf32>, vector<4x256xf32>, vector<4x128xf32> -> vector<4x1152xf32>
    %c8_1060 = arith.constant 8 : index
    %c0_1061 = arith.constant 0 : index
    %1158 = vector.load %arg11[%c8_1060, %c0_1061] : memref<48x1152xf32, #tpu.memory_space<vmem>>, vector<4x1152xf32>
    tpu.vector_store %arg11[%c8_1060, %c0_1061], %1157 {strides = array<i32>} : memref<48x1152xf32, #tpu.memory_space<vmem>>, vector<4x1152xf32>,
    %c6_1062 = arith.constant 6 : index
    %c0_1063 = arith.constant 0 : index
    %c0_1064 = arith.constant 0 : index
    %1159 = vector.load %arg8[%c6_1062, %c0_1063, %c0_1064] : memref<28x5x256xf32, #tpu.memory_space<vmem>>, vector<1x4x256xf32>
    %1160 = vector.shape_cast %1159 : vector<1x4x256xf32> to vector<4x256xf32>
    %c6_1065 = arith.constant 6 : index
    %c1_1066 = arith.constant 1 : index
    %c0_1067 = arith.constant 0 : index
    %1161 = vector.load %arg8[%c6_1065, %c1_1066, %c0_1067] : memref<28x5x256xf32, #tpu.memory_space<vmem>>, vector<1x4x128xf32>
    %1162 = vector.shape_cast %1161 : vector<1x4x128xf32> to vector<4x128xf32>
    %c7_1068 = arith.constant 7 : index
    %c0_1069 = arith.constant 0 : index
    %c0_1070 = arith.constant 0 : index
    %1163 = vector.load %arg8[%c7_1068, %c0_1069, %c0_1070] : memref<28x5x256xf32, #tpu.memory_space<vmem>>, vector<1x4x256xf32>
    %1164 = vector.shape_cast %1163 : vector<1x4x256xf32> to vector<4x256xf32>
    %c7_1071 = arith.constant 7 : index
    %c1_1072 = arith.constant 1 : index
    %c0_1073 = arith.constant 0 : index
    %1165 = vector.load %arg8[%c7_1071, %c1_1072, %c0_1073] : memref<28x5x256xf32, #tpu.memory_space<vmem>>, vector<1x4x128xf32>
    %1166 = vector.shape_cast %1165 : vector<1x4x128xf32> to vector<4x128xf32>
    %c8_1074 = arith.constant 8 : index
    %c0_1075 = arith.constant 0 : index
    %c0_1076 = arith.constant 0 : index
    %1167 = vector.load %arg8[%c8_1074, %c0_1075, %c0_1076] : memref<28x5x256xf32, #tpu.memory_space<vmem>>, vector<1x4x256xf32>
    %1168 = vector.shape_cast %1167 : vector<1x4x256xf32> to vector<4x256xf32>
    %c8_1077 = arith.constant 8 : index
    %c1_1078 = arith.constant 1 : index
    %c0_1079 = arith.constant 0 : index
    %1169 = vector.load %arg8[%c8_1077, %c1_1078, %c0_1079] : memref<28x5x256xf32, #tpu.memory_space<vmem>>, vector<1x4x128xf32>
    %1170 = vector.shape_cast %1169 : vector<1x4x128xf32> to vector<4x128xf32>
    %1171 = tpu.concatenate %1160, %1162, %1164, %1166, %1168, %1170 in 1 : vector<4x256xf32>, vector<4x128xf32>, vector<4x256xf32>, vector<4x128xf32>, vector<4x256xf32>, vector<4x128xf32> -> vector<4x1152xf32>
    %c12_1080 = arith.constant 12 : index
    %c0_1081 = arith.constant 0 : index
    %1172 = vector.load %arg11[%c12_1080, %c0_1081] : memref<48x1152xf32, #tpu.memory_space<vmem>>, vector<4x1152xf32>
    tpu.vector_store %arg11[%c12_1080, %c0_1081], %1171 {strides = array<i32>} : memref<48x1152xf32, #tpu.memory_space<vmem>>, vector<4x1152xf32>,
    %c8_1082 = arith.constant 8 : index
    %c0_1083 = arith.constant 0 : index
    %c0_1084 = arith.constant 0 : index
    %1173 = vector.load %arg8[%c8_1082, %c0_1083, %c0_1084] : memref<28x5x256xf32, #tpu.memory_space<vmem>>, vector<1x4x256xf32>
    %1174 = vector.shape_cast %1173 : vector<1x4x256xf32> to vector<4x256xf32>
    %c8_1085 = arith.constant 8 : index
    %c1_1086 = arith.constant 1 : index
    %c0_1087 = arith.constant 0 : index
    %1175 = vector.load %arg8[%c8_1085, %c1_1086, %c0_1087] : memref<28x5x256xf32, #tpu.memory_space<vmem>>, vector<1x4x128xf32>
    %1176 = vector.shape_cast %1175 : vector<1x4x128xf32> to vector<4x128xf32>
    %c9_1088 = arith.constant 9 : index
    %c0_1089 = arith.constant 0 : index
    %c0_1090 = arith.constant 0 : index
    %1177 = vector.load %arg8[%c9_1088, %c0_1089, %c0_1090] : memref<28x5x256xf32, #tpu.memory_space<vmem>>, vector<1x4x256xf32>
    %1178 = vector.shape_cast %1177 : vector<1x4x256xf32> to vector<4x256xf32>
    %c9_1091 = arith.constant 9 : index
    %c1_1092 = arith.constant 1 : index
    %c0_1093 = arith.constant 0 : index
    %1179 = vector.load %arg8[%c9_1091, %c1_1092, %c0_1093] : memref<28x5x256xf32, #tpu.memory_space<vmem>>, vector<1x4x128xf32>
    %1180 = vector.shape_cast %1179 : vector<1x4x128xf32> to vector<4x128xf32>
    %c10_1094 = arith.constant 10 : index
    %c0_1095 = arith.constant 0 : index
    %c0_1096 = arith.constant 0 : index
    %1181 = vector.load %arg8[%c10_1094, %c0_1095, %c0_1096] : memref<28x5x256xf32, #tpu.memory_space<vmem>>, vector<1x4x256xf32>
    %1182 = vector.shape_cast %1181 : vector<1x4x256xf32> to vector<4x256xf32>
    %c10_1097 = arith.constant 10 : index
    %c1_1098 = arith.constant 1 : index
    %c0_1099 = arith.constant 0 : index
    %1183 = vector.load %arg8[%c10_1097, %c1_1098, %c0_1099] : memref<28x5x256xf32, #tpu.memory_space<vmem>>, vector<1x4x128xf32>
    %1184 = vector.shape_cast %1183 : vector<1x4x128xf32> to vector<4x128xf32>
    %1185 = tpu.concatenate %1174, %1176, %1178, %1180, %1182, %1184 in 1 : vector<4x256xf32>, vector<4x128xf32>, vector<4x256xf32>, vector<4x128xf32>, vector<4x256xf32>, vector<4x128xf32> -> vector<4x1152xf32>
    %c16_1100 = arith.constant 16 : index
    %c0_1101 = arith.constant 0 : index
    %1186 = vector.load %arg11[%c16_1100, %c0_1101] : memref<48x1152xf32, #tpu.memory_space<vmem>>, vector<4x1152xf32>
    tpu.vector_store %arg11[%c16_1100, %c0_1101], %1185 {strides = array<i32>} : memref<48x1152xf32, #tpu.memory_space<vmem>>, vector<4x1152xf32>,
    %c10_1102 = arith.constant 10 : index
    %c0_1103 = arith.constant 0 : index
    %c0_1104 = arith.constant 0 : index
    %1187 = vector.load %arg8[%c10_1102, %c0_1103, %c0_1104] : memref<28x5x256xf32, #tpu.memory_space<vmem>>, vector<1x4x256xf32>
    %1188 = vector.shape_cast %1187 : vector<1x4x256xf32> to vector<4x256xf32>
    %c10_1105 = arith.constant 10 : index
    %c1_1106 = arith.constant 1 : index
    %c0_1107 = arith.constant 0 : index
    %1189 = vector.load %arg8[%c10_1105, %c1_1106, %c0_1107] : memref<28x5x256xf32, #tpu.memory_space<vmem>>, vector<1x4x128xf32>
    %1190 = vector.shape_cast %1189 : vector<1x4x128xf32> to vector<4x128xf32>
    %c11_1108 = arith.constant 11 : index
    %c0_1109 = arith.constant 0 : index
    %c0_1110 = arith.constant 0 : index
    %1191 = vector.load %arg8[%c11_1108, %c0_1109, %c0_1110] : memref<28x5x256xf32, #tpu.memory_space<vmem>>, vector<1x4x256xf32>
    %1192 = vector.shape_cast %1191 : vector<1x4x256xf32> to vector<4x256xf32>
    %c11_1111 = arith.constant 11 : index
    %c1_1112 = arith.constant 1 : index
    %c0_1113 = arith.constant 0 : index
    %1193 = vector.load %arg8[%c11_1111, %c1_1112, %c0_1113] : memref<28x5x256xf32, #tpu.memory_space<vmem>>, vector<1x4x128xf32>
    %1194 = vector.shape_cast %1193 : vector<1x4x128xf32> to vector<4x128xf32>
    %c12_1114 = arith.constant 12 : index
    %c0_1115 = arith.constant 0 : index
    %c0_1116 = arith.constant 0 : index
    %1195 = vector.load %arg8[%c12_1114, %c0_1115, %c0_1116] : memref<28x5x256xf32, #tpu.memory_space<vmem>>, vector<1x4x256xf32>
    %1196 = vector.shape_cast %1195 : vector<1x4x256xf32> to vector<4x256xf32>
    %c12_1117 = arith.constant 12 : index
    %c1_1118 = arith.constant 1 : index
    %c0_1119 = arith.constant 0 : index
    %1197 = vector.load %arg8[%c12_1117, %c1_1118, %c0_1119] : memref<28x5x256xf32, #tpu.memory_space<vmem>>, vector<1x4x128xf32>
    %1198 = vector.shape_cast %1197 : vector<1x4x128xf32> to vector<4x128xf32>
    %1199 = tpu.concatenate %1188, %1190, %1192, %1194, %1196, %1198 in 1 : vector<4x256xf32>, vector<4x128xf32>, vector<4x256xf32>, vector<4x128xf32>, vector<4x256xf32>, vector<4x128xf32> -> vector<4x1152xf32>
    %c20_1120 = arith.constant 20 : index
    %c0_1121 = arith.constant 0 : index
    %1200 = vector.load %arg11[%c20_1120, %c0_1121] : memref<48x1152xf32, #tpu.memory_space<vmem>>, vector<4x1152xf32>
    tpu.vector_store %arg11[%c20_1120, %c0_1121], %1199 {strides = array<i32>} : memref<48x1152xf32, #tpu.memory_space<vmem>>, vector<4x1152xf32>,
    %c14_1122 = arith.constant 14 : index
    %c0_1123 = arith.constant 0 : index
    %c0_1124 = arith.constant 0 : index
    %1201 = vector.load %arg8[%c14_1122, %c0_1123, %c0_1124] : memref<28x5x256xf32, #tpu.memory_space<vmem>>, vector<1x4x256xf32>
    %1202 = vector.shape_cast %1201 : vector<1x4x256xf32> to vector<4x256xf32>
    %c14_1125 = arith.constant 14 : index
    %c1_1126 = arith.constant 1 : index
    %c0_1127 = arith.constant 0 : index
    %1203 = vector.load %arg8[%c14_1125, %c1_1126, %c0_1127] : memref<28x5x256xf32, #tpu.memory_space<vmem>>, vector<1x4x128xf32>
    %1204 = vector.shape_cast %1203 : vector<1x4x128xf32> to vector<4x128xf32>
    %c15_1128 = arith.constant 15 : index
    %c0_1129 = arith.constant 0 : index
    %c0_1130 = arith.constant 0 : index
    %1205 = vector.load %arg8[%c15_1128, %c0_1129, %c0_1130] : memref<28x5x256xf32, #tpu.memory_space<vmem>>, vector<1x4x256xf32>
    %1206 = vector.shape_cast %1205 : vector<1x4x256xf32> to vector<4x256xf32>
    %c15_1131 = arith.constant 15 : index
    %c1_1132 = arith.constant 1 : index
    %c0_1133 = arith.constant 0 : index
    %1207 = vector.load %arg8[%c15_1131, %c1_1132, %c0_1133] : memref<28x5x256xf32, #tpu.memory_space<vmem>>, vector<1x4x128xf32>
    %1208 = vector.shape_cast %1207 : vector<1x4x128xf32> to vector<4x128xf32>
    %c16_1134 = arith.constant 16 : index
    %c0_1135 = arith.constant 0 : index
    %c0_1136 = arith.constant 0 : index
    %1209 = vector.load %arg8[%c16_1134, %c0_1135, %c0_1136] : memref<28x5x256xf32, #tpu.memory_space<vmem>>, vector<1x4x256xf32>
    %1210 = vector.shape_cast %1209 : vector<1x4x256xf32> to vector<4x256xf32>
    %c16_1137 = arith.constant 16 : index
    %c1_1138 = arith.constant 1 : index
    %c0_1139 = arith.constant 0 : index
    %1211 = vector.load %arg8[%c16_1137, %c1_1138, %c0_1139] : memref<28x5x256xf32, #tpu.memory_space<vmem>>, vector<1x4x128xf32>
    %1212 = vector.shape_cast %1211 : vector<1x4x128xf32> to vector<4x128xf32>
    %1213 = tpu.concatenate %1202, %1204, %1206, %1208, %1210, %1212 in 1 : vector<4x256xf32>, vector<4x128xf32>, vector<4x256xf32>, vector<4x128xf32>, vector<4x256xf32>, vector<4x128xf32> -> vector<4x1152xf32>
    %c24_1140 = arith.constant 24 : index
    %c0_1141 = arith.constant 0 : index
    %1214 = vector.load %arg11[%c24_1140, %c0_1141] : memref<48x1152xf32, #tpu.memory_space<vmem>>, vector<4x1152xf32>
    tpu.vector_store %arg11[%c24_1140, %c0_1141], %1213 {strides = array<i32>} : memref<48x1152xf32, #tpu.memory_space<vmem>>, vector<4x1152xf32>,
    %c16_1142 = arith.constant 16 : index
    %c0_1143 = arith.constant 0 : index
    %c0_1144 = arith.constant 0 : index
    %1215 = vector.load %arg8[%c16_1142, %c0_1143, %c0_1144] : memref<28x5x256xf32, #tpu.memory_space<vmem>>, vector<1x4x256xf32>
    %1216 = vector.shape_cast %1215 : vector<1x4x256xf32> to vector<4x256xf32>
    %c16_1145 = arith.constant 16 : index
    %c1_1146 = arith.constant 1 : index
    %c0_1147 = arith.constant 0 : index
    %1217 = vector.load %arg8[%c16_1145, %c1_1146, %c0_1147] : memref<28x5x256xf32, #tpu.memory_space<vmem>>, vector<1x4x128xf32>
    %1218 = vector.shape_cast %1217 : vector<1x4x128xf32> to vector<4x128xf32>
    %c17_1148 = arith.constant 17 : index
    %c0_1149 = arith.constant 0 : index
    %c0_1150 = arith.constant 0 : index
    %1219 = vector.load %arg8[%c17_1148, %c0_1149, %c0_1150] : memref<28x5x256xf32, #tpu.memory_space<vmem>>, vector<1x4x256xf32>
    %1220 = vector.shape_cast %1219 : vector<1x4x256xf32> to vector<4x256xf32>
    %c17_1151 = arith.constant 17 : index
    %c1_1152 = arith.constant 1 : index
    %c0_1153 = arith.constant 0 : index
    %1221 = vector.load %arg8[%c17_1151, %c1_1152, %c0_1153] : memref<28x5x256xf32, #tpu.memory_space<vmem>>, vector<1x4x128xf32>
    %1222 = vector.shape_cast %1221 : vector<1x4x128xf32> to vector<4x128xf32>
    %c18_1154 = arith.constant 18 : index
    %c0_1155 = arith.constant 0 : index
    %c0_1156 = arith.constant 0 : index
    %1223 = vector.load %arg8[%c18_1154, %c0_1155, %c0_1156] : memref<28x5x256xf32, #tpu.memory_space<vmem>>, vector<1x4x256xf32>
    %1224 = vector.shape_cast %1223 : vector<1x4x256xf32> to vector<4x256xf32>
    %c18_1157 = arith.constant 18 : index
    %c1_1158 = arith.constant 1 : index
    %c0_1159 = arith.constant 0 : index
    %1225 = vector.load %arg8[%c18_1157, %c1_1158, %c0_1159] : memref<28x5x256xf32, #tpu.memory_space<vmem>>, vector<1x4x128xf32>
    %1226 = vector.shape_cast %1225 : vector<1x4x128xf32> to vector<4x128xf32>
    %1227 = tpu.concatenate %1216, %1218, %1220, %1222, %1224, %1226 in 1 : vector<4x256xf32>, vector<4x128xf32>, vector<4x256xf32>, vector<4x128xf32>, vector<4x256xf32>, vector<4x128xf32> -> vector<4x1152xf32>
    %c28_1160 = arith.constant 28 : index
    %c0_1161 = arith.constant 0 : index
    %1228 = vector.load %arg11[%c28_1160, %c0_1161] : memref<48x1152xf32, #tpu.memory_space<vmem>>, vector<4x1152xf32>
    tpu.vector_store %arg11[%c28_1160, %c0_1161], %1227 {strides = array<i32>} : memref<48x1152xf32, #tpu.memory_space<vmem>>, vector<4x1152xf32>,
    %c18_1162 = arith.constant 18 : index
    %c0_1163 = arith.constant 0 : index
    %c0_1164 = arith.constant 0 : index
    %1229 = vector.load %arg8[%c18_1162, %c0_1163, %c0_1164] : memref<28x5x256xf32, #tpu.memory_space<vmem>>, vector<1x4x256xf32>
    %1230 = vector.shape_cast %1229 : vector<1x4x256xf32> to vector<4x256xf32>
    %c18_1165 = arith.constant 18 : index
    %c1_1166 = arith.constant 1 : index
    %c0_1167 = arith.constant 0 : index
    %1231 = vector.load %arg8[%c18_1165, %c1_1166, %c0_1167] : memref<28x5x256xf32, #tpu.memory_space<vmem>>, vector<1x4x128xf32>
    %1232 = vector.shape_cast %1231 : vector<1x4x128xf32> to vector<4x128xf32>
    %c19_1168 = arith.constant 19 : index
    %c0_1169 = arith.constant 0 : index
    %c0_1170 = arith.constant 0 : index
    %1233 = vector.load %arg8[%c19_1168, %c0_1169, %c0_1170] : memref<28x5x256xf32, #tpu.memory_space<vmem>>, vector<1x4x256xf32>
    %1234 = vector.shape_cast %1233 : vector<1x4x256xf32> to vector<4x256xf32>
    %c19_1171 = arith.constant 19 : index
    %c1_1172 = arith.constant 1 : index
    %c0_1173 = arith.constant 0 : index
    %1235 = vector.load %arg8[%c19_1171, %c1_1172, %c0_1173] : memref<28x5x256xf32, #tpu.memory_space<vmem>>, vector<1x4x128xf32>
    %1236 = vector.shape_cast %1235 : vector<1x4x128xf32> to vector<4x128xf32>
    %c20_1174 = arith.constant 20 : index
    %c0_1175 = arith.constant 0 : index
    %c0_1176 = arith.constant 0 : index
    %1237 = vector.load %arg8[%c20_1174, %c0_1175, %c0_1176] : memref<28x5x256xf32, #tpu.memory_space<vmem>>, vector<1x4x256xf32>
    %1238 = vector.shape_cast %1237 : vector<1x4x256xf32> to vector<4x256xf32>
    %c20_1177 = arith.constant 20 : index
    %c1_1178 = arith.constant 1 : index
    %c0_1179 = arith.constant 0 : index
    %1239 = vector.load %arg8[%c20_1177, %c1_1178, %c0_1179] : memref<28x5x256xf32, #tpu.memory_space<vmem>>, vector<1x4x128xf32>
    %1240 = vector.shape_cast %1239 : vector<1x4x128xf32> to vector<4x128xf32>
    %1241 = tpu.concatenate %1230, %1232, %1234, %1236, %1238, %1240 in 1 : vector<4x256xf32>, vector<4x128xf32>, vector<4x256xf32>, vector<4x128xf32>, vector<4x256xf32>, vector<4x128xf32> -> vector<4x1152xf32>
    %c32_1180 = arith.constant 32 : index
    %c0_1181 = arith.constant 0 : index
    %1242 = vector.load %arg11[%c32_1180, %c0_1181] : memref<48x1152xf32, #tpu.memory_space<vmem>>, vector<4x1152xf32>
    tpu.vector_store %arg11[%c32_1180, %c0_1181], %1241 {strides = array<i32>} : memref<48x1152xf32, #tpu.memory_space<vmem>>, vector<4x1152xf32>,
    %c20_1182 = arith.constant 20 : index
    %c0_1183 = arith.constant 0 : index
    %c0_1184 = arith.constant 0 : index
    %1243 = vector.load %arg8[%c20_1182, %c0_1183, %c0_1184] : memref<28x5x256xf32, #tpu.memory_space<vmem>>, vector<1x4x256xf32>
    %1244 = vector.shape_cast %1243 : vector<1x4x256xf32> to vector<4x256xf32>
    %c20_1185 = arith.constant 20 : index
    %c1_1186 = arith.constant 1 : index
    %c0_1187 = arith.constant 0 : index
    %1245 = vector.load %arg8[%c20_1185, %c1_1186, %c0_1187] : memref<28x5x256xf32, #tpu.memory_space<vmem>>, vector<1x4x128xf32>
    %1246 = vector.shape_cast %1245 : vector<1x4x128xf32> to vector<4x128xf32>
    %c21_1188 = arith.constant 21 : index
    %c0_1189 = arith.constant 0 : index
    %c0_1190 = arith.constant 0 : index
    %1247 = vector.load %arg8[%c21_1188, %c0_1189, %c0_1190] : memref<28x5x256xf32, #tpu.memory_space<vmem>>, vector<1x4x256xf32>
    %1248 = vector.shape_cast %1247 : vector<1x4x256xf32> to vector<4x256xf32>
    %c21_1191 = arith.constant 21 : index
    %c1_1192 = arith.constant 1 : index
    %c0_1193 = arith.constant 0 : index
    %1249 = vector.load %arg8[%c21_1191, %c1_1192, %c0_1193] : memref<28x5x256xf32, #tpu.memory_space<vmem>>, vector<1x4x128xf32>
    %1250 = vector.shape_cast %1249 : vector<1x4x128xf32> to vector<4x128xf32>
    %c22_1194 = arith.constant 22 : index
    %c0_1195 = arith.constant 0 : index
    %c0_1196 = arith.constant 0 : index
    %1251 = vector.load %arg8[%c22_1194, %c0_1195, %c0_1196] : memref<28x5x256xf32, #tpu.memory_space<vmem>>, vector<1x4x256xf32>
    %1252 = vector.shape_cast %1251 : vector<1x4x256xf32> to vector<4x256xf32>
    %c22_1197 = arith.constant 22 : index
    %c1_1198 = arith.constant 1 : index
    %c0_1199 = arith.constant 0 : index
    %1253 = vector.load %arg8[%c22_1197, %c1_1198, %c0_1199] : memref<28x5x256xf32, #tpu.memory_space<vmem>>, vector<1x4x128xf32>
    %1254 = vector.shape_cast %1253 : vector<1x4x128xf32> to vector<4x128xf32>
    %1255 = tpu.concatenate %1244, %1246, %1248, %1250, %1252, %1254 in 1 : vector<4x256xf32>, vector<4x128xf32>, vector<4x256xf32>, vector<4x128xf32>, vector<4x256xf32>, vector<4x128xf32> -> vector<4x1152xf32>
    %c36_1200 = arith.constant 36 : index
    %c0_1201 = arith.constant 0 : index
    %1256 = vector.load %arg11[%c36_1200, %c0_1201] : memref<48x1152xf32, #tpu.memory_space<vmem>>, vector<4x1152xf32>
    tpu.vector_store %arg11[%c36_1200, %c0_1201], %1255 {strides = array<i32>} : memref<48x1152xf32, #tpu.memory_space<vmem>>, vector<4x1152xf32>,
    %c22_1202 = arith.constant 22 : index
    %c0_1203 = arith.constant 0 : index
    %c0_1204 = arith.constant 0 : index
    %1257 = vector.load %arg8[%c22_1202, %c0_1203, %c0_1204] : memref<28x5x256xf32, #tpu.memory_space<vmem>>, vector<1x4x256xf32>
    %1258 = vector.shape_cast %1257 : vector<1x4x256xf32> to vector<4x256xf32>
    %c22_1205 = arith.constant 22 : index
    %c1_1206 = arith.constant 1 : index
    %c0_1207 = arith.constant 0 : index
    %1259 = vector.load %arg8[%c22_1205, %c1_1206, %c0_1207] : memref<28x5x256xf32, #tpu.memory_space<vmem>>, vector<1x4x128xf32>
    %1260 = vector.shape_cast %1259 : vector<1x4x128xf32> to vector<4x128xf32>
    %c23_1208 = arith.constant 23 : index
    %c0_1209 = arith.constant 0 : index
    %c0_1210 = arith.constant 0 : index
    %1261 = vector.load %arg8[%c23_1208, %c0_1209, %c0_1210] : memref<28x5x256xf32, #tpu.memory_space<vmem>>, vector<1x4x256xf32>
    %1262 = vector.shape_cast %1261 : vector<1x4x256xf32> to vector<4x256xf32>
    %c23_1211 = arith.constant 23 : index
    %c1_1212 = arith.constant 1 : index
    %c0_1213 = arith.constant 0 : index
    %1263 = vector.load %arg8[%c23_1211, %c1_1212, %c0_1213] : memref<28x5x256xf32, #tpu.memory_space<vmem>>, vector<1x4x128xf32>
    %1264 = vector.shape_cast %1263 : vector<1x4x128xf32> to vector<4x128xf32>
    %c24_1214 = arith.constant 24 : index
    %c0_1215 = arith.constant 0 : index
    %c0_1216 = arith.constant 0 : index
    %1265 = vector.load %arg8[%c24_1214, %c0_1215, %c0_1216] : memref<28x5x256xf32, #tpu.memory_space<vmem>>, vector<1x4x256xf32>
    %1266 = vector.shape_cast %1265 : vector<1x4x256xf32> to vector<4x256xf32>
    %c24_1217 = arith.constant 24 : index
    %c1_1218 = arith.constant 1 : index
    %c0_1219 = arith.constant 0 : index
    %1267 = vector.load %arg8[%c24_1217, %c1_1218, %c0_1219] : memref<28x5x256xf32, #tpu.memory_space<vmem>>, vector<1x4x128xf32>
    %1268 = vector.shape_cast %1267 : vector<1x4x128xf32> to vector<4x128xf32>
    %1269 = tpu.concatenate %1258, %1260, %1262, %1264, %1266, %1268 in 1 : vector<4x256xf32>, vector<4x128xf32>, vector<4x256xf32>, vector<4x128xf32>, vector<4x256xf32>, vector<4x128xf32> -> vector<4x1152xf32>
    %c40_1220 = arith.constant 40 : index
    %c0_1221 = arith.constant 0 : index
    %1270 = vector.load %arg11[%c40_1220, %c0_1221] : memref<48x1152xf32, #tpu.memory_space<vmem>>, vector<4x1152xf32>
    tpu.vector_store %arg11[%c40_1220, %c0_1221], %1269 {strides = array<i32>} : memref<48x1152xf32, #tpu.memory_space<vmem>>, vector<4x1152xf32>,
    %c24_1222 = arith.constant 24 : index
    %c0_1223 = arith.constant 0 : index
    %c0_1224 = arith.constant 0 : index
    %1271 = vector.load %arg8[%c24_1222, %c0_1223, %c0_1224] : memref<28x5x256xf32, #tpu.memory_space<vmem>>, vector<1x4x256xf32>
    %1272 = vector.shape_cast %1271 : vector<1x4x256xf32> to vector<4x256xf32>
    %c24_1225 = arith.constant 24 : index
    %c1_1226 = arith.constant 1 : index
    %c0_1227 = arith.constant 0 : index
    %1273 = vector.load %arg8[%c24_1225, %c1_1226, %c0_1227] : memref<28x5x256xf32, #tpu.memory_space<vmem>>, vector<1x4x128xf32>
    %1274 = vector.shape_cast %1273 : vector<1x4x128xf32> to vector<4x128xf32>
    %c25_1228 = arith.constant 25 : index
    %c0_1229 = arith.constant 0 : index
    %c0_1230 = arith.constant 0 : index
    %1275 = vector.load %arg8[%c25_1228, %c0_1229, %c0_1230] : memref<28x5x256xf32, #tpu.memory_space<vmem>>, vector<1x4x256xf32>
    %1276 = vector.shape_cast %1275 : vector<1x4x256xf32> to vector<4x256xf32>
    %c25_1231 = arith.constant 25 : index
    %c1_1232 = arith.constant 1 : index
    %c0_1233 = arith.constant 0 : index
    %1277 = vector.load %arg8[%c25_1231, %c1_1232, %c0_1233] : memref<28x5x256xf32, #tpu.memory_space<vmem>>, vector<1x4x128xf32>
    %1278 = vector.shape_cast %1277 : vector<1x4x128xf32> to vector<4x128xf32>
    %c26_1234 = arith.constant 26 : index
    %c0_1235 = arith.constant 0 : index
    %c0_1236 = arith.constant 0 : index
    %1279 = vector.load %arg8[%c26_1234, %c0_1235, %c0_1236] : memref<28x5x256xf32, #tpu.memory_space<vmem>>, vector<1x4x256xf32>
    %1280 = vector.shape_cast %1279 : vector<1x4x256xf32> to vector<4x256xf32>
    %c26_1237 = arith.constant 26 : index
    %c1_1238 = arith.constant 1 : index
    %c0_1239 = arith.constant 0 : index
    %1281 = vector.load %arg8[%c26_1237, %c1_1238, %c0_1239] : memref<28x5x256xf32, #tpu.memory_space<vmem>>, vector<1x4x128xf32>
    %1282 = vector.shape_cast %1281 : vector<1x4x128xf32> to vector<4x128xf32>
    %1283 = tpu.concatenate %1272, %1274, %1276, %1278, %1280, %1282 in 1 : vector<4x256xf32>, vector<4x128xf32>, vector<4x256xf32>, vector<4x128xf32>, vector<4x256xf32>, vector<4x128xf32> -> vector<4x1152xf32>
    %c44_1240 = arith.constant 44 : index
    %c0_1241 = arith.constant 0 : index
    %1284 = vector.load %arg11[%c44_1240, %c0_1241] : memref<48x1152xf32, #tpu.memory_space<vmem>>, vector<4x1152xf32>
    tpu.vector_store %arg11[%c44_1240, %c0_1241], %1283 {strides = array<i32>} : memref<48x1152xf32, #tpu.memory_space<vmem>>, vector<4x1152xf32>,
    %c0_1242 = arith.constant 0 : index
    %c0_1243 = arith.constant 0 : index
    %1285 = vector.load %arg11[%c0_1242, %c0_1243] : memref<48x1152xf32, #tpu.memory_space<vmem>>, vector<48x1152xf32>
    %1286 = arith.truncf %1285 : vector<48x1152xf32> to vector<48x1152xbf16>
    %c0_1244 = arith.constant 0 : index
    %c0_1245 = arith.constant 0 : index
    %1287 = vector.load %arg2[%c0_1244, %c0_1245] : memref<1152x128xbf16, #tpu.memory_space<vmem>>, vector<1152x128xbf16>
    %cst_1246 = arith.constant dense<0.000000e+00> : vector<48x128xf32>
    %1288 = tpu.matmul %1286, %1287, %cst_1246 {dimension_numbers = #tpu.dot_dimension_numbers<[1], [0], [0], [1], [0, 0, 1, 1], [], []>} : vector<48x1152xbf16>, vector<1152x128xbf16>, vector<48x128xf32> -> vector<48x128xf32>
    %cst_1247 = arith.constant dense<0.000000e+00> : vector<128xf32>
    %1289 = vector.multi_reduction <add>, %1288, %cst_1247 [0] : vector<48x128xf32> to vector<128xf32>
    %1290 = vector.shape_cast %1289 : vector<128xf32> to vector<1x128xf32>
    %1291 = arith.mulf %1288, %1288 : vector<48x128xf32>
    %cst_1248 = arith.constant dense<0.000000e+00> : vector<128xf32>
    %1292 = vector.multi_reduction <add>, %1291, %cst_1248 [0] : vector<48x128xf32> to vector<128xf32>
    %1293 = vector.shape_cast %1292 : vector<128xf32> to vector<1x128xf32>
    %cst_1249 = arith.constant 0.020833334 : f32
    %1294 = vector.broadcast %cst_1249 : f32 to vector<1x128xf32>
    %1295 = arith.mulf %1290, %1294 : vector<1x128xf32>
    %cst_1250 = arith.constant 0.020833334 : f32
    %1296 = vector.broadcast %cst_1250 : f32 to vector<1x128xf32>
    %1297 = arith.mulf %1293, %1296 : vector<1x128xf32>
    %1298 = arith.mulf %1295, %1295 : vector<1x128xf32>
    %1299 = arith.subf %1297, %1298 : vector<1x128xf32>
    %cst_1251 = arith.constant 0.000000e+00 : f32
    %1300 = vector.broadcast %cst_1251 : f32 to vector<1x128xf32>
    %1301 = arith.maximumf %1299, %1300 : vector<1x128xf32>
    %1302 = vector.broadcast %1295 : vector<1x128xf32> to vector<48x128xf32>
    %1303 = arith.subf %1288, %1302 : vector<48x128xf32>
    %cst_1252 = arith.constant 9.99999974E-6 : f32
    %1304 = vector.broadcast %cst_1252 : f32 to vector<1x128xf32>
    %1305 = arith.addf %1301, %1304 : vector<1x128xf32>
    %1306 = math.rsqrt %1305 : vector<1x128xf32>
    %1307 = vector.broadcast %1306 : vector<1x128xf32> to vector<48x128xf32>
    %1308 = arith.mulf %1303, %1307 : vector<48x128xf32>
    %cst_1253 = arith.constant 0.000000e+00 : f32
    %1309 = vector.broadcast %cst_1253 : f32 to vector<48x128xf32>
    %1310 = arith.cmpf oge, %1308, %1309 : vector<48x128xf32>
    %cst_1254 = arith.constant 2.000000e-01 : f32
    %1311 = vector.broadcast %cst_1254 : f32 to vector<48x128xf32>
    %1312 = arith.mulf %1311, %1308 : vector<48x128xf32>
    %1313 = arith.select %1310, %1308, %1312 : vector<48x128xi1>, vector<48x128xf32>
    %1314 = vector.extract_strided_slice %1313 {offsets = [0, 0], sizes = [1, 128], strides = [1, 1]} : vector<48x128xf32> to vector<1x128xf32>
    %c1_1255 = arith.constant 1 : index
    %c0_1256 = arith.constant 0 : index
    %c128_1257 = arith.constant 128 : index
    %1315 = vector.load %arg9[%c1_1255, %c0_1256, %c128_1257] : memref<16x3x256xf32, #tpu.memory_space<vmem>>, vector<1x1x128xf32>
    %1316 = vector.shape_cast %1315 : vector<1x1x128xf32> to vector<1x128xf32>
    %1317 = vector.shape_cast %1314 : vector<1x128xf32> to vector<1x1x128xf32>
    tpu.vector_store %arg9[%c1_1255, %c0_1256, %c128_1257], %1317 {strides = array<i32>} : memref<16x3x256xf32, #tpu.memory_space<vmem>>, vector<1x1x128xf32>,
    %1318 = vector.extract_strided_slice %1313 {offsets = [1, 0], sizes = [1, 128], strides = [1, 1]} : vector<48x128xf32> to vector<1x128xf32>
    %c1_1258 = arith.constant 1 : index
    %c1_1259 = arith.constant 1 : index
    %c0_1260 = arith.constant 0 : index
    %1319 = vector.load %arg9[%c1_1258, %c1_1259, %c0_1260] : memref<16x3x256xf32, #tpu.memory_space<vmem>>, vector<1x1x128xf32>
    %1320 = vector.shape_cast %1319 : vector<1x1x128xf32> to vector<1x128xf32>
    %1321 = vector.shape_cast %1318 : vector<1x128xf32> to vector<1x1x128xf32>
    tpu.vector_store %arg9[%c1_1258, %c1_1259, %c0_1260], %1321 {strides = array<i32>} : memref<16x3x256xf32, #tpu.memory_space<vmem>>, vector<1x1x128xf32>,
    %1322 = vector.extract_strided_slice %1313 {offsets = [2, 0], sizes = [1, 128], strides = [1, 1]} : vector<48x128xf32> to vector<1x128xf32>
    %c1_1261 = arith.constant 1 : index
    %c1_1262 = arith.constant 1 : index
    %c128_1263 = arith.constant 128 : index
    %1323 = vector.load %arg9[%c1_1261, %c1_1262, %c128_1263] : memref<16x3x256xf32, #tpu.memory_space<vmem>>, vector<1x1x128xf32>
    %1324 = vector.shape_cast %1323 : vector<1x1x128xf32> to vector<1x128xf32>
    %1325 = vector.shape_cast %1322 : vector<1x128xf32> to vector<1x1x128xf32>
    tpu.vector_store %arg9[%c1_1261, %c1_1262, %c128_1263], %1325 {strides = array<i32>} : memref<16x3x256xf32, #tpu.memory_space<vmem>>, vector<1x1x128xf32>,
    %1326 = vector.extract_strided_slice %1313 {offsets = [3, 0], sizes = [1, 128], strides = [1, 1]} : vector<48x128xf32> to vector<1x128xf32>
    %c1_1264 = arith.constant 1 : index
    %c2_1265 = arith.constant 2 : index
    %c0_1266 = arith.constant 0 : index
    %1327 = vector.load %arg9[%c1_1264, %c2_1265, %c0_1266] : memref<16x3x256xf32, #tpu.memory_space<vmem>>, vector<1x1x128xf32>
    %1328 = vector.shape_cast %1327 : vector<1x1x128xf32> to vector<1x128xf32>
    %1329 = vector.shape_cast %1326 : vector<1x128xf32> to vector<1x1x128xf32>
    tpu.vector_store %arg9[%c1_1264, %c2_1265, %c0_1266], %1329 {strides = array<i32>} : memref<16x3x256xf32, #tpu.memory_space<vmem>>, vector<1x1x128xf32>,
    %1330 = vector.extract_strided_slice %1313 {offsets = [4, 0], sizes = [1, 128], strides = [1, 1]} : vector<48x128xf32> to vector<1x128xf32>
    %c2_1267 = arith.constant 2 : index
    %c0_1268 = arith.constant 0 : index
    %c128_1269 = arith.constant 128 : index
    %1331 = vector.load %arg9[%c2_1267, %c0_1268, %c128_1269] : memref<16x3x256xf32, #tpu.memory_space<vmem>>, vector<1x1x128xf32>
    %1332 = vector.shape_cast %1331 : vector<1x1x128xf32> to vector<1x128xf32>
    %1333 = vector.shape_cast %1330 : vector<1x128xf32> to vector<1x1x128xf32>
    tpu.vector_store %arg9[%c2_1267, %c0_1268, %c128_1269], %1333 {strides = array<i32>} : memref<16x3x256xf32, #tpu.memory_space<vmem>>, vector<1x1x128xf32>,
    %1334 = vector.extract_strided_slice %1313 {offsets = [5, 0], sizes = [1, 128], strides = [1, 1]} : vector<48x128xf32> to vector<1x128xf32>
    %c2_1270 = arith.constant 2 : index
    %c1_1271 = arith.constant 1 : index
    %c0_1272 = arith.constant 0 : index
    %1335 = vector.load %arg9[%c2_1270, %c1_1271, %c0_1272] : memref<16x3x256xf32, #tpu.memory_space<vmem>>, vector<1x1x128xf32>
    %1336 = vector.shape_cast %1335 : vector<1x1x128xf32> to vector<1x128xf32>
    %1337 = vector.shape_cast %1334 : vector<1x128xf32> to vector<1x1x128xf32>
    tpu.vector_store %arg9[%c2_1270, %c1_1271, %c0_1272], %1337 {strides = array<i32>} : memref<16x3x256xf32, #tpu.memory_space<vmem>>, vector<1x1x128xf32>,
    %1338 = vector.extract_strided_slice %1313 {offsets = [6, 0], sizes = [1, 128], strides = [1, 1]} : vector<48x128xf32> to vector<1x128xf32>
    %c2_1273 = arith.constant 2 : index
    %c1_1274 = arith.constant 1 : index
    %c128_1275 = arith.constant 128 : index
    %1339 = vector.load %arg9[%c2_1273, %c1_1274, %c128_1275] : memref<16x3x256xf32, #tpu.memory_space<vmem>>, vector<1x1x128xf32>
    %1340 = vector.shape_cast %1339 : vector<1x1x128xf32> to vector<1x128xf32>
    %1341 = vector.shape_cast %1338 : vector<1x128xf32> to vector<1x1x128xf32>
    tpu.vector_store %arg9[%c2_1273, %c1_1274, %c128_1275], %1341 {strides = array<i32>} : memref<16x3x256xf32, #tpu.memory_space<vmem>>, vector<1x1x128xf32>,
    %1342 = vector.extract_strided_slice %1313 {offsets = [7, 0], sizes = [1, 128], strides = [1, 1]} : vector<48x128xf32> to vector<1x128xf32>
    %c2_1276 = arith.constant 2 : index
    %c2_1277 = arith.constant 2 : index
    %c0_1278 = arith.constant 0 : index
    %1343 = vector.load %arg9[%c2_1276, %c2_1277, %c0_1278] : memref<16x3x256xf32, #tpu.memory_space<vmem>>, vector<1x1x128xf32>
    %1344 = vector.shape_cast %1343 : vector<1x1x128xf32> to vector<1x128xf32>
    %1345 = vector.shape_cast %1342 : vector<1x128xf32> to vector<1x1x128xf32>
    tpu.vector_store %arg9[%c2_1276, %c2_1277, %c0_1278], %1345 {strides = array<i32>} : memref<16x3x256xf32, #tpu.memory_space<vmem>>, vector<1x1x128xf32>,
    %1346 = vector.extract_strided_slice %1313 {offsets = [8, 0], sizes = [1, 128], strides = [1, 1]} : vector<48x128xf32> to vector<1x128xf32>
    %c3_1279 = arith.constant 3 : index
    %c0_1280 = arith.constant 0 : index
    %c128_1281 = arith.constant 128 : index
    %1347 = vector.load %arg9[%c3_1279, %c0_1280, %c128_1281] : memref<16x3x256xf32, #tpu.memory_space<vmem>>, vector<1x1x128xf32>
    %1348 = vector.shape_cast %1347 : vector<1x1x128xf32> to vector<1x128xf32>
    %1349 = vector.shape_cast %1346 : vector<1x128xf32> to vector<1x1x128xf32>
    tpu.vector_store %arg9[%c3_1279, %c0_1280, %c128_1281], %1349 {strides = array<i32>} : memref<16x3x256xf32, #tpu.memory_space<vmem>>, vector<1x1x128xf32>,
    %1350 = vector.extract_strided_slice %1313 {offsets = [9, 0], sizes = [1, 128], strides = [1, 1]} : vector<48x128xf32> to vector<1x128xf32>
    %c3_1282 = arith.constant 3 : index
    %c1_1283 = arith.constant 1 : index
    %c0_1284 = arith.constant 0 : index
    %1351 = vector.load %arg9[%c3_1282, %c1_1283, %c0_1284] : memref<16x3x256xf32, #tpu.memory_space<vmem>>, vector<1x1x128xf32>
    %1352 = vector.shape_cast %1351 : vector<1x1x128xf32> to vector<1x128xf32>
    %1353 = vector.shape_cast %1350 : vector<1x128xf32> to vector<1x1x128xf32>
    tpu.vector_store %arg9[%c3_1282, %c1_1283, %c0_1284], %1353 {strides = array<i32>} : memref<16x3x256xf32, #tpu.memory_space<vmem>>, vector<1x1x128xf32>,
    %1354 = vector.extract_strided_slice %1313 {offsets = [10, 0], sizes = [1, 128], strides = [1, 1]} : vector<48x128xf32> to vector<1x128xf32>
    %c3_1285 = arith.constant 3 : index
    %c1_1286 = arith.constant 1 : index
    %c128_1287 = arith.constant 128 : index
    %1355 = vector.load %arg9[%c3_1285, %c1_1286, %c128_1287] : memref<16x3x256xf32, #tpu.memory_space<vmem>>, vector<1x1x128xf32>
    %1356 = vector.shape_cast %1355 : vector<1x1x128xf32> to vector<1x128xf32>
    %1357 = vector.shape_cast %1354 : vector<1x128xf32> to vector<1x1x128xf32>
    tpu.vector_store %arg9[%c3_1285, %c1_1286, %c128_1287], %1357 {strides = array<i32>} : memref<16x3x256xf32, #tpu.memory_space<vmem>>, vector<1x1x128xf32>,
    %1358 = vector.extract_strided_slice %1313 {offsets = [11, 0], sizes = [1, 128], strides = [1, 1]} : vector<48x128xf32> to vector<1x128xf32>
    %c3_1288 = arith.constant 3 : index
    %c2_1289 = arith.constant 2 : index
    %c0_1290 = arith.constant 0 : index
    %1359 = vector.load %arg9[%c3_1288, %c2_1289, %c0_1290] : memref<16x3x256xf32, #tpu.memory_space<vmem>>, vector<1x1x128xf32>
    %1360 = vector.shape_cast %1359 : vector<1x1x128xf32> to vector<1x128xf32>
    %1361 = vector.shape_cast %1358 : vector<1x128xf32> to vector<1x1x128xf32>
    tpu.vector_store %arg9[%c3_1288, %c2_1289, %c0_1290], %1361 {strides = array<i32>} : memref<16x3x256xf32, #tpu.memory_space<vmem>>, vector<1x1x128xf32>,
    %1362 = vector.extract_strided_slice %1313 {offsets = [12, 0], sizes = [1, 128], strides = [1, 1]} : vector<48x128xf32> to vector<1x128xf32>
    %c4_1291 = arith.constant 4 : index
    %c0_1292 = arith.constant 0 : index
    %c128_1293 = arith.constant 128 : index
    %1363 = vector.load %arg9[%c4_1291, %c0_1292, %c128_1293] : memref<16x3x256xf32, #tpu.memory_space<vmem>>, vector<1x1x128xf32>
    %1364 = vector.shape_cast %1363 : vector<1x1x128xf32> to vector<1x128xf32>
    %1365 = vector.shape_cast %1362 : vector<1x128xf32> to vector<1x1x128xf32>
    tpu.vector_store %arg9[%c4_1291, %c0_1292, %c128_1293], %1365 {strides = array<i32>} : memref<16x3x256xf32, #tpu.memory_space<vmem>>, vector<1x1x128xf32>,
    %1366 = vector.extract_strided_slice %1313 {offsets = [13, 0], sizes = [1, 128], strides = [1, 1]} : vector<48x128xf32> to vector<1x128xf32>
    %c4_1294 = arith.constant 4 : index
    %c1_1295 = arith.constant 1 : index
    %c0_1296 = arith.constant 0 : index
    %1367 = vector.load %arg9[%c4_1294, %c1_1295, %c0_1296] : memref<16x3x256xf32, #tpu.memory_space<vmem>>, vector<1x1x128xf32>
    %1368 = vector.shape_cast %1367 : vector<1x1x128xf32> to vector<1x128xf32>
    %1369 = vector.shape_cast %1366 : vector<1x128xf32> to vector<1x1x128xf32>
    tpu.vector_store %arg9[%c4_1294, %c1_1295, %c0_1296], %1369 {strides = array<i32>} : memref<16x3x256xf32, #tpu.memory_space<vmem>>, vector<1x1x128xf32>,
    %1370 = vector.extract_strided_slice %1313 {offsets = [14, 0], sizes = [1, 128], strides = [1, 1]} : vector<48x128xf32> to vector<1x128xf32>
    %c4_1297 = arith.constant 4 : index
    %c1_1298 = arith.constant 1 : index
    %c128_1299 = arith.constant 128 : index
    %1371 = vector.load %arg9[%c4_1297, %c1_1298, %c128_1299] : memref<16x3x256xf32, #tpu.memory_space<vmem>>, vector<1x1x128xf32>
    %1372 = vector.shape_cast %1371 : vector<1x1x128xf32> to vector<1x128xf32>
    %1373 = vector.shape_cast %1370 : vector<1x128xf32> to vector<1x1x128xf32>
    tpu.vector_store %arg9[%c4_1297, %c1_1298, %c128_1299], %1373 {strides = array<i32>} : memref<16x3x256xf32, #tpu.memory_space<vmem>>, vector<1x1x128xf32>,
    %1374 = vector.extract_strided_slice %1313 {offsets = [15, 0], sizes = [1, 128], strides = [1, 1]} : vector<48x128xf32> to vector<1x128xf32>
    %c4_1300 = arith.constant 4 : index
    %c2_1301 = arith.constant 2 : index
    %c0_1302 = arith.constant 0 : index
    %1375 = vector.load %arg9[%c4_1300, %c2_1301, %c0_1302] : memref<16x3x256xf32, #tpu.memory_space<vmem>>, vector<1x1x128xf32>
    %1376 = vector.shape_cast %1375 : vector<1x1x128xf32> to vector<1x128xf32>
    %1377 = vector.shape_cast %1374 : vector<1x128xf32> to vector<1x1x128xf32>
    tpu.vector_store %arg9[%c4_1300, %c2_1301, %c0_1302], %1377 {strides = array<i32>} : memref<16x3x256xf32, #tpu.memory_space<vmem>>, vector<1x1x128xf32>,
    %1378 = vector.extract_strided_slice %1313 {offsets = [16, 0], sizes = [1, 128], strides = [1, 1]} : vector<48x128xf32> to vector<1x128xf32>
    %c5_1303 = arith.constant 5 : index
    %c0_1304 = arith.constant 0 : index
    %c128_1305 = arith.constant 128 : index
    %1379 = vector.load %arg9[%c5_1303, %c0_1304, %c128_1305] : memref<16x3x256xf32, #tpu.memory_space<vmem>>, vector<1x1x128xf32>
    %1380 = vector.shape_cast %1379 : vector<1x1x128xf32> to vector<1x128xf32>
    %1381 = vector.shape_cast %1378 : vector<1x128xf32> to vector<1x1x128xf32>
    tpu.vector_store %arg9[%c5_1303, %c0_1304, %c128_1305], %1381 {strides = array<i32>} : memref<16x3x256xf32, #tpu.memory_space<vmem>>, vector<1x1x128xf32>,
    %1382 = vector.extract_strided_slice %1313 {offsets = [17, 0], sizes = [1, 128], strides = [1, 1]} : vector<48x128xf32> to vector<1x128xf32>
    %c5_1306 = arith.constant 5 : index
    %c1_1307 = arith.constant 1 : index
    %c0_1308 = arith.constant 0 : index
    %1383 = vector.load %arg9[%c5_1306, %c1_1307, %c0_1308] : memref<16x3x256xf32, #tpu.memory_space<vmem>>, vector<1x1x128xf32>
    %1384 = vector.shape_cast %1383 : vector<1x1x128xf32> to vector<1x128xf32>
    %1385 = vector.shape_cast %1382 : vector<1x128xf32> to vector<1x1x128xf32>
    tpu.vector_store %arg9[%c5_1306, %c1_1307, %c0_1308], %1385 {strides = array<i32>} : memref<16x3x256xf32, #tpu.memory_space<vmem>>, vector<1x1x128xf32>,
    %1386 = vector.extract_strided_slice %1313 {offsets = [18, 0], sizes = [1, 128], strides = [1, 1]} : vector<48x128xf32> to vector<1x128xf32>
    %c5_1309 = arith.constant 5 : index
    %c1_1310 = arith.constant 1 : index
    %c128_1311 = arith.constant 128 : index
    %1387 = vector.load %arg9[%c5_1309, %c1_1310, %c128_1311] : memref<16x3x256xf32, #tpu.memory_space<vmem>>, vector<1x1x128xf32>
    %1388 = vector.shape_cast %1387 : vector<1x1x128xf32> to vector<1x128xf32>
    %1389 = vector.shape_cast %1386 : vector<1x128xf32> to vector<1x1x128xf32>
    tpu.vector_store %arg9[%c5_1309, %c1_1310, %c128_1311], %1389 {strides = array<i32>} : memref<16x3x256xf32, #tpu.memory_space<vmem>>, vector<1x1x128xf32>,
    %1390 = vector.extract_strided_slice %1313 {offsets = [19, 0], sizes = [1, 128], strides = [1, 1]} : vector<48x128xf32> to vector<1x128xf32>
    %c5_1312 = arith.constant 5 : index
    %c2_1313 = arith.constant 2 : index
    %c0_1314 = arith.constant 0 : index
    %1391 = vector.load %arg9[%c5_1312, %c2_1313, %c0_1314] : memref<16x3x256xf32, #tpu.memory_space<vmem>>, vector<1x1x128xf32>
    %1392 = vector.shape_cast %1391 : vector<1x1x128xf32> to vector<1x128xf32>
    %1393 = vector.shape_cast %1390 : vector<1x128xf32> to vector<1x1x128xf32>
    tpu.vector_store %arg9[%c5_1312, %c2_1313, %c0_1314], %1393 {strides = array<i32>} : memref<16x3x256xf32, #tpu.memory_space<vmem>>, vector<1x1x128xf32>,
    %1394 = vector.extract_strided_slice %1313 {offsets = [20, 0], sizes = [1, 128], strides = [1, 1]} : vector<48x128xf32> to vector<1x128xf32>
    %c6_1315 = arith.constant 6 : index
    %c0_1316 = arith.constant 0 : index
    %c128_1317 = arith.constant 128 : index
    %1395 = vector.load %arg9[%c6_1315, %c0_1316, %c128_1317] : memref<16x3x256xf32, #tpu.memory_space<vmem>>, vector<1x1x128xf32>
    %1396 = vector.shape_cast %1395 : vector<1x1x128xf32> to vector<1x128xf32>
    %1397 = vector.shape_cast %1394 : vector<1x128xf32> to vector<1x1x128xf32>
    tpu.vector_store %arg9[%c6_1315, %c0_1316, %c128_1317], %1397 {strides = array<i32>} : memref<16x3x256xf32, #tpu.memory_space<vmem>>, vector<1x1x128xf32>,
    %1398 = vector.extract_strided_slice %1313 {offsets = [21, 0], sizes = [1, 128], strides = [1, 1]} : vector<48x128xf32> to vector<1x128xf32>
    %c6_1318 = arith.constant 6 : index
    %c1_1319 = arith.constant 1 : index
    %c0_1320 = arith.constant 0 : index
    %1399 = vector.load %arg9[%c6_1318, %c1_1319, %c0_1320] : memref<16x3x256xf32, #tpu.memory_space<vmem>>, vector<1x1x128xf32>
    %1400 = vector.shape_cast %1399 : vector<1x1x128xf32> to vector<1x128xf32>
    %1401 = vector.shape_cast %1398 : vector<1x128xf32> to vector<1x1x128xf32>
    tpu.vector_store %arg9[%c6_1318, %c1_1319, %c0_1320], %1401 {strides = array<i32>} : memref<16x3x256xf32, #tpu.memory_space<vmem>>, vector<1x1x128xf32>,
    %1402 = vector.extract_strided_slice %1313 {offsets = [22, 0], sizes = [1, 128], strides = [1, 1]} : vector<48x128xf32> to vector<1x128xf32>
    %c6_1321 = arith.constant 6 : index
    %c1_1322 = arith.constant 1 : index
    %c128_1323 = arith.constant 128 : index
    %1403 = vector.load %arg9[%c6_1321, %c1_1322, %c128_1323] : memref<16x3x256xf32, #tpu.memory_space<vmem>>, vector<1x1x128xf32>
    %1404 = vector.shape_cast %1403 : vector<1x1x128xf32> to vector<1x128xf32>
    %1405 = vector.shape_cast %1402 : vector<1x128xf32> to vector<1x1x128xf32>
    tpu.vector_store %arg9[%c6_1321, %c1_1322, %c128_1323], %1405 {strides = array<i32>} : memref<16x3x256xf32, #tpu.memory_space<vmem>>, vector<1x1x128xf32>,
    %1406 = vector.extract_strided_slice %1313 {offsets = [23, 0], sizes = [1, 128], strides = [1, 1]} : vector<48x128xf32> to vector<1x128xf32>
    %c6_1324 = arith.constant 6 : index
    %c2_1325 = arith.constant 2 : index
    %c0_1326 = arith.constant 0 : index
    %1407 = vector.load %arg9[%c6_1324, %c2_1325, %c0_1326] : memref<16x3x256xf32, #tpu.memory_space<vmem>>, vector<1x1x128xf32>
    %1408 = vector.shape_cast %1407 : vector<1x1x128xf32> to vector<1x128xf32>
    %1409 = vector.shape_cast %1406 : vector<1x128xf32> to vector<1x1x128xf32>
    tpu.vector_store %arg9[%c6_1324, %c2_1325, %c0_1326], %1409 {strides = array<i32>} : memref<16x3x256xf32, #tpu.memory_space<vmem>>, vector<1x1x128xf32>,
    %1410 = vector.extract_strided_slice %1313 {offsets = [24, 0], sizes = [1, 128], strides = [1, 1]} : vector<48x128xf32> to vector<1x128xf32>
    %c9_1327 = arith.constant 9 : index
    %c0_1328 = arith.constant 0 : index
    %c128_1329 = arith.constant 128 : index
    %1411 = vector.load %arg9[%c9_1327, %c0_1328, %c128_1329] : memref<16x3x256xf32, #tpu.memory_space<vmem>>, vector<1x1x128xf32>
    %1412 = vector.shape_cast %1411 : vector<1x1x128xf32> to vector<1x128xf32>
    %1413 = vector.shape_cast %1410 : vector<1x128xf32> to vector<1x1x128xf32>
    tpu.vector_store %arg9[%c9_1327, %c0_1328, %c128_1329], %1413 {strides = array<i32>} : memref<16x3x256xf32, #tpu.memory_space<vmem>>, vector<1x1x128xf32>,
    %1414 = vector.extract_strided_slice %1313 {offsets = [25, 0], sizes = [1, 128], strides = [1, 1]} : vector<48x128xf32> to vector<1x128xf32>
    %c9_1330 = arith.constant 9 : index
    %c1_1331 = arith.constant 1 : index
    %c0_1332 = arith.constant 0 : index
    %1415 = vector.load %arg9[%c9_1330, %c1_1331, %c0_1332] : memref<16x3x256xf32, #tpu.memory_space<vmem>>, vector<1x1x128xf32>
    %1416 = vector.shape_cast %1415 : vector<1x1x128xf32> to vector<1x128xf32>
    %1417 = vector.shape_cast %1414 : vector<1x128xf32> to vector<1x1x128xf32>
    tpu.vector_store %arg9[%c9_1330, %c1_1331, %c0_1332], %1417 {strides = array<i32>} : memref<16x3x256xf32, #tpu.memory_space<vmem>>, vector<1x1x128xf32>,
    %1418 = vector.extract_strided_slice %1313 {offsets = [26, 0], sizes = [1, 128], strides = [1, 1]} : vector<48x128xf32> to vector<1x128xf32>
    %c9_1333 = arith.constant 9 : index
    %c1_1334 = arith.constant 1 : index
    %c128_1335 = arith.constant 128 : index
    %1419 = vector.load %arg9[%c9_1333, %c1_1334, %c128_1335] : memref<16x3x256xf32, #tpu.memory_space<vmem>>, vector<1x1x128xf32>
    %1420 = vector.shape_cast %1419 : vector<1x1x128xf32> to vector<1x128xf32>
    %1421 = vector.shape_cast %1418 : vector<1x128xf32> to vector<1x1x128xf32>
    tpu.vector_store %arg9[%c9_1333, %c1_1334, %c128_1335], %1421 {strides = array<i32>} : memref<16x3x256xf32, #tpu.memory_space<vmem>>, vector<1x1x128xf32>,
    %1422 = vector.extract_strided_slice %1313 {offsets = [27, 0], sizes = [1, 128], strides = [1, 1]} : vector<48x128xf32> to vector<1x128xf32>
    %c9_1336 = arith.constant 9 : index
    %c2_1337 = arith.constant 2 : index
    %c0_1338 = arith.constant 0 : index
    %1423 = vector.load %arg9[%c9_1336, %c2_1337, %c0_1338] : memref<16x3x256xf32, #tpu.memory_space<vmem>>, vector<1x1x128xf32>
    %1424 = vector.shape_cast %1423 : vector<1x1x128xf32> to vector<1x128xf32>
    %1425 = vector.shape_cast %1422 : vector<1x128xf32> to vector<1x1x128xf32>
    tpu.vector_store %arg9[%c9_1336, %c2_1337, %c0_1338], %1425 {strides = array<i32>} : memref<16x3x256xf32, #tpu.memory_space<vmem>>, vector<1x1x128xf32>,
    %1426 = vector.extract_strided_slice %1313 {offsets = [28, 0], sizes = [1, 128], strides = [1, 1]} : vector<48x128xf32> to vector<1x128xf32>
    %c10_1339 = arith.constant 10 : index
    %c0_1340 = arith.constant 0 : index
    %c128_1341 = arith.constant 128 : index
    %1427 = vector.load %arg9[%c10_1339, %c0_1340, %c128_1341] : memref<16x3x256xf32, #tpu.memory_space<vmem>>, vector<1x1x128xf32>
    %1428 = vector.shape_cast %1427 : vector<1x1x128xf32> to vector<1x128xf32>
    %1429 = vector.shape_cast %1426 : vector<1x128xf32> to vector<1x1x128xf32>
    tpu.vector_store %arg9[%c10_1339, %c0_1340, %c128_1341], %1429 {strides = array<i32>} : memref<16x3x256xf32, #tpu.memory_space<vmem>>, vector<1x1x128xf32>,
    %1430 = vector.extract_strided_slice %1313 {offsets = [29, 0], sizes = [1, 128], strides = [1, 1]} : vector<48x128xf32> to vector<1x128xf32>
    %c10_1342 = arith.constant 10 : index
    %c1_1343 = arith.constant 1 : index
    %c0_1344 = arith.constant 0 : index
    %1431 = vector.load %arg9[%c10_1342, %c1_1343, %c0_1344] : memref<16x3x256xf32, #tpu.memory_space<vmem>>, vector<1x1x128xf32>
    %1432 = vector.shape_cast %1431 : vector<1x1x128xf32> to vector<1x128xf32>
    %1433 = vector.shape_cast %1430 : vector<1x128xf32> to vector<1x1x128xf32>
    tpu.vector_store %arg9[%c10_1342, %c1_1343, %c0_1344], %1433 {strides = array<i32>} : memref<16x3x256xf32, #tpu.memory_space<vmem>>, vector<1x1x128xf32>,
    %1434 = vector.extract_strided_slice %1313 {offsets = [30, 0], sizes = [1, 128], strides = [1, 1]} : vector<48x128xf32> to vector<1x128xf32>
    %c10_1345 = arith.constant 10 : index
    %c1_1346 = arith.constant 1 : index
    %c128_1347 = arith.constant 128 : index
    %1435 = vector.load %arg9[%c10_1345, %c1_1346, %c128_1347] : memref<16x3x256xf32, #tpu.memory_space<vmem>>, vector<1x1x128xf32>
    %1436 = vector.shape_cast %1435 : vector<1x1x128xf32> to vector<1x128xf32>
    %1437 = vector.shape_cast %1434 : vector<1x128xf32> to vector<1x1x128xf32>
    tpu.vector_store %arg9[%c10_1345, %c1_1346, %c128_1347], %1437 {strides = array<i32>} : memref<16x3x256xf32, #tpu.memory_space<vmem>>, vector<1x1x128xf32>,
    %1438 = vector.extract_strided_slice %1313 {offsets = [31, 0], sizes = [1, 128], strides = [1, 1]} : vector<48x128xf32> to vector<1x128xf32>
    %c10_1348 = arith.constant 10 : index
    %c2_1349 = arith.constant 2 : index
    %c0_1350 = arith.constant 0 : index
    %1439 = vector.load %arg9[%c10_1348, %c2_1349, %c0_1350] : memref<16x3x256xf32, #tpu.memory_space<vmem>>, vector<1x1x128xf32>
    %1440 = vector.shape_cast %1439 : vector<1x1x128xf32> to vector<1x128xf32>
    %1441 = vector.shape_cast %1438 : vector<1x128xf32> to vector<1x1x128xf32>
    tpu.vector_store %arg9[%c10_1348, %c2_1349, %c0_1350], %1441 {strides = array<i32>} : memref<16x3x256xf32, #tpu.memory_space<vmem>>, vector<1x1x128xf32>,
    %1442 = vector.extract_strided_slice %1313 {offsets = [32, 0], sizes = [1, 128], strides = [1, 1]} : vector<48x128xf32> to vector<1x128xf32>
    %c11_1351 = arith.constant 11 : index
    %c0_1352 = arith.constant 0 : index
    %c128_1353 = arith.constant 128 : index
    %1443 = vector.load %arg9[%c11_1351, %c0_1352, %c128_1353] : memref<16x3x256xf32, #tpu.memory_space<vmem>>, vector<1x1x128xf32>
    %1444 = vector.shape_cast %1443 : vector<1x1x128xf32> to vector<1x128xf32>
    %1445 = vector.shape_cast %1442 : vector<1x128xf32> to vector<1x1x128xf32>
    tpu.vector_store %arg9[%c11_1351, %c0_1352, %c128_1353], %1445 {strides = array<i32>} : memref<16x3x256xf32, #tpu.memory_space<vmem>>, vector<1x1x128xf32>,
    %1446 = vector.extract_strided_slice %1313 {offsets = [33, 0], sizes = [1, 128], strides = [1, 1]} : vector<48x128xf32> to vector<1x128xf32>
    %c11_1354 = arith.constant 11 : index
    %c1_1355 = arith.constant 1 : index
    %c0_1356 = arith.constant 0 : index
    %1447 = vector.load %arg9[%c11_1354, %c1_1355, %c0_1356] : memref<16x3x256xf32, #tpu.memory_space<vmem>>, vector<1x1x128xf32>
    %1448 = vector.shape_cast %1447 : vector<1x1x128xf32> to vector<1x128xf32>
    %1449 = vector.shape_cast %1446 : vector<1x128xf32> to vector<1x1x128xf32>
    tpu.vector_store %arg9[%c11_1354, %c1_1355, %c0_1356], %1449 {strides = array<i32>} : memref<16x3x256xf32, #tpu.memory_space<vmem>>, vector<1x1x128xf32>,
    %1450 = vector.extract_strided_slice %1313 {offsets = [34, 0], sizes = [1, 128], strides = [1, 1]} : vector<48x128xf32> to vector<1x128xf32>
    %c11_1357 = arith.constant 11 : index
    %c1_1358 = arith.constant 1 : index
    %c128_1359 = arith.constant 128 : index
    %1451 = vector.load %arg9[%c11_1357, %c1_1358, %c128_1359] : memref<16x3x256xf32, #tpu.memory_space<vmem>>, vector<1x1x128xf32>
    %1452 = vector.shape_cast %1451 : vector<1x1x128xf32> to vector<1x128xf32>
    %1453 = vector.shape_cast %1450 : vector<1x128xf32> to vector<1x1x128xf32>
    tpu.vector_store %arg9[%c11_1357, %c1_1358, %c128_1359], %1453 {strides = array<i32>} : memref<16x3x256xf32, #tpu.memory_space<vmem>>, vector<1x1x128xf32>,
    %1454 = vector.extract_strided_slice %1313 {offsets = [35, 0], sizes = [1, 128], strides = [1, 1]} : vector<48x128xf32> to vector<1x128xf32>
    %c11_1360 = arith.constant 11 : index
    %c2_1361 = arith.constant 2 : index
    %c0_1362 = arith.constant 0 : index
    %1455 = vector.load %arg9[%c11_1360, %c2_1361, %c0_1362] : memref<16x3x256xf32, #tpu.memory_space<vmem>>, vector<1x1x128xf32>
    %1456 = vector.shape_cast %1455 : vector<1x1x128xf32> to vector<1x128xf32>
    %1457 = vector.shape_cast %1454 : vector<1x128xf32> to vector<1x1x128xf32>
    tpu.vector_store %arg9[%c11_1360, %c2_1361, %c0_1362], %1457 {strides = array<i32>} : memref<16x3x256xf32, #tpu.memory_space<vmem>>, vector<1x1x128xf32>,
    %1458 = vector.extract_strided_slice %1313 {offsets = [36, 0], sizes = [1, 128], strides = [1, 1]} : vector<48x128xf32> to vector<1x128xf32>
    %c12_1363 = arith.constant 12 : index
    %c0_1364 = arith.constant 0 : index
    %c128_1365 = arith.constant 128 : index
    %1459 = vector.load %arg9[%c12_1363, %c0_1364, %c128_1365] : memref<16x3x256xf32, #tpu.memory_space<vmem>>, vector<1x1x128xf32>
    %1460 = vector.shape_cast %1459 : vector<1x1x128xf32> to vector<1x128xf32>
    %1461 = vector.shape_cast %1458 : vector<1x128xf32> to vector<1x1x128xf32>
    tpu.vector_store %arg9[%c12_1363, %c0_1364, %c128_1365], %1461 {strides = array<i32>} : memref<16x3x256xf32, #tpu.memory_space<vmem>>, vector<1x1x128xf32>,
    %1462 = vector.extract_strided_slice %1313 {offsets = [37, 0], sizes = [1, 128], strides = [1, 1]} : vector<48x128xf32> to vector<1x128xf32>
    %c12_1366 = arith.constant 12 : index
    %c1_1367 = arith.constant 1 : index
    %c0_1368 = arith.constant 0 : index
    %1463 = vector.load %arg9[%c12_1366, %c1_1367, %c0_1368] : memref<16x3x256xf32, #tpu.memory_space<vmem>>, vector<1x1x128xf32>
    %1464 = vector.shape_cast %1463 : vector<1x1x128xf32> to vector<1x128xf32>
    %1465 = vector.shape_cast %1462 : vector<1x128xf32> to vector<1x1x128xf32>
    tpu.vector_store %arg9[%c12_1366, %c1_1367, %c0_1368], %1465 {strides = array<i32>} : memref<16x3x256xf32, #tpu.memory_space<vmem>>, vector<1x1x128xf32>,
    %1466 = vector.extract_strided_slice %1313 {offsets = [38, 0], sizes = [1, 128], strides = [1, 1]} : vector<48x128xf32> to vector<1x128xf32>
    %c12_1369 = arith.constant 12 : index
    %c1_1370 = arith.constant 1 : index
    %c128_1371 = arith.constant 128 : index
    %1467 = vector.load %arg9[%c12_1369, %c1_1370, %c128_1371] : memref<16x3x256xf32, #tpu.memory_space<vmem>>, vector<1x1x128xf32>
    %1468 = vector.shape_cast %1467 : vector<1x1x128xf32> to vector<1x128xf32>
    %1469 = vector.shape_cast %1466 : vector<1x128xf32> to vector<1x1x128xf32>
    tpu.vector_store %arg9[%c12_1369, %c1_1370, %c128_1371], %1469 {strides = array<i32>} : memref<16x3x256xf32, #tpu.memory_space<vmem>>, vector<1x1x128xf32>,
    %1470 = vector.extract_strided_slice %1313 {offsets = [39, 0], sizes = [1, 128], strides = [1, 1]} : vector<48x128xf32> to vector<1x128xf32>
    %c12_1372 = arith.constant 12 : index
    %c2_1373 = arith.constant 2 : index
    %c0_1374 = arith.constant 0 : index
    %1471 = vector.load %arg9[%c12_1372, %c2_1373, %c0_1374] : memref<16x3x256xf32, #tpu.memory_space<vmem>>, vector<1x1x128xf32>
    %1472 = vector.shape_cast %1471 : vector<1x1x128xf32> to vector<1x128xf32>
    %1473 = vector.shape_cast %1470 : vector<1x128xf32> to vector<1x1x128xf32>
    tpu.vector_store %arg9[%c12_1372, %c2_1373, %c0_1374], %1473 {strides = array<i32>} : memref<16x3x256xf32, #tpu.memory_space<vmem>>, vector<1x1x128xf32>,
    %1474 = vector.extract_strided_slice %1313 {offsets = [40, 0], sizes = [1, 128], strides = [1, 1]} : vector<48x128xf32> to vector<1x128xf32>
    %c13_1375 = arith.constant 13 : index
    %c0_1376 = arith.constant 0 : index
    %c128_1377 = arith.constant 128 : index
    %1475 = vector.load %arg9[%c13_1375, %c0_1376, %c128_1377] : memref<16x3x256xf32, #tpu.memory_space<vmem>>, vector<1x1x128xf32>
    %1476 = vector.shape_cast %1475 : vector<1x1x128xf32> to vector<1x128xf32>
    %1477 = vector.shape_cast %1474 : vector<1x128xf32> to vector<1x1x128xf32>
    tpu.vector_store %arg9[%c13_1375, %c0_1376, %c128_1377], %1477 {strides = array<i32>} : memref<16x3x256xf32, #tpu.memory_space<vmem>>, vector<1x1x128xf32>,
    %1478 = vector.extract_strided_slice %1313 {offsets = [41, 0], sizes = [1, 128], strides = [1, 1]} : vector<48x128xf32> to vector<1x128xf32>
    %c13_1378 = arith.constant 13 : index
    %c1_1379 = arith.constant 1 : index
    %c0_1380 = arith.constant 0 : index
    %1479 = vector.load %arg9[%c13_1378, %c1_1379, %c0_1380] : memref<16x3x256xf32, #tpu.memory_space<vmem>>, vector<1x1x128xf32>
    %1480 = vector.shape_cast %1479 : vector<1x1x128xf32> to vector<1x128xf32>
    %1481 = vector.shape_cast %1478 : vector<1x128xf32> to vector<1x1x128xf32>
    tpu.vector_store %arg9[%c13_1378, %c1_1379, %c0_1380], %1481 {strides = array<i32>} : memref<16x3x256xf32, #tpu.memory_space<vmem>>, vector<1x1x128xf32>,
    %1482 = vector.extract_strided_slice %1313 {offsets = [42, 0], sizes = [1, 128], strides = [1, 1]} : vector<48x128xf32> to vector<1x128xf32>
    %c13_1381 = arith.constant 13 : index
    %c1_1382 = arith.constant 1 : index
    %c128_1383 = arith.constant 128 : index
    %1483 = vector.load %arg9[%c13_1381, %c1_1382, %c128_1383] : memref<16x3x256xf32, #tpu.memory_space<vmem>>, vector<1x1x128xf32>
    %1484 = vector.shape_cast %1483 : vector<1x1x128xf32> to vector<1x128xf32>
    %1485 = vector.shape_cast %1482 : vector<1x128xf32> to vector<1x1x128xf32>
    tpu.vector_store %arg9[%c13_1381, %c1_1382, %c128_1383], %1485 {strides = array<i32>} : memref<16x3x256xf32, #tpu.memory_space<vmem>>, vector<1x1x128xf32>,
    %1486 = vector.extract_strided_slice %1313 {offsets = [43, 0], sizes = [1, 128], strides = [1, 1]} : vector<48x128xf32> to vector<1x128xf32>
    %c13_1384 = arith.constant 13 : index
    %c2_1385 = arith.constant 2 : index
    %c0_1386 = arith.constant 0 : index
    %1487 = vector.load %arg9[%c13_1384, %c2_1385, %c0_1386] : memref<16x3x256xf32, #tpu.memory_space<vmem>>, vector<1x1x128xf32>
    %1488 = vector.shape_cast %1487 : vector<1x1x128xf32> to vector<1x128xf32>
    %1489 = vector.shape_cast %1486 : vector<1x128xf32> to vector<1x1x128xf32>
    tpu.vector_store %arg9[%c13_1384, %c2_1385, %c0_1386], %1489 {strides = array<i32>} : memref<16x3x256xf32, #tpu.memory_space<vmem>>, vector<1x1x128xf32>,
    %1490 = vector.extract_strided_slice %1313 {offsets = [44, 0], sizes = [1, 128], strides = [1, 1]} : vector<48x128xf32> to vector<1x128xf32>
    %c14_1387 = arith.constant 14 : index
    %c0_1388 = arith.constant 0 : index
    %c128_1389 = arith.constant 128 : index
    %1491 = vector.load %arg9[%c14_1387, %c0_1388, %c128_1389] : memref<16x3x256xf32, #tpu.memory_space<vmem>>, vector<1x1x128xf32>
    %1492 = vector.shape_cast %1491 : vector<1x1x128xf32> to vector<1x128xf32>
    %1493 = vector.shape_cast %1490 : vector<1x128xf32> to vector<1x1x128xf32>
    tpu.vector_store %arg9[%c14_1387, %c0_1388, %c128_1389], %1493 {strides = array<i32>} : memref<16x3x256xf32, #tpu.memory_space<vmem>>, vector<1x1x128xf32>,
    %1494 = vector.extract_strided_slice %1313 {offsets = [45, 0], sizes = [1, 128], strides = [1, 1]} : vector<48x128xf32> to vector<1x128xf32>
    %c14_1390 = arith.constant 14 : index
    %c1_1391 = arith.constant 1 : index
    %c0_1392 = arith.constant 0 : index
    %1495 = vector.load %arg9[%c14_1390, %c1_1391, %c0_1392] : memref<16x3x256xf32, #tpu.memory_space<vmem>>, vector<1x1x128xf32>
    %1496 = vector.shape_cast %1495 : vector<1x1x128xf32> to vector<1x128xf32>
    %1497 = vector.shape_cast %1494 : vector<1x128xf32> to vector<1x1x128xf32>
    tpu.vector_store %arg9[%c14_1390, %c1_1391, %c0_1392], %1497 {strides = array<i32>} : memref<16x3x256xf32, #tpu.memory_space<vmem>>, vector<1x1x128xf32>,
    %1498 = vector.extract_strided_slice %1313 {offsets = [46, 0], sizes = [1, 128], strides = [1, 1]} : vector<48x128xf32> to vector<1x128xf32>
    %c14_1393 = arith.constant 14 : index
    %c1_1394 = arith.constant 1 : index
    %c128_1395 = arith.constant 128 : index
    %1499 = vector.load %arg9[%c14_1393, %c1_1394, %c128_1395] : memref<16x3x256xf32, #tpu.memory_space<vmem>>, vector<1x1x128xf32>
    %1500 = vector.shape_cast %1499 : vector<1x1x128xf32> to vector<1x128xf32>
    %1501 = vector.shape_cast %1498 : vector<1x128xf32> to vector<1x1x128xf32>
    tpu.vector_store %arg9[%c14_1393, %c1_1394, %c128_1395], %1501 {strides = array<i32>} : memref<16x3x256xf32, #tpu.memory_space<vmem>>, vector<1x1x128xf32>,
    %1502 = vector.extract_strided_slice %1313 {offsets = [47, 0], sizes = [1, 128], strides = [1, 1]} : vector<48x128xf32> to vector<1x128xf32>
    %c14_1396 = arith.constant 14 : index
    %c2_1397 = arith.constant 2 : index
    %c0_1398 = arith.constant 0 : index
    %1503 = vector.load %arg9[%c14_1396, %c2_1397, %c0_1398] : memref<16x3x256xf32, #tpu.memory_space<vmem>>, vector<1x1x128xf32>
    %1504 = vector.shape_cast %1503 : vector<1x1x128xf32> to vector<1x128xf32>
    %1505 = vector.shape_cast %1502 : vector<1x128xf32> to vector<1x1x128xf32>
    tpu.vector_store %arg9[%c14_1396, %c2_1397, %c0_1398], %1505 {strides = array<i32>} : memref<16x3x256xf32, #tpu.memory_space<vmem>>, vector<1x1x128xf32>,
    %c0_1399 = arith.constant 0 : index
    %c0_1400 = arith.constant 0 : index
    %c0_1401 = arith.constant 0 : index
    %1506 = vector.load %arg9[%c0_1399, %c0_1400, %c0_1401] : memref<16x3x256xf32, #tpu.memory_space<vmem>>, vector<1x2x256xf32>
    %1507 = vector.shape_cast %1506 : vector<1x2x256xf32> to vector<2x256xf32>
    %c0_1402 = arith.constant 0 : index
    %c1_1403 = arith.constant 1 : index
    %c0_1404 = arith.constant 0 : index
    %1508 = vector.load %arg9[%c0_1402, %c1_1403, %c0_1404] : memref<16x3x256xf32, #tpu.memory_space<vmem>>, vector<1x2x128xf32>
    %1509 = vector.shape_cast %1508 : vector<1x2x128xf32> to vector<2x128xf32>
    %c1_1405 = arith.constant 1 : index
    %c0_1406 = arith.constant 0 : index
    %c0_1407 = arith.constant 0 : index
    %1510 = vector.load %arg9[%c1_1405, %c0_1406, %c0_1407] : memref<16x3x256xf32, #tpu.memory_space<vmem>>, vector<1x2x256xf32>
    %1511 = vector.shape_cast %1510 : vector<1x2x256xf32> to vector<2x256xf32>
    %c1_1408 = arith.constant 1 : index
    %c1_1409 = arith.constant 1 : index
    %c0_1410 = arith.constant 0 : index
    %1512 = vector.load %arg9[%c1_1408, %c1_1409, %c0_1410] : memref<16x3x256xf32, #tpu.memory_space<vmem>>, vector<1x2x128xf32>
    %1513 = vector.shape_cast %1512 : vector<1x2x128xf32> to vector<2x128xf32>
    %c2_1411 = arith.constant 2 : index
    %c0_1412 = arith.constant 0 : index
    %c0_1413 = arith.constant 0 : index
    %1514 = vector.load %arg9[%c2_1411, %c0_1412, %c0_1413] : memref<16x3x256xf32, #tpu.memory_space<vmem>>, vector<1x2x256xf32>
    %1515 = vector.shape_cast %1514 : vector<1x2x256xf32> to vector<2x256xf32>
    %c2_1414 = arith.constant 2 : index
    %c1_1415 = arith.constant 1 : index
    %c0_1416 = arith.constant 0 : index
    %1516 = vector.load %arg9[%c2_1414, %c1_1415, %c0_1416] : memref<16x3x256xf32, #tpu.memory_space<vmem>>, vector<1x2x128xf32>
    %1517 = vector.shape_cast %1516 : vector<1x2x128xf32> to vector<2x128xf32>
    %1518 = tpu.concatenate %1507, %1509, %1511, %1513, %1515, %1517 in 1 : vector<2x256xf32>, vector<2x128xf32>, vector<2x256xf32>, vector<2x128xf32>, vector<2x256xf32>, vector<2x128xf32> -> vector<2x1152xf32>
    %c0_1417 = arith.constant 0 : index
    %c0_1418 = arith.constant 0 : index
    %1519 = vector.load %arg12[%c0_1417, %c0_1418] : memref<12x1152xf32, #tpu.memory_space<vmem>>, vector<2x1152xf32>
    tpu.vector_store %arg12[%c0_1417, %c0_1418], %1518 {strides = array<i32>} : memref<12x1152xf32, #tpu.memory_space<vmem>>, vector<2x1152xf32>,
    %c2_1419 = arith.constant 2 : index
    %c0_1420 = arith.constant 0 : index
    %c0_1421 = arith.constant 0 : index
    %1520 = vector.load %arg9[%c2_1419, %c0_1420, %c0_1421] : memref<16x3x256xf32, #tpu.memory_space<vmem>>, vector<1x2x256xf32>
    %1521 = vector.shape_cast %1520 : vector<1x2x256xf32> to vector<2x256xf32>
    %c2_1422 = arith.constant 2 : index
    %c1_1423 = arith.constant 1 : index
    %c0_1424 = arith.constant 0 : index
    %1522 = vector.load %arg9[%c2_1422, %c1_1423, %c0_1424] : memref<16x3x256xf32, #tpu.memory_space<vmem>>, vector<1x2x128xf32>
    %1523 = vector.shape_cast %1522 : vector<1x2x128xf32> to vector<2x128xf32>
    %c3_1425 = arith.constant 3 : index
    %c0_1426 = arith.constant 0 : index
    %c0_1427 = arith.constant 0 : index
    %1524 = vector.load %arg9[%c3_1425, %c0_1426, %c0_1427] : memref<16x3x256xf32, #tpu.memory_space<vmem>>, vector<1x2x256xf32>
    %1525 = vector.shape_cast %1524 : vector<1x2x256xf32> to vector<2x256xf32>
    %c3_1428 = arith.constant 3 : index
    %c1_1429 = arith.constant 1 : index
    %c0_1430 = arith.constant 0 : index
    %1526 = vector.load %arg9[%c3_1428, %c1_1429, %c0_1430] : memref<16x3x256xf32, #tpu.memory_space<vmem>>, vector<1x2x128xf32>
    %1527 = vector.shape_cast %1526 : vector<1x2x128xf32> to vector<2x128xf32>
    %c4_1431 = arith.constant 4 : index
    %c0_1432 = arith.constant 0 : index
    %c0_1433 = arith.constant 0 : index
    %1528 = vector.load %arg9[%c4_1431, %c0_1432, %c0_1433] : memref<16x3x256xf32, #tpu.memory_space<vmem>>, vector<1x2x256xf32>
    %1529 = vector.shape_cast %1528 : vector<1x2x256xf32> to vector<2x256xf32>
    %c4_1434 = arith.constant 4 : index
    %c1_1435 = arith.constant 1 : index
    %c0_1436 = arith.constant 0 : index
    %1530 = vector.load %arg9[%c4_1434, %c1_1435, %c0_1436] : memref<16x3x256xf32, #tpu.memory_space<vmem>>, vector<1x2x128xf32>
    %1531 = vector.shape_cast %1530 : vector<1x2x128xf32> to vector<2x128xf32>
    %1532 = tpu.concatenate %1521, %1523, %1525, %1527, %1529, %1531 in 1 : vector<2x256xf32>, vector<2x128xf32>, vector<2x256xf32>, vector<2x128xf32>, vector<2x256xf32>, vector<2x128xf32> -> vector<2x1152xf32>
    %c2_1437 = arith.constant 2 : index
    %c0_1438 = arith.constant 0 : index
    %1533 = vector.load %arg12[%c2_1437, %c0_1438] : memref<12x1152xf32, #tpu.memory_space<vmem>>, vector<2x1152xf32>
    tpu.vector_store %arg12[%c2_1437, %c0_1438], %1532 {strides = array<i32>} : memref<12x1152xf32, #tpu.memory_space<vmem>>, vector<2x1152xf32>,
    %c4_1439 = arith.constant 4 : index
    %c0_1440 = arith.constant 0 : index
    %c0_1441 = arith.constant 0 : index
    %1534 = vector.load %arg9[%c4_1439, %c0_1440, %c0_1441] : memref<16x3x256xf32, #tpu.memory_space<vmem>>, vector<1x2x256xf32>
    %1535 = vector.shape_cast %1534 : vector<1x2x256xf32> to vector<2x256xf32>
    %c4_1442 = arith.constant 4 : index
    %c1_1443 = arith.constant 1 : index
    %c0_1444 = arith.constant 0 : index
    %1536 = vector.load %arg9[%c4_1442, %c1_1443, %c0_1444] : memref<16x3x256xf32, #tpu.memory_space<vmem>>, vector<1x2x128xf32>
    %1537 = vector.shape_cast %1536 : vector<1x2x128xf32> to vector<2x128xf32>
    %c5_1445 = arith.constant 5 : index
    %c0_1446 = arith.constant 0 : index
    %c0_1447 = arith.constant 0 : index
    %1538 = vector.load %arg9[%c5_1445, %c0_1446, %c0_1447] : memref<16x3x256xf32, #tpu.memory_space<vmem>>, vector<1x2x256xf32>
    %1539 = vector.shape_cast %1538 : vector<1x2x256xf32> to vector<2x256xf32>
    %c5_1448 = arith.constant 5 : index
    %c1_1449 = arith.constant 1 : index
    %c0_1450 = arith.constant 0 : index
    %1540 = vector.load %arg9[%c5_1448, %c1_1449, %c0_1450] : memref<16x3x256xf32, #tpu.memory_space<vmem>>, vector<1x2x128xf32>
    %1541 = vector.shape_cast %1540 : vector<1x2x128xf32> to vector<2x128xf32>
    %c6_1451 = arith.constant 6 : index
    %c0_1452 = arith.constant 0 : index
    %c0_1453 = arith.constant 0 : index
    %1542 = vector.load %arg9[%c6_1451, %c0_1452, %c0_1453] : memref<16x3x256xf32, #tpu.memory_space<vmem>>, vector<1x2x256xf32>
    %1543 = vector.shape_cast %1542 : vector<1x2x256xf32> to vector<2x256xf32>
    %c6_1454 = arith.constant 6 : index
    %c1_1455 = arith.constant 1 : index
    %c0_1456 = arith.constant 0 : index
    %1544 = vector.load %arg9[%c6_1454, %c1_1455, %c0_1456] : memref<16x3x256xf32, #tpu.memory_space<vmem>>, vector<1x2x128xf32>
    %1545 = vector.shape_cast %1544 : vector<1x2x128xf32> to vector<2x128xf32>
    %1546 = tpu.concatenate %1535, %1537, %1539, %1541, %1543, %1545 in 1 : vector<2x256xf32>, vector<2x128xf32>, vector<2x256xf32>, vector<2x128xf32>, vector<2x256xf32>, vector<2x128xf32> -> vector<2x1152xf32>
    %c4_1457 = arith.constant 4 : index
    %c0_1458 = arith.constant 0 : index
    %1547 = vector.load %arg12[%c4_1457, %c0_1458] : memref<12x1152xf32, #tpu.memory_space<vmem>>, vector<2x1152xf32>
    tpu.vector_store %arg12[%c4_1457, %c0_1458], %1546 {strides = array<i32>} : memref<12x1152xf32, #tpu.memory_space<vmem>>, vector<2x1152xf32>,
    %c8_1459 = arith.constant 8 : index
    %c0_1460 = arith.constant 0 : index
    %c0_1461 = arith.constant 0 : index
    %1548 = vector.load %arg9[%c8_1459, %c0_1460, %c0_1461] : memref<16x3x256xf32, #tpu.memory_space<vmem>>, vector<1x2x256xf32>
    %1549 = vector.shape_cast %1548 : vector<1x2x256xf32> to vector<2x256xf32>
    %c8_1462 = arith.constant 8 : index
    %c1_1463 = arith.constant 1 : index
    %c0_1464 = arith.constant 0 : index
    %1550 = vector.load %arg9[%c8_1462, %c1_1463, %c0_1464] : memref<16x3x256xf32, #tpu.memory_space<vmem>>, vector<1x2x128xf32>
    %1551 = vector.shape_cast %1550 : vector<1x2x128xf32> to vector<2x128xf32>
    %c9_1465 = arith.constant 9 : index
    %c0_1466 = arith.constant 0 : index
    %c0_1467 = arith.constant 0 : index
    %1552 = vector.load %arg9[%c9_1465, %c0_1466, %c0_1467] : memref<16x3x256xf32, #tpu.memory_space<vmem>>, vector<1x2x256xf32>
    %1553 = vector.shape_cast %1552 : vector<1x2x256xf32> to vector<2x256xf32>
    %c9_1468 = arith.constant 9 : index
    %c1_1469 = arith.constant 1 : index
    %c0_1470 = arith.constant 0 : index
    %1554 = vector.load %arg9[%c9_1468, %c1_1469, %c0_1470] : memref<16x3x256xf32, #tpu.memory_space<vmem>>, vector<1x2x128xf32>
    %1555 = vector.shape_cast %1554 : vector<1x2x128xf32> to vector<2x128xf32>
    %c10_1471 = arith.constant 10 : index
    %c0_1472 = arith.constant 0 : index
    %c0_1473 = arith.constant 0 : index
    %1556 = vector.load %arg9[%c10_1471, %c0_1472, %c0_1473] : memref<16x3x256xf32, #tpu.memory_space<vmem>>, vector<1x2x256xf32>
    %1557 = vector.shape_cast %1556 : vector<1x2x256xf32> to vector<2x256xf32>
    %c10_1474 = arith.constant 10 : index
    %c1_1475 = arith.constant 1 : index
    %c0_1476 = arith.constant 0 : index
    %1558 = vector.load %arg9[%c10_1474, %c1_1475, %c0_1476] : memref<16x3x256xf32, #tpu.memory_space<vmem>>, vector<1x2x128xf32>
    %1559 = vector.shape_cast %1558 : vector<1x2x128xf32> to vector<2x128xf32>
    %1560 = tpu.concatenate %1549, %1551, %1553, %1555, %1557, %1559 in 1 : vector<2x256xf32>, vector<2x128xf32>, vector<2x256xf32>, vector<2x128xf32>, vector<2x256xf32>, vector<2x128xf32> -> vector<2x1152xf32>
    %c6_1477 = arith.constant 6 : index
    %c0_1478 = arith.constant 0 : index
    %1561 = vector.load %arg12[%c6_1477, %c0_1478] : memref<12x1152xf32, #tpu.memory_space<vmem>>, vector<2x1152xf32>
    tpu.vector_store %arg12[%c6_1477, %c0_1478], %1560 {strides = array<i32>} : memref<12x1152xf32, #tpu.memory_space<vmem>>, vector<2x1152xf32>,
    %c10_1479 = arith.constant 10 : index
    %c0_1480 = arith.constant 0 : index
    %c0_1481 = arith.constant 0 : index
    %1562 = vector.load %arg9[%c10_1479, %c0_1480, %c0_1481] : memref<16x3x256xf32, #tpu.memory_space<vmem>>, vector<1x2x256xf32>
    %1563 = vector.shape_cast %1562 : vector<1x2x256xf32> to vector<2x256xf32>
    %c10_1482 = arith.constant 10 : index
    %c1_1483 = arith.constant 1 : index
    %c0_1484 = arith.constant 0 : index
    %1564 = vector.load %arg9[%c10_1482, %c1_1483, %c0_1484] : memref<16x3x256xf32, #tpu.memory_space<vmem>>, vector<1x2x128xf32>
    %1565 = vector.shape_cast %1564 : vector<1x2x128xf32> to vector<2x128xf32>
    %c11_1485 = arith.constant 11 : index
    %c0_1486 = arith.constant 0 : index
    %c0_1487 = arith.constant 0 : index
    %1566 = vector.load %arg9[%c11_1485, %c0_1486, %c0_1487] : memref<16x3x256xf32, #tpu.memory_space<vmem>>, vector<1x2x256xf32>
    %1567 = vector.shape_cast %1566 : vector<1x2x256xf32> to vector<2x256xf32>
    %c11_1488 = arith.constant 11 : index
    %c1_1489 = arith.constant 1 : index
    %c0_1490 = arith.constant 0 : index
    %1568 = vector.load %arg9[%c11_1488, %c1_1489, %c0_1490] : memref<16x3x256xf32, #tpu.memory_space<vmem>>, vector<1x2x128xf32>
    %1569 = vector.shape_cast %1568 : vector<1x2x128xf32> to vector<2x128xf32>
    %c12_1491 = arith.constant 12 : index
    %c0_1492 = arith.constant 0 : index
    %c0_1493 = arith.constant 0 : index
    %1570 = vector.load %arg9[%c12_1491, %c0_1492, %c0_1493] : memref<16x3x256xf32, #tpu.memory_space<vmem>>, vector<1x2x256xf32>
    %1571 = vector.shape_cast %1570 : vector<1x2x256xf32> to vector<2x256xf32>
    %c12_1494 = arith.constant 12 : index
    %c1_1495 = arith.constant 1 : index
    %c0_1496 = arith.constant 0 : index
    %1572 = vector.load %arg9[%c12_1494, %c1_1495, %c0_1496] : memref<16x3x256xf32, #tpu.memory_space<vmem>>, vector<1x2x128xf32>
    %1573 = vector.shape_cast %1572 : vector<1x2x128xf32> to vector<2x128xf32>
    %1574 = tpu.concatenate %1563, %1565, %1567, %1569, %1571, %1573 in 1 : vector<2x256xf32>, vector<2x128xf32>, vector<2x256xf32>, vector<2x128xf32>, vector<2x256xf32>, vector<2x128xf32> -> vector<2x1152xf32>
    %c8_1497 = arith.constant 8 : index
    %c0_1498 = arith.constant 0 : index
    %1575 = vector.load %arg12[%c8_1497, %c0_1498] : memref<12x1152xf32, #tpu.memory_space<vmem>>, vector<2x1152xf32>
    tpu.vector_store %arg12[%c8_1497, %c0_1498], %1574 {strides = array<i32>} : memref<12x1152xf32, #tpu.memory_space<vmem>>, vector<2x1152xf32>,
    %c12_1499 = arith.constant 12 : index
    %c0_1500 = arith.constant 0 : index
    %c0_1501 = arith.constant 0 : index
    %1576 = vector.load %arg9[%c12_1499, %c0_1500, %c0_1501] : memref<16x3x256xf32, #tpu.memory_space<vmem>>, vector<1x2x256xf32>
    %1577 = vector.shape_cast %1576 : vector<1x2x256xf32> to vector<2x256xf32>
    %c12_1502 = arith.constant 12 : index
    %c1_1503 = arith.constant 1 : index
    %c0_1504 = arith.constant 0 : index
    %1578 = vector.load %arg9[%c12_1502, %c1_1503, %c0_1504] : memref<16x3x256xf32, #tpu.memory_space<vmem>>, vector<1x2x128xf32>
    %1579 = vector.shape_cast %1578 : vector<1x2x128xf32> to vector<2x128xf32>
    %c13_1505 = arith.constant 13 : index
    %c0_1506 = arith.constant 0 : index
    %c0_1507 = arith.constant 0 : index
    %1580 = vector.load %arg9[%c13_1505, %c0_1506, %c0_1507] : memref<16x3x256xf32, #tpu.memory_space<vmem>>, vector<1x2x256xf32>
    %1581 = vector.shape_cast %1580 : vector<1x2x256xf32> to vector<2x256xf32>
    %c13_1508 = arith.constant 13 : index
    %c1_1509 = arith.constant 1 : index
    %c0_1510 = arith.constant 0 : index
    %1582 = vector.load %arg9[%c13_1508, %c1_1509, %c0_1510] : memref<16x3x256xf32, #tpu.memory_space<vmem>>, vector<1x2x128xf32>
    %1583 = vector.shape_cast %1582 : vector<1x2x128xf32> to vector<2x128xf32>
    %c14_1511 = arith.constant 14 : index
    %c0_1512 = arith.constant 0 : index
    %c0_1513 = arith.constant 0 : index
    %1584 = vector.load %arg9[%c14_1511, %c0_1512, %c0_1513] : memref<16x3x256xf32, #tpu.memory_space<vmem>>, vector<1x2x256xf32>
    %1585 = vector.shape_cast %1584 : vector<1x2x256xf32> to vector<2x256xf32>
    %c14_1514 = arith.constant 14 : index
    %c1_1515 = arith.constant 1 : index
    %c0_1516 = arith.constant 0 : index
    %1586 = vector.load %arg9[%c14_1514, %c1_1515, %c0_1516] : memref<16x3x256xf32, #tpu.memory_space<vmem>>, vector<1x2x128xf32>
    %1587 = vector.shape_cast %1586 : vector<1x2x128xf32> to vector<2x128xf32>
    %1588 = tpu.concatenate %1577, %1579, %1581, %1583, %1585, %1587 in 1 : vector<2x256xf32>, vector<2x128xf32>, vector<2x256xf32>, vector<2x128xf32>, vector<2x256xf32>, vector<2x128xf32> -> vector<2x1152xf32>
    %c10_1517 = arith.constant 10 : index
    %c0_1518 = arith.constant 0 : index
    %1589 = vector.load %arg12[%c10_1517, %c0_1518] : memref<12x1152xf32, #tpu.memory_space<vmem>>, vector<2x1152xf32>
    tpu.vector_store %arg12[%c10_1517, %c0_1518], %1588 {strides = array<i32>} : memref<12x1152xf32, #tpu.memory_space<vmem>>, vector<2x1152xf32>,
    %c0_1519 = arith.constant 0 : index
    %c0_1520 = arith.constant 0 : index
    %1590 = vector.load %arg12[%c0_1519, %c0_1520] : memref<12x1152xf32, #tpu.memory_space<vmem>>, vector<12x1152xf32>
    %1591 = arith.truncf %1590 : vector<12x1152xf32> to vector<12x1152xbf16>
    %c0_1521 = arith.constant 0 : index
    %c0_1522 = arith.constant 0 : index
    %1592 = vector.load %arg3[%c0_1521, %c0_1522] : memref<1152x128xbf16, #tpu.memory_space<vmem>>, vector<1152x128xbf16>
    %cst_1523 = arith.constant dense<0.000000e+00> : vector<12x128xf32>
    %1593 = tpu.matmul %1591, %1592, %cst_1523 {dimension_numbers = #tpu.dot_dimension_numbers<[1], [0], [0], [1], [0, 0, 1, 1], [], []>} : vector<12x1152xbf16>, vector<1152x128xbf16>, vector<12x128xf32> -> vector<12x128xf32>
    %cst_1524 = arith.constant dense<0.000000e+00> : vector<128xf32>
    %1594 = vector.multi_reduction <add>, %1593, %cst_1524 [0] : vector<12x128xf32> to vector<128xf32>
    %1595 = vector.shape_cast %1594 : vector<128xf32> to vector<1x128xf32>
    %1596 = arith.mulf %1593, %1593 : vector<12x128xf32>
    %cst_1525 = arith.constant dense<0.000000e+00> : vector<128xf32>
    %1597 = vector.multi_reduction <add>, %1596, %cst_1525 [0] : vector<12x128xf32> to vector<128xf32>
    %1598 = vector.shape_cast %1597 : vector<128xf32> to vector<1x128xf32>
    %cst_1526 = arith.constant 0.0833333358 : f32
    %1599 = vector.broadcast %cst_1526 : f32 to vector<1x128xf32>
    %1600 = arith.mulf %1595, %1599 : vector<1x128xf32>
    %cst_1527 = arith.constant 0.0833333358 : f32
    %1601 = vector.broadcast %cst_1527 : f32 to vector<1x128xf32>
    %1602 = arith.mulf %1598, %1601 : vector<1x128xf32>
    %1603 = arith.mulf %1600, %1600 : vector<1x128xf32>
    %1604 = arith.subf %1602, %1603 : vector<1x128xf32>
    %cst_1528 = arith.constant 0.000000e+00 : f32
    %1605 = vector.broadcast %cst_1528 : f32 to vector<1x128xf32>
    %1606 = arith.maximumf %1604, %1605 : vector<1x128xf32>
    %1607 = vector.broadcast %1600 : vector<1x128xf32> to vector<12x128xf32>
    %1608 = arith.subf %1593, %1607 : vector<12x128xf32>
    %cst_1529 = arith.constant 9.99999974E-6 : f32
    %1609 = vector.broadcast %cst_1529 : f32 to vector<1x128xf32>
    %1610 = arith.addf %1606, %1609 : vector<1x128xf32>
    %1611 = math.rsqrt %1610 : vector<1x128xf32>
    %1612 = vector.broadcast %1611 : vector<1x128xf32> to vector<12x128xf32>
    %1613 = arith.mulf %1608, %1612 : vector<12x128xf32>
    %cst_1530 = arith.constant 0.000000e+00 : f32
    %1614 = vector.broadcast %cst_1530 : f32 to vector<12x128xf32>
    %1615 = arith.cmpf oge, %1613, %1614 : vector<12x128xf32>
    %cst_1531 = arith.constant 2.000000e-01 : f32
    %1616 = vector.broadcast %cst_1531 : f32 to vector<12x128xf32>
    %1617 = arith.mulf %1616, %1613 : vector<12x128xf32>
    %1618 = arith.select %1615, %1613, %1617 : vector<12x128xi1>, vector<12x128xf32>
    %1619 = vector.extract_strided_slice %1618 {offsets = [0, 0], sizes = [1, 64], strides = [1, 1]} : vector<12x128xf32> to vector<1x64xf32>
    %c0_1532 = arith.constant 0 : index
    %c0_1533 = arith.constant 0 : index
    %1620 = vector.load %arg13[%c0_1532, %c0_1533] : memref<2x384xf32, #tpu.memory_space<vmem>>, vector<1x64xf32>
    tpu.vector_store %arg13[%c0_1532, %c0_1533], %1619 {strides = array<i32>} : memref<2x384xf32, #tpu.memory_space<vmem>>, vector<1x64xf32>,
    %1621 = vector.extract_strided_slice %1618 {offsets = [1, 0], sizes = [1, 64], strides = [1, 1]} : vector<12x128xf32> to vector<1x64xf32>
    %c0_1534 = arith.constant 0 : index
    %c64_1535 = arith.constant 64 : index
    %1622 = vector.load %arg13[%c0_1534, %c64_1535] : memref<2x384xf32, #tpu.memory_space<vmem>>, vector<1x64xf32>
    tpu.vector_store %arg13[%c0_1534, %c64_1535], %1621 {strides = array<i32>} : memref<2x384xf32, #tpu.memory_space<vmem>>, vector<1x64xf32>,
    %1623 = vector.extract_strided_slice %1618 {offsets = [2, 0], sizes = [1, 64], strides = [1, 1]} : vector<12x128xf32> to vector<1x64xf32>
    %c0_1536 = arith.constant 0 : index
    %c128_1537 = arith.constant 128 : index
    %1624 = vector.load %arg13[%c0_1536, %c128_1537] : memref<2x384xf32, #tpu.memory_space<vmem>>, vector<1x64xf32>
    tpu.vector_store %arg13[%c0_1536, %c128_1537], %1623 {strides = array<i32>} : memref<2x384xf32, #tpu.memory_space<vmem>>, vector<1x64xf32>,
    %1625 = vector.extract_strided_slice %1618 {offsets = [3, 0], sizes = [1, 64], strides = [1, 1]} : vector<12x128xf32> to vector<1x64xf32>
    %c0_1538 = arith.constant 0 : index
    %c192 = arith.constant 192 : index
    %1626 = vector.load %arg13[%c0_1538, %c192] : memref<2x384xf32, #tpu.memory_space<vmem>>, vector<1x64xf32>
    tpu.vector_store %arg13[%c0_1538, %c192], %1625 {strides = array<i32>} : memref<2x384xf32, #tpu.memory_space<vmem>>, vector<1x64xf32>,
    %1627 = vector.extract_strided_slice %1618 {offsets = [4, 0], sizes = [1, 64], strides = [1, 1]} : vector<12x128xf32> to vector<1x64xf32>
    %c0_1539 = arith.constant 0 : index
    %c256 = arith.constant 256 : index
    %1628 = vector.load %arg13[%c0_1539, %c256] : memref<2x384xf32, #tpu.memory_space<vmem>>, vector<1x64xf32>
    tpu.vector_store %arg13[%c0_1539, %c256], %1627 {strides = array<i32>} : memref<2x384xf32, #tpu.memory_space<vmem>>, vector<1x64xf32>,
    %1629 = vector.extract_strided_slice %1618 {offsets = [5, 0], sizes = [1, 64], strides = [1, 1]} : vector<12x128xf32> to vector<1x64xf32>
    %c0_1540 = arith.constant 0 : index
    %c320 = arith.constant 320 : index
    %1630 = vector.load %arg13[%c0_1540, %c320] : memref<2x384xf32, #tpu.memory_space<vmem>>, vector<1x64xf32>
    tpu.vector_store %arg13[%c0_1540, %c320], %1629 {strides = array<i32>} : memref<2x384xf32, #tpu.memory_space<vmem>>, vector<1x64xf32>,
    %1631 = vector.extract_strided_slice %1618 {offsets = [6, 0], sizes = [1, 64], strides = [1, 1]} : vector<12x128xf32> to vector<1x64xf32>
    %c1_1541 = arith.constant 1 : index
    %c0_1542 = arith.constant 0 : index
    %1632 = vector.load %arg13[%c1_1541, %c0_1542] : memref<2x384xf32, #tpu.memory_space<vmem>>, vector<1x64xf32>
    tpu.vector_store %arg13[%c1_1541, %c0_1542], %1631 {strides = array<i32>} : memref<2x384xf32, #tpu.memory_space<vmem>>, vector<1x64xf32>,
    %1633 = vector.extract_strided_slice %1618 {offsets = [7, 0], sizes = [1, 64], strides = [1, 1]} : vector<12x128xf32> to vector<1x64xf32>
    %c1_1543 = arith.constant 1 : index
    %c64_1544 = arith.constant 64 : index
    %1634 = vector.load %arg13[%c1_1543, %c64_1544] : memref<2x384xf32, #tpu.memory_space<vmem>>, vector<1x64xf32>
    tpu.vector_store %arg13[%c1_1543, %c64_1544], %1633 {strides = array<i32>} : memref<2x384xf32, #tpu.memory_space<vmem>>, vector<1x64xf32>,
    %1635 = vector.extract_strided_slice %1618 {offsets = [8, 0], sizes = [1, 64], strides = [1, 1]} : vector<12x128xf32> to vector<1x64xf32>
    %c1_1545 = arith.constant 1 : index
    %c128_1546 = arith.constant 128 : index
    %1636 = vector.load %arg13[%c1_1545, %c128_1546] : memref<2x384xf32, #tpu.memory_space<vmem>>, vector<1x64xf32>
    tpu.vector_store %arg13[%c1_1545, %c128_1546], %1635 {strides = array<i32>} : memref<2x384xf32, #tpu.memory_space<vmem>>, vector<1x64xf32>,
    %1637 = vector.extract_strided_slice %1618 {offsets = [9, 0], sizes = [1, 64], strides = [1, 1]} : vector<12x128xf32> to vector<1x64xf32>
    %c1_1547 = arith.constant 1 : index
    %c192_1548 = arith.constant 192 : index
    %1638 = vector.load %arg13[%c1_1547, %c192_1548] : memref<2x384xf32, #tpu.memory_space<vmem>>, vector<1x64xf32>
    tpu.vector_store %arg13[%c1_1547, %c192_1548], %1637 {strides = array<i32>} : memref<2x384xf32, #tpu.memory_space<vmem>>, vector<1x64xf32>,
    %1639 = vector.extract_strided_slice %1618 {offsets = [10, 0], sizes = [1, 64], strides = [1, 1]} : vector<12x128xf32> to vector<1x64xf32>
    %c1_1549 = arith.constant 1 : index
    %c256_1550 = arith.constant 256 : index
    %1640 = vector.load %arg13[%c1_1549, %c256_1550] : memref<2x384xf32, #tpu.memory_space<vmem>>, vector<1x64xf32>
    tpu.vector_store %arg13[%c1_1549, %c256_1550], %1639 {strides = array<i32>} : memref<2x384xf32, #tpu.memory_space<vmem>>, vector<1x64xf32>,
    %1641 = vector.extract_strided_slice %1618 {offsets = [11, 0], sizes = [1, 64], strides = [1, 1]} : vector<12x128xf32> to vector<1x64xf32>
    %c1_1551 = arith.constant 1 : index
    %c320_1552 = arith.constant 320 : index
    %1642 = vector.load %arg13[%c1_1551, %c320_1552] : memref<2x384xf32, #tpu.memory_space<vmem>>, vector<1x64xf32>
    tpu.vector_store %arg13[%c1_1551, %c320_1552], %1641 {strides = array<i32>} : memref<2x384xf32, #tpu.memory_space<vmem>>, vector<1x64xf32>,
    %c0_1553 = arith.constant 0 : index
    %c0_1554 = arith.constant 0 : index
    %1643 = vector.load %arg13[%c0_1553, %c0_1554] : memref<2x384xf32, #tpu.memory_space<vmem>>, vector<2x384xf32>
    %1644 = arith.truncf %1643 : vector<2x384xf32> to vector<2x384xbf16>
    %c0_1555 = arith.constant 0 : index
    %c0_1556 = arith.constant 0 : index
    %1645 = vector.load %arg4[%c0_1555, %c0_1556] : memref<384x64xbf16, #tpu.memory_space<vmem>>, vector<384x64xbf16>
    %cst_1557 = arith.constant dense<0.000000e+00> : vector<2x64xf32>
    %1646 = tpu.matmul %1644, %1645, %cst_1557 {dimension_numbers = #tpu.dot_dimension_numbers<[1], [0], [0], [1], [0, 0, 1, 1], [], []>} : vector<2x384xbf16>, vector<384x64xbf16>, vector<2x64xf32> -> vector<2x64xf32>
    %cst_1558 = arith.constant 0.000000e+00 : f32
    %1647 = vector.broadcast %cst_1558 : f32 to vector<2x64xf32>
    %1648 = arith.cmpf oge, %1646, %1647 : vector<2x64xf32>
    %cst_1559 = arith.constant 2.000000e-01 : f32
    %1649 = vector.broadcast %cst_1559 : f32 to vector<2x64xf32>
    %1650 = arith.mulf %1649, %1646 : vector<2x64xf32>
    %1651 = arith.select %1648, %1646, %1650 : vector<2x64xi1>, vector<2x64xf32>
    %1652 = arith.truncf %1651 : vector<2x64xf32> to vector<2x64xbf16>
    %c0_1560 = arith.constant 0 : index
    %c0_1561 = arith.constant 0 : index
    %1653 = vector.load %arg5[%c0_1560, %c0_1561] : memref<64x32xbf16, #tpu.memory_space<vmem>>, vector<64x32xbf16>
    %cst_1562 = arith.constant dense<0.000000e+00> : vector<2x32xf32>
    %1654 = tpu.matmul %1652, %1653, %cst_1562 {dimension_numbers = #tpu.dot_dimension_numbers<[1], [0], [0], [1], [0, 0, 1, 1], [], []>} : vector<2x64xbf16>, vector<64x32xbf16>, vector<2x32xf32> -> vector<2x32xf32>
    %cst_1563 = arith.constant 0.000000e+00 : f32
    %1655 = vector.broadcast %cst_1563 : f32 to vector<2x32xf32>
    %1656 = arith.cmpf oge, %1654, %1655 : vector<2x32xf32>
    %cst_1564 = arith.constant 2.000000e-01 : f32
    %1657 = vector.broadcast %cst_1564 : f32 to vector<2x32xf32>
    %1658 = arith.mulf %1657, %1654 : vector<2x32xf32>
    %1659 = arith.select %1656, %1654, %1658 : vector<2x32xi1>, vector<2x32xf32>
    %c0_1565 = arith.constant 0 : index
    %c0_1566 = arith.constant 0 : index
    %1660 = vector.load %arg6[%c0_1565, %c0_1566] : memref<1x32xf32, #tpu.memory_space<vmem>>, vector<1x32xf32>
    %1661 = vector.broadcast %1660 : vector<1x32xf32> to vector<2x32xf32>
    %1662 = arith.mulf %1659, %1661 : vector<2x32xf32>
    %cst_1567 = arith.constant dense<0.000000e+00> : vector<2xf32>
    %1663 = vector.multi_reduction <add>, %1662, %cst_1567 [1] : vector<2x32xf32> to vector<2xf32>
    %1664 = vector.shape_cast %1663 : vector<2xf32> to vector<2x1xf32>
    %cst_1568 = arith.constant 0.000000e+00 : f32
    %1665 = vector.broadcast %cst_1568 : f32 to vector<2x1xf32>
    %1666 = arith.subf %1665, %1664 : vector<2x1xf32>
    %1667 = math.exp %1666 : vector<2x1xf32>
    %cst_1569 = arith.constant 1.000000e+00 : f32
    %1668 = vector.broadcast %cst_1569 : f32 to vector<2x1xf32>
    %1669 = arith.addf %1668, %1667 : vector<2x1xf32>
    %cst_1570 = arith.constant 1.000000e+00 : f32
    %1670 = vector.broadcast %cst_1570 : f32 to vector<2x1xf32>
    %1671 = arith.divf %1670, %1669 : vector<2x1xf32>
    %c0_1571 = arith.constant 0 : index
    %c0_1572 = arith.constant 0 : index
    %1672 = vector.load %arg7[%c0_1571, %c0_1572] : memref<2x1xf32, #tpu.memory_space<vmem>>, vector<2x1xf32>
    tpu.vector_store %arg7[%c0_1571, %c0_1572], %1671 {strides = array<i32>} : memref<2x1xf32, #tpu.memory_space<vmem>>, vector<2x1xf32>,
    return
  }
}

</mosaic_0001>

<llo_original>
// kernel: discriminator_forward.1
$region0: #{discriminator_forward.1}
  #allocation0 [shape = 'u32[]', space=smem, size = 0x4, offset = 0x4, fixed_abs, tag = 'smem constant byte address 0x4 - core index']
  #allocation1 [shape = 'u32[144,128]{1,0:T(1,128)}', space=vmem, size = 0x12000, scoped, tag = 'internal scratch']
  #allocation2 [shape = 'f32[28,5,256]{2,1,0:T(8,128)}', space=vmem, size = 0x38000, scoped, tag = 'scratch operand']
  #allocation3 [shape = 'f32[16,3,256]{2,1,0:T(4,128)}', space=vmem, size = 0x10000, scoped, tag = 'scratch operand']
  #allocation4 [shape = 'f32[192,18]{1,0:T(8,128)}', space=vmem, size = 0x18000, scoped, tag = 'scratch operand']
  #allocation5 [shape = 'f32[48,1152]{1,0:T(8,128)}', space=vmem, size = 0x36000, scoped, tag = 'scratch operand']
  #allocation6 [shape = 'f32[12,1152]{1,0:T(8,128)}', space=vmem, size = 0x12000, scoped, tag = 'scratch operand']
  #allocation7 [shape = 'f32[2,384]{1,0:T(2,128)}', space=vmem, size = 0xc00, scoped, tag = 'scratch operand']
  %s0 = inlined_call_operand.vmem [shape: f32[52,9,4], index: 0, kind: input, shape index: {}]
  %s1 = inlined_call_operand.vmem [shape: bf16[18,128], index: 1, kind: input, shape index: {}]
  %s2 = inlined_call_operand.vmem [shape: bf16[1152,128], index: 2, kind: input, shape index: {}]
  %s3 = inlined_call_operand.vmem [shape: bf16[1152,128], index: 3, kind: input, shape index: {}]
  %s4 = inlined_call_operand.vmem [shape: bf16[384,64], index: 4, kind: input, shape index: {}]
  %s5 = inlined_call_operand.vmem [shape: bf16[64,32], index: 5, kind: input, shape index: {}]
  %s6 = inlined_call_operand.vmem [shape: f32[1,32], index: 6, kind: input, shape index: {}]
  %s7 = inlined_call_operand.vmem [shape: f32[2,1], index: 7, kind: output, shape index: {}]
  %s8 = sld [smem:[#allocation0]]
  $region38: #{discriminator_forward.1} parent=0
    _
  %s10 = ssub.s32 1, %s8
  %s11 = scalar_select 0, %s10, %s8
  // Predicated region
  $region2: #{discriminator_forward.1} parent=0 // pred_check
    _
  $region3: #{discriminator_forward.1} parent=0 // pred_check_branch
    %13 = sbr.rel (0) target = $region5
  $region4: #{discriminator_forward.1} parent=0 // pred_region
    _
  $region5: #{discriminator_forward.1} parent=0 // pred_fallthru
    _
  // Predicated region
  $region6: #{discriminator_forward.1} parent=0 // pred_check
    _
  $region7: #{discriminator_forward.1} parent=0 // pred_check_branch
    %15 = sbr.rel (0) target = $region9
  $region8: #{discriminator_forward.1} parent=0 // pred_region
    _
  $region9: #{discriminator_forward.1} parent=0 // pred_fallthru
    _
  // Predicated region
  $region10: #{discriminator_forward.1} parent=0 // pred_check
    _
  $region11: #{discriminator_forward.1} parent=0 // pred_check_branch
    %17 = sbr.rel (0) target = $region13
  $region12: #{discriminator_forward.1} parent=0 // pred_region
    _
  $region13: #{discriminator_forward.1} parent=0 // pred_fallthru
    _
  // Predicated region
  $region14: #{discriminator_forward.1} parent=0 // pred_check
    _
  $region15: #{discriminator_forward.1} parent=0 // pred_check_branch
    %19 = sbr.rel (0) target = $region17
  $region16: #{discriminator_forward.1} parent=0 // pred_region
    _
  $region17: #{discriminator_forward.1} parent=0 // pred_fallthru
    _
  // Predicated region
  $region18: #{discriminator_forward.1} parent=0 // pred_check
    _
  $region19: #{discriminator_forward.1} parent=0 // pred_check_branch
    %21 = sbr.rel (0) target = $region21
  $region20: #{discriminator_forward.1} parent=0 // pred_region
    _
  $region21: #{discriminator_forward.1} parent=0 // pred_fallthru
    _
  // Predicated region
  $region22: #{discriminator_forward.1} parent=0 // pred_check
    _
  $region23: #{discriminator_forward.1} parent=0 // pred_check_branch
    %23 = sbr.rel (0) target = $region25
  $region24: #{discriminator_forward.1} parent=0 // pred_region
    _
  $region25: #{discriminator_forward.1} parent=0 // pred_fallthru
    _
  // Predicated region
  $region26: #{discriminator_forward.1} parent=0 // pred_check
    _
  $region27: #{discriminator_forward.1} parent=0 // pred_check_branch
    %25 = sbr.rel (0) target = $region29
  $region28: #{discriminator_forward.1} parent=0 // pred_region
    _
  $region29: #{discriminator_forward.1} parent=0 // pred_fallthru
    _
  %27 = vst [vmem:[#allocation2] sm:$0x1f] 0.0
  %28 = vst [vmem:[#allocation2 + $0x8] sm:$0x1f] 0.0
  %29 = vst [vmem:[#allocation2 + $0x10] sm:$0x1f] 0.0
  %30 = vst [vmem:[#allocation2 + $0x18] sm:$0x1f] 0.0
  %31 = vst [vmem:[#allocation2 + $0x20] sm:$0x1f] 0.0
  %32 = vst [vmem:[#allocation2 + $0x28] sm:$0x1f] 0.0
  %33 = vst [vmem:[#allocation2 + $0x30] sm:$0x1f] 0.0
  %34 = vst [vmem:[#allocation2 + $0x38] sm:$0x1f] 0.0
  %35 = vst [vmem:[#allocation2 + $0x40] sm:$0x1f] 0.0
  %36 = vst [vmem:[#allocation2 + $0x48] sm:$0x1f] 0.0
  %37 = vst [vmem:[#allocation2 + $0x50] sm:$0x1f] 0.0
  %38 = vst [vmem:[#allocation2 + $0x58] sm:$0x1f] 0.0
  %39 = vst [vmem:[#allocation2 + $0x60] sm:$0x1f] 0.0
  %40 = vst [vmem:[#allocation2 + $0x68] sm:$0x1f] 0.0
  %41 = vst [vmem:[#allocation2 + $0x70] sm:$0x1f] 0.0
  %42 = vst [vmem:[#allocation2 + $0x78] sm:$0x1f] 0.0
  %43 = vst [vmem:[#allocation2 + $0x80] sm:$0x1f] 0.0
  %44 = vst [vmem:[#allocation2 + $0x88] sm:$0x1f] 0.0
  %45 = vst [vmem:[#allocation2 + $0x90] sm:$0x1f] 0.0
  %46 = vst [vmem:[#allocation2 + $0x98] sm:$0x1f] 0.0
  %47 = vst [vmem:[#allocation2 + $0xa0] sm:$0x1f] 0.0
  %48 = vst [vmem:[#allocation2 + $0xa8] sm:$0x1f] 0.0
  %49 = vst [vmem:[#allocation2 + $0xb0] sm:$0x1f] 0.0
  %50 = vst [vmem:[#allocation2 + $0xb8] sm:$0x1f] 0.0
  %51 = vst [vmem:[#allocation2 + $0xc0] sm:$0x1f] 0.0
  %52 = vst [vmem:[#allocation2 + $0xc8] sm:$0x1f] 0.0
  %53 = vst [vmem:[#allocation2 + $0xd0] sm:$0x1f] 0.0
  %54 = vst [vmem:[#allocation2 + $0xd8] sm:$0x1f] 0.0
  %55 = vst [vmem:[#allocation2 + $0xe0] sm:$0x1f] 0.0
  %56 = vst [vmem:[#allocation2 + $0xe8] sm:$0x1f] 0.0
  %57 = vst [vmem:[#allocation2 + $0xf0] sm:$0x1f] 0.0
  %58 = vst [vmem:[#allocation2 + $0xf8] sm:$0x1f] 0.0
  %59 = vst [vmem:[#allocation2 + $0x100] sm:$0x1f] 0.0
  %60 = vst [vmem:[#allocation2 + $0x108] sm:$0x1f] 0.0
  %61 = vst [vmem:[#allocation2 + $0x110] sm:$0x1f] 0.0
  %62 = vst [vmem:[#allocation2 + $0x118] sm:$0x1f] 0.0
  %63 = vst [vmem:[#allocation2 + $0x120] sm:$0x1f] 0.0
  %64 = vst [vmem:[#allocation2 + $0x128] sm:$0x1f] 0.0
  %65 = vst [vmem:[#allocation2 + $0x130] sm:$0x1f] 0.0
  %66 = vst [vmem:[#allocation2 + $0x138] sm:$0x1f] 0.0
  %67 = vst [vmem:[#allocation2 + $0x140] sm:$0x1f] 0.0
  %68 = vst [vmem:[#allocation2 + $0x148] sm:$0x1f] 0.0
  %69 = vst [vmem:[#allocation2 + $0x150] sm:$0x1f] 0.0
  %70 = vst [vmem:[#allocation2 + $0x158] sm:$0x1f] 0.0
  %71 = vst [vmem:[#allocation2 + $0x160] sm:$0x1f] 0.0
  %72 = vst [vmem:[#allocation2 + $0x168] sm:$0x1f] 0.0
  %73 = vst [vmem:[#allocation2 + $0x170] sm:$0x1f] 0.0
  %74 = vst [vmem:[#allocation2 + $0x178] sm:$0x1f] 0.0
  %75 = vst [vmem:[#allocation2 + $0x180] sm:$0x1f] 0.0
  %76 = vst [vmem:[#allocation2 + $0x188] sm:$0x1f] 0.0
  %77 = vst [vmem:[#allocation2 + $0x190] sm:$0x1f] 0.0
  %78 = vst [vmem:[#allocation2 + $0x198] sm:$0x1f] 0.0
  %79 = vst [vmem:[#allocation2 + $0x1a0] sm:$0x1f] 0.0
  %80 = vst [vmem:[#allocation2 + $0x1a8] sm:$0x1f] 0.0
  %81 = vst [vmem:[#allocation2 + $0x1b0] sm:$0x1f] 0.0
  %82 = vst [vmem:[#allocation2 + $0x1b8] sm:$0x1f] 0.0
  %83 = vst [vmem:[#allocation3] sm:$0x77] 0.0
  %84 = vst [vmem:[#allocation3 + $0x8] sm:$0x77] 0.0
  %85 = vst [vmem:[#allocation3 + $0x10] sm:$0x77] 0.0
  %86 = vst [vmem:[#allocation3 + $0x18] sm:$0x77] 0.0
  %87 = vst [vmem:[#allocation3 + $0x20] sm:$0x77] 0.0
  %88 = vst [vmem:[#allocation3 + $0x28] sm:$0x77] 0.0
  %89 = vst [vmem:[#allocation3 + $0x30] sm:$0x77] 0.0
  %90 = vst [vmem:[#allocation3 + $0x38] sm:$0x77] 0.0
  %91 = vst [vmem:[#allocation3 + $0x40] sm:$0x77] 0.0
  %92 = vst [vmem:[#allocation3 + $0x48] sm:$0x77] 0.0
  %93 = vst [vmem:[#allocation3 + $0x50] sm:$0x77] 0.0
  %94 = vst [vmem:[#allocation3 + $0x58] sm:$0x77] 0.0
  %95 = vst [vmem:[#allocation3 + $0x60] sm:$0x77] 0.0
  %96 = vst [vmem:[#allocation3 + $0x68] sm:$0x77] 0.0
  %97 = vst [vmem:[#allocation3 + $0x70] sm:$0x77] 0.0
  %98 = vst [vmem:[#allocation3 + $0x78] sm:$0x77] 0.0
  %v99 = vld [vmem:[%s0] sm:$0xff]
  %v100 = vld [vmem:[%s0 + $0x1] sm:$0xff]
  %s101 = scalar_lea.vmem %s0, 16
  %v102 = vld [vmem:[%s101] sm:$0xff]
  %v103 = vld [vmem:[%s101 + $0x1] sm:$0xff]
  %s104 = scalar_lea.vmem %s0, 32
  %v105 = vld [vmem:[%s104] sm:$0xff]
  %v106 = vld [vmem:[%s104 + $0x1] sm:$0xff]
  %108 = vrot.lane.b32.xlu0 %v100, 4
  %v109 = vpop.permute.xlu0 %108
  %112 = vrot.lane.b32.xlu0 %v102, 6
  %v113 = vpop.permute.xlu0 %112
  %116 = vrot.lane.b32.xlu0 %v103, 10
  %v117 = vpop.permute.xlu0 %116
  %120 = vrot.lane.b32.xlu0 %v105, 12
  %v121 = vpop.permute.xlu0 %120
  %124 = vrot.lane.b32.xlu0 %v106, 16
  %v125 = vpop.permute.xlu0 %124
  %vm127 = vcmask 31744
  %v128 = vsel %vm127, %v99, %v109
  %vm129 = vcmask 48128
  %v130 = vsel %vm129, %v128, %v113
  %vm131 = vcmask 80896
  %v132 = vsel %vm131, %v130, %v117
  %vm133 = vcmask 97280
  %v134 = vsel %vm133, %v132, %v121
  %vm135 = vcmask 130048
  %v136 = vsel %vm135, %v134, %v125
  %vm137 = vcmask 146432
  %138 = vst.msk [vmem:[#allocation4] sm:$0xff] %vm137, %v136
  %v139 = vld [vmem:[%s104] sm:$0xff]
  %v140 = vld [vmem:[%s104 + $0x1] sm:$0xff]
  %s141 = scalar_lea.vmem %s0, 48
  %v142 = vld [vmem:[%s141] sm:$0xff]
  %v143 = vld [vmem:[%s141 + $0x1] sm:$0xff]
  %s144 = scalar_lea.vmem %s0, 64
  %v145 = vld [vmem:[%s144] sm:$0xff]
  %v146 = vld [vmem:[%s144 + $0x1] sm:$0xff]
  %148 = vrot.lane.b32.xlu0 %v140, 4
  %v149 = vpop.permute.xlu0 %148
  %152 = vrot.lane.b32.xlu0 %v142, 6
  %v153 = vpop.permute.xlu0 %152
  %156 = vrot.lane.b32.xlu0 %v143, 10
  %v157 = vpop.permute.xlu0 %156
  %160 = vrot.lane.b32.xlu0 %v145, 12
  %v161 = vpop.permute.xlu0 %160
  %164 = vrot.lane.b32.xlu0 %v146, 16
  %v165 = vpop.permute.xlu0 %164
  %v167 = vsel %vm127, %v139, %v149
  %v168 = vsel %vm129, %v167, %v153
  %v169 = vsel %vm131, %v168, %v157
  %v170 = vsel %vm133, %v169, %v161
  %v171 = vsel %vm135, %v170, %v165
  %172 = vst.msk [vmem:[#allocation4 + $0x8] sm:$0xff] %vm137, %v171
  %v173 = vld [vmem:[%s144] sm:$0xff]
  %v174 = vld [vmem:[%s144 + $0x1] sm:$0xff]
  %s175 = scalar_lea.vmem %s0, 80
  %v176 = vld [vmem:[%s175] sm:$0xff]
  %v177 = vld [vmem:[%s175 + $0x1] sm:$0xff]
  %s178 = scalar_lea.vmem %s0, 96
  %v179 = vld [vmem:[%s178] sm:$0xff]
  %v180 = vld [vmem:[%s178 + $0x1] sm:$0xff]
  %182 = vrot.lane.b32.xlu0 %v174, 4
  %v183 = vpop.permute.xlu0 %182
  %186 = vrot.lane.b32.xlu0 %v176, 6
  %v187 = vpop.permute.xlu0 %186
  %190 = vrot.lane.b32.xlu0 %v177, 10
  %v191 = vpop.permute.xlu0 %190
  %194 = vrot.lane.b32.xlu0 %v179, 12
  %v195 = vpop.permute.xlu0 %194
  %198 = vrot.lane.b32.xlu0 %v180, 16
  %v199 = vpop.permute.xlu0 %198
  %v201 = vsel %vm127, %v173, %v183
  %v202 = vsel %vm129, %v201, %v187
  %v203 = vsel %vm131, %v202, %v191
  %v204 = vsel %vm133, %v203, %v195
  %v205 = vsel %vm135, %v204, %v199
  %206 = vst.msk [vmem:[#allocation4 + $0x10] sm:$0xff] %vm137, %v205
  %v207 = vld [vmem:[%s178] sm:$0xff]
  %v208 = vld [vmem:[%s178 + $0x1] sm:$0xff]
  %s209 = scalar_lea.vmem %s0, 112
  %v210 = vld [vmem:[%s209] sm:$0xff]
  %v211 = vld [vmem:[%s209 + $0x1] sm:$0xff]
  %s212 = scalar_lea.vmem %s0, 128
  %v213 = vld [vmem:[%s212] sm:$0xff]
  %v214 = vld [vmem:[%s212 + $0x1] sm:$0xff]
  %216 = vrot.lane.b32.xlu0 %v208, 4
  %v217 = vpop.permute.xlu0 %216
  %220 = vrot.lane.b32.xlu0 %v210, 6
  %v221 = vpop.permute.xlu0 %220
  %224 = vrot.lane.b32.xlu0 %v211, 10
  %v225 = vpop.permute.xlu0 %224
  %228 = vrot.lane.b32.xlu0 %v213, 12
  %v229 = vpop.permute.xlu0 %228
  %232 = vrot.lane.b32.xlu0 %v214, 16
  %v233 = vpop.permute.xlu0 %232
  %v235 = vsel %vm127, %v207, %v217
  %v236 = vsel %vm129, %v235, %v221
  %v237 = vsel %vm131, %v236, %v225
  %v238 = vsel %vm133, %v237, %v229
  %v239 = vsel %vm135, %v238, %v233
  %240 = vst.msk [vmem:[#allocation4 + $0x18] sm:$0xff] %vm137, %v239
  %v241 = vld [vmem:[%s212] sm:$0xff]
  %v242 = vld [vmem:[%s212 + $0x1] sm:$0xff]
  %s243 = scalar_lea.vmem %s0, 144
  %v244 = vld [vmem:[%s243] sm:$0xff]
  %v245 = vld [vmem:[%s243 + $0x1] sm:$0xff]
  %s246 = scalar_lea.vmem %s0, 160
  %v247 = vld [vmem:[%s246] sm:$0xff]
  %v248 = vld [vmem:[%s246 + $0x1] sm:$0xff]
  %250 = vrot.lane.b32.xlu0 %v242, 4
  %v251 = vpop.permute.xlu0 %250
  %254 = vrot.lane.b32.xlu0 %v244, 6
  %v255 = vpop.permute.xlu0 %254
  %258 = vrot.lane.b32.xlu0 %v245, 10
  %v259 = vpop.permute.xlu0 %258
  %262 = vrot.lane.b32.xlu0 %v247, 12
  %v263 = vpop.permute.xlu0 %262
  %266 = vrot.lane.b32.xlu0 %v248, 16
  %v267 = vpop.permute.xlu0 %266
  %v269 = vsel %vm127, %v241, %v251
  %v270 = vsel %vm129, %v269, %v255
  %v271 = vsel %vm131, %v270, %v259
  %v272 = vsel %vm133, %v271, %v263
  %v273 = vsel %vm135, %v272, %v267
  %274 = vst.msk [vmem:[#allocation4 + $0x20] sm:$0xff] %vm137, %v273
  %v275 = vld [vmem:[%s246] sm:$0xff]
  %v276 = vld [vmem:[%s246 + $0x1] sm:$0xff]
  %s277 = scalar_lea.vmem %s0, 176
  %v278 = vld [vmem:[%s277] sm:$0xff]
  %v279 = vld [vmem:[%s277 + $0x1] sm:$0xff]
  %s280 = scalar_lea.vmem %s0, 192
  %v281 = vld [vmem:[%s280] sm:$0xff]
  %v282 = vld [vmem:[%s280 + $0x1] sm:$0xff]
  %284 = vrot.lane.b32.xlu0 %v276, 4
  %v285 = vpop.permute.xlu0 %284
  %288 = vrot.lane.b32.xlu0 %v278, 6
  %v289 = vpop.permute.xlu0 %288
  %292 = vrot.lane.b32.xlu0 %v279, 10
  %v293 = vpop.permute.xlu0 %292
  %296 = vrot.lane.b32.xlu0 %v281, 12
  %v297 = vpop.permute.xlu0 %296
  %300 = vrot.lane.b32.xlu0 %v282, 16
  %v301 = vpop.permute.xlu0 %300
  %v303 = vsel %vm127, %v275, %v285
  %v304 = vsel %vm129, %v303, %v289
  %v305 = vsel %vm131, %v304, %v293
  %v306 = vsel %vm133, %v305, %v297
  %v307 = vsel %vm135, %v306, %v301
  %308 = vst.msk [vmem:[#allocation4 + $0x28] sm:$0xff] %vm137, %v307
  %v309 = vld [vmem:[%s280] sm:$0xff]
  %v310 = vld [vmem:[%s280 + $0x1] sm:$0xff]
  %s311 = scalar_lea.vmem %s0, 208
  %v312 = vld [vmem:[%s311] sm:$0xff]
  %v313 = vld [vmem:[%s311 + $0x1] sm:$0xff]
  %s314 = scalar_lea.vmem %s0, 224
  %v315 = vld [vmem:[%s314] sm:$0xff]
  %v316 = vld [vmem:[%s314 + $0x1] sm:$0xff]
  %318 = vrot.lane.b32.xlu0 %v310, 4
  %v319 = vpop.permute.xlu0 %318
  %322 = vrot.lane.b32.xlu0 %v312, 6
  %v323 = vpop.permute.xlu0 %322
  %326 = vrot.lane.b32.xlu0 %v313, 10
  %v327 = vpop.permute.xlu0 %326
  %330 = vrot.lane.b32.xlu0 %v315, 12
  %v331 = vpop.permute.xlu0 %330
  %334 = vrot.lane.b32.xlu0 %v316, 16
  %v335 = vpop.permute.xlu0 %334
  %v337 = vsel %vm127, %v309, %v319
  %v338 = vsel %vm129, %v337, %v323
  %v339 = vsel %vm131, %v338, %v327
  %v340 = vsel %vm133, %v339, %v331
  %v341 = vsel %vm135, %v340, %v335
  %342 = vst.msk [vmem:[#allocation4 + $0x30] sm:$0xff] %vm137, %v341
  %v343 = vld [vmem:[%s314] sm:$0xff]
  %v344 = vld [vmem:[%s314 + $0x1] sm:$0xff]
  %s345 = scalar_lea.vmem %s0, 240
  %v346 = vld [vmem:[%s345] sm:$0xff]
  %v347 = vld [vmem:[%s345 + $0x1] sm:$0xff]
  %s348 = scalar_lea.vmem %s0, 256
  %v349 = vld [vmem:[%s348] sm:$0xff]
  %v350 = vld [vmem:[%s348 + $0x1] sm:$0xff]
  %352 = vrot.lane.b32.xlu0 %v344, 4
  %v353 = vpop.permute.xlu0 %352
  %356 = vrot.lane.b32.xlu0 %v346, 6
  %v357 = vpop.permute.xlu0 %356
  %360 = vrot.lane.b32.xlu0 %v347, 10
  %v361 = vpop.permute.xlu0 %360
  %364 = vrot.lane.b32.xlu0 %v349, 12
  %v365 = vpop.permute.xlu0 %364
  %368 = vrot.lane.b32.xlu0 %v350, 16
  %v369 = vpop.permute.xlu0 %368
  %v371 = vsel %vm127, %v343, %v353
  %v372 = vsel %vm129, %v371, %v357
  %v373 = vsel %vm131, %v372, %v361
  %v374 = vsel %vm133, %v373, %v365
  %v375 = vsel %vm135, %v374, %v369
  %376 = vst.msk [vmem:[#allocation4 + $0x38] sm:$0xff] %vm137, %v375
  %v377 = vld [vmem:[%s348] sm:$0xff]
  %v378 = vld [vmem:[%s348 + $0x1] sm:$0xff]
  %s379 = scalar_lea.vmem %s0, 272
  %v380 = vld [vmem:[%s379] sm:$0xff]
  %v381 = vld [vmem:[%s379 + $0x1] sm:$0xff]
  %s382 = scalar_lea.vmem %s0, 288
  %v383 = vld [vmem:[%s382] sm:$0xff]
  %v384 = vld [vmem:[%s382 + $0x1] sm:$0xff]
  %386 = vrot.lane.b32.xlu0 %v378, 4
  %v387 = vpop.permute.xlu0 %386
  %390 = vrot.lane.b32.xlu0 %v380, 6
  %v391 = vpop.permute.xlu0 %390
  %394 = vrot.lane.b32.xlu0 %v381, 10
  %v395 = vpop.permute.xlu0 %394
  %398 = vrot.lane.b32.xlu0 %v383, 12
  %v399 = vpop.permute.xlu0 %398
  %402 = vrot.lane.b32.xlu0 %v384, 16
  %v403 = vpop.permute.xlu0 %402
  %v405 = vsel %vm127, %v377, %v387
  %v406 = vsel %vm129, %v405, %v391
  %v407 = vsel %vm131, %v406, %v395
  %v408 = vsel %vm133, %v407, %v399
  %v409 = vsel %vm135, %v408, %v403
  %410 = vst.msk [vmem:[#allocation4 + $0x40] sm:$0xff] %vm137, %v409
  %v411 = vld [vmem:[%s382] sm:$0xff]
  %v412 = vld [vmem:[%s382 + $0x1] sm:$0xff]
  %s413 = scalar_lea.vmem %s0, 304
  %v414 = vld [vmem:[%s413] sm:$0xff]
  %v415 = vld [vmem:[%s413 + $0x1] sm:$0xff]
  %s416 = scalar_lea.vmem %s0, 320
  %v417 = vld [vmem:[%s416] sm:$0xff]
  %v418 = vld [vmem:[%s416 + $0x1] sm:$0xff]
  %420 = vrot.lane.b32.xlu0 %v412, 4
  %v421 = vpop.permute.xlu0 %420
  %424 = vrot.lane.b32.xlu0 %v414, 6
  %v425 = vpop.permute.xlu0 %424
  %428 = vrot.lane.b32.xlu0 %v415, 10
  %v429 = vpop.permute.xlu0 %428
  %432 = vrot.lane.b32.xlu0 %v417, 12
  %v433 = vpop.permute.xlu0 %432
  %436 = vrot.lane.b32.xlu0 %v418, 16
  %v437 = vpop.permute.xlu0 %436
  %v439 = vsel %vm127, %v411, %v421
  %v440 = vsel %vm129, %v439, %v425
  %v441 = vsel %vm131, %v440, %v429
  %v442 = vsel %vm133, %v441, %v433
  %v443 = vsel %vm135, %v442, %v437
  %444 = vst.msk [vmem:[#allocation4 + $0x48] sm:$0xff] %vm137, %v443
  %v445 = vld [vmem:[%s416] sm:$0xff]
  %v446 = vld [vmem:[%s416 + $0x1] sm:$0xff]
  %s447 = scalar_lea.vmem %s0, 336
  %v448 = vld [vmem:[%s447] sm:$0xff]
  %v449 = vld [vmem:[%s447 + $0x1] sm:$0xff]
  %s450 = scalar_lea.vmem %s0, 352
  %v451 = vld [vmem:[%s450] sm:$0xff]
  %v452 = vld [vmem:[%s450 + $0x1] sm:$0xff]
  %454 = vrot.lane.b32.xlu0 %v446, 4
  %v455 = vpop.permute.xlu0 %454
  %458 = vrot.lane.b32.xlu0 %v448, 6
  %v459 = vpop.permute.xlu0 %458
  %462 = vrot.lane.b32.xlu0 %v449, 10
  %v463 = vpop.permute.xlu0 %462
  %466 = vrot.lane.b32.xlu0 %v451, 12
  %v467 = vpop.permute.xlu0 %466
  %470 = vrot.lane.b32.xlu0 %v452, 16
  %v471 = vpop.permute.xlu0 %470
  %v473 = vsel %vm127, %v445, %v455
  %v474 = vsel %vm129, %v473, %v459
  %v475 = vsel %vm131, %v474, %v463
  %v476 = vsel %vm133, %v475, %v467
  %v477 = vsel %vm135, %v476, %v471
  %478 = vst.msk [vmem:[#allocation4 + $0x50] sm:$0xff] %vm137, %v477
  %v479 = vld [vmem:[%s450] sm:$0xff]
  %v480 = vld [vmem:[%s450 + $0x1] sm:$0xff]
  %s481 = scalar_lea.vmem %s0, 368
  %v482 = vld [vmem:[%s481] sm:$0xff]
  %v483 = vld [vmem:[%s481 + $0x1] sm:$0xff]
  %s484 = scalar_lea.vmem %s0, 384
  %v485 = vld [vmem:[%s484] sm:$0xff]
  %v486 = vld [vmem:[%s484 + $0x1] sm:$0xff]
  %488 = vrot.lane.b32.xlu0 %v480, 4
  %v489 = vpop.permute.xlu0 %488
  %492 = vrot.lane.b32.xlu0 %v482, 6
  %v493 = vpop.permute.xlu0 %492
  %496 = vrot.lane.b32.xlu0 %v483, 10
  %v497 = vpop.permute.xlu0 %496
  %500 = vrot.lane.b32.xlu0 %v485, 12
  %v501 = vpop.permute.xlu0 %500
  %504 = vrot.lane.b32.xlu0 %v486, 16
  %v505 = vpop.permute.xlu0 %504
  %v507 = vsel %vm127, %v479, %v489
  %v508 = vsel %vm129, %v507, %v493
  %v509 = vsel %vm131, %v508, %v497
  %v510 = vsel %vm133, %v509, %v501
  %v511 = vsel %vm135, %v510, %v505
  %512 = vst.msk [vmem:[#allocation4 + $0x58] sm:$0xff] %vm137, %v511
  %s513 = scalar_lea.vmem %s0, 416
  %v514 = vld [vmem:[%s513] sm:$0xff]
  %v515 = vld [vmem:[%s513 + $0x1] sm:$0xff]
  %s516 = scalar_lea.vmem %s0, 432
  %v517 = vld [vmem:[%s516] sm:$0xff]
  %v518 = vld [vmem:[%s516 + $0x1] sm:$0xff]
  %s519 = scalar_lea.vmem %s0, 448
  %v520 = vld [vmem:[%s519] sm:$0xff]
  %v521 = vld [vmem:[%s519 + $0x1] sm:$0xff]
  %523 = vrot.lane.b32.xlu0 %v515, 4
  %v524 = vpop.permute.xlu0 %523
  %527 = vrot.lane.b32.xlu0 %v517, 6
  %v528 = vpop.permute.xlu0 %527
  %531 = vrot.lane.b32.xlu0 %v518, 10
  %v532 = vpop.permute.xlu0 %531
  %535 = vrot.lane.b32.xlu0 %v520, 12
  %v536 = vpop.permute.xlu0 %535
  %539 = vrot.lane.b32.xlu0 %v521, 16
  %v540 = vpop.permute.xlu0 %539
  %v542 = vsel %vm127, %v514, %v524
  %v543 = vsel %vm129, %v542, %v528
  %v544 = vsel %vm131, %v543, %v532
  %v545 = vsel %vm133, %v544, %v536
  %v546 = vsel %vm135, %v545, %v540
  %547 = vst.msk [vmem:[#allocation4 + $0x60] sm:$0xff] %vm137, %v546
  %v548 = vld [vmem:[%s519] sm:$0xff]
  %v549 = vld [vmem:[%s519 + $0x1] sm:$0xff]
  %s550 = scalar_lea.vmem %s0, 464
  %v551 = vld [vmem:[%s550] sm:$0xff]
  %v552 = vld [vmem:[%s550 + $0x1] sm:$0xff]
  %s553 = scalar_lea.vmem %s0, 480
  %v554 = vld [vmem:[%s553] sm:$0xff]
  %v555 = vld [vmem:[%s553 + $0x1] sm:$0xff]
  %557 = vrot.lane.b32.xlu0 %v549, 4
  %v558 = vpop.permute.xlu0 %557
  %561 = vrot.lane.b32.xlu0 %v551, 6
  %v562 = vpop.permute.xlu0 %561
  %565 = vrot.lane.b32.xlu0 %v552, 10
  %v566 = vpop.permute.xlu0 %565
  %569 = vrot.lane.b32.xlu0 %v554, 12
  %v570 = vpop.permute.xlu0 %569
  %573 = vrot.lane.b32.xlu0 %v555, 16
  %v574 = vpop.permute.xlu0 %573
  %v576 = vsel %vm127, %v548, %v558
  %v577 = vsel %vm129, %v576, %v562
  %v578 = vsel %vm131, %v577, %v566
  %v579 = vsel %vm133, %v578, %v570
  %v580 = vsel %vm135, %v579, %v574
  %581 = vst.msk [vmem:[#allocation4 + $0x68] sm:$0xff] %vm137, %v580
  %v582 = vld [vmem:[%s553] sm:$0xff]
  %v583 = vld [vmem:[%s553 + $0x1] sm:$0xff]
  %s584 = scalar_lea.vmem %s0, 496
  %v585 = vld [vmem:[%s584] sm:$0xff]
  %v586 = vld [vmem:[%s584 + $0x1] sm:$0xff]
  %s587 = scalar_lea.vmem %s0, 512
  %v588 = vld [vmem:[%s587] sm:$0xff]
  %v589 = vld [vmem:[%s587 + $0x1] sm:$0xff]
  %591 = vrot.lane.b32.xlu0 %v583, 4
  %v592 = vpop.permute.xlu0 %591
  %595 = vrot.lane.b32.xlu0 %v585, 6
  %v596 = vpop.permute.xlu0 %595
  %599 = vrot.lane.b32.xlu0 %v586, 10
  %v600 = vpop.permute.xlu0 %599
  %603 = vrot.lane.b32.xlu0 %v588, 12
  %v604 = vpop.permute.xlu0 %603
  %607 = vrot.lane.b32.xlu0 %v589, 16
  %v608 = vpop.permute.xlu0 %607
  %v610 = vsel %vm127, %v582, %v592
  %v611 = vsel %vm129, %v610, %v596
  %v612 = vsel %vm131, %v611, %v600
  %v613 = vsel %vm133, %v612, %v604
  %v614 = vsel %vm135, %v613, %v608
  %615 = vst.msk [vmem:[#allocation4 + $0x70] sm:$0xff] %vm137, %v614
  %v616 = vld [vmem:[%s587] sm:$0xff]
  %v617 = vld [vmem:[%s587 + $0x1] sm:$0xff]
  %s618 = scalar_lea.vmem %s0, 528
  %v619 = vld [vmem:[%s618] sm:$0xff]
  %v620 = vld [vmem:[%s618 + $0x1] sm:$0xff]
  %s621 = scalar_lea.vmem %s0, 544
  %v622 = vld [vmem:[%s621] sm:$0xff]
  %v623 = vld [vmem:[%s621 + $0x1] sm:$0xff]
  %625 = vrot.lane.b32.xlu0 %v617, 4
  %v626 = vpop.permute.xlu0 %625
  %629 = vrot.lane.b32.xlu0 %v619, 6
  %v630 = vpop.permute.xlu0 %629
  %633 = vrot.lane.b32.xlu0 %v620, 10
  %v634 = vpop.permute.xlu0 %633
  %637 = vrot.lane.b32.xlu0 %v622, 12
  %v638 = vpop.permute.xlu0 %637
  %641 = vrot.lane.b32.xlu0 %v623, 16
  %v642 = vpop.permute.xlu0 %641
  %v644 = vsel %vm127, %v616, %v626
  %v645 = vsel %vm129, %v644, %v630
  %v646 = vsel %vm131, %v645, %v634
  %v647 = vsel %vm133, %v646, %v638
  %v648 = vsel %vm135, %v647, %v642
  %649 = vst.msk [vmem:[#allocation4 + $0x78] sm:$0xff] %vm137, %v648
  %v650 = vld [vmem:[%s621] sm:$0xff]
  %v651 = vld [vmem:[%s621 + $0x1] sm:$0xff]
  %s652 = scalar_lea.vmem %s0, 560
  %v653 = vld [vmem:[%s652] sm:$0xff]
  %v654 = vld [vmem:[%s652 + $0x1] sm:$0xff]
  %s655 = scalar_lea.vmem %s0, 576
  %v656 = vld [vmem:[%s655] sm:$0xff]
  %v657 = vld [vmem:[%s655 + $0x1] sm:$0xff]
  %659 = vrot.lane.b32.xlu0 %v651, 4
  %v660 = vpop.permute.xlu0 %659
  %663 = vrot.lane.b32.xlu0 %v653, 6
  %v664 = vpop.permute.xlu0 %663
  %667 = vrot.lane.b32.xlu0 %v654, 10
  %v668 = vpop.permute.xlu0 %667
  %671 = vrot.lane.b32.xlu0 %v656, 12
  %v672 = vpop.permute.xlu0 %671
  %675 = vrot.lane.b32.xlu0 %v657, 16
  %v676 = vpop.permute.xlu0 %675
  %v678 = vsel %vm127, %v650, %v660
  %v679 = vsel %vm129, %v678, %v664
  %v680 = vsel %vm131, %v679, %v668
  %v681 = vsel %vm133, %v680, %v672
  %v682 = vsel %vm135, %v681, %v676
  %683 = vst.msk [vmem:[#allocation4 + $0x80] sm:$0xff] %vm137, %v682
  %v684 = vld [vmem:[%s655] sm:$0xff]
  %v685 = vld [vmem:[%s655 + $0x1] sm:$0xff]
  %s686 = scalar_lea.vmem %s0, 592
  %v687 = vld [vmem:[%s686] sm:$0xff]
  %v688 = vld [vmem:[%s686 + $0x1] sm:$0xff]
  %s689 = scalar_lea.vmem %s0, 608
  %v690 = vld [vmem:[%s689] sm:$0xff]
  %v691 = vld [vmem:[%s689 + $0x1] sm:$0xff]
  %693 = vrot.lane.b32.xlu0 %v685, 4
  %v694 = vpop.permute.xlu0 %693
  %697 = vrot.lane.b32.xlu0 %v687, 6
  %v698 = vpop.permute.xlu0 %697
  %701 = vrot.lane.b32.xlu0 %v688, 10
  %v702 = vpop.permute.xlu0 %701
  %705 = vrot.lane.b32.xlu0 %v690, 12
  %v706 = vpop.permute.xlu0 %705
  %709 = vrot.lane.b32.xlu0 %v691, 16
  %v710 = vpop.permute.xlu0 %709
  %v712 = vsel %vm127, %v684, %v694
  %v713 = vsel %vm129, %v712, %v698
  %v714 = vsel %vm131, %v713, %v702
  %v715 = vsel %vm133, %v714, %v706
  %v716 = vsel %vm135, %v715, %v710
  %717 = vst.msk [vmem:[#allocation4 + $0x88] sm:$0xff] %vm137, %v716
  %v718 = vld [vmem:[%s689] sm:$0xff]
  %v719 = vld [vmem:[%s689 + $0x1] sm:$0xff]
  %s720 = scalar_lea.vmem %s0, 624
  %v721 = vld [vmem:[%s720] sm:$0xff]
  %v722 = vld [vmem:[%s720 + $0x1] sm:$0xff]
  %s723 = scalar_lea.vmem %s0, 640
  %v724 = vld [vmem:[%s723] sm:$0xff]
  %v725 = vld [vmem:[%s723 + $0x1] sm:$0xff]
  %727 = vrot.lane.b32.xlu0 %v719, 4
  %v728 = vpop.permute.xlu0 %727
  %731 = vrot.lane.b32.xlu0 %v721, 6
  %v732 = vpop.permute.xlu0 %731
  %735 = vrot.lane.b32.xlu0 %v722, 10
  %v736 = vpop.permute.xlu0 %735
  %739 = vrot.lane.b32.xlu0 %v724, 12
  %v740 = vpop.permute.xlu0 %739
  %743 = vrot.lane.b32.xlu0 %v725, 16
  %v744 = vpop.permute.xlu0 %743
  %v746 = vsel %vm127, %v718, %v728
  %v747 = vsel %vm129, %v746, %v732
  %v748 = vsel %vm131, %v747, %v736
  %v749 = vsel %vm133, %v748, %v740
  %v750 = vsel %vm135, %v749, %v744
  %751 = vst.msk [vmem:[#allocation4 + $0x90] sm:$0xff] %vm137, %v750
  %v752 = vld [vmem:[%s723] sm:$0xff]
  %v753 = vld [vmem:[%s723 + $0x1] sm:$0xff]
  %s754 = scalar_lea.vmem %s0, 656
  %v755 = vld [vmem:[%s754] sm:$0xff]
  %v756 = vld [vmem:[%s754 + $0x1] sm:$0xff]
  %s757 = scalar_lea.vmem %s0, 672
  %v758 = vld [vmem:[%s757] sm:$0xff]
  %v759 = vld [vmem:[%s757 + $0x1] sm:$0xff]
  %761 = vrot.lane.b32.xlu0 %v753, 4
  %v762 = vpop.permute.xlu0 %761
  %765 = vrot.lane.b32.xlu0 %v755, 6
  %v766 = vpop.permute.xlu0 %765
  %769 = vrot.lane.b32.xlu0 %v756, 10
  %v770 = vpop.permute.xlu0 %769
  %773 = vrot.lane.b32.xlu0 %v758, 12
  %v774 = vpop.permute.xlu0 %773
  %777 = vrot.lane.b32.xlu0 %v759, 16
  %v778 = vpop.permute.xlu0 %777
  %v780 = vsel %vm127, %v752, %v762
  %v781 = vsel %vm129, %v780, %v766
  %v782 = vsel %vm131, %v781, %v770
  %v783 = vsel %vm133, %v782, %v774
  %v784 = vsel %vm135, %v783, %v778
  %785 = vst.msk [vmem:[#allocation4 + $0x98] sm:$0xff] %vm137, %v784
  %v786 = vld [vmem:[%s757] sm:$0xff]
  %v787 = vld [vmem:[%s757 + $0x1] sm:$0xff]
  %s788 = scalar_lea.vmem %s0, 688
  %v789 = vld [vmem:[%s788] sm:$0xff]
  %v790 = vld [vmem:[%s788 + $0x1] sm:$0xff]
  %s791 = scalar_lea.vmem %s0, 704
  %v792 = vld [vmem:[%s791] sm:$0xff]
  %v793 = vld [vmem:[%s791 + $0x1] sm:$0xff]
  %795 = vrot.lane.b32.xlu0 %v787, 4
  %v796 = vpop.permute.xlu0 %795
  %799 = vrot.lane.b32.xlu0 %v789, 6
  %v800 = vpop.permute.xlu0 %799
  %803 = vrot.lane.b32.xlu0 %v790, 10
  %v804 = vpop.permute.xlu0 %803
  %807 = vrot.lane.b32.xlu0 %v792, 12
  %v808 = vpop.permute.xlu0 %807
  %811 = vrot.lane.b32.xlu0 %v793, 16
  %v812 = vpop.permute.xlu0 %811
  %v814 = vsel %vm127, %v786, %v796
  %v815 = vsel %vm129, %v814, %v800
  %v816 = vsel %vm131, %v815, %v804
  %v817 = vsel %vm133, %v816, %v808
  %v818 = vsel %vm135, %v817, %v812
  %819 = vst.msk [vmem:[#allocation4 + $0xa0] sm:$0xff] %vm137, %v818
  %v820 = vld [vmem:[%s791] sm:$0xff]
  %v821 = vld [vmem:[%s791 + $0x1] sm:$0xff]
  %s822 = scalar_lea.vmem %s0, 720
  %v823 = vld [vmem:[%s822] sm:$0xff]
  %v824 = vld [vmem:[%s822 + $0x1] sm:$0xff]
  %s825 = scalar_lea.vmem %s0, 736
  %v826 = vld [vmem:[%s825] sm:$0xff]
  %v827 = vld [vmem:[%s825 + $0x1] sm:$0xff]
  %829 = vrot.lane.b32.xlu0 %v821, 4
  %v830 = vpop.permute.xlu0 %829
  %833 = vrot.lane.b32.xlu0 %v823, 6
  %v834 = vpop.permute.xlu0 %833
  %837 = vrot.lane.b32.xlu0 %v824, 10
  %v838 = vpop.permute.xlu0 %837
  %841 = vrot.lane.b32.xlu0 %v826, 12
  %v842 = vpop.permute.xlu0 %841
  %845 = vrot.lane.b32.xlu0 %v827, 16
  %v846 = vpop.permute.xlu0 %845
  %v848 = vsel %vm127, %v820, %v830
  %v849 = vsel %vm129, %v848, %v834
  %v850 = vsel %vm131, %v849, %v838
  %v851 = vsel %vm133, %v850, %v842
  %v852 = vsel %vm135, %v851, %v846
  %853 = vst.msk [vmem:[#allocation4 + $0xa8] sm:$0xff] %vm137, %v852
  %v854 = vld [vmem:[%s825] sm:$0xff]
  %v855 = vld [vmem:[%s825 + $0x1] sm:$0xff]
  %s856 = scalar_lea.vmem %s0, 752
  %v857 = vld [vmem:[%s856] sm:$0xff]
  %v858 = vld [vmem:[%s856 + $0x1] sm:$0xff]
  %s859 = scalar_lea.vmem %s0, 768
  %v860 = vld [vmem:[%s859] sm:$0xff]
  %v861 = vld [vmem:[%s859 + $0x1] sm:$0xff]
  %863 = vrot.lane.b32.xlu0 %v855, 4
  %v864 = vpop.permute.xlu0 %863
  %867 = vrot.lane.b32.xlu0 %v857, 6
  %v868 = vpop.permute.xlu0 %867
  %871 = vrot.lane.b32.xlu0 %v858, 10
  %v872 = vpop.permute.xlu0 %871
  %875 = vrot.lane.b32.xlu0 %v860, 12
  %v876 = vpop.permute.xlu0 %875
  %879 = vrot.lane.b32.xlu0 %v861, 16
  %v880 = vpop.permute.xlu0 %879
  %v882 = vsel %vm127, %v854, %v864
  %v883 = vsel %vm129, %v882, %v868
  %v884 = vsel %vm131, %v883, %v872
  %v885 = vsel %vm133, %v884, %v876
  %v886 = vsel %vm135, %v885, %v880
  %887 = vst.msk [vmem:[#allocation4 + $0xb0] sm:$0xff] %vm137, %v886
  %v888 = vld [vmem:[%s859] sm:$0xff]
  %v889 = vld [vmem:[%s859 + $0x1] sm:$0xff]
  %s890 = scalar_lea.vmem %s0, 784
  %v891 = vld [vmem:[%s890] sm:$0xff]
  %v892 = vld [vmem:[%s890 + $0x1] sm:$0xff]
  %s893 = scalar_lea.vmem %s0, 800
  %v894 = vld [vmem:[%s893] sm:$0xff]
  %v895 = vld [vmem:[%s893 + $0x1] sm:$0xff]
  %897 = vrot.lane.b32.xlu0 %v889, 4
  %v898 = vpop.permute.xlu0 %897
  %901 = vrot.lane.b32.xlu0 %v891, 6
  %v902 = vpop.permute.xlu0 %901
  %905 = vrot.lane.b32.xlu0 %v892, 10
  %v906 = vpop.permute.xlu0 %905
  %909 = vrot.lane.b32.xlu0 %v894, 12
  %v910 = vpop.permute.xlu0 %909
  %913 = vrot.lane.b32.xlu0 %v895, 16
  %v914 = vpop.permute.xlu0 %913
  %v916 = vsel %vm127, %v888, %v898
  %v917 = vsel %vm129, %v916, %v902
  %v918 = vsel %vm131, %v917, %v906
  %v919 = vsel %vm133, %v918, %v910
  %v920 = vsel %vm135, %v919, %v914
  %921 = vst.msk [vmem:[#allocation4 + $0xb8] sm:$0xff] %vm137, %v920
  %v922 = vld [vmem:[#allocation4] sm:$0xff]
  %v923 = vld [vmem:[#allocation4 + $0x8] sm:$0xff]
  %v924 = vld [vmem:[#allocation4 + $0x10] sm:$0xff]
  %v925 = vld [vmem:[#allocation4 + $0x18] sm:$0xff]
  %v926 = vld [vmem:[#allocation4 + $0x20] sm:$0xff]
  %v927 = vld [vmem:[#allocation4 + $0x28] sm:$0xff]
  %v928 = vld [vmem:[#allocation4 + $0x30] sm:$0xff]
  %v929 = vld [vmem:[#allocation4 + $0x38] sm:$0xff]
  %v930 = vld [vmem:[#allocation4 + $0x40] sm:$0xff]
  %v931 = vld [vmem:[#allocation4 + $0x48] sm:$0xff]
  %v932 = vld [vmem:[#allocation4 + $0x50] sm:$0xff]
  %v933 = vld [vmem:[#allocation4 + $0x58] sm:$0xff]
  %v934 = vld [vmem:[#allocation4 + $0x60] sm:$0xff]
  %v935 = vld [vmem:[#allocation4 + $0x68] sm:$0xff]
  %v936 = vld [vmem:[#allocation4 + $0x70] sm:$0xff]
  %v937 = vld [vmem:[#allocation4 + $0x78] sm:$0xff]
  %v938 = vld [vmem:[#allocation4 + $0x80] sm:$0xff]
  %v939 = vld [vmem:[#allocation4 + $0x88] sm:$0xff]
  %v940 = vld [vmem:[#allocation4 + $0x90] sm:$0xff]
  %v941 = vld [vmem:[#allocation4 + $0x98] sm:$0xff]
  %v942 = vld [vmem:[#allocation4 + $0xa0] sm:$0xff]
  %v943 = vld [vmem:[#allocation4 + $0xa8] sm:$0xff]
  %v944 = vld [vmem:[#allocation4 + $0xb0] sm:$0xff]
  %v945 = vld [vmem:[#allocation4 + $0xb8] sm:$0xff]
  %v946 = vpack.c.bf16 %v923, %v922
  %v947 = vpack.c.bf16 %v925, %v924
  %v948 = vpack.c.bf16 %v927, %v926
  %v949 = vpack.c.bf16 %v929, %v928
  %v950 = vpack.c.bf16 %v931, %v930
  %v951 = vpack.c.bf16 %v933, %v932
  %v952 = vpack.c.bf16 %v935, %v934
  %v953 = vpack.c.bf16 %v937, %v936
  %v954 = vpack.c.bf16 %v939, %v938
  %v955 = vpack.c.bf16 %v941, %v940
  %v956 = vpack.c.bf16 %v943, %v942
  %v957 = vpack.c.bf16 %v945, %v944
  %v958 = vld [vmem:[%s1] sm:$0xf]
  %v959 = vld [vmem:[%s1 + $0x4] sm:$0xf]
  %v960 = vld [vmem:[%s1 + $0x8] sm:$0x1]
  %v964 = vunpack.c.l.b16 %v958
  %v965 = vunpack.c.l.b16 %v959
  %v966 = vunpack.c.l.b16 %v960
  %v967 = vpack.c.b16 %v965, %v964
  %v968 = vpack.c.b16 %v966, %v966
  %v971 = vsel %vm137, %v946, 0
  %v974 = vsel %vm137, %v947, 0
  %v977 = vsel %vm137, %v948, 0
  %v980 = vsel %vm137, %v949, 0
  %v983 = vsel %vm137, %v950, 0
  %v986 = vsel %vm137, %v951, 0
  %v989 = vsel %vm137, %v952, 0
  %v992 = vsel %vm137, %v953, 0
  %v995 = vsel %vm137, %v954, 0
  %v998 = vsel %vm137, %v955, 0
  %v1001 = vsel %vm137, %v956, 0
  %v1004 = vsel %vm137, %v957, 0
  %vm1006 = vcmask 1040384
  %v1008 = vsel %vm1006, %v968, 0
  %1010 = vmatprep.subr.bf16.mxu0 0
  %1011 = vmatpush1.bf16.msra.mxu0 %v967
  %1012 = vmatprep.subr.bf16.mxu0 0
  %1013 = vmatpush1.bf16.msra.mxu0 %v1008
  %1014 = vmatprep.subr.bf16.mxu0 0
  %1015 = vmatpush1.bf16.msra.mxu0 0
  %1016 = vmatprep.subr.bf16.mxu0 0
  %1017 = vmatpush1.bf16.msra.mxu0 0
  %1018 = vmatprep.subr.bf16.mxu0 0
  %1019 = vmatpush1.bf16.msra.mxu0 0
  %1020 = vmatprep.subr.bf16.mxu0 0
  %1021 = vmatpush1.bf16.msra.mxu0 0
  %1022 = vmatprep.subr.bf16.mxu0 0
  %1023 = vmatpush1.bf16.msra.mxu0 0
  %1024 = vmatprep.subr.bf16.mxu0 0
  %1025 = vmatpush1.bf16.msra.mxu0 0
  %1026 = vmatprep.subr.bf16.mxu0 0
  %1027 = vmatpush1.bf16.msra.mxu0 0
  %1028 = vmatprep.subr.bf16.mxu0 0
  %1029 = vmatpush1.bf16.msra.mxu0 0
  %1030 = vmatprep.subr.bf16.mxu0 0
  %1031 = vmatpush1.bf16.msra.mxu0 0
  %1032 = vmatprep.subr.bf16.mxu0 0
  %1033 = vmatpush1.bf16.msra.mxu0 0
  %1034 = vmatprep.subr.bf16.mxu0 0
  %1035 = vmatpush1.bf16.msra.mxu0 0
  %1036 = vmatprep.subr.bf16.mxu0 0
  %1037 = vmatpush1.bf16.msra.mxu0 0
  %1038 = vmatprep.subr.bf16.mxu0 0
  %1039 = vmatpush1.bf16.msra.mxu0 0
  %1040 = vmatprep.subr.bf16.mxu0 0
  %1041 = vmatpush1.bf16.msra.mxu0 0
  %1042 = vmatprep.mubr.bf16.mxu0 0
  %1043 = vmatmul.mubr.bf16.gmra.mrb[0].mxu0 %v971
  %v1044 = vpop.f32.mrb[0].mxu0
  %v1045 = vadd.f32 0.0, %v1044
  %v1046 = vpop.f32.mrb[0].mxu0
  %v1047 = vpop.f32.mrb[0].mxu0
  %v1048 = vadd.f32 0.0, %v1047
  %v1049 = vpop.f32.mrb[0].mxu0
  %1050 = vmatprep.mubr.bf16.mxu0 0
  %1051 = vmatmul.mubr.bf16.gmra.mrb[0].mxu0 %v974
  %v1052 = vpop.f32.mrb[0].mxu0
  %v1053 = vadd.f32 0.0, %v1052
  %v1054 = vpop.f32.mrb[0].mxu0
  %v1055 = vpop.f32.mrb[0].mxu0
  %v1056 = vadd.f32 0.0, %v1055
  %v1057 = vpop.f32.mrb[0].mxu0
  %1058 = vmatprep.mubr.bf16.mxu0 0
  %1059 = vmatmul.mubr.bf16.gmra.mrb[0].mxu0 %v977
  %v1060 = vpop.f32.mrb[0].mxu0
  %v1061 = vadd.f32 0.0, %v1060
  %v1062 = vpop.f32.mrb[0].mxu0
  %v1063 = vpop.f32.mrb[0].mxu0
  %v1064 = vadd.f32 0.0, %v1063
  %v1065 = vpop.f32.mrb[0].mxu0
  %1066 = vmatprep.mubr.bf16.mxu0 0
  %1067 = vmatmul.mubr.bf16.gmra.mrb[0].mxu0 %v980
  %v1068 = vpop.f32.mrb[0].mxu0
  %v1069 = vadd.f32 0.0, %v1068
  %v1070 = vpop.f32.mrb[0].mxu0
  %v1071 = vpop.f32.mrb[0].mxu0
  %v1072 = vadd.f32 0.0, %v1071
  %v1073 = vpop.f32.mrb[0].mxu0
  %1074 = vmatprep.mubr.bf16.mxu0 0
  %1075 = vmatmul.mubr.bf16.gmra.mrb[0].mxu0 %v983
  %v1076 = vpop.f32.mrb[0].mxu0
  %v1077 = vadd.f32 0.0, %v1076
  %v1078 = vpop.f32.mrb[0].mxu0
  %v1079 = vpop.f32.mrb[0].mxu0
  %v1080 = vadd.f32 0.0, %v1079
  %v1081 = vpop.f32.mrb[0].mxu0
  %1082 = vmatprep.mubr.bf16.mxu0 0
  %1083 = vmatmul.mubr.bf16.gmra.mrb[0].mxu0 %v986
  %v1084 = vpop.f32.mrb[0].mxu0
  %v1085 = vadd.f32 0.0, %v1084
  %v1086 = vpop.f32.mrb[0].mxu0
  %v1087 = vpop.f32.mrb[0].mxu0
  %v1088 = vadd.f32 0.0, %v1087
  %v1089 = vpop.f32.mrb[0].mxu0
  %1090 = vmatprep.mubr.bf16.mxu0 0
  %1091 = vmatmul.mubr.bf16.gmra.mrb[0].mxu0 %v989
  %v1092 = vpop.f32.mrb[0].mxu0
  %v1093 = vadd.f32 0.0, %v1092
  %v1094 = vpop.f32.mrb[0].mxu0
  %v1095 = vpop.f32.mrb[0].mxu0
  %v1096 = vadd.f32 0.0, %v1095
  %v1097 = vpop.f32.mrb[0].mxu0
  %1098 = vmatprep.mubr.bf16.mxu0 0
  %1099 = vmatmul.mubr.bf16.gmra.mrb[0].mxu0 %v992
  %v1100 = vpop.f32.mrb[0].mxu0
  %v1101 = vadd.f32 0.0, %v1100
  %v1102 = vpop.f32.mrb[0].mxu0
  %v1103 = vpop.f32.mrb[0].mxu0
  %v1104 = vadd.f32 0.0, %v1103
  %v1105 = vpop.f32.mrb[0].mxu0
  %1106 = vmatprep.mubr.bf16.mxu0 0
  %1107 = vmatmul.mubr.bf16.gmra.mrb[0].mxu0 %v995
  %v1108 = vpop.f32.mrb[0].mxu0
  %v1109 = vadd.f32 0.0, %v1108
  %v1110 = vpop.f32.mrb[0].mxu0
  %v1111 = vpop.f32.mrb[0].mxu0
  %v1112 = vadd.f32 0.0, %v1111
  %v1113 = vpop.f32.mrb[0].mxu0
  %1114 = vmatprep.mubr.bf16.mxu0 0
  %1115 = vmatmul.mubr.bf16.gmra.mrb[0].mxu0 %v998
  %v1116 = vpop.f32.mrb[0].mxu0
  %v1117 = vadd.f32 0.0, %v1116
  %v1118 = vpop.f32.mrb[0].mxu0
  %v1119 = vpop.f32.mrb[0].mxu0
  %v1120 = vadd.f32 0.0, %v1119
  %v1121 = vpop.f32.mrb[0].mxu0
  %1122 = vmatprep.mubr.bf16.mxu0 0
  %1123 = vmatmul.mubr.bf16.gmra.mrb[0].mxu0 %v1001
  %v1124 = vpop.f32.mrb[0].mxu0
  %v1125 = vadd.f32 0.0, %v1124
  %v1126 = vpop.f32.mrb[0].mxu0
  %v1127 = vpop.f32.mrb[0].mxu0
  %v1128 = vadd.f32 0.0, %v1127
  %v1129 = vpop.f32.mrb[0].mxu0
  %1130 = vmatprep.mubr.bf16.mxu0 0
  %1131 = vmatmul.mubr.bf16.gmra.mrb[0].mxu0 %v1004
  %v1132 = vpop.f32.mrb[0].mxu0
  %v1133 = vadd.f32 0.0, %v1132
  %v1134 = vpop.f32.mrb[0].mxu0
  %v1135 = vpop.f32.mrb[0].mxu0
  %v1136 = vadd.f32 0.0, %v1135
  %v1137 = vpop.f32.mrb[0].mxu0
  %1138 = vdwg.mxu0
  %vm1139 = vcmp.ge.f32.partialorder %v1045, 0.0
  %vm1140 = vcmp.ge.f32.partialorder %v1048, 0.0
  %vm1141 = vcmp.ge.f32.partialorder %v1053, 0.0
  %vm1142 = vcmp.ge.f32.partialorder %v1056, 0.0
  %vm1143 = vcmp.ge.f32.partialorder %v1061, 0.0
  %vm1144 = vcmp.ge.f32.partialorder %v1064, 0.0
  %vm1145 = vcmp.ge.f32.partialorder %v1069, 0.0
  %vm1146 = vcmp.ge.f32.partialorder %v1072, 0.0
  %vm1147 = vcmp.ge.f32.partialorder %v1077, 0.0
  %vm1148 = vcmp.ge.f32.partialorder %v1080, 0.0
  %vm1149 = vcmp.ge.f32.partialorder %v1085, 0.0
  %vm1150 = vcmp.ge.f32.partialorder %v1088, 0.0
  %vm1151 = vcmp.ge.f32.partialorder %v1093, 0.0
  %vm1152 = vcmp.ge.f32.partialorder %v1096, 0.0
  %vm1153 = vcmp.ge.f32.partialorder %v1101, 0.0
  %vm1154 = vcmp.ge.f32.partialorder %v1104, 0.0
  %vm1155 = vcmp.ge.f32.partialorder %v1109, 0.0
  %vm1156 = vcmp.ge.f32.partialorder %v1112, 0.0
  %vm1157 = vcmp.ge.f32.partialorder %v1117, 0.0
  %vm1158 = vcmp.ge.f32.partialorder %v1120, 0.0
  %vm1159 = vcmp.ge.f32.partialorder %v1125, 0.0
  %vm1160 = vcmp.ge.f32.partialorder %v1128, 0.0
  %vm1161 = vcmp.ge.f32.partialorder %v1133, 0.0
  %vm1162 = vcmp.ge.f32.partialorder %v1136, 0.0
  %v1163 = vmul.f32 %v1045, 0.2
  %v1164 = vmul.f32 %v1048, 0.2
  %v1165 = vmul.f32 %v1053, 0.2
  %v1166 = vmul.f32 %v1056, 0.2
  %v1167 = vmul.f32 %v1061, 0.2
  %v1168 = vmul.f32 %v1064, 0.2
  %v1169 = vmul.f32 %v1069, 0.2
  %v1170 = vmul.f32 %v1072, 0.2
  %v1171 = vmul.f32 %v1077, 0.2
  %v1172 = vmul.f32 %v1080, 0.2
  %v1173 = vmul.f32 %v1085, 0.2
  %v1174 = vmul.f32 %v1088, 0.2
  %v1175 = vmul.f32 %v1093, 0.2
  %v1176 = vmul.f32 %v1096, 0.2
  %v1177 = vmul.f32 %v1101, 0.2
  %v1178 = vmul.f32 %v1104, 0.2
  %v1179 = vmul.f32 %v1109, 0.2
  %v1180 = vmul.f32 %v1112, 0.2
  %v1181 = vmul.f32 %v1117, 0.2
  %v1182 = vmul.f32 %v1120, 0.2
  %v1183 = vmul.f32 %v1125, 0.2
  %v1184 = vmul.f32 %v1128, 0.2
  %v1185 = vmul.f32 %v1133, 0.2
  %v1186 = vmul.f32 %v1136, 0.2
  %v1187 = vsel %vm1139, %v1045, %v1163
  %v1188 = vsel %vm1140, %v1048, %v1164
  %v1189 = vsel %vm1141, %v1053, %v1165
  %v1190 = vsel %vm1142, %v1056, %v1166
  %v1191 = vsel %vm1143, %v1061, %v1167
  %v1192 = vsel %vm1144, %v1064, %v1168
  %v1193 = vsel %vm1145, %v1069, %v1169
  %v1194 = vsel %vm1146, %v1072, %v1170
  %v1195 = vsel %vm1147, %v1077, %v1171
  %v1196 = vsel %vm1148, %v1080, %v1172
  %v1197 = vsel %vm1149, %v1085, %v1173
  %v1198 = vsel %vm1150, %v1088, %v1174
  %v1199 = vsel %vm1151, %v1093, %v1175
  %v1200 = vsel %vm1152, %v1096, %v1176
  %v1201 = vsel %vm1153, %v1101, %v1177
  %v1202 = vsel %vm1154, %v1104, %v1178
  %v1203 = vsel %vm1155, %v1109, %v1179
  %v1204 = vsel %vm1156, %v1112, %v1180
  %v1205 = vsel %vm1157, %v1117, %v1181
  %v1206 = vsel %vm1158, %v1120, %v1182
  %v1207 = vsel %vm1159, %v1125, %v1183
  %v1208 = vsel %vm1160, %v1128, %v1184
  %v1209 = vsel %vm1161, %v1133, %v1185
  %v1210 = vsel %vm1162, %v1136, %v1186
  %s1211 = scalar_lea.vmem [#allocation2], 16
  %1212 = vst [vmem:[%s1211 + $0x8] sm:$0x1] %v1187
  %v1214 = vrot.slane %v1187, 1
  %1216 = vst [vmem:[%s1211 + $0x1] sm:$0x1] %v1214
  %v1217 = vrot.slane %v1187, 2
  %1219 = vst [vmem:[%s1211 + $0x9] sm:$0x1] %v1217
  %v1220 = vrot.slane %v1187, 3
  %1222 = vst [vmem:[%s1211 + $0x2] sm:$0x1] %v1220
  %v1223 = vrot.slane %v1187, 4
  %1225 = vst [vmem:[%s1211 + $0xa] sm:$0x1] %v1223
  %v1226 = vrot.slane %v1187, 5
  %1228 = vst [vmem:[%s1211 + $0x3] sm:$0x1] %v1226
  %v1229 = vrot.slane %v1187, 6
  %1231 = vst [vmem:[%s1211 + $0xb] sm:$0x1] %v1229
  %v1232 = vrot.slane %v1187, 7
  %1234 = vst [vmem:[%s1211 + $0x4] sm:$0x1] %v1232
  %s1235 = scalar_lea.vmem [#allocation2], 32
  %1236 = vst [vmem:[%s1235 + $0x8] sm:$0x1] %v1188
  %v1238 = vrot.slane %v1188, 1
  %1240 = vst [vmem:[%s1235 + $0x1] sm:$0x1] %v1238
  %v1241 = vrot.slane %v1188, 2
  %1243 = vst [vmem:[%s1235 + $0x9] sm:$0x1] %v1241
  %v1244 = vrot.slane %v1188, 3
  %1246 = vst [vmem:[%s1235 + $0x2] sm:$0x1] %v1244
  %v1247 = vrot.slane %v1188, 4
  %1249 = vst [vmem:[%s1235 + $0xa] sm:$0x1] %v1247
  %v1250 = vrot.slane %v1188, 5
  %1252 = vst [vmem:[%s1235 + $0x3] sm:$0x1] %v1250
  %v1253 = vrot.slane %v1188, 6
  %1255 = vst [vmem:[%s1235 + $0xb] sm:$0x1] %v1253
  %v1256 = vrot.slane %v1188, 7
  %1258 = vst [vmem:[%s1235 + $0x4] sm:$0x1] %v1256
  %s1259 = scalar_lea.vmem [#allocation2], 48
  %1260 = vst [vmem:[%s1259 + $0x8] sm:$0x1] %v1189
  %v1262 = vrot.slane %v1189, 1
  %1264 = vst [vmem:[%s1259 + $0x1] sm:$0x1] %v1262
  %v1265 = vrot.slane %v1189, 2
  %1267 = vst [vmem:[%s1259 + $0x9] sm:$0x1] %v1265
  %v1268 = vrot.slane %v1189, 3
  %1270 = vst [vmem:[%s1259 + $0x2] sm:$0x1] %v1268
  %v1271 = vrot.slane %v1189, 4
  %1273 = vst [vmem:[%s1259 + $0xa] sm:$0x1] %v1271
  %v1274 = vrot.slane %v1189, 5
  %1276 = vst [vmem:[%s1259 + $0x3] sm:$0x1] %v1274
  %v1277 = vrot.slane %v1189, 6
  %1279 = vst [vmem:[%s1259 + $0xb] sm:$0x1] %v1277
  %v1280 = vrot.slane %v1189, 7
  %1282 = vst [vmem:[%s1259 + $0x4] sm:$0x1] %v1280
  %s1283 = scalar_lea.vmem [#allocation2], 64
  %1284 = vst [vmem:[%s1283 + $0x8] sm:$0x1] %v1190
  %v1286 = vrot.slane %v1190, 1
  %1288 = vst [vmem:[%s1283 + $0x1] sm:$0x1] %v1286
  %v1289 = vrot.slane %v1190, 2
  %1291 = vst [vmem:[%s1283 + $0x9] sm:$0x1] %v1289
  %v1292 = vrot.slane %v1190, 3
  %1294 = vst [vmem:[%s1283 + $0x2] sm:$0x1] %v1292
  %v1295 = vrot.slane %v1190, 4
  %1297 = vst [vmem:[%s1283 + $0xa] sm:$0x1] %v1295
  %v1298 = vrot.slane %v1190, 5
  %1300 = vst [vmem:[%s1283 + $0x3] sm:$0x1] %v1298
  %v1301 = vrot.slane %v1190, 6
  %1303 = vst [vmem:[%s1283 + $0xb] sm:$0x1] %v1301
  %v1304 = vrot.slane %v1190, 7
  %1306 = vst [vmem:[%s1283 + $0x4] sm:$0x1] %v1304
  %s1307 = scalar_lea.vmem [#allocation2], 80
  %1308 = vst [vmem:[%s1307 + $0x8] sm:$0x1] %v1191
  %v1310 = vrot.slane %v1191, 1
  %1312 = vst [vmem:[%s1307 + $0x1] sm:$0x1] %v1310
  %v1313 = vrot.slane %v1191, 2
  %1315 = vst [vmem:[%s1307 + $0x9] sm:$0x1] %v1313
  %v1316 = vrot.slane %v1191, 3
  %1318 = vst [vmem:[%s1307 + $0x2] sm:$0x1] %v1316
  %v1319 = vrot.slane %v1191, 4
  %1321 = vst [vmem:[%s1307 + $0xa] sm:$0x1] %v1319
  %v1322 = vrot.slane %v1191, 5
  %1324 = vst [vmem:[%s1307 + $0x3] sm:$0x1] %v1322
  %v1325 = vrot.slane %v1191, 6
  %1327 = vst [vmem:[%s1307 + $0xb] sm:$0x1] %v1325
  %v1328 = vrot.slane %v1191, 7
  %1330 = vst [vmem:[%s1307 + $0x4] sm:$0x1] %v1328
  %s1331 = scalar_lea.vmem [#allocation2], 96
  %1332 = vst [vmem:[%s1331 + $0x8] sm:$0x1] %v1192
  %v1334 = vrot.slane %v1192, 1
  %1336 = vst [vmem:[%s1331 + $0x1] sm:$0x1] %v1334
  %v1337 = vrot.slane %v1192, 2
  %1339 = vst [vmem:[%s1331 + $0x9] sm:$0x1] %v1337
  %v1340 = vrot.slane %v1192, 3
  %1342 = vst [vmem:[%s1331 + $0x2] sm:$0x1] %v1340
  %v1343 = vrot.slane %v1192, 4
  %1345 = vst [vmem:[%s1331 + $0xa] sm:$0x1] %v1343
  %v1346 = vrot.slane %v1192, 5
  %1348 = vst [vmem:[%s1331 + $0x3] sm:$0x1] %v1346
  %v1349 = vrot.slane %v1192, 6
  %1351 = vst [vmem:[%s1331 + $0xb] sm:$0x1] %v1349
  %v1352 = vrot.slane %v1192, 7
  %1354 = vst [vmem:[%s1331 + $0x4] sm:$0x1] %v1352
  %s1355 = scalar_lea.vmem [#allocation2], 112
  %1356 = vst [vmem:[%s1355 + $0x8] sm:$0x1] %v1193
  %v1358 = vrot.slane %v1193, 1
  %1360 = vst [vmem:[%s1355 + $0x1] sm:$0x1] %v1358
  %v1361 = vrot.slane %v1193, 2
  %1363 = vst [vmem:[%s1355 + $0x9] sm:$0x1] %v1361
  %v1364 = vrot.slane %v1193, 3
  %1366 = vst [vmem:[%s1355 + $0x2] sm:$0x1] %v1364
  %v1367 = vrot.slane %v1193, 4
  %1369 = vst [vmem:[%s1355 + $0xa] sm:$0x1] %v1367
  %v1370 = vrot.slane %v1193, 5
  %1372 = vst [vmem:[%s1355 + $0x3] sm:$0x1] %v1370
  %v1373 = vrot.slane %v1193, 6
  %1375 = vst [vmem:[%s1355 + $0xb] sm:$0x1] %v1373
  %v1376 = vrot.slane %v1193, 7
  %1378 = vst [vmem:[%s1355 + $0x4] sm:$0x1] %v1376
  %s1379 = scalar_lea.vmem [#allocation2], 128
  %1380 = vst [vmem:[%s1379 + $0x8] sm:$0x1] %v1194
  %v1382 = vrot.slane %v1194, 1
  %1384 = vst [vmem:[%s1379 + $0x1] sm:$0x1] %v1382
  %v1385 = vrot.slane %v1194, 2
  %1387 = vst [vmem:[%s1379 + $0x9] sm:$0x1] %v1385
  %v1388 = vrot.slane %v1194, 3
  %1390 = vst [vmem:[%s1379 + $0x2] sm:$0x1] %v1388
  %v1391 = vrot.slane %v1194, 4
  %1393 = vst [vmem:[%s1379 + $0xa] sm:$0x1] %v1391
  %v1394 = vrot.slane %v1194, 5
  %1396 = vst [vmem:[%s1379 + $0x3] sm:$0x1] %v1394
  %v1397 = vrot.slane %v1194, 6
  %1399 = vst [vmem:[%s1379 + $0xb] sm:$0x1] %v1397
  %v1400 = vrot.slane %v1194, 7
  %1402 = vst [vmem:[%s1379 + $0x4] sm:$0x1] %v1400
  %s1403 = scalar_lea.vmem [#allocation2], 144
  %1404 = vst [vmem:[%s1403 + $0x8] sm:$0x1] %v1195
  %v1406 = vrot.slane %v1195, 1
  %1408 = vst [vmem:[%s1403 + $0x1] sm:$0x1] %v1406
  %v1409 = vrot.slane %v1195, 2
  %1411 = vst [vmem:[%s1403 + $0x9] sm:$0x1] %v1409
  %v1412 = vrot.slane %v1195, 3
  %1414 = vst [vmem:[%s1403 + $0x2] sm:$0x1] %v1412
  %v1415 = vrot.slane %v1195, 4
  %1417 = vst [vmem:[%s1403 + $0xa] sm:$0x1] %v1415
  %v1418 = vrot.slane %v1195, 5
  %1420 = vst [vmem:[%s1403 + $0x3] sm:$0x1] %v1418
  %v1421 = vrot.slane %v1195, 6
  %1423 = vst [vmem:[%s1403 + $0xb] sm:$0x1] %v1421
  %v1424 = vrot.slane %v1195, 7
  %1426 = vst [vmem:[%s1403 + $0x4] sm:$0x1] %v1424
  %s1427 = scalar_lea.vmem [#allocation2], 160
  %1428 = vst [vmem:[%s1427 + $0x8] sm:$0x1] %v1196
  %v1430 = vrot.slane %v1196, 1
  %1432 = vst [vmem:[%s1427 + $0x1] sm:$0x1] %v1430
  %v1433 = vrot.slane %v1196, 2
  %1435 = vst [vmem:[%s1427 + $0x9] sm:$0x1] %v1433
  %v1436 = vrot.slane %v1196, 3
  %1438 = vst [vmem:[%s1427 + $0x2] sm:$0x1] %v1436
  %v1439 = vrot.slane %v1196, 4
  %1441 = vst [vmem:[%s1427 + $0xa] sm:$0x1] %v1439
  %v1442 = vrot.slane %v1196, 5
  %1444 = vst [vmem:[%s1427 + $0x3] sm:$0x1] %v1442
  %v1445 = vrot.slane %v1196, 6
  %1447 = vst [vmem:[%s1427 + $0xb] sm:$0x1] %v1445
  %v1448 = vrot.slane %v1196, 7
  %1450 = vst [vmem:[%s1427 + $0x4] sm:$0x1] %v1448
  %s1451 = scalar_lea.vmem [#allocation2], 176
  %1452 = vst [vmem:[%s1451 + $0x8] sm:$0x1] %v1197
  %v1454 = vrot.slane %v1197, 1
  %1456 = vst [vmem:[%s1451 + $0x1] sm:$0x1] %v1454
  %v1457 = vrot.slane %v1197, 2
  %1459 = vst [vmem:[%s1451 + $0x9] sm:$0x1] %v1457
  %v1460 = vrot.slane %v1197, 3
  %1462 = vst [vmem:[%s1451 + $0x2] sm:$0x1] %v1460
  %v1463 = vrot.slane %v1197, 4
  %1465 = vst [vmem:[%s1451 + $0xa] sm:$0x1] %v1463
  %v1466 = vrot.slane %v1197, 5
  %1468 = vst [vmem:[%s1451 + $0x3] sm:$0x1] %v1466
  %v1469 = vrot.slane %v1197, 6
  %1471 = vst [vmem:[%s1451 + $0xb] sm:$0x1] %v1469
  %v1472 = vrot.slane %v1197, 7
  %1474 = vst [vmem:[%s1451 + $0x4] sm:$0x1] %v1472
  %s1475 = scalar_lea.vmem [#allocation2], 192
  %1476 = vst [vmem:[%s1475 + $0x8] sm:$0x1] %v1198
  %v1478 = vrot.slane %v1198, 1
  %1480 = vst [vmem:[%s1475 + $0x1] sm:$0x1] %v1478
  %v1481 = vrot.slane %v1198, 2
  %1483 = vst [vmem:[%s1475 + $0x9] sm:$0x1] %v1481
  %v1484 = vrot.slane %v1198, 3
  %1486 = vst [vmem:[%s1475 + $0x2] sm:$0x1] %v1484
  %v1487 = vrot.slane %v1198, 4
  %1489 = vst [vmem:[%s1475 + $0xa] sm:$0x1] %v1487
  %v1490 = vrot.slane %v1198, 5
  %1492 = vst [vmem:[%s1475 + $0x3] sm:$0x1] %v1490
  %v1493 = vrot.slane %v1198, 6
  %1495 = vst [vmem:[%s1475 + $0xb] sm:$0x1] %v1493
  %v1496 = vrot.slane %v1198, 7
  %1498 = vst [vmem:[%s1475 + $0x4] sm:$0x1] %v1496
  %s1499 = scalar_lea.vmem [#allocation2], 240
  %1500 = vst [vmem:[%s1499 + $0x8] sm:$0x1] %v1199
  %v1502 = vrot.slane %v1199, 1
  %1504 = vst [vmem:[%s1499 + $0x1] sm:$0x1] %v1502
  %v1505 = vrot.slane %v1199, 2
  %1507 = vst [vmem:[%s1499 + $0x9] sm:$0x1] %v1505
  %v1508 = vrot.slane %v1199, 3
  %1510 = vst [vmem:[%s1499 + $0x2] sm:$0x1] %v1508
  %v1511 = vrot.slane %v1199, 4
  %1513 = vst [vmem:[%s1499 + $0xa] sm:$0x1] %v1511
  %v1514 = vrot.slane %v1199, 5
  %1516 = vst [vmem:[%s1499 + $0x3] sm:$0x1] %v1514
  %v1517 = vrot.slane %v1199, 6
  %1519 = vst [vmem:[%s1499 + $0xb] sm:$0x1] %v1517
  %v1520 = vrot.slane %v1199, 7
  %1522 = vst [vmem:[%s1499 + $0x4] sm:$0x1] %v1520
  %s1523 = scalar_lea.vmem [#allocation2], 256
  %1524 = vst [vmem:[%s1523 + $0x8] sm:$0x1] %v1200
  %v1526 = vrot.slane %v1200, 1
  %1528 = vst [vmem:[%s1523 + $0x1] sm:$0x1] %v1526
  %v1529 = vrot.slane %v1200, 2
  %1531 = vst [vmem:[%s1523 + $0x9] sm:$0x1] %v1529
  %v1532 = vrot.slane %v1200, 3
  %1534 = vst [vmem:[%s1523 + $0x2] sm:$0x1] %v1532
  %v1535 = vrot.slane %v1200, 4
  %1537 = vst [vmem:[%s1523 + $0xa] sm:$0x1] %v1535
  %v1538 = vrot.slane %v1200, 5
  %1540 = vst [vmem:[%s1523 + $0x3] sm:$0x1] %v1538
  %v1541 = vrot.slane %v1200, 6
  %1543 = vst [vmem:[%s1523 + $0xb] sm:$0x1] %v1541
  %v1544 = vrot.slane %v1200, 7
  %1546 = vst [vmem:[%s1523 + $0x4] sm:$0x1] %v1544
  %s1547 = scalar_lea.vmem [#allocation2], 272
  %1548 = vst [vmem:[%s1547 + $0x8] sm:$0x1] %v1201
  %v1550 = vrot.slane %v1201, 1
  %1552 = vst [vmem:[%s1547 + $0x1] sm:$0x1] %v1550
  %v1553 = vrot.slane %v1201, 2
  %1555 = vst [vmem:[%s1547 + $0x9] sm:$0x1] %v1553
  %v1556 = vrot.slane %v1201, 3
  %1558 = vst [vmem:[%s1547 + $0x2] sm:$0x1] %v1556
  %v1559 = vrot.slane %v1201, 4
  %1561 = vst [vmem:[%s1547 + $0xa] sm:$0x1] %v1559
  %v1562 = vrot.slane %v1201, 5
  %1564 = vst [vmem:[%s1547 + $0x3] sm:$0x1] %v1562
  %v1565 = vrot.slane %v1201, 6
  %1567 = vst [vmem:[%s1547 + $0xb] sm:$0x1] %v1565
  %v1568 = vrot.slane %v1201, 7
  %1570 = vst [vmem:[%s1547 + $0x4] sm:$0x1] %v1568
  %s1571 = scalar_lea.vmem [#allocation2], 288
  %1572 = vst [vmem:[%s1571 + $0x8] sm:$0x1] %v1202
  %v1574 = vrot.slane %v1202, 1
  %1576 = vst [vmem:[%s1571 + $0x1] sm:$0x1] %v1574
  %v1577 = vrot.slane %v1202, 2
  %1579 = vst [vmem:[%s1571 + $0x9] sm:$0x1] %v1577
  %v1580 = vrot.slane %v1202, 3
  %1582 = vst [vmem:[%s1571 + $0x2] sm:$0x1] %v1580
  %v1583 = vrot.slane %v1202, 4
  %1585 = vst [vmem:[%s1571 + $0xa] sm:$0x1] %v1583
  %v1586 = vrot.slane %v1202, 5
  %1588 = vst [vmem:[%s1571 + $0x3] sm:$0x1] %v1586
  %v1589 = vrot.slane %v1202, 6
  %1591 = vst [vmem:[%s1571 + $0xb] sm:$0x1] %v1589
  %v1592 = vrot.slane %v1202, 7
  %1594 = vst [vmem:[%s1571 + $0x4] sm:$0x1] %v1592
  %s1595 = scalar_lea.vmem [#allocation2], 304
  %1596 = vst [vmem:[%s1595 + $0x8] sm:$0x1] %v1203
  %v1598 = vrot.slane %v1203, 1
  %1600 = vst [vmem:[%s1595 + $0x1] sm:$0x1] %v1598
  %v1601 = vrot.slane %v1203, 2
  %1603 = vst [vmem:[%s1595 + $0x9] sm:$0x1] %v1601
  %v1604 = vrot.slane %v1203, 3
  %1606 = vst [vmem:[%s1595 + $0x2] sm:$0x1] %v1604
  %v1607 = vrot.slane %v1203, 4
  %1609 = vst [vmem:[%s1595 + $0xa] sm:$0x1] %v1607
  %v1610 = vrot.slane %v1203, 5
  %1612 = vst [vmem:[%s1595 + $0x3] sm:$0x1] %v1610
  %v1613 = vrot.slane %v1203, 6
  %1615 = vst [vmem:[%s1595 + $0xb] sm:$0x1] %v1613
  %v1616 = vrot.slane %v1203, 7
  %1618 = vst [vmem:[%s1595 + $0x4] sm:$0x1] %v1616
  %s1619 = scalar_lea.vmem [#allocation2], 320
  %1620 = vst [vmem:[%s1619 + $0x8] sm:$0x1] %v1204
  %v1622 = vrot.slane %v1204, 1
  %1624 = vst [vmem:[%s1619 + $0x1] sm:$0x1] %v1622
  %v1625 = vrot.slane %v1204, 2
  %1627 = vst [vmem:[%s1619 + $0x9] sm:$0x1] %v1625
  %v1628 = vrot.slane %v1204, 3
  %1630 = vst [vmem:[%s1619 + $0x2] sm:$0x1] %v1628
  %v1631 = vrot.slane %v1204, 4
  %1633 = vst [vmem:[%s1619 + $0xa] sm:$0x1] %v1631
  %v1634 = vrot.slane %v1204, 5
  %1636 = vst [vmem:[%s1619 + $0x3] sm:$0x1] %v1634
  %v1637 = vrot.slane %v1204, 6
  %1639 = vst [vmem:[%s1619 + $0xb] sm:$0x1] %v1637
  %v1640 = vrot.slane %v1204, 7
  %1642 = vst [vmem:[%s1619 + $0x4] sm:$0x1] %v1640
  %s1643 = scalar_lea.vmem [#allocation2], 336
  %1644 = vst [vmem:[%s1643 + $0x8] sm:$0x1] %v1205
  %v1646 = vrot.slane %v1205, 1
  %1648 = vst [vmem:[%s1643 + $0x1] sm:$0x1] %v1646
  %v1649 = vrot.slane %v1205, 2
  %1651 = vst [vmem:[%s1643 + $0x9] sm:$0x1] %v1649
  %v1652 = vrot.slane %v1205, 3
  %1654 = vst [vmem:[%s1643 + $0x2] sm:$0x1] %v1652
  %v1655 = vrot.slane %v1205, 4
  %1657 = vst [vmem:[%s1643 + $0xa] sm:$0x1] %v1655
  %v1658 = vrot.slane %v1205, 5
  %1660 = vst [vmem:[%s1643 + $0x3] sm:$0x1] %v1658
  %v1661 = vrot.slane %v1205, 6
  %1663 = vst [vmem:[%s1643 + $0xb] sm:$0x1] %v1661
  %v1664 = vrot.slane %v1205, 7
  %1666 = vst [vmem:[%s1643 + $0x4] sm:$0x1] %v1664
  %s1667 = scalar_lea.vmem [#allocation2], 352
  %1668 = vst [vmem:[%s1667 + $0x8] sm:$0x1] %v1206
  %v1670 = vrot.slane %v1206, 1
  %1672 = vst [vmem:[%s1667 + $0x1] sm:$0x1] %v1670
  %v1673 = vrot.slane %v1206, 2
  %1675 = vst [vmem:[%s1667 + $0x9] sm:$0x1] %v1673
  %v1676 = vrot.slane %v1206, 3
  %1678 = vst [vmem:[%s1667 + $0x2] sm:$0x1] %v1676
  %v1679 = vrot.slane %v1206, 4
  %1681 = vst [vmem:[%s1667 + $0xa] sm:$0x1] %v1679
  %v1682 = vrot.slane %v1206, 5
  %1684 = vst [vmem:[%s1667 + $0x3] sm:$0x1] %v1682
  %v1685 = vrot.slane %v1206, 6
  %1687 = vst [vmem:[%s1667 + $0xb] sm:$0x1] %v1685
  %v1688 = vrot.slane %v1206, 7
  %1690 = vst [vmem:[%s1667 + $0x4] sm:$0x1] %v1688
  %s1691 = scalar_lea.vmem [#allocation2], 368
  %1692 = vst [vmem:[%s1691 + $0x8] sm:$0x1] %v1207
  %v1694 = vrot.slane %v1207, 1
  %1696 = vst [vmem:[%s1691 + $0x1] sm:$0x1] %v1694
  %v1697 = vrot.slane %v1207, 2
  %1699 = vst [vmem:[%s1691 + $0x9] sm:$0x1] %v1697
  %v1700 = vrot.slane %v1207, 3
  %1702 = vst [vmem:[%s1691 + $0x2] sm:$0x1] %v1700
  %v1703 = vrot.slane %v1207, 4
  %1705 = vst [vmem:[%s1691 + $0xa] sm:$0x1] %v1703
  %v1706 = vrot.slane %v1207, 5
  %1708 = vst [vmem:[%s1691 + $0x3] sm:$0x1] %v1706
  %v1709 = vrot.slane %v1207, 6
  %1711 = vst [vmem:[%s1691 + $0xb] sm:$0x1] %v1709
  %v1712 = vrot.slane %v1207, 7
  %1714 = vst [vmem:[%s1691 + $0x4] sm:$0x1] %v1712
  %s1715 = scalar_lea.vmem [#allocation2], 384
  %1716 = vst [vmem:[%s1715 + $0x8] sm:$0x1] %v1208
  %v1718 = vrot.slane %v1208, 1
  %1720 = vst [vmem:[%s1715 + $0x1] sm:$0x1] %v1718
  %v1721 = vrot.slane %v1208, 2
  %1723 = vst [vmem:[%s1715 + $0x9] sm:$0x1] %v1721
  %v1724 = vrot.slane %v1208, 3
  %1726 = vst [vmem:[%s1715 + $0x2] sm:$0x1] %v1724
  %v1727 = vrot.slane %v1208, 4
  %1729 = vst [vmem:[%s1715 + $0xa] sm:$0x1] %v1727
  %v1730 = vrot.slane %v1208, 5
  %1732 = vst [vmem:[%s1715 + $0x3] sm:$0x1] %v1730
  %v1733 = vrot.slane %v1208, 6
  %1735 = vst [vmem:[%s1715 + $0xb] sm:$0x1] %v1733
  %v1736 = vrot.slane %v1208, 7
  %1738 = vst [vmem:[%s1715 + $0x4] sm:$0x1] %v1736
  %s1739 = scalar_lea.vmem [#allocation2], 400
  %1740 = vst [vmem:[%s1739 + $0x8] sm:$0x1] %v1209
  %v1742 = vrot.slane %v1209, 1
  %1744 = vst [vmem:[%s1739 + $0x1] sm:$0x1] %v1742
  %v1745 = vrot.slane %v1209, 2
  %1747 = vst [vmem:[%s1739 + $0x9] sm:$0x1] %v1745
  %v1748 = vrot.slane %v1209, 3
  %1750 = vst [vmem:[%s1739 + $0x2] sm:$0x1] %v1748
  %v1751 = vrot.slane %v1209, 4
  %1753 = vst [vmem:[%s1739 + $0xa] sm:$0x1] %v1751
  %v1754 = vrot.slane %v1209, 5
  %1756 = vst [vmem:[%s1739 + $0x3] sm:$0x1] %v1754
  %v1757 = vrot.slane %v1209, 6
  %1759 = vst [vmem:[%s1739 + $0xb] sm:$0x1] %v1757
  %v1760 = vrot.slane %v1209, 7
  %1762 = vst [vmem:[%s1739 + $0x4] sm:$0x1] %v1760
  %s1763 = scalar_lea.vmem [#allocation2], 416
  %1764 = vst [vmem:[%s1763 + $0x8] sm:$0x1] %v1210
  %v1766 = vrot.slane %v1210, 1
  %1768 = vst [vmem:[%s1763 + $0x1] sm:$0x1] %v1766
  %v1769 = vrot.slane %v1210, 2
  %1771 = vst [vmem:[%s1763 + $0x9] sm:$0x1] %v1769
  %v1772 = vrot.slane %v1210, 3
  %1774 = vst [vmem:[%s1763 + $0x2] sm:$0x1] %v1772
  %v1775 = vrot.slane %v1210, 4
  %1777 = vst [vmem:[%s1763 + $0xa] sm:$0x1] %v1775
  %v1778 = vrot.slane %v1210, 5
  %1780 = vst [vmem:[%s1763 + $0x3] sm:$0x1] %v1778
  %v1781 = vrot.slane %v1210, 6
  %1783 = vst [vmem:[%s1763 + $0xb] sm:$0x1] %v1781
  %v1784 = vrot.slane %v1210, 7
  %1786 = vst [vmem:[%s1763 + $0x4] sm:$0x1] %v1784
  %v1787 = vld [vmem:[#allocation2] sm:$0xf]
  %v1788 = vld [vmem:[#allocation2 + $0x8] sm:$0xf]
  %v1789 = vld [vmem:[#allocation2] sm:$0x1e]
  %v1790 = vld [vmem:[%s1211] sm:$0xf]
  %v1791 = vld [vmem:[%s1211 + $0x8] sm:$0xf]
  %v1792 = vld [vmem:[%s1211] sm:$0x1e]
  %v1793 = vld [vmem:[%s1235] sm:$0xf]
  %v1794 = vld [vmem:[%s1235 + $0x8] sm:$0xf]
  %v1795 = vld [vmem:[%s1235] sm:$0x1e]
  %v1797 = vrot.slane %v1789, 1
  %v1800 = vrot.slane %v1792, 1
  %v1803 = vrot.slane %v1795, 1
  %1805 = vst [vmem:[#allocation5] sm:$0xf] %v1787
  %1806 = vst [vmem:[#allocation5 + $0x8] sm:$0xf] %v1788
  %1807 = vst [vmem:[#allocation5 + $0x10] sm:$0xf] %v1797
  %1808 = vst [vmem:[#allocation5 + $0x18] sm:$0xf] %v1790
  %1809 = vst [vmem:[#allocation5 + $0x20] sm:$0xf] %v1791
  %1810 = vst [vmem:[#allocation5 + $0x28] sm:$0xf] %v1800
  %1811 = vst [vmem:[#allocation5 + $0x30] sm:$0xf] %v1793
  %1812 = vst [vmem:[#allocation5 + $0x38] sm:$0xf] %v1794
  %1813 = vst [vmem:[#allocation5 + $0x40] sm:$0xf] %v1803
  %v1814 = vld [vmem:[%s1235] sm:$0xf]
  %v1815 = vld [vmem:[%s1235 + $0x8] sm:$0xf]
  %v1816 = vld [vmem:[%s1235] sm:$0x1e]
  %v1817 = vld [vmem:[%s1259] sm:$0xf]
  %v1818 = vld [vmem:[%s1259 + $0x8] sm:$0xf]
  %v1819 = vld [vmem:[%s1259] sm:$0x1e]
  %v1820 = vld [vmem:[%s1283] sm:$0xf]
  %v1821 = vld [vmem:[%s1283 + $0x8] sm:$0xf]
  %v1822 = vld [vmem:[%s1283] sm:$0x1e]
  %v1824 = vrot.slane %v1816, 1
  %v1826 = vrot.slane %v1819, 1
  %v1828 = vrot.slane %v1822, 1
  %v1835 = vrot.slane %v1814, 4
  %v1836 = vrot.slane %v1815, 4
  %v1837 = vrot.slane %v1824, 4
  %v1838 = vrot.slane %v1817, 4
  %v1839 = vrot.slane %v1818, 4
  %v1840 = vrot.slane %v1826, 4
  %v1841 = vrot.slane %v1820, 4
  %v1842 = vrot.slane %v1821, 4
  %v1843 = vrot.slane %v1828, 4
  %1853 = vst [vmem:[#allocation5] sm:$0xf0] %v1835
  %1854 = vst [vmem:[#allocation5 + $0x8] sm:$0xf0] %v1836
  %1855 = vst [vmem:[#allocation5 + $0x10] sm:$0xf0] %v1837
  %1856 = vst [vmem:[#allocation5 + $0x18] sm:$0xf0] %v1838
  %1857 = vst [vmem:[#allocation5 + $0x20] sm:$0xf0] %v1839
  %1858 = vst [vmem:[#allocation5 + $0x28] sm:$0xf0] %v1840
  %1859 = vst [vmem:[#allocation5 + $0x30] sm:$0xf0] %v1841
  %1860 = vst [vmem:[#allocation5 + $0x38] sm:$0xf0] %v1842
  %1861 = vst [vmem:[#allocation5 + $0x40] sm:$0xf0] %v1843
  %v1862 = vld [vmem:[%s1283] sm:$0xf]
  %v1863 = vld [vmem:[%s1283 + $0x8] sm:$0xf]
  %v1864 = vld [vmem:[%s1283] sm:$0x1e]
  %v1865 = vld [vmem:[%s1307] sm:$0xf]
  %v1866 = vld [vmem:[%s1307 + $0x8] sm:$0xf]
  %v1867 = vld [vmem:[%s1307] sm:$0x1e]
  %v1868 = vld [vmem:[%s1331] sm:$0xf]
  %v1869 = vld [vmem:[%s1331 + $0x8] sm:$0xf]
  %v1870 = vld [vmem:[%s1331] sm:$0x1e]
  %v1872 = vrot.slane %v1864, 1
  %v1875 = vrot.slane %v1867, 1
  %v1878 = vrot.slane %v1870, 1
  %1880 = vst [vmem:[#allocation5 + $0x48] sm:$0xf] %v1862
  %1881 = vst [vmem:[#allocation5 + $0x50] sm:$0xf] %v1863
  %1882 = vst [vmem:[#allocation5 + $0x58] sm:$0xf] %v1872
  %1883 = vst [vmem:[#allocation5 + $0x60] sm:$0xf] %v1865
  %1884 = vst [vmem:[#allocation5 + $0x68] sm:$0xf] %v1866
  %1885 = vst [vmem:[#allocation5 + $0x70] sm:$0xf] %v1875
  %1886 = vst [vmem:[#allocation5 + $0x78] sm:$0xf] %v1868
  %1887 = vst [vmem:[#allocation5 + $0x80] sm:$0xf] %v1869
  %1888 = vst [vmem:[#allocation5 + $0x88] sm:$0xf] %v1878
  %v1889 = vld [vmem:[%s1331] sm:$0xf]
  %v1890 = vld [vmem:[%s1331 + $0x8] sm:$0xf]
  %v1891 = vld [vmem:[%s1331] sm:$0x1e]
  %v1892 = vld [vmem:[%s1355] sm:$0xf]
  %v1893 = vld [vmem:[%s1355 + $0x8] sm:$0xf]
  %v1894 = vld [vmem:[%s1355] sm:$0x1e]
  %v1895 = vld [vmem:[%s1379] sm:$0xf]
  %v1896 = vld [vmem:[%s1379 + $0x8] sm:$0xf]
  %v1897 = vld [vmem:[%s1379] sm:$0x1e]
  %v1899 = vrot.slane %v1891, 1
  %v1901 = vrot.slane %v1894, 1
  %v1903 = vrot.slane %v1897, 1
  %v1910 = vrot.slane %v1889, 4
  %v1911 = vrot.slane %v1890, 4
  %v1912 = vrot.slane %v1899, 4
  %v1913 = vrot.slane %v1892, 4
  %v1914 = vrot.slane %v1893, 4
  %v1915 = vrot.slane %v1901, 4
  %v1916 = vrot.slane %v1895, 4
  %v1917 = vrot.slane %v1896, 4
  %v1918 = vrot.slane %v1903, 4
  %1928 = vst [vmem:[#allocation5 + $0x48] sm:$0xf0] %v1910
  %1929 = vst [vmem:[#allocation5 + $0x50] sm:$0xf0] %v1911
  %1930 = vst [vmem:[#allocation5 + $0x58] sm:$0xf0] %v1912
  %1931 = vst [vmem:[#allocation5 + $0x60] sm:$0xf0] %v1913
  %1932 = vst [vmem:[#allocation5 + $0x68] sm:$0xf0] %v1914
  %1933 = vst [vmem:[#allocation5 + $0x70] sm:$0xf0] %v1915
  %1934 = vst [vmem:[#allocation5 + $0x78] sm:$0xf0] %v1916
  %1935 = vst [vmem:[#allocation5 + $0x80] sm:$0xf0] %v1917
  %1936 = vst [vmem:[#allocation5 + $0x88] sm:$0xf0] %v1918
  %v1937 = vld [vmem:[%s1379] sm:$0xf]
  %v1938 = vld [vmem:[%s1379 + $0x8] sm:$0xf]
  %v1939 = vld [vmem:[%s1379] sm:$0x1e]
  %v1940 = vld [vmem:[%s1403] sm:$0xf]
  %v1941 = vld [vmem:[%s1403 + $0x8] sm:$0xf]
  %v1942 = vld [vmem:[%s1403] sm:$0x1e]
  %v1943 = vld [vmem:[%s1427] sm:$0xf]
  %v1944 = vld [vmem:[%s1427 + $0x8] sm:$0xf]
  %v1945 = vld [vmem:[%s1427] sm:$0x1e]
  %v1947 = vrot.slane %v1939, 1
  %v1950 = vrot.slane %v1942, 1
  %v1953 = vrot.slane %v1945, 1
  %1955 = vst [vmem:[#allocation5 + $0x90] sm:$0xf] %v1937
  %1956 = vst [vmem:[#allocation5 + $0x98] sm:$0xf] %v1938
  %1957 = vst [vmem:[#allocation5 + $0xa0] sm:$0xf] %v1947
  %1958 = vst [vmem:[#allocation5 + $0xa8] sm:$0xf] %v1940
  %1959 = vst [vmem:[#allocation5 + $0xb0] sm:$0xf] %v1941
  %1960 = vst [vmem:[#allocation5 + $0xb8] sm:$0xf] %v1950
  %1961 = vst [vmem:[#allocation5 + $0xc0] sm:$0xf] %v1943
  %1962 = vst [vmem:[#allocation5 + $0xc8] sm:$0xf] %v1944
  %1963 = vst [vmem:[#allocation5 + $0xd0] sm:$0xf] %v1953
  %v1964 = vld [vmem:[%s1427] sm:$0xf]
  %v1965 = vld [vmem:[%s1427 + $0x8] sm:$0xf]
  %v1966 = vld [vmem:[%s1427] sm:$0x1e]
  %v1967 = vld [vmem:[%s1451] sm:$0xf]
  %v1968 = vld [vmem:[%s1451 + $0x8] sm:$0xf]
  %v1969 = vld [vmem:[%s1451] sm:$0x1e]
  %v1970 = vld [vmem:[%s1475] sm:$0xf]
  %v1971 = vld [vmem:[%s1475 + $0x8] sm:$0xf]
  %v1972 = vld [vmem:[%s1475] sm:$0x1e]
  %v1974 = vrot.slane %v1966, 1
  %v1976 = vrot.slane %v1969, 1
  %v1978 = vrot.slane %v1972, 1
  %v1985 = vrot.slane %v1964, 4
  %v1986 = vrot.slane %v1965, 4
  %v1987 = vrot.slane %v1974, 4
  %v1988 = vrot.slane %v1967, 4
  %v1989 = vrot.slane %v1968, 4
  %v1990 = vrot.slane %v1976, 4
  %v1991 = vrot.slane %v1970, 4
  %v1992 = vrot.slane %v1971, 4
  %v1993 = vrot.slane %v1978, 4
  %2003 = vst [vmem:[#allocation5 + $0x90] sm:$0xf0] %v1985
  %2004 = vst [vmem:[#allocation5 + $0x98] sm:$0xf0] %v1986
  %2005 = vst [vmem:[#allocation5 + $0xa0] sm:$0xf0] %v1987
  %2006 = vst [vmem:[#allocation5 + $0xa8] sm:$0xf0] %v1988
  %2007 = vst [vmem:[#allocation5 + $0xb0] sm:$0xf0] %v1989
  %2008 = vst [vmem:[#allocation5 + $0xb8] sm:$0xf0] %v1990
  %2009 = vst [vmem:[#allocation5 + $0xc0] sm:$0xf0] %v1991
  %2010 = vst [vmem:[#allocation5 + $0xc8] sm:$0xf0] %v1992
  %2011 = vst [vmem:[#allocation5 + $0xd0] sm:$0xf0] %v1993
  %s2012 = scalar_lea.vmem [#allocation2], 224
  %v2013 = vld [vmem:[%s2012] sm:$0xf]
  %v2014 = vld [vmem:[%s2012 + $0x8] sm:$0xf]
  %v2015 = vld [vmem:[%s2012] sm:$0x1e]
  %v2016 = vld [vmem:[%s1499] sm:$0xf]
  %v2017 = vld [vmem:[%s1499 + $0x8] sm:$0xf]
  %v2018 = vld [vmem:[%s1499] sm:$0x1e]
  %v2019 = vld [vmem:[%s1523] sm:$0xf]
  %v2020 = vld [vmem:[%s1523 + $0x8] sm:$0xf]
  %v2021 = vld [vmem:[%s1523] sm:$0x1e]
  %v2023 = vrot.slane %v2015, 1
  %v2026 = vrot.slane %v2018, 1
  %v2029 = vrot.slane %v2021, 1
  %2031 = vst [vmem:[#allocation5 + $0xd8] sm:$0xf] %v2013
  %2032 = vst [vmem:[#allocation5 + $0xe0] sm:$0xf] %v2014
  %2033 = vst [vmem:[#allocation5 + $0xe8] sm:$0xf] %v2023
  %2034 = vst [vmem:[#allocation5 + $0xf0] sm:$0xf] %v2016
  %2035 = vst [vmem:[#allocation5 + $0xf8] sm:$0xf] %v2017
  %2036 = vst [vmem:[#allocation5 + $0x100] sm:$0xf] %v2026
  %2037 = vst [vmem:[#allocation5 + $0x108] sm:$0xf] %v2019
  %2038 = vst [vmem:[#allocation5 + $0x110] sm:$0xf] %v2020
  %2039 = vst [vmem:[#allocation5 + $0x118] sm:$0xf] %v2029
  %v2040 = vld [vmem:[%s1523] sm:$0xf]
  %v2041 = vld [vmem:[%s1523 + $0x8] sm:$0xf]
  %v2042 = vld [vmem:[%s1523] sm:$0x1e]
  %v2043 = vld [vmem:[%s1547] sm:$0xf]
  %v2044 = vld [vmem:[%s1547 + $0x8] sm:$0xf]
  %v2045 = vld [vmem:[%s1547] sm:$0x1e]
  %v2046 = vld [vmem:[%s1571] sm:$0xf]
  %v2047 = vld [vmem:[%s1571 + $0x8] sm:$0xf]
  %v2048 = vld [vmem:[%s1571] sm:$0x1e]
  %v2050 = vrot.slane %v2042, 1
  %v2052 = vrot.slane %v2045, 1
  %v2054 = vrot.slane %v2048, 1
  %v2061 = vrot.slane %v2040, 4
  %v2062 = vrot.slane %v2041, 4
  %v2063 = vrot.slane %v2050, 4
  %v2064 = vrot.slane %v2043, 4
  %v2065 = vrot.slane %v2044, 4
  %v2066 = vrot.slane %v2052, 4
  %v2067 = vrot.slane %v2046, 4
  %v2068 = vrot.slane %v2047, 4
  %v2069 = vrot.slane %v2054, 4
  %2079 = vst [vmem:[#allocation5 + $0xd8] sm:$0xf0] %v2061
  %2080 = vst [vmem:[#allocation5 + $0xe0] sm:$0xf0] %v2062
  %2081 = vst [vmem:[#allocation5 + $0xe8] sm:$0xf0] %v2063
  %2082 = vst [vmem:[#allocation5 + $0xf0] sm:$0xf0] %v2064
  %2083 = vst [vmem:[#allocation5 + $0xf8] sm:$0xf0] %v2065
  %2084 = vst [vmem:[#allocation5 + $0x100] sm:$0xf0] %v2066
  %2085 = vst [vmem:[#allocation5 + $0x108] sm:$0xf0] %v2067
  %2086 = vst [vmem:[#allocation5 + $0x110] sm:$0xf0] %v2068
  %2087 = vst [vmem:[#allocation5 + $0x118] sm:$0xf0] %v2069
  %v2088 = vld [vmem:[%s1571] sm:$0xf]
  %v2089 = vld [vmem:[%s1571 + $0x8] sm:$0xf]
  %v2090 = vld [vmem:[%s1571] sm:$0x1e]
  %v2091 = vld [vmem:[%s1595] sm:$0xf]
  %v2092 = vld [vmem:[%s1595 + $0x8] sm:$0xf]
  %v2093 = vld [vmem:[%s1595] sm:$0x1e]
  %v2094 = vld [vmem:[%s1619] sm:$0xf]
  %v2095 = vld [vmem:[%s1619 + $0x8] sm:$0xf]
  %v2096 = vld [vmem:[%s1619] sm:$0x1e]
  %v2098 = vrot.slane %v2090, 1
  %v2101 = vrot.slane %v2093, 1
  %v2104 = vrot.slane %v2096, 1
  %2106 = vst [vmem:[#allocation5 + $0x120] sm:$0xf] %v2088
  %2107 = vst [vmem:[#allocation5 + $0x128] sm:$0xf] %v2089
  %2108 = vst [vmem:[#allocation5 + $0x130] sm:$0xf] %v2098
  %2109 = vst [vmem:[#allocation5 + $0x138] sm:$0xf] %v2091
  %2110 = vst [vmem:[#allocation5 + $0x140] sm:$0xf] %v2092
  %2111 = vst [vmem:[#allocation5 + $0x148] sm:$0xf] %v2101
  %2112 = vst [vmem:[#allocation5 + $0x150] sm:$0xf] %v2094
  %2113 = vst [vmem:[#allocation5 + $0x158] sm:$0xf] %v2095
  %2114 = vst [vmem:[#allocation5 + $0x160] sm:$0xf] %v2104
  %v2115 = vld [vmem:[%s1619] sm:$0xf]
  %v2116 = vld [vmem:[%s1619 + $0x8] sm:$0xf]
  %v2117 = vld [vmem:[%s1619] sm:$0x1e]
  %v2118 = vld [vmem:[%s1643] sm:$0xf]
  %v2119 = vld [vmem:[%s1643 + $0x8] sm:$0xf]
  %v2120 = vld [vmem:[%s1643] sm:$0x1e]
  %v2121 = vld [vmem:[%s1667] sm:$0xf]
  %v2122 = vld [vmem:[%s1667 + $0x8] sm:$0xf]
  %v2123 = vld [vmem:[%s1667] sm:$0x1e]
  %v2125 = vrot.slane %v2117, 1
  %v2127 = vrot.slane %v2120, 1
  %v2129 = vrot.slane %v2123, 1
  %v2136 = vrot.slane %v2115, 4
  %v2137 = vrot.slane %v2116, 4
  %v2138 = vrot.slane %v2125, 4
  %v2139 = vrot.slane %v2118, 4
  %v2140 = vrot.slane %v2119, 4
  %v2141 = vrot.slane %v2127, 4
  %v2142 = vrot.slane %v2121, 4
  %v2143 = vrot.slane %v2122, 4
  %v2144 = vrot.slane %v2129, 4
  %2154 = vst [vmem:[#allocation5 + $0x120] sm:$0xf0] %v2136
  %2155 = vst [vmem:[#allocation5 + $0x128] sm:$0xf0] %v2137
  %2156 = vst [vmem:[#allocation5 + $0x130] sm:$0xf0] %v2138
  %2157 = vst [vmem:[#allocation5 + $0x138] sm:$0xf0] %v2139
  %2158 = vst [vmem:[#allocation5 + $0x140] sm:$0xf0] %v2140
  %2159 = vst [vmem:[#allocation5 + $0x148] sm:$0xf0] %v2141
  %2160 = vst [vmem:[#allocation5 + $0x150] sm:$0xf0] %v2142
  %2161 = vst [vmem:[#allocation5 + $0x158] sm:$0xf0] %v2143
  %2162 = vst [vmem:[#allocation5 + $0x160] sm:$0xf0] %v2144
  %v2163 = vld [vmem:[%s1667] sm:$0xf]
  %v2164 = vld [vmem:[%s1667 + $0x8] sm:$0xf]
  %v2165 = vld [vmem:[%s1667] sm:$0x1e]
  %v2166 = vld [vmem:[%s1691] sm:$0xf]
  %v2167 = vld [vmem:[%s1691 + $0x8] sm:$0xf]
  %v2168 = vld [vmem:[%s1691] sm:$0x1e]
  %v2169 = vld [vmem:[%s1715] sm:$0xf]
  %v2170 = vld [vmem:[%s1715 + $0x8] sm:$0xf]
  %v2171 = vld [vmem:[%s1715] sm:$0x1e]
  %v2173 = vrot.slane %v2165, 1
  %v2176 = vrot.slane %v2168, 1
  %v2179 = vrot.slane %v2171, 1
  %2181 = vst [vmem:[#allocation5 + $0x168] sm:$0xf] %v2163
  %2182 = vst [vmem:[#allocation5 + $0x170] sm:$0xf] %v2164
  %2183 = vst [vmem:[#allocation5 + $0x178] sm:$0xf] %v2173
  %2184 = vst [vmem:[#allocation5 + $0x180] sm:$0xf] %v2166
  %2185 = vst [vmem:[#allocation5 + $0x188] sm:$0xf] %v2167
  %2186 = vst [vmem:[#allocation5 + $0x190] sm:$0xf] %v2176
  %2187 = vst [vmem:[#allocation5 + $0x198] sm:$0xf] %v2169
  %2188 = vst [vmem:[#allocation5 + $0x1a0] sm:$0xf] %v2170
  %2189 = vst [vmem:[#allocation5 + $0x1a8] sm:$0xf] %v2179
  %v2190 = vld [vmem:[%s1715] sm:$0xf]
  %v2191 = vld [vmem:[%s1715 + $0x8] sm:$0xf]
  %v2192 = vld [vmem:[%s1715] sm:$0x1e]
  %v2193 = vld [vmem:[%s1739] sm:$0xf]
  %v2194 = vld [vmem:[%s1739 + $0x8] sm:$0xf]
  %v2195 = vld [vmem:[%s1739] sm:$0x1e]
  %v2196 = vld [vmem:[%s1763] sm:$0xf]
  %v2197 = vld [vmem:[%s1763 + $0x8] sm:$0xf]
  %v2198 = vld [vmem:[%s1763] sm:$0x1e]
  %v2200 = vrot.slane %v2192, 1
  %v2202 = vrot.slane %v2195, 1
  %v2204 = vrot.slane %v2198, 1
  %v2211 = vrot.slane %v2190, 4
  %v2212 = vrot.slane %v2191, 4
  %v2213 = vrot.slane %v2200, 4
  %v2214 = vrot.slane %v2193, 4
  %v2215 = vrot.slane %v2194, 4
  %v2216 = vrot.slane %v2202, 4
  %v2217 = vrot.slane %v2196, 4
  %v2218 = vrot.slane %v2197, 4
  %v2219 = vrot.slane %v2204, 4
  %2229 = vst [vmem:[#allocation5 + $0x168] sm:$0xf0] %v2211
  %2230 = vst [vmem:[#allocation5 + $0x170] sm:$0xf0] %v2212
  %2231 = vst [vmem:[#allocation5 + $0x178] sm:$0xf0] %v2213
  %2232 = vst [vmem:[#allocation5 + $0x180] sm:$0xf0] %v2214
  %2233 = vst [vmem:[#allocation5 + $0x188] sm:$0xf0] %v2215
  %2234 = vst [vmem:[#allocation5 + $0x190] sm:$0xf0] %v2216
  %2235 = vst [vmem:[#allocation5 + $0x198] sm:$0xf0] %v2217
  %2236 = vst [vmem:[#allocation5 + $0x1a0] sm:$0xf0] %v2218
  %2237 = vst [vmem:[#allocation5 + $0x1a8] sm:$0xf0] %v2219
  %v2238 = vld [vmem:[#allocation5] sm:$0xff]
  %v2239 = vld [vmem:[#allocation5 + $0x8] sm:$0xff]
  %v2240 = vld [vmem:[#allocation5 + $0x10] sm:$0xff]
  %v2241 = vld [vmem:[#allocation5 + $0x18] sm:$0xff]
  %v2242 = vld [vmem:[#allocation5 + $0x20] sm:$0xff]
  %v2243 = vld [vmem:[#allocation5 + $0x28] sm:$0xff]
  %v2244 = vld [vmem:[#allocation5 + $0x30] sm:$0xff]
  %v2245 = vld [vmem:[#allocation5 + $0x38] sm:$0xff]
  %v2246 = vld [vmem:[#allocation5 + $0x40] sm:$0xff]
  %v2247 = vld [vmem:[#allocation5 + $0x48] sm:$0xff]
  %v2248 = vld [vmem:[#allocation5 + $0x50] sm:$0xff]
  %v2249 = vld [vmem:[#allocation5 + $0x58] sm:$0xff]
  %v2250 = vld [vmem:[#allocation5 + $0x60] sm:$0xff]
  %v2251 = vld [vmem:[#allocation5 + $0x68] sm:$0xff]
  %v2252 = vld [vmem:[#allocation5 + $0x70] sm:$0xff]
  %v2253 = vld [vmem:[#allocation5 + $0x78] sm:$0xff]
  %v2254 = vld [vmem:[#allocation5 + $0x80] sm:$0xff]
  %v2255 = vld [vmem:[#allocation5 + $0x88] sm:$0xff]
  %v2256 = vld [vmem:[#allocation5 + $0x90] sm:$0xff]
  %v2257 = vld [vmem:[#allocation5 + $0x98] sm:$0xff]
  %v2258 = vld [vmem:[#allocation5 + $0xa0] sm:$0xff]
  %v2259 = vld [vmem:[#allocation5 + $0xa8] sm:$0xff]
  %v2260 = vld [vmem:[#allocation5 + $0xb0] sm:$0xff]
  %v2261 = vld [vmem:[#allocation5 + $0xb8] sm:$0xff]
  %v2262 = vld [vmem:[#allocation5 + $0xc0] sm:$0xff]
  %v2263 = vld [vmem:[#allocation5 + $0xc8] sm:$0xff]
  %v2264 = vld [vmem:[#allocation5 + $0xd0] sm:$0xff]
  %v2265 = vld [vmem:[#allocation5 + $0xd8] sm:$0xff]
  %v2266 = vld [vmem:[#allocation5 + $0xe0] sm:$0xff]
  %v2267 = vld [vmem:[#allocation5 + $0xe8] sm:$0xff]
  %v2268 = vld [vmem:[#allocation5 + $0xf0] sm:$0xff]
  %v2269 = vld [vmem:[#allocation5 + $0xf8] sm:$0xff]
  %v2270 = vld [vmem:[#allocation5 + $0x100] sm:$0xff]
  %v2271 = vld [vmem:[#allocation5 + $0x108] sm:$0xff]
  %v2272 = vld [vmem:[#allocation5 + $0x110] sm:$0xff]
  %v2273 = vld [vmem:[#allocation5 + $0x118] sm:$0xff]
  %v2274 = vld [vmem:[#allocation5 + $0x120] sm:$0xff]
  %v2275 = vld [vmem:[#allocation5 + $0x128] sm:$0xff]
  %v2276 = vld [vmem:[#allocation5 + $0x130] sm:$0xff]
  %v2277 = vld [vmem:[#allocation5 + $0x138] sm:$0xff]
  %v2278 = vld [vmem:[#allocation5 + $0x140] sm:$0xff]
  %v2279 = vld [vmem:[#allocation5 + $0x148] sm:$0xff]
  %v2280 = vld [vmem:[#allocation5 + $0x150] sm:$0xff]
  %v2281 = vld [vmem:[#allocation5 + $0x158] sm:$0xff]
  %v2282 = vld [vmem:[#allocation5 + $0x160] sm:$0xff]
  %v2283 = vld [vmem:[#allocation5 + $0x168] sm:$0xff]
  %v2284 = vld [vmem:[#allocation5 + $0x170] sm:$0xff]
  %v2285 = vld [vmem:[#allocation5 + $0x178] sm:$0xff]
  %v2286 = vld [vmem:[#allocation5 + $0x180] sm:$0xff]
  %v2287 = vld [vmem:[#allocation5 + $0x188] sm:$0xff]
  %v2288 = vld [vmem:[#allocation5 + $0x190] sm:$0xff]
  %v2289 = vld [vmem:[#allocation5 + $0x198] sm:$0xff]
  %v2290 = vld [vmem:[#allocation5 + $0x1a0] sm:$0xff]
  %v2291 = vld [vmem:[#allocation5 + $0x1a8] sm:$0xff]
  %v2292 = vpack.c.bf16 %v2247, %v2238
  %v2293 = vpack.c.bf16 %v2248, %v2239
  %v2294 = vpack.c.bf16 %v2249, %v2240
  %v2295 = vpack.c.bf16 %v2250, %v2241
  %v2296 = vpack.c.bf16 %v2251, %v2242
  %v2297 = vpack.c.bf16 %v2252, %v2243
  %v2298 = vpack.c.bf16 %v2253, %v2244
  %v2299 = vpack.c.bf16 %v2254, %v2245
  %v2300 = vpack.c.bf16 %v2255, %v2246
  %v2301 = vpack.c.bf16 %v2265, %v2256
  %v2302 = vpack.c.bf16 %v2266, %v2257
  %v2303 = vpack.c.bf16 %v2267, %v2258
  %v2304 = vpack.c.bf16 %v2268, %v2259
  %v2305 = vpack.c.bf16 %v2269, %v2260
  %v2306 = vpack.c.bf16 %v2270, %v2261
  %v2307 = vpack.c.bf16 %v2271, %v2262
  %v2308 = vpack.c.bf16 %v2272, %v2263
  %v2309 = vpack.c.bf16 %v2273, %v2264
  %v2310 = vpack.c.bf16 %v2283, %v2274
  %v2311 = vpack.c.bf16 %v2284, %v2275
  %v2312 = vpack.c.bf16 %v2285, %v2276
  %v2313 = vpack.c.bf16 %v2286, %v2277
  %v2314 = vpack.c.bf16 %v2287, %v2278
  %v2315 = vpack.c.bf16 %v2288, %v2279
  %v2316 = vpack.c.bf16 %v2289, %v2280
  %v2317 = vpack.c.bf16 %v2290, %v2281
  %v2318 = vpack.c.bf16 %v2291, %v2282
  %v2319 = vld [vmem:[%s2] sm:$0xf]
  %v2320 = vld [vmem:[%s2 + $0x4] sm:$0xf]
  %v2321 = vld [vmem:[%s2 + $0x8] sm:$0xf]
  %v2322 = vld [vmem:[%s2 + $0xc] sm:$0xf]
  %v2323 = vld [vmem:[%s2 + $0x10] sm:$0xf]
  %v2324 = vld [vmem:[%s2 + $0x14] sm:$0xf]
  %v2325 = vld [vmem:[%s2 + $0x18] sm:$0xf]
  %v2326 = vld [vmem:[%s2 + $0x1c] sm:$0xf]
  %v2327 = vld [vmem:[%s2 + $0x20] sm:$0xf]
  %v2328 = vld [vmem:[%s2 + $0x24] sm:$0xf]
  %v2329 = vld [vmem:[%s2 + $0x28] sm:$0xf]
  %v2330 = vld [vmem:[%s2 + $0x2c] sm:$0xf]
  %v2331 = vld [vmem:[%s2 + $0x30] sm:$0xf]
  %v2332 = vld [vmem:[%s2 + $0x34] sm:$0xf]
  %v2333 = vld [vmem:[%s2 + $0x38] sm:$0xf]
  %v2334 = vld [vmem:[%s2 + $0x3c] sm:$0xf]
  %v2335 = vld [vmem:[%s2 + $0x40] sm:$0xf]
  %v2336 = vld [vmem:[%s2 + $0x44] sm:$0xf]
  %v2337 = vld [vmem:[%s2 + $0x48] sm:$0xf]
  %v2338 = vld [vmem:[%s2 + $0x4c] sm:$0xf]
  %v2339 = vld [vmem:[%s2 + $0x50] sm:$0xf]
  %v2340 = vld [vmem:[%s2 + $0x54] sm:$0xf]
  %v2341 = vld [vmem:[%s2 + $0x58] sm:$0xf]
  %v2342 = vld [vmem:[%s2 + $0x5c] sm:$0xf]
  %v2343 = vld [vmem:[%s2 + $0x60] sm:$0xf]
  %v2344 = vld [vmem:[%s2 + $0x64] sm:$0xf]
  %v2345 = vld [vmem:[%s2 + $0x68] sm:$0xf]
  %v2346 = vld [vmem:[%s2 + $0x6c] sm:$0xf]
  %v2347 = vld [vmem:[%s2 + $0x70] sm:$0xf]
  %v2348 = vld [vmem:[%s2 + $0x74] sm:$0xf]
  %v2349 = vld [vmem:[%s2 + $0x78] sm:$0xf]
  %v2350 = vld [vmem:[%s2 + $0x7c] sm:$0xf]
  %v2351 = vld [vmem:[%s2 + $0x80] sm:$0xf]
  %v2352 = vld [vmem:[%s2 + $0x84] sm:$0xf]
  %v2353 = vld [vmem:[%s2 + $0x88] sm:$0xf]
  %v2354 = vld [vmem:[%s2 + $0x8c] sm:$0xf]
  %v2355 = vld [vmem:[%s2 + $0x90] sm:$0xf]
  %v2356 = vld [vmem:[%s2 + $0x94] sm:$0xf]
  %v2357 = vld [vmem:[%s2 + $0x98] sm:$0xf]
  %v2358 = vld [vmem:[%s2 + $0x9c] sm:$0xf]
  %v2359 = vld [vmem:[%s2 + $0xa0] sm:$0xf]
  %v2360 = vld [vmem:[%s2 + $0xa4] sm:$0xf]
  %v2361 = vld [vmem:[%s2 + $0xa8] sm:$0xf]
  %v2362 = vld [vmem:[%s2 + $0xac] sm:$0xf]
  %v2363 = vld [vmem:[%s2 + $0xb0] sm:$0xf]
  %v2364 = vld [vmem:[%s2 + $0xb4] sm:$0xf]
  %v2365 = vld [vmem:[%s2 + $0xb8] sm:$0xf]
  %v2366 = vld [vmem:[%s2 + $0xbc] sm:$0xf]
  %v2367 = vld [vmem:[%s2 + $0xc0] sm:$0xf]
  %v2368 = vld [vmem:[%s2 + $0xc4] sm:$0xf]
  %v2369 = vld [vmem:[%s2 + $0xc8] sm:$0xf]
  %v2370 = vld [vmem:[%s2 + $0xcc] sm:$0xf]
  %v2371 = vld [vmem:[%s2 + $0xd0] sm:$0xf]
  %v2372 = vld [vmem:[%s2 + $0xd4] sm:$0xf]
  %v2373 = vld [vmem:[%s2 + $0xd8] sm:$0xf]
  %v2374 = vld [vmem:[%s2 + $0xdc] sm:$0xf]
  %v2375 = vld [vmem:[%s2 + $0xe0] sm:$0xf]
  %v2376 = vld [vmem:[%s2 + $0xe4] sm:$0xf]
  %v2377 = vld [vmem:[%s2 + $0xe8] sm:$0xf]
  %v2378 = vld [vmem:[%s2 + $0xec] sm:$0xf]
  %v2379 = vld [vmem:[%s2 + $0xf0] sm:$0xf]
  %v2380 = vld [vmem:[%s2 + $0xf4] sm:$0xf]
  %v2381 = vld [vmem:[%s2 + $0xf8] sm:$0xf]
  %v2382 = vld [vmem:[%s2 + $0xfc] sm:$0xf]
  %v2383 = vld [vmem:[%s2 + $0x100] sm:$0xf]
  %v2384 = vld [vmem:[%s2 + $0x104] sm:$0xf]
  %v2385 = vld [vmem:[%s2 + $0x108] sm:$0xf]
  %v2386 = vld [vmem:[%s2 + $0x10c] sm:$0xf]
  %v2387 = vld [vmem:[%s2 + $0x110] sm:$0xf]
  %v2388 = vld [vmem:[%s2 + $0x114] sm:$0xf]
  %v2389 = vld [vmem:[%s2 + $0x118] sm:$0xf]
  %v2390 = vld [vmem:[%s2 + $0x11c] sm:$0xf]
  %v2391 = vld [vmem:[%s2 + $0x120] sm:$0xf]
  %v2392 = vld [vmem:[%s2 + $0x124] sm:$0xf]
  %v2393 = vld [vmem:[%s2 + $0x128] sm:$0xf]
  %v2394 = vld [vmem:[%s2 + $0x12c] sm:$0xf]
  %v2395 = vld [vmem:[%s2 + $0x130] sm:$0xf]
  %v2396 = vld [vmem:[%s2 + $0x134] sm:$0xf]
  %v2397 = vld [vmem:[%s2 + $0x138] sm:$0xf]
  %v2398 = vld [vmem:[%s2 + $0x13c] sm:$0xf]
  %v2399 = vld [vmem:[%s2 + $0x140] sm:$0xf]
  %v2400 = vld [vmem:[%s2 + $0x144] sm:$0xf]
  %v2401 = vld [vmem:[%s2 + $0x148] sm:$0xf]
  %v2402 = vld [vmem:[%s2 + $0x14c] sm:$0xf]
  %v2403 = vld [vmem:[%s2 + $0x150] sm:$0xf]
  %v2404 = vld [vmem:[%s2 + $0x154] sm:$0xf]
  %v2405 = vld [vmem:[%s2 + $0x158] sm:$0xf]
  %v2406 = vld [vmem:[%s2 + $0x15c] sm:$0xf]
  %v2407 = vld [vmem:[%s2 + $0x160] sm:$0xf]
  %v2408 = vld [vmem:[%s2 + $0x164] sm:$0xf]
  %v2409 = vld [vmem:[%s2 + $0x168] sm:$0xf]
  %v2410 = vld [vmem:[%s2 + $0x16c] sm:$0xf]
  %v2411 = vld [vmem:[%s2 + $0x170] sm:$0xf]
  %v2412 = vld [vmem:[%s2 + $0x174] sm:$0xf]
  %v2413 = vld [vmem:[%s2 + $0x178] sm:$0xf]
  %v2414 = vld [vmem:[%s2 + $0x17c] sm:$0xf]
  %v2415 = vld [vmem:[%s2 + $0x180] sm:$0xf]
  %v2416 = vld [vmem:[%s2 + $0x184] sm:$0xf]
  %v2417 = vld [vmem:[%s2 + $0x188] sm:$0xf]
  %v2418 = vld [vmem:[%s2 + $0x18c] sm:$0xf]
  %v2419 = vld [vmem:[%s2 + $0x190] sm:$0xf]
  %v2420 = vld [vmem:[%s2 + $0x194] sm:$0xf]
  %v2421 = vld [vmem:[%s2 + $0x198] sm:$0xf]
  %v2422 = vld [vmem:[%s2 + $0x19c] sm:$0xf]
  %v2423 = vld [vmem:[%s2 + $0x1a0] sm:$0xf]
  %v2424 = vld [vmem:[%s2 + $0x1a4] sm:$0xf]
  %v2425 = vld [vmem:[%s2 + $0x1a8] sm:$0xf]
  %v2426 = vld [vmem:[%s2 + $0x1ac] sm:$0xf]
  %v2427 = vld [vmem:[%s2 + $0x1b0] sm:$0xf]
  %v2428 = vld [vmem:[%s2 + $0x1b4] sm:$0xf]
  %v2429 = vld [vmem:[%s2 + $0x1b8] sm:$0xf]
  %v2430 = vld [vmem:[%s2 + $0x1bc] sm:$0xf]
  %v2431 = vld [vmem:[%s2 + $0x1c0] sm:$0xf]
  %v2432 = vld [vmem:[%s2 + $0x1c4] sm:$0xf]
  %v2433 = vld [vmem:[%s2 + $0x1c8] sm:$0xf]
  %v2434 = vld [vmem:[%s2 + $0x1cc] sm:$0xf]
  %v2435 = vld [vmem:[%s2 + $0x1d0] sm:$0xf]
  %v2436 = vld [vmem:[%s2 + $0x1d4] sm:$0xf]
  %v2437 = vld [vmem:[%s2 + $0x1d8] sm:$0xf]
  %v2438 = vld [vmem:[%s2 + $0x1dc] sm:$0xf]
  %v2439 = vld [vmem:[%s2 + $0x1e0] sm:$0xf]
  %v2440 = vld [vmem:[%s2 + $0x1e4] sm:$0xf]
  %v2441 = vld [vmem:[%s2 + $0x1e8] sm:$0xf]
  %v2442 = vld [vmem:[%s2 + $0x1ec] sm:$0xf]
  %v2443 = vld [vmem:[%s2 + $0x1f0] sm:$0xf]
  %v2444 = vld [vmem:[%s2 + $0x1f4] sm:$0xf]
  %v2445 = vld [vmem:[%s2 + $0x1f8] sm:$0xf]
  %v2446 = vld [vmem:[%s2 + $0x1fc] sm:$0xf]
  %v2447 = vld [vmem:[%s2 + $0x200] sm:$0xf]
  %v2448 = vld [vmem:[%s2 + $0x204] sm:$0xf]
  %v2449 = vld [vmem:[%s2 + $0x208] sm:$0xf]
  %v2450 = vld [vmem:[%s2 + $0x20c] sm:$0xf]
  %v2451 = vld [vmem:[%s2 + $0x210] sm:$0xf]
  %v2452 = vld [vmem:[%s2 + $0x214] sm:$0xf]
  %v2453 = vld [vmem:[%s2 + $0x218] sm:$0xf]
  %v2454 = vld [vmem:[%s2 + $0x21c] sm:$0xf]
  %v2455 = vld [vmem:[%s2 + $0x220] sm:$0xf]
  %v2456 = vld [vmem:[%s2 + $0x224] sm:$0xf]
  %v2457 = vld [vmem:[%s2 + $0x228] sm:$0xf]
  %v2458 = vld [vmem:[%s2 + $0x22c] sm:$0xf]
  %v2459 = vld [vmem:[%s2 + $0x230] sm:$0xf]
  %v2460 = vld [vmem:[%s2 + $0x234] sm:$0xf]
  %v2461 = vld [vmem:[%s2 + $0x238] sm:$0xf]
  %v2462 = vld [vmem:[%s2 + $0x23c] sm:$0xf]
  %v2607 = vunpack.c.l.b16 %v2319
  %v2608 = vunpack.c.l.b16 %v2320
  %v2609 = vunpack.c.l.b16 %v2321
  %v2610 = vunpack.c.l.b16 %v2322
  %v2611 = vunpack.c.l.b16 %v2323
  %v2612 = vunpack.c.l.b16 %v2324
  %v2613 = vunpack.c.l.b16 %v2325
  %v2614 = vunpack.c.l.b16 %v2326
  %v2615 = vunpack.c.l.b16 %v2327
  %v2616 = vunpack.c.l.b16 %v2328
  %v2617 = vunpack.c.l.b16 %v2329
  %v2618 = vunpack.c.l.b16 %v2330
  %v2619 = vunpack.c.l.b16 %v2331
  %v2620 = vunpack.c.l.b16 %v2332
  %v2621 = vunpack.c.l.b16 %v2333
  %v2622 = vunpack.c.l.b16 %v2334
  %v2623 = vunpack.c.l.b16 %v2335
  %v2624 = vunpack.c.l.b16 %v2336
  %v2625 = vunpack.c.l.b16 %v2337
  %v2626 = vunpack.c.l.b16 %v2338
  %v2627 = vunpack.c.l.b16 %v2339
  %v2628 = vunpack.c.l.b16 %v2340
  %v2629 = vunpack.c.l.b16 %v2341
  %v2630 = vunpack.c.l.b16 %v2342
  %v2631 = vunpack.c.l.b16 %v2343
  %v2632 = vunpack.c.l.b16 %v2344
  %v2633 = vunpack.c.l.b16 %v2345
  %v2634 = vunpack.c.l.b16 %v2346
  %v2635 = vunpack.c.l.b16 %v2347
  %v2636 = vunpack.c.l.b16 %v2348
  %v2637 = vunpack.c.l.b16 %v2349
  %v2638 = vunpack.c.l.b16 %v2350
  %v2639 = vunpack.c.l.b16 %v2351
  %v2640 = vunpack.c.l.b16 %v2352
  %v2641 = vunpack.c.l.b16 %v2353
  %v2642 = vunpack.c.l.b16 %v2354
  %v2643 = vunpack.c.l.b16 %v2355
  %v2644 = vunpack.c.l.b16 %v2356
  %v2645 = vunpack.c.l.b16 %v2357
  %v2646 = vunpack.c.l.b16 %v2358
  %v2647 = vunpack.c.l.b16 %v2359
  %v2648 = vunpack.c.l.b16 %v2360
  %v2649 = vunpack.c.l.b16 %v2361
  %v2650 = vunpack.c.l.b16 %v2362
  %v2651 = vunpack.c.l.b16 %v2363
  %v2652 = vunpack.c.l.b16 %v2364
  %v2653 = vunpack.c.l.b16 %v2365
  %v2654 = vunpack.c.l.b16 %v2366
  %v2655 = vunpack.c.l.b16 %v2367
  %v2656 = vunpack.c.l.b16 %v2368
  %v2657 = vunpack.c.l.b16 %v2369
  %v2658 = vunpack.c.l.b16 %v2370
  %v2659 = vunpack.c.l.b16 %v2371
  %v2660 = vunpack.c.l.b16 %v2372
  %v2661 = vunpack.c.l.b16 %v2373
  %v2662 = vunpack.c.l.b16 %v2374
  %v2663 = vunpack.c.l.b16 %v2375
  %v2664 = vunpack.c.l.b16 %v2376
  %v2665 = vunpack.c.l.b16 %v2377
  %v2666 = vunpack.c.l.b16 %v2378
  %v2667 = vunpack.c.l.b16 %v2379
  %v2668 = vunpack.c.l.b16 %v2380
  %v2669 = vunpack.c.l.b16 %v2381
  %v2670 = vunpack.c.l.b16 %v2382
  %v2671 = vunpack.c.l.b16 %v2383
  %v2672 = vunpack.c.l.b16 %v2384
  %v2673 = vunpack.c.l.b16 %v2385
  %v2674 = vunpack.c.l.b16 %v2386
  %v2675 = vunpack.c.l.b16 %v2387
  %v2676 = vunpack.c.l.b16 %v2388
  %v2677 = vunpack.c.l.b16 %v2389
  %v2678 = vunpack.c.l.b16 %v2390
  %v2679 = vunpack.c.l.b16 %v2391
  %v2680 = vunpack.c.l.b16 %v2392
  %v2681 = vunpack.c.l.b16 %v2393
  %v2682 = vunpack.c.l.b16 %v2394
  %v2683 = vunpack.c.l.b16 %v2395
  %v2684 = vunpack.c.l.b16 %v2396
  %v2685 = vunpack.c.l.b16 %v2397
  %v2686 = vunpack.c.l.b16 %v2398
  %v2687 = vunpack.c.l.b16 %v2399
  %v2688 = vunpack.c.l.b16 %v2400
  %v2689 = vunpack.c.l.b16 %v2401
  %v2690 = vunpack.c.l.b16 %v2402
  %v2691 = vunpack.c.l.b16 %v2403
  %v2692 = vunpack.c.l.b16 %v2404
  %v2693 = vunpack.c.l.b16 %v2405
  %v2694 = vunpack.c.l.b16 %v2406
  %v2695 = vunpack.c.l.b16 %v2407
  %v2696 = vunpack.c.l.b16 %v2408
  %v2697 = vunpack.c.l.b16 %v2409
  %v2698 = vunpack.c.l.b16 %v2410
  %v2699 = vunpack.c.l.b16 %v2411
  %v2700 = vunpack.c.l.b16 %v2412
  %v2701 = vunpack.c.l.b16 %v2413
  %v2702 = vunpack.c.l.b16 %v2414
  %v2703 = vunpack.c.l.b16 %v2415
  %v2704 = vunpack.c.l.b16 %v2416
  %v2705 = vunpack.c.l.b16 %v2417
  %v2706 = vunpack.c.l.b16 %v2418
  %v2707 = vunpack.c.l.b16 %v2419
  %v2708 = vunpack.c.l.b16 %v2420
  %v2709 = vunpack.c.l.b16 %v2421
  %v2710 = vunpack.c.l.b16 %v2422
  %v2711 = vunpack.c.l.b16 %v2423
  %v2712 = vunpack.c.l.b16 %v2424
  %v2713 = vunpack.c.l.b16 %v2425
  %v2714 = vunpack.c.l.b16 %v2426
  %v2715 = vunpack.c.l.b16 %v2427
  %v2716 = vunpack.c.l.b16 %v2428
  %v2717 = vunpack.c.l.b16 %v2429
  %v2718 = vunpack.c.l.b16 %v2430
  %v2719 = vunpack.c.l.b16 %v2431
  %v2720 = vunpack.c.l.b16 %v2432
  %v2721 = vunpack.c.l.b16 %v2433
  %v2722 = vunpack.c.l.b16 %v2434
  %v2723 = vunpack.c.l.b16 %v2435
  %v2724 = vunpack.c.l.b16 %v2436
  %v2725 = vunpack.c.l.b16 %v2437
  %v2726 = vunpack.c.l.b16 %v2438
  %v2727 = vunpack.c.l.b16 %v2439
  %v2728 = vunpack.c.l.b16 %v2440
  %v2729 = vunpack.c.l.b16 %v2441
  %v2730 = vunpack.c.l.b16 %v2442
  %v2731 = vunpack.c.l.b16 %v2443
  %v2732 = vunpack.c.l.b16 %v2444
  %v2733 = vunpack.c.l.b16 %v2445
  %v2734 = vunpack.c.l.b16 %v2446
  %v2735 = vunpack.c.l.b16 %v2447
  %v2736 = vunpack.c.l.b16 %v2448
  %v2737 = vunpack.c.l.b16 %v2449
  %v2738 = vunpack.c.l.b16 %v2450
  %v2739 = vunpack.c.l.b16 %v2451
  %v2740 = vunpack.c.l.b16 %v2452
  %v2741 = vunpack.c.l.b16 %v2453
  %v2742 = vunpack.c.l.b16 %v2454
  %v2743 = vunpack.c.l.b16 %v2455
  %v2744 = vunpack.c.l.b16 %v2456
  %v2745 = vunpack.c.l.b16 %v2457
  %v2746 = vunpack.c.l.b16 %v2458
  %v2747 = vunpack.c.l.b16 %v2459
  %v2748 = vunpack.c.l.b16 %v2460
  %v2749 = vunpack.c.l.b16 %v2461
  %v2750 = vunpack.c.l.b16 %v2462
  %v2751 = vpack.c.b16 %v2608, %v2607
  %v2752 = vpack.c.b16 %v2610, %v2609
  %v2753 = vpack.c.b16 %v2612, %v2611
  %v2754 = vpack.c.b16 %v2614, %v2613
  %v2755 = vpack.c.b16 %v2616, %v2615
  %v2756 = vpack.c.b16 %v2618, %v2617
  %v2757 = vpack.c.b16 %v2620, %v2619
  %v2758 = vpack.c.b16 %v2622, %v2621
  %v2759 = vpack.c.b16 %v2624, %v2623
  %v2760 = vpack.c.b16 %v2626, %v2625
  %v2761 = vpack.c.b16 %v2628, %v2627
  %v2762 = vpack.c.b16 %v2630, %v2629
  %v2763 = vpack.c.b16 %v2632, %v2631
  %v2764 = vpack.c.b16 %v2634, %v2633
  %v2765 = vpack.c.b16 %v2636, %v2635
  %v2766 = vpack.c.b16 %v2638, %v2637
  %v2767 = vpack.c.b16 %v2640, %v2639
  %v2768 = vpack.c.b16 %v2642, %v2641
  %v2769 = vpack.c.b16 %v2644, %v2643
  %v2770 = vpack.c.b16 %v2646, %v2645
  %v2771 = vpack.c.b16 %v2648, %v2647
  %v2772 = vpack.c.b16 %v2650, %v2649
  %v2773 = vpack.c.b16 %v2652, %v2651
  %v2774 = vpack.c.b16 %v2654, %v2653
  %v2775 = vpack.c.b16 %v2656, %v2655
  %v2776 = vpack.c.b16 %v2658, %v2657
  %v2777 = vpack.c.b16 %v2660, %v2659
  %v2778 = vpack.c.b16 %v2662, %v2661
  %v2779 = vpack.c.b16 %v2664, %v2663
  %v2780 = vpack.c.b16 %v2666, %v2665
  %v2781 = vpack.c.b16 %v2668, %v2667
  %v2782 = vpack.c.b16 %v2670, %v2669
  %v2783 = vpack.c.b16 %v2672, %v2671
  %v2784 = vpack.c.b16 %v2674, %v2673
  %v2785 = vpack.c.b16 %v2676, %v2675
  %v2786 = vpack.c.b16 %v2678, %v2677
  %v2787 = vpack.c.b16 %v2680, %v2679
  %v2788 = vpack.c.b16 %v2682, %v2681
  %v2789 = vpack.c.b16 %v2684, %v2683
  %v2790 = vpack.c.b16 %v2686, %v2685
  %v2791 = vpack.c.b16 %v2688, %v2687
  %v2792 = vpack.c.b16 %v2690, %v2689
  %v2793 = vpack.c.b16 %v2692, %v2691
  %v2794 = vpack.c.b16 %v2694, %v2693
  %v2795 = vpack.c.b16 %v2696, %v2695
  %v2796 = vpack.c.b16 %v2698, %v2697
  %v2797 = vpack.c.b16 %v2700, %v2699
  %v2798 = vpack.c.b16 %v2702, %v2701
  %v2799 = vpack.c.b16 %v2704, %v2703
  %v2800 = vpack.c.b16 %v2706, %v2705
  %v2801 = vpack.c.b16 %v2708, %v2707
  %v2802 = vpack.c.b16 %v2710, %v2709
  %v2803 = vpack.c.b16 %v2712, %v2711
  %v2804 = vpack.c.b16 %v2714, %v2713
  %v2805 = vpack.c.b16 %v2716, %v2715
  %v2806 = vpack.c.b16 %v2718, %v2717
  %v2807 = vpack.c.b16 %v2720, %v2719
  %v2808 = vpack.c.b16 %v2722, %v2721
  %v2809 = vpack.c.b16 %v2724, %v2723
  %v2810 = vpack.c.b16 %v2726, %v2725
  %v2811 = vpack.c.b16 %v2728, %v2727
  %v2812 = vpack.c.b16 %v2730, %v2729
  %v2813 = vpack.c.b16 %v2732, %v2731
  %v2814 = vpack.c.b16 %v2734, %v2733
  %v2815 = vpack.c.b16 %v2736, %v2735
  %v2816 = vpack.c.b16 %v2738, %v2737
  %v2817 = vpack.c.b16 %v2740, %v2739
  %v2818 = vpack.c.b16 %v2742, %v2741
  %v2819 = vpack.c.b16 %v2744, %v2743
  %v2820 = vpack.c.b16 %v2746, %v2745
  %v2821 = vpack.c.b16 %v2748, %v2747
  %v2822 = vpack.c.b16 %v2750, %v2749
  %2895 = vmatprep.subr.bf16.mxu0 0
  %2896 = vmatpush1.bf16.msra.mxu0 %v2751
  %2897 = vmatprep.subr.bf16.mxu0 0
  %2898 = vmatpush1.bf16.msra.mxu0 %v2752
  %2899 = vmatprep.subr.bf16.mxu0 0
  %2900 = vmatpush1.bf16.msra.mxu0 %v2753
  %2901 = vmatprep.subr.bf16.mxu0 0
  %2902 = vmatpush1.bf16.msra.mxu0 %v2754
  %2903 = vmatprep.subr.bf16.mxu0 0
  %2904 = vmatpush1.bf16.msra.mxu0 %v2755
  %2905 = vmatprep.subr.bf16.mxu0 0
  %2906 = vmatpush1.bf16.msra.mxu0 %v2756
  %2907 = vmatprep.subr.bf16.mxu0 0
  %2908 = vmatpush1.bf16.msra.mxu0 %v2757
  %2909 = vmatprep.subr.bf16.mxu0 0
  %2910 = vmatpush1.bf16.msra.mxu0 %v2758
  %2911 = vmatprep.subr.bf16.mxu0 0
  %2912 = vmatpush1.bf16.msra.mxu0 %v2759
  %2913 = vmatprep.subr.bf16.mxu0 0
  %2914 = vmatpush1.bf16.msra.mxu0 %v2760
  %2915 = vmatprep.subr.bf16.mxu0 0
  %2916 = vmatpush1.bf16.msra.mxu0 %v2761
  %2917 = vmatprep.subr.bf16.mxu0 0
  %2918 = vmatpush1.bf16.msra.mxu0 %v2762
  %2919 = vmatprep.subr.bf16.mxu0 0
  %2920 = vmatpush1.bf16.msra.mxu0 %v2763
  %2921 = vmatprep.subr.bf16.mxu0 0
  %2922 = vmatpush1.bf16.msra.mxu0 %v2764
  %2923 = vmatprep.subr.bf16.mxu0 0
  %2924 = vmatpush1.bf16.msra.mxu0 %v2765
  %2925 = vmatprep.subr.bf16.mxu0 0
  %2926 = vmatpush1.bf16.msra.mxu0 %v2766
  %2927 = vmatprep.mubr.bf16.mxu0 %v2293
  %2928 = vmatmul.mubr.bf16.gmra.mrb[0].mxu0 %v2292
  %v2929 = vpop.f32.mrb[0].mxu0
  %v2930 = vadd.f32 0.0, %v2929
  %v2931 = vpop.f32.mrb[0].mxu0
  %v2932 = vpop.f32.mrb[0].mxu0
  %v2933 = vadd.f32 0.0, %v2932
  %v2934 = vpop.f32.mrb[0].mxu0
  %2935 = vmatprep.mubr.bf16.mxu0 %v2302
  %2936 = vmatmul.mubr.bf16.gmra.mrb[0].mxu0 %v2301
  %v2937 = vpop.f32.mrb[0].mxu0
  %v2938 = vadd.f32 0.0, %v2937
  %v2939 = vpop.f32.mrb[0].mxu0
  %v2940 = vpop.f32.mrb[0].mxu0
  %v2941 = vadd.f32 0.0, %v2940
  %v2942 = vpop.f32.mrb[0].mxu0
  %2943 = vmatprep.mubr.bf16.mxu0 %v2311
  %2944 = vmatmul.mubr.bf16.gmra.mrb[0].mxu0 %v2310
  %v2945 = vpop.f32.mrb[0].mxu0
  %v2946 = vadd.f32 0.0, %v2945
  %v2947 = vpop.f32.mrb[0].mxu0
  %v2948 = vpop.f32.mrb[0].mxu0
  %v2949 = vadd.f32 0.0, %v2948
  %v2950 = vpop.f32.mrb[0].mxu0
  %2951 = vdwg.mxu0
  %2952 = vmatprep.subr.bf16.mxu0 0
  %2953 = vmatpush1.bf16.msra.mxu0 %v2767
  %2954 = vmatprep.subr.bf16.mxu0 0
  %2955 = vmatpush1.bf16.msra.mxu0 %v2768
  %2956 = vmatprep.subr.bf16.mxu0 0
  %2957 = vmatpush1.bf16.msra.mxu0 %v2769
  %2958 = vmatprep.subr.bf16.mxu0 0
  %2959 = vmatpush1.bf16.msra.mxu0 %v2770
  %2960 = vmatprep.subr.bf16.mxu0 0
  %2961 = vmatpush1.bf16.msra.mxu0 %v2771
  %2962 = vmatprep.subr.bf16.mxu0 0
  %2963 = vmatpush1.bf16.msra.mxu0 %v2772
  %2964 = vmatprep.subr.bf16.mxu0 0
  %2965 = vmatpush1.bf16.msra.mxu0 %v2773
  %2966 = vmatprep.subr.bf16.mxu0 0
  %2967 = vmatpush1.bf16.msra.mxu0 %v2774
  %2968 = vmatprep.subr.bf16.mxu0 0
  %2969 = vmatpush1.bf16.msra.mxu0 %v2775
  %2970 = vmatprep.subr.bf16.mxu0 0
  %2971 = vmatpush1.bf16.msra.mxu0 %v2776
  %2972 = vmatprep.subr.bf16.mxu0 0
  %2973 = vmatpush1.bf16.msra.mxu0 %v2777
  %2974 = vmatprep.subr.bf16.mxu0 0
  %2975 = vmatpush1.bf16.msra.mxu0 %v2778
  %2976 = vmatprep.subr.bf16.mxu0 0
  %2977 = vmatpush1.bf16.msra.mxu0 %v2779
  %2978 = vmatprep.subr.bf16.mxu0 0
  %2979 = vmatpush1.bf16.msra.mxu0 %v2780
  %2980 = vmatprep.subr.bf16.mxu0 0
  %2981 = vmatpush1.bf16.msra.mxu0 %v2781
  %2982 = vmatprep.subr.bf16.mxu0 0
  %2983 = vmatpush1.bf16.msra.mxu0 %v2782
  %2984 = vmatprep.mubr.bf16.mxu0 %v2295
  %2985 = vmatmul.mubr.bf16.gmra.mrb[0].mxu0 %v2294
  %v2986 = vpop.f32.mrb[0].mxu0
  %v2987 = vadd.f32 %v2930, %v2986
  %v2988 = vpop.f32.mrb[0].mxu0
  %v2989 = vpop.f32.mrb[0].mxu0
  %v2990 = vadd.f32 %v2933, %v2989
  %v2991 = vpop.f32.mrb[0].mxu0
  %2992 = vmatprep.mubr.bf16.mxu0 %v2304
  %2993 = vmatmul.mubr.bf16.gmra.mrb[0].mxu0 %v2303
  %v2994 = vpop.f32.mrb[0].mxu0
  %v2995 = vadd.f32 %v2938, %v2994
  %v2996 = vpop.f32.mrb[0].mxu0
  %v2997 = vpop.f32.mrb[0].mxu0
  %v2998 = vadd.f32 %v2941, %v2997
  %v2999 = vpop.f32.mrb[0].mxu0
  %3000 = vmatprep.mubr.bf16.mxu0 %v2313
  %3001 = vmatmul.mubr.bf16.gmra.mrb[0].mxu0 %v2312
  %v3002 = vpop.f32.mrb[0].mxu0
  %v3003 = vadd.f32 %v2946, %v3002
  %v3004 = vpop.f32.mrb[0].mxu0
  %v3005 = vpop.f32.mrb[0].mxu0
  %v3006 = vadd.f32 %v2949, %v3005
  %v3007 = vpop.f32.mrb[0].mxu0
  %3008 = vdwg.mxu0
  %3009 = vmatprep.subr.bf16.mxu0 0
  %3010 = vmatpush1.bf16.msra.mxu0 %v2783
  %3011 = vmatprep.subr.bf16.mxu0 0
  %3012 = vmatpush1.bf16.msra.mxu0 %v2784
  %3013 = vmatprep.subr.bf16.mxu0 0
  %3014 = vmatpush1.bf16.msra.mxu0 %v2785
  %3015 = vmatprep.subr.bf16.mxu0 0
  %3016 = vmatpush1.bf16.msra.mxu0 %v2786
  %3017 = vmatprep.subr.bf16.mxu0 0
  %3018 = vmatpush1.bf16.msra.mxu0 %v2787
  %3019 = vmatprep.subr.bf16.mxu0 0
  %3020 = vmatpush1.bf16.msra.mxu0 %v2788
  %3021 = vmatprep.subr.bf16.mxu0 0
  %3022 = vmatpush1.bf16.msra.mxu0 %v2789
  %3023 = vmatprep.subr.bf16.mxu0 0
  %3024 = vmatpush1.bf16.msra.mxu0 %v2790
  %3025 = vmatprep.subr.bf16.mxu0 0
  %3026 = vmatpush1.bf16.msra.mxu0 %v2791
  %3027 = vmatprep.subr.bf16.mxu0 0
  %3028 = vmatpush1.bf16.msra.mxu0 %v2792
  %3029 = vmatprep.subr.bf16.mxu0 0
  %3030 = vmatpush1.bf16.msra.mxu0 %v2793
  %3031 = vmatprep.subr.bf16.mxu0 0
  %3032 = vmatpush1.bf16.msra.mxu0 %v2794
  %3033 = vmatprep.subr.bf16.mxu0 0
  %3034 = vmatpush1.bf16.msra.mxu0 %v2795
  %3035 = vmatprep.subr.bf16.mxu0 0
  %3036 = vmatpush1.bf16.msra.mxu0 %v2796
  %3037 = vmatprep.subr.bf16.mxu0 0
  %3038 = vmatpush1.bf16.msra.mxu0 %v2797
  %3039 = vmatprep.subr.bf16.mxu0 0
  %3040 = vmatpush1.bf16.msra.mxu0 %v2798
  %3041 = vmatprep.mubr.bf16.mxu0 %v2297
  %3042 = vmatmul.mubr.bf16.gmra.mrb[0].mxu0 %v2296
  %v3043 = vpop.f32.mrb[0].mxu0
  %v3044 = vadd.f32 %v2987, %v3043
  %v3045 = vpop.f32.mrb[0].mxu0
  %v3046 = vpop.f32.mrb[0].mxu0
  %v3047 = vadd.f32 %v2990, %v3046
  %v3048 = vpop.f32.mrb[0].mxu0
  %3049 = vmatprep.mubr.bf16.mxu0 %v2306
  %3050 = vmatmul.mubr.bf16.gmra.mrb[0].mxu0 %v2305
  %v3051 = vpop.f32.mrb[0].mxu0
  %v3052 = vadd.f32 %v2995, %v3051
  %v3053 = vpop.f32.mrb[0].mxu0
  %v3054 = vpop.f32.mrb[0].mxu0
  %v3055 = vadd.f32 %v2998, %v3054
  %v3056 = vpop.f32.mrb[0].mxu0
  %3057 = vmatprep.mubr.bf16.mxu0 %v2315
  %3058 = vmatmul.mubr.bf16.gmra.mrb[0].mxu0 %v2314
  %v3059 = vpop.f32.mrb[0].mxu0
  %v3060 = vadd.f32 %v3003, %v3059
  %v3061 = vpop.f32.mrb[0].mxu0
  %v3062 = vpop.f32.mrb[0].mxu0
  %v3063 = vadd.f32 %v3006, %v3062
  %v3064 = vpop.f32.mrb[0].mxu0
  %3065 = vdwg.mxu0
  %3066 = vmatprep.subr.bf16.mxu0 0
  %3067 = vmatpush1.bf16.msra.mxu0 %v2799
  %3068 = vmatprep.subr.bf16.mxu0 0
  %3069 = vmatpush1.bf16.msra.mxu0 %v2800
  %3070 = vmatprep.subr.bf16.mxu0 0
  %3071 = vmatpush1.bf16.msra.mxu0 %v2801
  %3072 = vmatprep.subr.bf16.mxu0 0
  %3073 = vmatpush1.bf16.msra.mxu0 %v2802
  %3074 = vmatprep.subr.bf16.mxu0 0
  %3075 = vmatpush1.bf16.msra.mxu0 %v2803
  %3076 = vmatprep.subr.bf16.mxu0 0
  %3077 = vmatpush1.bf16.msra.mxu0 %v2804
  %3078 = vmatprep.subr.bf16.mxu0 0
  %3079 = vmatpush1.bf16.msra.mxu0 %v2805
  %3080 = vmatprep.subr.bf16.mxu0 0
  %3081 = vmatpush1.bf16.msra.mxu0 %v2806
  %3082 = vmatprep.subr.bf16.mxu0 0
  %3083 = vmatpush1.bf16.msra.mxu0 %v2807
  %3084 = vmatprep.subr.bf16.mxu0 0
  %3085 = vmatpush1.bf16.msra.mxu0 %v2808
  %3086 = vmatprep.subr.bf16.mxu0 0
  %3087 = vmatpush1.bf16.msra.mxu0 %v2809
  %3088 = vmatprep.subr.bf16.mxu0 0
  %3089 = vmatpush1.bf16.msra.mxu0 %v2810
  %3090 = vmatprep.subr.bf16.mxu0 0
  %3091 = vmatpush1.bf16.msra.mxu0 %v2811
  %3092 = vmatprep.subr.bf16.mxu0 0
  %3093 = vmatpush1.bf16.msra.mxu0 %v2812
  %3094 = vmatprep.subr.bf16.mxu0 0
  %3095 = vmatpush1.bf16.msra.mxu0 %v2813
  %3096 = vmatprep.subr.bf16.mxu0 0
  %3097 = vmatpush1.bf16.msra.mxu0 %v2814
  %3098 = vmatprep.mubr.bf16.mxu0 %v2299
  %3099 = vmatmul.mubr.bf16.gmra.mrb[0].mxu0 %v2298
  %v3100 = vpop.f32.mrb[0].mxu0
  %v3101 = vadd.f32 %v3044, %v3100
  %v3102 = vpop.f32.mrb[0].mxu0
  %v3103 = vpop.f32.mrb[0].mxu0
  %v3104 = vadd.f32 %v3047, %v3103
  %v3105 = vpop.f32.mrb[0].mxu0
  %3106 = vmatprep.mubr.bf16.mxu0 %v2308
  %3107 = vmatmul.mubr.bf16.gmra.mrb[0].mxu0 %v2307
  %v3108 = vpop.f32.mrb[0].mxu0
  %v3109 = vadd.f32 %v3052, %v3108
  %v3110 = vpop.f32.mrb[0].mxu0
  %v3111 = vpop.f32.mrb[0].mxu0
  %v3112 = vadd.f32 %v3055, %v3111
  %v3113 = vpop.f32.mrb[0].mxu0
  %3114 = vmatprep.mubr.bf16.mxu0 %v2317
  %3115 = vmatmul.mubr.bf16.gmra.mrb[0].mxu0 %v2316
  %v3116 = vpop.f32.mrb[0].mxu0
  %v3117 = vadd.f32 %v3060, %v3116
  %v3118 = vpop.f32.mrb[0].mxu0
  %v3119 = vpop.f32.mrb[0].mxu0
  %v3120 = vadd.f32 %v3063, %v3119
  %v3121 = vpop.f32.mrb[0].mxu0
  %3122 = vdwg.mxu0
  %3123 = vmatprep.subr.bf16.mxu0 0
  %3124 = vmatpush1.bf16.msra.mxu0 %v2815
  %3125 = vmatprep.subr.bf16.mxu0 0
  %3126 = vmatpush1.bf16.msra.mxu0 %v2816
  %3127 = vmatprep.subr.bf16.mxu0 0
  %3128 = vmatpush1.bf16.msra.mxu0 %v2817
  %3129 = vmatprep.subr.bf16.mxu0 0
  %3130 = vmatpush1.bf16.msra.mxu0 %v2818
  %3131 = vmatprep.subr.bf16.mxu0 0
  %3132 = vmatpush1.bf16.msra.mxu0 %v2819
  %3133 = vmatprep.subr.bf16.mxu0 0
  %3134 = vmatpush1.bf16.msra.mxu0 %v2820
  %3135 = vmatprep.subr.bf16.mxu0 0
  %3136 = vmatpush1.bf16.msra.mxu0 %v2821
  %3137 = vmatprep.subr.bf16.mxu0 0
  %3138 = vmatpush1.bf16.msra.mxu0 %v2822
  %3139 = vmatprep.subr.bf16.mxu0 0
  %3140 = vmatpush1.bf16.msra.mxu0 0
  %3141 = vmatprep.subr.bf16.mxu0 0
  %3142 = vmatpush1.bf16.msra.mxu0 0
  %3143 = vmatprep.subr.bf16.mxu0 0
  %3144 = vmatpush1.bf16.msra.mxu0 0
  %3145 = vmatprep.subr.bf16.mxu0 0
  %3146 = vmatpush1.bf16.msra.mxu0 0
  %3147 = vmatprep.subr.bf16.mxu0 0
  %3148 = vmatpush1.bf16.msra.mxu0 0
  %3149 = vmatprep.subr.bf16.mxu0 0
  %3150 = vmatpush1.bf16.msra.mxu0 0
  %3151 = vmatprep.subr.bf16.mxu0 0
  %3152 = vmatpush1.bf16.msra.mxu0 0
  %3153 = vmatprep.subr.bf16.mxu0 0
  %3154 = vmatpush1.bf16.msra.mxu0 0
  %3155 = vmatprep.mubr.bf16.mxu0 0
  %3156 = vmatmul.mubr.bf16.gmra.mrb[0].mxu0 %v2300
  %v3157 = vpop.f32.mrb[0].mxu0
  %v3158 = vadd.f32 %v3101, %v3157
  %v3159 = vpop.f32.mrb[0].mxu0
  %v3160 = vpop.f32.mrb[0].mxu0
  %v3161 = vadd.f32 %v3104, %v3160
  %v3162 = vpop.f32.mrb[0].mxu0
  %3163 = vmatprep.mubr.bf16.mxu0 0
  %3164 = vmatmul.mubr.bf16.gmra.mrb[0].mxu0 %v2309
  %v3165 = vpop.f32.mrb[0].mxu0
  %v3166 = vadd.f32 %v3109, %v3165
  %v3167 = vpop.f32.mrb[0].mxu0
  %v3168 = vpop.f32.mrb[0].mxu0
  %v3169 = vadd.f32 %v3112, %v3168
  %v3170 = vpop.f32.mrb[0].mxu0
  %3171 = vmatprep.mubr.bf16.mxu0 0
  %3172 = vmatmul.mubr.bf16.gmra.mrb[0].mxu0 %v2318
  %v3173 = vpop.f32.mrb[0].mxu0
  %v3174 = vadd.f32 %v3117, %v3173
  %v3175 = vpop.f32.mrb[0].mxu0
  %v3176 = vpop.f32.mrb[0].mxu0
  %v3177 = vadd.f32 %v3120, %v3176
  %v3178 = vpop.f32.mrb[0].mxu0
  %3179 = vdwg.mxu0
  %v3180 = vadd.f32 %v3158, %v3161
  %v3181 = vadd.f32 %v3180, %v3166
  %v3182 = vadd.f32 %v3181, %v3169
  %v3183 = vadd.f32 %v3182, %v3174
  %v3184 = vadd.f32 %v3183, %v3177
  %v3185 = vrot.slane %v3184, 4
  %v3186 = vadd.f32 %v3184, %v3185
  %v3187 = vrot.slane %v3186, 2
  %v3188 = vadd.f32 %v3186, %v3187
  %v3189 = vrot.slane %v3188, 1
  %v3190 = vadd.f32 %v3188, %v3189
  %v3191 = vmul.f32 %v3158, %v3158
  %v3192 = vmul.f32 %v3161, %v3161
  %v3193 = vmul.f32 %v3166, %v3166
  %v3194 = vmul.f32 %v3169, %v3169
  %v3195 = vmul.f32 %v3174, %v3174
  %v3196 = vmul.f32 %v3177, %v3177
  %v3197 = vadd.f32 %v3191, %v3192
  %v3198 = vadd.f32 %v3197, %v3193
  %v3199 = vadd.f32 %v3198, %v3194
  %v3200 = vadd.f32 %v3199, %v3195
  %v3201 = vadd.f32 %v3200, %v3196
  %v3202 = vrot.slane %v3201, 4
  %v3203 = vadd.f32 %v3201, %v3202
  %v3204 = vrot.slane %v3203, 2
  %v3205 = vadd.f32 %v3203, %v3204
  %v3206 = vrot.slane %v3205, 1
  %v3207 = vadd.f32 %v3205, %v3206
  %v3208 = vmul.f32 %v3190, 0.020833334
  %v3209 = vmul.f32 %v3207, 0.020833334
  %v3210 = vmul.f32 %v3208, %v3208
  %v3211 = vsub.f32 %v3209, %v3210
  %v3212 = vmax.f32 %v3211, 0.0
  %v3213 = vsub.f32 %v3158, %v3208
  %v3214 = vsub.f32 %v3161, %v3208
  %v3215 = vsub.f32 %v3166, %v3208
  %v3216 = vsub.f32 %v3169, %v3208
  %v3217 = vsub.f32 %v3174, %v3208
  %v3218 = vsub.f32 %v3177, %v3208
  %v3219 = vadd.f32 %v3212, 1e-05
  %v3220 = vrsqrt.pop %v3219
  %v3221 = vmul.f32 %v3213, %v3220
  %v3222 = vmul.f32 %v3214, %v3220
  %v3223 = vmul.f32 %v3215, %v3220
  %v3224 = vmul.f32 %v3216, %v3220
  %v3225 = vmul.f32 %v3217, %v3220
  %v3226 = vmul.f32 %v3218, %v3220
  %vm3227 = vcmp.ge.f32.partialorder %v3221, 0.0
  %vm3228 = vcmp.ge.f32.partialorder %v3222, 0.0
  %vm3229 = vcmp.ge.f32.partialorder %v3223, 0.0
  %vm3230 = vcmp.ge.f32.partialorder %v3224, 0.0
  %vm3231 = vcmp.ge.f32.partialorder %v3225, 0.0
  %vm3232 = vcmp.ge.f32.partialorder %v3226, 0.0
  %v3233 = vmul.f32 %v3221, 0.2
  %v3234 = vmul.f32 %v3222, 0.2
  %v3235 = vmul.f32 %v3223, 0.2
  %v3236 = vmul.f32 %v3224, 0.2
  %v3237 = vmul.f32 %v3225, 0.2
  %v3238 = vmul.f32 %v3226, 0.2
  %v3239 = vsel %vm3227, %v3221, %v3233
  %v3240 = vsel %vm3228, %v3222, %v3234
  %v3241 = vsel %vm3229, %v3223, %v3235
  %v3242 = vsel %vm3230, %v3224, %v3236
  %v3243 = vsel %vm3231, %v3225, %v3237
  %v3244 = vsel %vm3232, %v3226, %v3238
  %s3245 = scalar_lea.vmem [#allocation3], 8
  %3246 = vst [vmem:[%s3245 + $0x4] sm:$0x1] %v3239
  %v3248 = vrot.slane %v3239, 5
  %v3249 = vrot.slane %v3248, 4
  %3251 = vst [vmem:[%s3245 + $0x1] sm:$0x1] %v3249
  %v3252 = vrot.slane %v3239, 6
  %v3253 = vrot.slane %v3252, 4
  %3255 = vst [vmem:[%s3245 + $0x5] sm:$0x1] %v3253
  %v3256 = vrot.slane %v3239, 7
  %v3257 = vrot.slane %v3256, 4
  %3259 = vst [vmem:[%s3245 + $0x2] sm:$0x1] %v3257
  %v3260 = vcombine.high %v3239, %v3239
  %s3262 = scalar_lea.vmem [#allocation3], 16
  %3263 = vst [vmem:[%s3262 + $0x4] sm:$0x1] %v3260
  %v3264 = vrot.slane %v3260, 5
  %v3265 = vrot.slane %v3264, 4
  %3267 = vst [vmem:[%s3262 + $0x1] sm:$0x1] %v3265
  %v3268 = vrot.slane %v3260, 6
  %v3269 = vrot.slane %v3268, 4
  %3271 = vst [vmem:[%s3262 + $0x5] sm:$0x1] %v3269
  %v3272 = vrot.slane %v3260, 7
  %v3273 = vrot.slane %v3272, 4
  %3275 = vst [vmem:[%s3262 + $0x2] sm:$0x1] %v3273
  %s3276 = scalar_lea.vmem [#allocation3], 24
  %3277 = vst [vmem:[%s3276 + $0x4] sm:$0x1] %v3240
  %v3279 = vrot.slane %v3240, 5
  %v3280 = vrot.slane %v3279, 4
  %3282 = vst [vmem:[%s3276 + $0x1] sm:$0x1] %v3280
  %v3283 = vrot.slane %v3240, 6
  %v3284 = vrot.slane %v3283, 4
  %3286 = vst [vmem:[%s3276 + $0x5] sm:$0x1] %v3284
  %v3287 = vrot.slane %v3240, 7
  %v3288 = vrot.slane %v3287, 4
  %3290 = vst [vmem:[%s3276 + $0x2] sm:$0x1] %v3288
  %v3291 = vcombine.high %v3240, %v3240
  %s3293 = scalar_lea.vmem [#allocation3], 32
  %3294 = vst [vmem:[%s3293 + $0x4] sm:$0x1] %v3291
  %v3295 = vrot.slane %v3291, 5
  %v3296 = vrot.slane %v3295, 4
  %3298 = vst [vmem:[%s3293 + $0x1] sm:$0x1] %v3296
  %v3299 = vrot.slane %v3291, 6
  %v3300 = vrot.slane %v3299, 4
  %3302 = vst [vmem:[%s3293 + $0x5] sm:$0x1] %v3300
  %v3303 = vrot.slane %v3291, 7
  %v3304 = vrot.slane %v3303, 4
  %3306 = vst [vmem:[%s3293 + $0x2] sm:$0x1] %v3304
  %s3307 = scalar_lea.vmem [#allocation3], 40
  %3308 = vst [vmem:[%s3307 + $0x4] sm:$0x1] %v3241
  %v3310 = vrot.slane %v3241, 5
  %v3311 = vrot.slane %v3310, 4
  %3313 = vst [vmem:[%s3307 + $0x1] sm:$0x1] %v3311
  %v3314 = vrot.slane %v3241, 6
  %v3315 = vrot.slane %v3314, 4
  %3317 = vst [vmem:[%s3307 + $0x5] sm:$0x1] %v3315
  %v3318 = vrot.slane %v3241, 7
  %v3319 = vrot.slane %v3318, 4
  %3321 = vst [vmem:[%s3307 + $0x2] sm:$0x1] %v3319
  %v3322 = vcombine.high %v3241, %v3241
  %s3324 = scalar_lea.vmem [#allocation3], 48
  %3325 = vst [vmem:[%s3324 + $0x4] sm:$0x1] %v3322
  %v3326 = vrot.slane %v3322, 5
  %v3327 = vrot.slane %v3326, 4
  %3329 = vst [vmem:[%s3324 + $0x1] sm:$0x1] %v3327
  %v3330 = vrot.slane %v3322, 6
  %v3331 = vrot.slane %v3330, 4
  %3333 = vst [vmem:[%s3324 + $0x5] sm:$0x1] %v3331
  %v3334 = vrot.slane %v3322, 7
  %v3335 = vrot.slane %v3334, 4
  %3337 = vst [vmem:[%s3324 + $0x2] sm:$0x1] %v3335
  %s3338 = scalar_lea.vmem [#allocation3], 72
  %3339 = vst [vmem:[%s3338 + $0x4] sm:$0x1] %v3242
  %v3341 = vrot.slane %v3242, 5
  %v3342 = vrot.slane %v3341, 4
  %3344 = vst [vmem:[%s3338 + $0x1] sm:$0x1] %v3342
  %v3345 = vrot.slane %v3242, 6
  %v3346 = vrot.slane %v3345, 4
  %3348 = vst [vmem:[%s3338 + $0x5] sm:$0x1] %v3346
  %v3349 = vrot.slane %v3242, 7
  %v3350 = vrot.slane %v3349, 4
  %3352 = vst [vmem:[%s3338 + $0x2] sm:$0x1] %v3350
  %v3353 = vcombine.high %v3242, %v3242
  %s3355 = scalar_lea.vmem [#allocation3], 80
  %3356 = vst [vmem:[%s3355 + $0x4] sm:$0x1] %v3353
  %v3357 = vrot.slane %v3353, 5
  %v3358 = vrot.slane %v3357, 4
  %3360 = vst [vmem:[%s3355 + $0x1] sm:$0x1] %v3358
  %v3361 = vrot.slane %v3353, 6
  %v3362 = vrot.slane %v3361, 4
  %3364 = vst [vmem:[%s3355 + $0x5] sm:$0x1] %v3362
  %v3365 = vrot.slane %v3353, 7
  %v3366 = vrot.slane %v3365, 4
  %3368 = vst [vmem:[%s3355 + $0x2] sm:$0x1] %v3366
  %s3369 = scalar_lea.vmem [#allocation3], 88
  %3370 = vst [vmem:[%s3369 + $0x4] sm:$0x1] %v3243
  %v3372 = vrot.slane %v3243, 5
  %v3373 = vrot.slane %v3372, 4
  %3375 = vst [vmem:[%s3369 + $0x1] sm:$0x1] %v3373
  %v3376 = vrot.slane %v3243, 6
  %v3377 = vrot.slane %v3376, 4
  %3379 = vst [vmem:[%s3369 + $0x5] sm:$0x1] %v3377
  %v3380 = vrot.slane %v3243, 7
  %v3381 = vrot.slane %v3380, 4
  %3383 = vst [vmem:[%s3369 + $0x2] sm:$0x1] %v3381
  %v3384 = vcombine.high %v3243, %v3243
  %s3386 = scalar_lea.vmem [#allocation3], 96
  %3387 = vst [vmem:[%s3386 + $0x4] sm:$0x1] %v3384
  %v3388 = vrot.slane %v3384, 5
  %v3389 = vrot.slane %v3388, 4
  %3391 = vst [vmem:[%s3386 + $0x1] sm:$0x1] %v3389
  %v3392 = vrot.slane %v3384, 6
  %v3393 = vrot.slane %v3392, 4
  %3395 = vst [vmem:[%s3386 + $0x5] sm:$0x1] %v3393
  %v3396 = vrot.slane %v3384, 7
  %v3397 = vrot.slane %v3396, 4
  %3399 = vst [vmem:[%s3386 + $0x2] sm:$0x1] %v3397
  %s3400 = scalar_lea.vmem [#allocation3], 104
  %3401 = vst [vmem:[%s3400 + $0x4] sm:$0x1] %v3244
  %v3403 = vrot.slane %v3244, 5
  %v3404 = vrot.slane %v3403, 4
  %3406 = vst [vmem:[%s3400 + $0x1] sm:$0x1] %v3404
  %v3407 = vrot.slane %v3244, 6
  %v3408 = vrot.slane %v3407, 4
  %3410 = vst [vmem:[%s3400 + $0x5] sm:$0x1] %v3408
  %v3411 = vrot.slane %v3244, 7
  %v3412 = vrot.slane %v3411, 4
  %3414 = vst [vmem:[%s3400 + $0x2] sm:$0x1] %v3412
  %v3415 = vcombine.high %v3244, %v3244
  %s3417 = scalar_lea.vmem [#allocation3], 112
  %3418 = vst [vmem:[%s3417 + $0x4] sm:$0x1] %v3415
  %v3419 = vrot.slane %v3415, 5
  %v3420 = vrot.slane %v3419, 4
  %3422 = vst [vmem:[%s3417 + $0x1] sm:$0x1] %v3420
  %v3423 = vrot.slane %v3415, 6
  %v3424 = vrot.slane %v3423, 4
  %3426 = vst [vmem:[%s3417 + $0x5] sm:$0x1] %v3424
  %v3427 = vrot.slane %v3415, 7
  %v3428 = vrot.slane %v3427, 4
  %3430 = vst [vmem:[%s3417 + $0x2] sm:$0x1] %v3428
  %v3431 = vld [vmem:[#allocation3] sm:$0x33]
  %v3432 = vld [vmem:[#allocation3] sm:$0x6]
  %v3433 = vld [vmem:[%s3245] sm:$0x33]
  %v3434 = vld [vmem:[%s3245] sm:$0x6]
  %v3435 = vld [vmem:[%s3262] sm:$0x33]
  %v3436 = vld [vmem:[%s3262] sm:$0x6]
  %v3438 = vcombine.high %v3431, %v3431
  %v3441 = vrot.slane %v3432, 1
  %v3444 = vcombine.high %v3433, %v3433
  %v3447 = vrot.slane %v3434, 1
  %v3450 = vcombine.high %v3435, %v3435
  %v3453 = vrot.slane %v3436, 1
  %3455 = vst [vmem:[#allocation6] sm:$0x3] %v3431
  %3456 = vst [vmem:[#allocation6 + $0x8] sm:$0x3] %v3438
  %3457 = vst [vmem:[#allocation6 + $0x10] sm:$0x3] %v3441
  %3458 = vst [vmem:[#allocation6 + $0x18] sm:$0x3] %v3433
  %3459 = vst [vmem:[#allocation6 + $0x20] sm:$0x3] %v3444
  %3460 = vst [vmem:[#allocation6 + $0x28] sm:$0x3] %v3447
  %3461 = vst [vmem:[#allocation6 + $0x30] sm:$0x3] %v3435
  %3462 = vst [vmem:[#allocation6 + $0x38] sm:$0x3] %v3450
  %3463 = vst [vmem:[#allocation6 + $0x40] sm:$0x3] %v3453
  %v3464 = vld [vmem:[%s3262] sm:$0x33]
  %v3465 = vld [vmem:[%s3262] sm:$0x6]
  %v3466 = vld [vmem:[%s3276] sm:$0x33]
  %v3467 = vld [vmem:[%s3276] sm:$0x6]
  %v3468 = vld [vmem:[%s3293] sm:$0x33]
  %v3469 = vld [vmem:[%s3293] sm:$0x6]
  %v3471 = vcombine.high %v3464, %v3464
  %v3473 = vrot.slane %v3465, 1
  %v3475 = vcombine.high %v3466, %v3466
  %v3477 = vrot.slane %v3467, 1
  %v3479 = vcombine.high %v3468, %v3468
  %v3481 = vrot.slane %v3469, 1
  %v3482 = vrot.slane %v3464, 6
  %v3483 = vrot.slane %v3471, 6
  %v3484 = vrot.slane %v3473, 6
  %v3485 = vrot.slane %v3466, 6
  %v3486 = vrot.slane %v3475, 6
  %v3487 = vrot.slane %v3477, 6
  %v3488 = vrot.slane %v3468, 6
  %v3489 = vrot.slane %v3479, 6
  %v3490 = vrot.slane %v3481, 6
  %3500 = vst [vmem:[#allocation6] sm:$0xc] %v3482
  %3501 = vst [vmem:[#allocation6 + $0x8] sm:$0xc] %v3483
  %3502 = vst [vmem:[#allocation6 + $0x10] sm:$0xc] %v3484
  %3503 = vst [vmem:[#allocation6 + $0x18] sm:$0xc] %v3485
  %3504 = vst [vmem:[#allocation6 + $0x20] sm:$0xc] %v3486
  %3505 = vst [vmem:[#allocation6 + $0x28] sm:$0xc] %v3487
  %3506 = vst [vmem:[#allocation6 + $0x30] sm:$0xc] %v3488
  %3507 = vst [vmem:[#allocation6 + $0x38] sm:$0xc] %v3489
  %3508 = vst [vmem:[#allocation6 + $0x40] sm:$0xc] %v3490
  %v3509 = vld [vmem:[%s3293] sm:$0x33]
  %v3510 = vld [vmem:[%s3293] sm:$0x6]
  %v3511 = vld [vmem:[%s3307] sm:$0x33]
  %v3512 = vld [vmem:[%s3307] sm:$0x6]
  %v3513 = vld [vmem:[%s3324] sm:$0x33]
  %v3514 = vld [vmem:[%s3324] sm:$0x6]
  %v3516 = vcombine.high %v3509, %v3509
  %v3518 = vrot.slane %v3510, 1
  %v3520 = vcombine.high %v3511, %v3511
  %v3522 = vrot.slane %v3512, 1
  %v3524 = vcombine.high %v3513, %v3513
  %v3526 = vrot.slane %v3514, 1
  %v3527 = vrot.slane %v3509, 4
  %v3528 = vrot.slane %v3516, 4
  %v3529 = vrot.slane %v3518, 4
  %v3530 = vrot.slane %v3511, 4
  %v3531 = vrot.slane %v3520, 4
  %v3532 = vrot.slane %v3522, 4
  %v3533 = vrot.slane %v3513, 4
  %v3534 = vrot.slane %v3524, 4
  %v3535 = vrot.slane %v3526, 4
  %3545 = vst [vmem:[#allocation6] sm:$0x30] %v3527
  %3546 = vst [vmem:[#allocation6 + $0x8] sm:$0x30] %v3528
  %3547 = vst [vmem:[#allocation6 + $0x10] sm:$0x30] %v3529
  %3548 = vst [vmem:[#allocation6 + $0x18] sm:$0x30] %v3530
  %3549 = vst [vmem:[#allocation6 + $0x20] sm:$0x30] %v3531
  %3550 = vst [vmem:[#allocation6 + $0x28] sm:$0x30] %v3532
  %3551 = vst [vmem:[#allocation6 + $0x30] sm:$0x30] %v3533
  %3552 = vst [vmem:[#allocation6 + $0x38] sm:$0x30] %v3534
  %3553 = vst [vmem:[#allocation6 + $0x40] sm:$0x30] %v3535
  %s3554 = scalar_lea.vmem [#allocation3], 64
  %v3555 = vld [vmem:[%s3554] sm:$0x33]
  %v3556 = vld [vmem:[%s3554] sm:$0x6]
  %v3557 = vld [vmem:[%s3338] sm:$0x33]
  %v3558 = vld [vmem:[%s3338] sm:$0x6]
  %v3559 = vld [vmem:[%s3355] sm:$0x33]
  %v3560 = vld [vmem:[%s3355] sm:$0x6]
  %v3562 = vcombine.high %v3555, %v3555
  %v3564 = vrot.slane %v3556, 1
  %v3566 = vcombine.high %v3557, %v3557
  %v3568 = vrot.slane %v3558, 1
  %v3570 = vcombine.high %v3559, %v3559
  %v3572 = vrot.slane %v3560, 1
  %v3573 = vrot.slane %v3555, 2
  %v3574 = vrot.slane %v3562, 2
  %v3575 = vrot.slane %v3564, 2
  %v3576 = vrot.slane %v3557, 2
  %v3577 = vrot.slane %v3566, 2
  %v3578 = vrot.slane %v3568, 2
  %v3579 = vrot.slane %v3559, 2
  %v3580 = vrot.slane %v3570, 2
  %v3581 = vrot.slane %v3572, 2
  %3591 = vst [vmem:[#allocation6] sm:$0xc0] %v3573
  %3592 = vst [vmem:[#allocation6 + $0x8] sm:$0xc0] %v3574
  %3593 = vst [vmem:[#allocation6 + $0x10] sm:$0xc0] %v3575
  %3594 = vst [vmem:[#allocation6 + $0x18] sm:$0xc0] %v3576
  %3595 = vst [vmem:[#allocation6 + $0x20] sm:$0xc0] %v3577
  %3596 = vst [vmem:[#allocation6 + $0x28] sm:$0xc0] %v3578
  %3597 = vst [vmem:[#allocation6 + $0x30] sm:$0xc0] %v3579
  %3598 = vst [vmem:[#allocation6 + $0x38] sm:$0xc0] %v3580
  %3599 = vst [vmem:[#allocation6 + $0x40] sm:$0xc0] %v3581
  %v3600 = vld [vmem:[%s3355] sm:$0x33]
  %v3601 = vld [vmem:[%s3355] sm:$0x6]
  %v3602 = vld [vmem:[%s3369] sm:$0x33]
  %v3603 = vld [vmem:[%s3369] sm:$0x6]
  %v3604 = vld [vmem:[%s3386] sm:$0x33]
  %v3605 = vld [vmem:[%s3386] sm:$0x6]
  %v3607 = vcombine.high %v3600, %v3600
  %v3610 = vrot.slane %v3601, 1
  %v3613 = vcombine.high %v3602, %v3602
  %v3616 = vrot.slane %v3603, 1
  %v3619 = vcombine.high %v3604, %v3604
  %v3622 = vrot.slane %v3605, 1
  %3624 = vst [vmem:[#allocation6 + $0x48] sm:$0x3] %v3600
  %3625 = vst [vmem:[#allocation6 + $0x50] sm:$0x3] %v3607
  %3626 = vst [vmem:[#allocation6 + $0x58] sm:$0x3] %v3610
  %3627 = vst [vmem:[#allocation6 + $0x60] sm:$0x3] %v3602
  %3628 = vst [vmem:[#allocation6 + $0x68] sm:$0x3] %v3613
  %3629 = vst [vmem:[#allocation6 + $0x70] sm:$0x3] %v3616
  %3630 = vst [vmem:[#allocation6 + $0x78] sm:$0x3] %v3604
  %3631 = vst [vmem:[#allocation6 + $0x80] sm:$0x3] %v3619
  %3632 = vst [vmem:[#allocation6 + $0x88] sm:$0x3] %v3622
  %v3633 = vld [vmem:[%s3386] sm:$0x33]
  %v3634 = vld [vmem:[%s3386] sm:$0x6]
  %v3635 = vld [vmem:[%s3400] sm:$0x33]
  %v3636 = vld [vmem:[%s3400] sm:$0x6]
  %v3637 = vld [vmem:[%s3417] sm:$0x33]
  %v3638 = vld [vmem:[%s3417] sm:$0x6]
  %v3640 = vcombine.high %v3633, %v3633
  %v3642 = vrot.slane %v3634, 1
  %v3644 = vcombine.high %v3635, %v3635
  %v3646 = vrot.slane %v3636, 1
  %v3648 = vcombine.high %v3637, %v3637
  %v3650 = vrot.slane %v3638, 1
  %v3651 = vrot.slane %v3633, 6
  %v3652 = vrot.slane %v3640, 6
  %v3653 = vrot.slane %v3642, 6
  %v3654 = vrot.slane %v3635, 6
  %v3655 = vrot.slane %v3644, 6
  %v3656 = vrot.slane %v3646, 6
  %v3657 = vrot.slane %v3637, 6
  %v3658 = vrot.slane %v3648, 6
  %v3659 = vrot.slane %v3650, 6
  %3669 = vst [vmem:[#allocation6 + $0x48] sm:$0xc] %v3651
  %3670 = vst [vmem:[#allocation6 + $0x50] sm:$0xc] %v3652
  %3671 = vst [vmem:[#allocation6 + $0x58] sm:$0xc] %v3653
  %3672 = vst [vmem:[#allocation6 + $0x60] sm:$0xc] %v3654
  %3673 = vst [vmem:[#allocation6 + $0x68] sm:$0xc] %v3655
  %3674 = vst [vmem:[#allocation6 + $0x70] sm:$0xc] %v3656
  %3675 = vst [vmem:[#allocation6 + $0x78] sm:$0xc] %v3657
  %3676 = vst [vmem:[#allocation6 + $0x80] sm:$0xc] %v3658
  %3677 = vst [vmem:[#allocation6 + $0x88] sm:$0xc] %v3659
  %v3678 = vld [vmem:[#allocation6] sm:$0xff]
  %v3679 = vld [vmem:[#allocation6 + $0x8] sm:$0xff]
  %v3680 = vld [vmem:[#allocation6 + $0x10] sm:$0xff]
  %v3681 = vld [vmem:[#allocation6 + $0x18] sm:$0xff]
  %v3682 = vld [vmem:[#allocation6 + $0x20] sm:$0xff]
  %v3683 = vld [vmem:[#allocation6 + $0x28] sm:$0xff]
  %v3684 = vld [vmem:[#allocation6 + $0x30] sm:$0xff]
  %v3685 = vld [vmem:[#allocation6 + $0x38] sm:$0xff]
  %v3686 = vld [vmem:[#allocation6 + $0x40] sm:$0xff]
  %v3687 = vld [vmem:[#allocation6 + $0x48] sm:$0xf]
  %v3688 = vld [vmem:[#allocation6 + $0x50] sm:$0xf]
  %v3689 = vld [vmem:[#allocation6 + $0x58] sm:$0xf]
  %v3690 = vld [vmem:[#allocation6 + $0x60] sm:$0xf]
  %v3691 = vld [vmem:[#allocation6 + $0x68] sm:$0xf]
  %v3692 = vld [vmem:[#allocation6 + $0x70] sm:$0xf]
  %v3693 = vld [vmem:[#allocation6 + $0x78] sm:$0xf]
  %v3694 = vld [vmem:[#allocation6 + $0x80] sm:$0xf]
  %v3695 = vld [vmem:[#allocation6 + $0x88] sm:$0xf]
  %v3696 = vpack.c.bf16 %v3687, %v3678
  %v3697 = vpack.c.bf16 %v3688, %v3679
  %v3698 = vpack.c.bf16 %v3689, %v3680
  %v3699 = vpack.c.bf16 %v3690, %v3681
  %v3700 = vpack.c.bf16 %v3691, %v3682
  %v3701 = vpack.c.bf16 %v3692, %v3683
  %v3702 = vpack.c.bf16 %v3693, %v3684
  %v3703 = vpack.c.bf16 %v3694, %v3685
  %v3704 = vpack.c.bf16 %v3695, %v3686
  %v3705 = vld [vmem:[%s3] sm:$0xf]
  %v3706 = vld [vmem:[%s3 + $0x4] sm:$0xf]
  %v3707 = vld [vmem:[%s3 + $0x8] sm:$0xf]
  %v3708 = vld [vmem:[%s3 + $0xc] sm:$0xf]
  %v3709 = vld [vmem:[%s3 + $0x10] sm:$0xf]
  %v3710 = vld [vmem:[%s3 + $0x14] sm:$0xf]
  %v3711 = vld [vmem:[%s3 + $0x18] sm:$0xf]
  %v3712 = vld [vmem:[%s3 + $0x1c] sm:$0xf]
  %v3713 = vld [vmem:[%s3 + $0x20] sm:$0xf]
  %v3714 = vld [vmem:[%s3 + $0x24] sm:$0xf]
  %v3715 = vld [vmem:[%s3 + $0x28] sm:$0xf]
  %v3716 = vld [vmem:[%s3 + $0x2c] sm:$0xf]
  %v3717 = vld [vmem:[%s3 + $0x30] sm:$0xf]
  %v3718 = vld [vmem:[%s3 + $0x34] sm:$0xf]
  %v3719 = vld [vmem:[%s3 + $0x38] sm:$0xf]
  %v3720 = vld [vmem:[%s3 + $0x3c] sm:$0xf]
  %v3721 = vld [vmem:[%s3 + $0x40] sm:$0xf]
  %v3722 = vld [vmem:[%s3 + $0x44] sm:$0xf]
  %v3723 = vld [vmem:[%s3 + $0x48] sm:$0xf]
  %v3724 = vld [vmem:[%s3 + $0x4c] sm:$0xf]
  %v3725 = vld [vmem:[%s3 + $0x50] sm:$0xf]
  %v3726 = vld [vmem:[%s3 + $0x54] sm:$0xf]
  %v3727 = vld [vmem:[%s3 + $0x58] sm:$0xf]
  %v3728 = vld [vmem:[%s3 + $0x5c] sm:$0xf]
  %v3729 = vld [vmem:[%s3 + $0x60] sm:$0xf]
  %v3730 = vld [vmem:[%s3 + $0x64] sm:$0xf]
  %v3731 = vld [vmem:[%s3 + $0x68] sm:$0xf]
  %v3732 = vld [vmem:[%s3 + $0x6c] sm:$0xf]
  %v3733 = vld [vmem:[%s3 + $0x70] sm:$0xf]
  %v3734 = vld [vmem:[%s3 + $0x74] sm:$0xf]
  %v3735 = vld [vmem:[%s3 + $0x78] sm:$0xf]
  %v3736 = vld [vmem:[%s3 + $0x7c] sm:$0xf]
  %v3737 = vld [vmem:[%s3 + $0x80] sm:$0xf]
  %v3738 = vld [vmem:[%s3 + $0x84] sm:$0xf]
  %v3739 = vld [vmem:[%s3 + $0x88] sm:$0xf]
  %v3740 = vld [vmem:[%s3 + $0x8c] sm:$0xf]
  %v3741 = vld [vmem:[%s3 + $0x90] sm:$0xf]
  %v3742 = vld [vmem:[%s3 + $0x94] sm:$0xf]
  %v3743 = vld [vmem:[%s3 + $0x98] sm:$0xf]
  %v3744 = vld [vmem:[%s3 + $0x9c] sm:$0xf]
  %v3745 = vld [vmem:[%s3 + $0xa0] sm:$0xf]
  %v3746 = vld [vmem:[%s3 + $0xa4] sm:$0xf]
  %v3747 = vld [vmem:[%s3 + $0xa8] sm:$0xf]
  %v3748 = vld [vmem:[%s3 + $0xac] sm:$0xf]
  %v3749 = vld [vmem:[%s3 + $0xb0] sm:$0xf]
  %v3750 = vld [vmem:[%s3 + $0xb4] sm:$0xf]
  %v3751 = vld [vmem:[%s3 + $0xb8] sm:$0xf]
  %v3752 = vld [vmem:[%s3 + $0xbc] sm:$0xf]
  %v3753 = vld [vmem:[%s3 + $0xc0] sm:$0xf]
  %v3754 = vld [vmem:[%s3 + $0xc4] sm:$0xf]
  %v3755 = vld [vmem:[%s3 + $0xc8] sm:$0xf]
  %v3756 = vld [vmem:[%s3 + $0xcc] sm:$0xf]
  %v3757 = vld [vmem:[%s3 + $0xd0] sm:$0xf]
  %v3758 = vld [vmem:[%s3 + $0xd4] sm:$0xf]
  %v3759 = vld [vmem:[%s3 + $0xd8] sm:$0xf]
  %v3760 = vld [vmem:[%s3 + $0xdc] sm:$0xf]
  %v3761 = vld [vmem:[%s3 + $0xe0] sm:$0xf]
  %v3762 = vld [vmem:[%s3 + $0xe4] sm:$0xf]
  %v3763 = vld [vmem:[%s3 + $0xe8] sm:$0xf]
  %v3764 = vld [vmem:[%s3 + $0xec] sm:$0xf]
  %v3765 = vld [vmem:[%s3 + $0xf0] sm:$0xf]
  %v3766 = vld [vmem:[%s3 + $0xf4] sm:$0xf]
  %v3767 = vld [vmem:[%s3 + $0xf8] sm:$0xf]
  %v3768 = vld [vmem:[%s3 + $0xfc] sm:$0xf]
  %v3769 = vld [vmem:[%s3 + $0x100] sm:$0xf]
  %v3770 = vld [vmem:[%s3 + $0x104] sm:$0xf]
  %v3771 = vld [vmem:[%s3 + $0x108] sm:$0xf]
  %v3772 = vld [vmem:[%s3 + $0x10c] sm:$0xf]
  %v3773 = vld [vmem:[%s3 + $0x110] sm:$0xf]
  %v3774 = vld [vmem:[%s3 + $0x114] sm:$0xf]
  %v3775 = vld [vmem:[%s3 + $0x118] sm:$0xf]
  %v3776 = vld [vmem:[%s3 + $0x11c] sm:$0xf]
  %v3777 = vld [vmem:[%s3 + $0x120] sm:$0xf]
  %v3778 = vld [vmem:[%s3 + $0x124] sm:$0xf]
  %v3779 = vld [vmem:[%s3 + $0x128] sm:$0xf]
  %v3780 = vld [vmem:[%s3 + $0x12c] sm:$0xf]
  %v3781 = vld [vmem:[%s3 + $0x130] sm:$0xf]
  %v3782 = vld [vmem:[%s3 + $0x134] sm:$0xf]
  %v3783 = vld [vmem:[%s3 + $0x138] sm:$0xf]
  %v3784 = vld [vmem:[%s3 + $0x13c] sm:$0xf]
  %v3785 = vld [vmem:[%s3 + $0x140] sm:$0xf]
  %v3786 = vld [vmem:[%s3 + $0x144] sm:$0xf]
  %v3787 = vld [vmem:[%s3 + $0x148] sm:$0xf]
  %v3788 = vld [vmem:[%s3 + $0x14c] sm:$0xf]
  %v3789 = vld [vmem:[%s3 + $0x150] sm:$0xf]
  %v3790 = vld [vmem:[%s3 + $0x154] sm:$0xf]
  %v3791 = vld [vmem:[%s3 + $0x158] sm:$0xf]
  %v3792 = vld [vmem:[%s3 + $0x15c] sm:$0xf]
  %v3793 = vld [vmem:[%s3 + $0x160] sm:$0xf]
  %v3794 = vld [vmem:[%s3 + $0x164] sm:$0xf]
  %v3795 = vld [vmem:[%s3 + $0x168] sm:$0xf]
  %v3796 = vld [vmem:[%s3 + $0x16c] sm:$0xf]
  %v3797 = vld [vmem:[%s3 + $0x170] sm:$0xf]
  %v3798 = vld [vmem:[%s3 + $0x174] sm:$0xf]
  %v3799 = vld [vmem:[%s3 + $0x178] sm:$0xf]
  %v3800 = vld [vmem:[%s3 + $0x17c] sm:$0xf]
  %v3801 = vld [vmem:[%s3 + $0x180] sm:$0xf]
  %v3802 = vld [vmem:[%s3 + $0x184] sm:$0xf]
  %v3803 = vld [vmem:[%s3 + $0x188] sm:$0xf]
  %v3804 = vld [vmem:[%s3 + $0x18c] sm:$0xf]
  %v3805 = vld [vmem:[%s3 + $0x190] sm:$0xf]
  %v3806 = vld [vmem:[%s3 + $0x194] sm:$0xf]
  %v3807 = vld [vmem:[%s3 + $0x198] sm:$0xf]
  %v3808 = vld [vmem:[%s3 + $0x19c] sm:$0xf]
  %v3809 = vld [vmem:[%s3 + $0x1a0] sm:$0xf]
  %v3810 = vld [vmem:[%s3 + $0x1a4] sm:$0xf]
  %v3811 = vld [vmem:[%s3 + $0x1a8] sm:$0xf]
  %v3812 = vld [vmem:[%s3 + $0x1ac] sm:$0xf]
  %v3813 = vld [vmem:[%s3 + $0x1b0] sm:$0xf]
  %v3814 = vld [vmem:[%s3 + $0x1b4] sm:$0xf]
  %v3815 = vld [vmem:[%s3 + $0x1b8] sm:$0xf]
  %v3816 = vld [vmem:[%s3 + $0x1bc] sm:$0xf]
  %v3817 = vld [vmem:[%s3 + $0x1c0] sm:$0xf]
  %v3818 = vld [vmem:[%s3 + $0x1c4] sm:$0xf]
  %v3819 = vld [vmem:[%s3 + $0x1c8] sm:$0xf]
  %v3820 = vld [vmem:[%s3 + $0x1cc] sm:$0xf]
  %v3821 = vld [vmem:[%s3 + $0x1d0] sm:$0xf]
  %v3822 = vld [vmem:[%s3 + $0x1d4] sm:$0xf]
  %v3823 = vld [vmem:[%s3 + $0x1d8] sm:$0xf]
  %v3824 = vld [vmem:[%s3 + $0x1dc] sm:$0xf]
  %v3825 = vld [vmem:[%s3 + $0x1e0] sm:$0xf]
  %v3826 = vld [vmem:[%s3 + $0x1e4] sm:$0xf]
  %v3827 = vld [vmem:[%s3 + $0x1e8] sm:$0xf]
  %v3828 = vld [vmem:[%s3 + $0x1ec] sm:$0xf]
  %v3829 = vld [vmem:[%s3 + $0x1f0] sm:$0xf]
  %v3830 = vld [vmem:[%s3 + $0x1f4] sm:$0xf]
  %v3831 = vld [vmem:[%s3 + $0x1f8] sm:$0xf]
  %v3832 = vld [vmem:[%s3 + $0x1fc] sm:$0xf]
  %v3833 = vld [vmem:[%s3 + $0x200] sm:$0xf]
  %v3834 = vld [vmem:[%s3 + $0x204] sm:$0xf]
  %v3835 = vld [vmem:[%s3 + $0x208] sm:$0xf]
  %v3836 = vld [vmem:[%s3 + $0x20c] sm:$0xf]
  %v3837 = vld [vmem:[%s3 + $0x210] sm:$0xf]
  %v3838 = vld [vmem:[%s3 + $0x214] sm:$0xf]
  %v3839 = vld [vmem:[%s3 + $0x218] sm:$0xf]
  %v3840 = vld [vmem:[%s3 + $0x21c] sm:$0xf]
  %v3841 = vld [vmem:[%s3 + $0x220] sm:$0xf]
  %v3842 = vld [vmem:[%s3 + $0x224] sm:$0xf]
  %v3843 = vld [vmem:[%s3 + $0x228] sm:$0xf]
  %v3844 = vld [vmem:[%s3 + $0x22c] sm:$0xf]
  %v3845 = vld [vmem:[%s3 + $0x230] sm:$0xf]
  %v3846 = vld [vmem:[%s3 + $0x234] sm:$0xf]
  %v3847 = vld [vmem:[%s3 + $0x238] sm:$0xf]
  %v3848 = vld [vmem:[%s3 + $0x23c] sm:$0xf]
  %v3993 = vunpack.c.l.b16 %v3705
  %v3994 = vunpack.c.l.b16 %v3706
  %v3995 = vunpack.c.l.b16 %v3707
  %v3996 = vunpack.c.l.b16 %v3708
  %v3997 = vunpack.c.l.b16 %v3709
  %v3998 = vunpack.c.l.b16 %v3710
  %v3999 = vunpack.c.l.b16 %v3711
  %v4000 = vunpack.c.l.b16 %v3712
  %v4001 = vunpack.c.l.b16 %v3713
  %v4002 = vunpack.c.l.b16 %v3714
  %v4003 = vunpack.c.l.b16 %v3715
  %v4004 = vunpack.c.l.b16 %v3716
  %v4005 = vunpack.c.l.b16 %v3717
  %v4006 = vunpack.c.l.b16 %v3718
  %v4007 = vunpack.c.l.b16 %v3719
  %v4008 = vunpack.c.l.b16 %v3720
  %v4009 = vunpack.c.l.b16 %v3721
  %v4010 = vunpack.c.l.b16 %v3722
  %v4011 = vunpack.c.l.b16 %v3723
  %v4012 = vunpack.c.l.b16 %v3724
  %v4013 = vunpack.c.l.b16 %v3725
  %v4014 = vunpack.c.l.b16 %v3726
  %v4015 = vunpack.c.l.b16 %v3727
  %v4016 = vunpack.c.l.b16 %v3728
  %v4017 = vunpack.c.l.b16 %v3729
  %v4018 = vunpack.c.l.b16 %v3730
  %v4019 = vunpack.c.l.b16 %v3731
  %v4020 = vunpack.c.l.b16 %v3732
  %v4021 = vunpack.c.l.b16 %v3733
  %v4022 = vunpack.c.l.b16 %v3734
  %v4023 = vunpack.c.l.b16 %v3735
  %v4024 = vunpack.c.l.b16 %v3736
  %v4025 = vunpack.c.l.b16 %v3737
  %v4026 = vunpack.c.l.b16 %v3738
  %v4027 = vunpack.c.l.b16 %v3739
  %v4028 = vunpack.c.l.b16 %v3740
  %v4029 = vunpack.c.l.b16 %v3741
  %v4030 = vunpack.c.l.b16 %v3742
  %v4031 = vunpack.c.l.b16 %v3743
  %v4032 = vunpack.c.l.b16 %v3744
  %v4033 = vunpack.c.l.b16 %v3745
  %v4034 = vunpack.c.l.b16 %v3746
  %v4035 = vunpack.c.l.b16 %v3747
  %v4036 = vunpack.c.l.b16 %v3748
  %v4037 = vunpack.c.l.b16 %v3749
  %v4038 = vunpack.c.l.b16 %v3750
  %v4039 = vunpack.c.l.b16 %v3751
  %v4040 = vunpack.c.l.b16 %v3752
  %v4041 = vunpack.c.l.b16 %v3753
  %v4042 = vunpack.c.l.b16 %v3754
  %v4043 = vunpack.c.l.b16 %v3755
  %v4044 = vunpack.c.l.b16 %v3756
  %v4045 = vunpack.c.l.b16 %v3757
  %v4046 = vunpack.c.l.b16 %v3758
  %v4047 = vunpack.c.l.b16 %v3759
  %v4048 = vunpack.c.l.b16 %v3760
  %v4049 = vunpack.c.l.b16 %v3761
  %v4050 = vunpack.c.l.b16 %v3762
  %v4051 = vunpack.c.l.b16 %v3763
  %v4052 = vunpack.c.l.b16 %v3764
  %v4053 = vunpack.c.l.b16 %v3765
  %v4054 = vunpack.c.l.b16 %v3766
  %v4055 = vunpack.c.l.b16 %v3767
  %v4056 = vunpack.c.l.b16 %v3768
  %v4057 = vunpack.c.l.b16 %v3769
  %v4058 = vunpack.c.l.b16 %v3770
  %v4059 = vunpack.c.l.b16 %v3771
  %v4060 = vunpack.c.l.b16 %v3772
  %v4061 = vunpack.c.l.b16 %v3773
  %v4062 = vunpack.c.l.b16 %v3774
  %v4063 = vunpack.c.l.b16 %v3775
  %v4064 = vunpack.c.l.b16 %v3776
  %v4065 = vunpack.c.l.b16 %v3777
  %v4066 = vunpack.c.l.b16 %v3778
  %v4067 = vunpack.c.l.b16 %v3779
  %v4068 = vunpack.c.l.b16 %v3780
  %v4069 = vunpack.c.l.b16 %v3781
  %v4070 = vunpack.c.l.b16 %v3782
  %v4071 = vunpack.c.l.b16 %v3783
  %v4072 = vunpack.c.l.b16 %v3784
  %v4073 = vunpack.c.l.b16 %v3785
  %v4074 = vunpack.c.l.b16 %v3786
  %v4075 = vunpack.c.l.b16 %v3787
  %v4076 = vunpack.c.l.b16 %v3788
  %v4077 = vunpack.c.l.b16 %v3789
  %v4078 = vunpack.c.l.b16 %v3790
  %v4079 = vunpack.c.l.b16 %v3791
  %v4080 = vunpack.c.l.b16 %v3792
  %v4081 = vunpack.c.l.b16 %v3793
  %v4082 = vunpack.c.l.b16 %v3794
  %v4083 = vunpack.c.l.b16 %v3795
  %v4084 = vunpack.c.l.b16 %v3796
  %v4085 = vunpack.c.l.b16 %v3797
  %v4086 = vunpack.c.l.b16 %v3798
  %v4087 = vunpack.c.l.b16 %v3799
  %v4088 = vunpack.c.l.b16 %v3800
  %v4089 = vunpack.c.l.b16 %v3801
  %v4090 = vunpack.c.l.b16 %v3802
  %v4091 = vunpack.c.l.b16 %v3803
  %v4092 = vunpack.c.l.b16 %v3804
  %v4093 = vunpack.c.l.b16 %v3805
  %v4094 = vunpack.c.l.b16 %v3806
  %v4095 = vunpack.c.l.b16 %v3807
  %v4096 = vunpack.c.l.b16 %v3808
  %v4097 = vunpack.c.l.b16 %v3809
  %v4098 = vunpack.c.l.b16 %v3810
  %v4099 = vunpack.c.l.b16 %v3811
  %v4100 = vunpack.c.l.b16 %v3812
  %v4101 = vunpack.c.l.b16 %v3813
  %v4102 = vunpack.c.l.b16 %v3814
  %v4103 = vunpack.c.l.b16 %v3815
  %v4104 = vunpack.c.l.b16 %v3816
  %v4105 = vunpack.c.l.b16 %v3817
  %v4106 = vunpack.c.l.b16 %v3818
  %v4107 = vunpack.c.l.b16 %v3819
  %v4108 = vunpack.c.l.b16 %v3820
  %v4109 = vunpack.c.l.b16 %v3821
  %v4110 = vunpack.c.l.b16 %v3822
  %v4111 = vunpack.c.l.b16 %v3823
  %v4112 = vunpack.c.l.b16 %v3824
  %v4113 = vunpack.c.l.b16 %v3825
  %v4114 = vunpack.c.l.b16 %v3826
  %v4115 = vunpack.c.l.b16 %v3827
  %v4116 = vunpack.c.l.b16 %v3828
  %v4117 = vunpack.c.l.b16 %v3829
  %v4118 = vunpack.c.l.b16 %v3830
  %v4119 = vunpack.c.l.b16 %v3831
  %v4120 = vunpack.c.l.b16 %v3832
  %v4121 = vunpack.c.l.b16 %v3833
  %v4122 = vunpack.c.l.b16 %v3834
  %v4123 = vunpack.c.l.b16 %v3835
  %v4124 = vunpack.c.l.b16 %v3836
  %v4125 = vunpack.c.l.b16 %v3837
  %v4126 = vunpack.c.l.b16 %v3838
  %v4127 = vunpack.c.l.b16 %v3839
  %v4128 = vunpack.c.l.b16 %v3840
  %v4129 = vunpack.c.l.b16 %v3841
  %v4130 = vunpack.c.l.b16 %v3842
  %v4131 = vunpack.c.l.b16 %v3843
  %v4132 = vunpack.c.l.b16 %v3844
  %v4133 = vunpack.c.l.b16 %v3845
  %v4134 = vunpack.c.l.b16 %v3846
  %v4135 = vunpack.c.l.b16 %v3847
  %v4136 = vunpack.c.l.b16 %v3848
  %v4137 = vpack.c.b16 %v3994, %v3993
  %v4138 = vpack.c.b16 %v3996, %v3995
  %v4139 = vpack.c.b16 %v3998, %v3997
  %v4140 = vpack.c.b16 %v4000, %v3999
  %v4141 = vpack.c.b16 %v4002, %v4001
  %v4142 = vpack.c.b16 %v4004, %v4003
  %v4143 = vpack.c.b16 %v4006, %v4005
  %v4144 = vpack.c.b16 %v4008, %v4007
  %v4145 = vpack.c.b16 %v4010, %v4009
  %v4146 = vpack.c.b16 %v4012, %v4011
  %v4147 = vpack.c.b16 %v4014, %v4013
  %v4148 = vpack.c.b16 %v4016, %v4015
  %v4149 = vpack.c.b16 %v4018, %v4017
  %v4150 = vpack.c.b16 %v4020, %v4019
  %v4151 = vpack.c.b16 %v4022, %v4021
  %v4152 = vpack.c.b16 %v4024, %v4023
  %v4153 = vpack.c.b16 %v4026, %v4025
  %v4154 = vpack.c.b16 %v4028, %v4027
  %v4155 = vpack.c.b16 %v4030, %v4029
  %v4156 = vpack.c.b16 %v4032, %v4031
  %v4157 = vpack.c.b16 %v4034, %v4033
  %v4158 = vpack.c.b16 %v4036, %v4035
  %v4159 = vpack.c.b16 %v4038, %v4037
  %v4160 = vpack.c.b16 %v4040, %v4039
  %v4161 = vpack.c.b16 %v4042, %v4041
  %v4162 = vpack.c.b16 %v4044, %v4043
  %v4163 = vpack.c.b16 %v4046, %v4045
  %v4164 = vpack.c.b16 %v4048, %v4047
  %v4165 = vpack.c.b16 %v4050, %v4049
  %v4166 = vpack.c.b16 %v4052, %v4051
  %v4167 = vpack.c.b16 %v4054, %v4053
  %v4168 = vpack.c.b16 %v4056, %v4055
  %v4169 = vpack.c.b16 %v4058, %v4057
  %v4170 = vpack.c.b16 %v4060, %v4059
  %v4171 = vpack.c.b16 %v4062, %v4061
  %v4172 = vpack.c.b16 %v4064, %v4063
  %v4173 = vpack.c.b16 %v4066, %v4065
  %v4174 = vpack.c.b16 %v4068, %v4067
  %v4175 = vpack.c.b16 %v4070, %v4069
  %v4176 = vpack.c.b16 %v4072, %v4071
  %v4177 = vpack.c.b16 %v4074, %v4073
  %v4178 = vpack.c.b16 %v4076, %v4075
  %v4179 = vpack.c.b16 %v4078, %v4077
  %v4180 = vpack.c.b16 %v4080, %v4079
  %v4181 = vpack.c.b16 %v4082, %v4081
  %v4182 = vpack.c.b16 %v4084, %v4083
  %v4183 = vpack.c.b16 %v4086, %v4085
  %v4184 = vpack.c.b16 %v4088, %v4087
  %v4185 = vpack.c.b16 %v4090, %v4089
  %v4186 = vpack.c.b16 %v4092, %v4091
  %v4187 = vpack.c.b16 %v4094, %v4093
  %v4188 = vpack.c.b16 %v4096, %v4095
  %v4189 = vpack.c.b16 %v4098, %v4097
  %v4190 = vpack.c.b16 %v4100, %v4099
  %v4191 = vpack.c.b16 %v4102, %v4101
  %v4192 = vpack.c.b16 %v4104, %v4103
  %v4193 = vpack.c.b16 %v4106, %v4105
  %v4194 = vpack.c.b16 %v4108, %v4107
  %v4195 = vpack.c.b16 %v4110, %v4109
  %v4196 = vpack.c.b16 %v4112, %v4111
  %v4197 = vpack.c.b16 %v4114, %v4113
  %v4198 = vpack.c.b16 %v4116, %v4115
  %v4199 = vpack.c.b16 %v4118, %v4117
  %v4200 = vpack.c.b16 %v4120, %v4119
  %v4201 = vpack.c.b16 %v4122, %v4121
  %v4202 = vpack.c.b16 %v4124, %v4123
  %v4203 = vpack.c.b16 %v4126, %v4125
  %v4204 = vpack.c.b16 %v4128, %v4127
  %v4205 = vpack.c.b16 %v4130, %v4129
  %v4206 = vpack.c.b16 %v4132, %v4131
  %v4207 = vpack.c.b16 %v4134, %v4133
  %v4208 = vpack.c.b16 %v4136, %v4135
  %4281 = vmatprep.subr.bf16.mxu0 0
  %4282 = vmatpush1.bf16.msra.mxu0 %v4137
  %4283 = vmatprep.subr.bf16.mxu0 0
  %4284 = vmatpush1.bf16.msra.mxu0 %v4138
  %4285 = vmatprep.subr.bf16.mxu0 0
  %4286 = vmatpush1.bf16.msra.mxu0 %v4139
  %4287 = vmatprep.subr.bf16.mxu0 0
  %4288 = vmatpush1.bf16.msra.mxu0 %v4140
  %4289 = vmatprep.subr.bf16.mxu0 0
  %4290 = vmatpush1.bf16.msra.mxu0 %v4141
  %4291 = vmatprep.subr.bf16.mxu0 0
  %4292 = vmatpush1.bf16.msra.mxu0 %v4142
  %4293 = vmatprep.subr.bf16.mxu0 0
  %4294 = vmatpush1.bf16.msra.mxu0 %v4143
  %4295 = vmatprep.subr.bf16.mxu0 0
  %4296 = vmatpush1.bf16.msra.mxu0 %v4144
  %4297 = vmatprep.subr.bf16.mxu0 0
  %4298 = vmatpush1.bf16.msra.mxu0 %v4145
  %4299 = vmatprep.subr.bf16.mxu0 0
  %4300 = vmatpush1.bf16.msra.mxu0 %v4146
  %4301 = vmatprep.subr.bf16.mxu0 0
  %4302 = vmatpush1.bf16.msra.mxu0 %v4147
  %4303 = vmatprep.subr.bf16.mxu0 0
  %4304 = vmatpush1.bf16.msra.mxu0 %v4148
  %4305 = vmatprep.subr.bf16.mxu0 0
  %4306 = vmatpush1.bf16.msra.mxu0 %v4149
  %4307 = vmatprep.subr.bf16.mxu0 0
  %4308 = vmatpush1.bf16.msra.mxu0 %v4150
  %4309 = vmatprep.subr.bf16.mxu0 0
  %4310 = vmatpush1.bf16.msra.mxu0 %v4151
  %4311 = vmatprep.subr.bf16.mxu0 0
  %4312 = vmatpush1.bf16.msra.mxu0 %v4152
  %4313 = vmatprep.mubr.bf16.mxu0 %v3697
  %4314 = vmatmul.mubr.bf16.gmra.mrb[0].mxu0 %v3696
  %v4315 = vpop.f32.mrb[0].mxu0
  %v4316 = vadd.f32 0.0, %v4315
  %v4317 = vpop.f32.mrb[0].mxu0
  %v4318 = vpop.f32.mrb[0].mxu0
  %v4319 = vadd.f32 0.0, %v4318
  %v4320 = vpop.f32.mrb[0].mxu0
  %4321 = vdwg.mxu0
  %4322 = vmatprep.subr.bf16.mxu0 0
  %4323 = vmatpush1.bf16.msra.mxu0 %v4153
  %4324 = vmatprep.subr.bf16.mxu0 0
  %4325 = vmatpush1.bf16.msra.mxu0 %v4154
  %4326 = vmatprep.subr.bf16.mxu0 0
  %4327 = vmatpush1.bf16.msra.mxu0 %v4155
  %4328 = vmatprep.subr.bf16.mxu0 0
  %4329 = vmatpush1.bf16.msra.mxu0 %v4156
  %4330 = vmatprep.subr.bf16.mxu0 0
  %4331 = vmatpush1.bf16.msra.mxu0 %v4157
  %4332 = vmatprep.subr.bf16.mxu0 0
  %4333 = vmatpush1.bf16.msra.mxu0 %v4158
  %4334 = vmatprep.subr.bf16.mxu0 0
  %4335 = vmatpush1.bf16.msra.mxu0 %v4159
  %4336 = vmatprep.subr.bf16.mxu0 0
  %4337 = vmatpush1.bf16.msra.mxu0 %v4160
  %4338 = vmatprep.subr.bf16.mxu0 0
  %4339 = vmatpush1.bf16.msra.mxu0 %v4161
  %4340 = vmatprep.subr.bf16.mxu0 0
  %4341 = vmatpush1.bf16.msra.mxu0 %v4162
  %4342 = vmatprep.subr.bf16.mxu0 0
  %4343 = vmatpush1.bf16.msra.mxu0 %v4163
  %4344 = vmatprep.subr.bf16.mxu0 0
  %4345 = vmatpush1.bf16.msra.mxu0 %v4164
  %4346 = vmatprep.subr.bf16.mxu0 0
  %4347 = vmatpush1.bf16.msra.mxu0 %v4165
  %4348 = vmatprep.subr.bf16.mxu0 0
  %4349 = vmatpush1.bf16.msra.mxu0 %v4166
  %4350 = vmatprep.subr.bf16.mxu0 0
  %4351 = vmatpush1.bf16.msra.mxu0 %v4167
  %4352 = vmatprep.subr.bf16.mxu0 0
  %4353 = vmatpush1.bf16.msra.mxu0 %v4168
  %4354 = vmatprep.mubr.bf16.mxu0 %v3699
  %4355 = vmatmul.mubr.bf16.gmra.mrb[0].mxu0 %v3698
  %v4356 = vpop.f32.mrb[0].mxu0
  %v4357 = vadd.f32 %v4316, %v4356
  %v4358 = vpop.f32.mrb[0].mxu0
  %v4359 = vpop.f32.mrb[0].mxu0
  %v4360 = vadd.f32 %v4319, %v4359
  %v4361 = vpop.f32.mrb[0].mxu0
  %4362 = vdwg.mxu0
  %4363 = vmatprep.subr.bf16.mxu0 0
  %4364 = vmatpush1.bf16.msra.mxu0 %v4169
  %4365 = vmatprep.subr.bf16.mxu0 0
  %4366 = vmatpush1.bf16.msra.mxu0 %v4170
  %4367 = vmatprep.subr.bf16.mxu0 0
  %4368 = vmatpush1.bf16.msra.mxu0 %v4171
  %4369 = vmatprep.subr.bf16.mxu0 0
  %4370 = vmatpush1.bf16.msra.mxu0 %v4172
  %4371 = vmatprep.subr.bf16.mxu0 0
  %4372 = vmatpush1.bf16.msra.mxu0 %v4173
  %4373 = vmatprep.subr.bf16.mxu0 0
  %4374 = vmatpush1.bf16.msra.mxu0 %v4174
  %4375 = vmatprep.subr.bf16.mxu0 0
  %4376 = vmatpush1.bf16.msra.mxu0 %v4175
  %4377 = vmatprep.subr.bf16.mxu0 0
  %4378 = vmatpush1.bf16.msra.mxu0 %v4176
  %4379 = vmatprep.subr.bf16.mxu0 0
  %4380 = vmatpush1.bf16.msra.mxu0 %v4177
  %4381 = vmatprep.subr.bf16.mxu0 0
  %4382 = vmatpush1.bf16.msra.mxu0 %v4178
  %4383 = vmatprep.subr.bf16.mxu0 0
  %4384 = vmatpush1.bf16.msra.mxu0 %v4179
  %4385 = vmatprep.subr.bf16.mxu0 0
  %4386 = vmatpush1.bf16.msra.mxu0 %v4180
  %4387 = vmatprep.subr.bf16.mxu0 0
  %4388 = vmatpush1.bf16.msra.mxu0 %v4181
  %4389 = vmatprep.subr.bf16.mxu0 0
  %4390 = vmatpush1.bf16.msra.mxu0 %v4182
  %4391 = vmatprep.subr.bf16.mxu0 0
  %4392 = vmatpush1.bf16.msra.mxu0 %v4183
  %4393 = vmatprep.subr.bf16.mxu0 0
  %4394 = vmatpush1.bf16.msra.mxu0 %v4184
  %4395 = vmatprep.mubr.bf16.mxu0 %v3701
  %4396 = vmatmul.mubr.bf16.gmra.mrb[0].mxu0 %v3700
  %v4397 = vpop.f32.mrb[0].mxu0
  %v4398 = vadd.f32 %v4357, %v4397
  %v4399 = vpop.f32.mrb[0].mxu0
  %v4400 = vpop.f32.mrb[0].mxu0
  %v4401 = vadd.f32 %v4360, %v4400
  %v4402 = vpop.f32.mrb[0].mxu0
  %4403 = vdwg.mxu0
  %4404 = vmatprep.subr.bf16.mxu0 0
  %4405 = vmatpush1.bf16.msra.mxu0 %v4185
  %4406 = vmatprep.subr.bf16.mxu0 0
  %4407 = vmatpush1.bf16.msra.mxu0 %v4186
  %4408 = vmatprep.subr.bf16.mxu0 0
  %4409 = vmatpush1.bf16.msra.mxu0 %v4187
  %4410 = vmatprep.subr.bf16.mxu0 0
  %4411 = vmatpush1.bf16.msra.mxu0 %v4188
  %4412 = vmatprep.subr.bf16.mxu0 0
  %4413 = vmatpush1.bf16.msra.mxu0 %v4189
  %4414 = vmatprep.subr.bf16.mxu0 0
  %4415 = vmatpush1.bf16.msra.mxu0 %v4190
  %4416 = vmatprep.subr.bf16.mxu0 0
  %4417 = vmatpush1.bf16.msra.mxu0 %v4191
  %4418 = vmatprep.subr.bf16.mxu0 0
  %4419 = vmatpush1.bf16.msra.mxu0 %v4192
  %4420 = vmatprep.subr.bf16.mxu0 0
  %4421 = vmatpush1.bf16.msra.mxu0 %v4193
  %4422 = vmatprep.subr.bf16.mxu0 0
  %4423 = vmatpush1.bf16.msra.mxu0 %v4194
  %4424 = vmatprep.subr.bf16.mxu0 0
  %4425 = vmatpush1.bf16.msra.mxu0 %v4195
  %4426 = vmatprep.subr.bf16.mxu0 0
  %4427 = vmatpush1.bf16.msra.mxu0 %v4196
  %4428 = vmatprep.subr.bf16.mxu0 0
  %4429 = vmatpush1.bf16.msra.mxu0 %v4197
  %4430 = vmatprep.subr.bf16.mxu0 0
  %4431 = vmatpush1.bf16.msra.mxu0 %v4198
  %4432 = vmatprep.subr.bf16.mxu0 0
  %4433 = vmatpush1.bf16.msra.mxu0 %v4199
  %4434 = vmatprep.subr.bf16.mxu0 0
  %4435 = vmatpush1.bf16.msra.mxu0 %v4200
  %4436 = vmatprep.mubr.bf16.mxu0 %v3703
  %4437 = vmatmul.mubr.bf16.gmra.mrb[0].mxu0 %v3702
  %v4438 = vpop.f32.mrb[0].mxu0
  %v4439 = vadd.f32 %v4398, %v4438
  %v4440 = vpop.f32.mrb[0].mxu0
  %v4441 = vpop.f32.mrb[0].mxu0
  %v4442 = vadd.f32 %v4401, %v4441
  %v4443 = vpop.f32.mrb[0].mxu0
  %4444 = vdwg.mxu0
  %4445 = vmatprep.subr.bf16.mxu0 0
  %4446 = vmatpush1.bf16.msra.mxu0 %v4201
  %4447 = vmatprep.subr.bf16.mxu0 0
  %4448 = vmatpush1.bf16.msra.mxu0 %v4202
  %4449 = vmatprep.subr.bf16.mxu0 0
  %4450 = vmatpush1.bf16.msra.mxu0 %v4203
  %4451 = vmatprep.subr.bf16.mxu0 0
  %4452 = vmatpush1.bf16.msra.mxu0 %v4204
  %4453 = vmatprep.subr.bf16.mxu0 0
  %4454 = vmatpush1.bf16.msra.mxu0 %v4205
  %4455 = vmatprep.subr.bf16.mxu0 0
  %4456 = vmatpush1.bf16.msra.mxu0 %v4206
  %4457 = vmatprep.subr.bf16.mxu0 0
  %4458 = vmatpush1.bf16.msra.mxu0 %v4207
  %4459 = vmatprep.subr.bf16.mxu0 0
  %4460 = vmatpush1.bf16.msra.mxu0 %v4208
  %4461 = vmatprep.subr.bf16.mxu0 0
  %4462 = vmatpush1.bf16.msra.mxu0 0
  %4463 = vmatprep.subr.bf16.mxu0 0
  %4464 = vmatpush1.bf16.msra.mxu0 0
  %4465 = vmatprep.subr.bf16.mxu0 0
  %4466 = vmatpush1.bf16.msra.mxu0 0
  %4467 = vmatprep.subr.bf16.mxu0 0
  %4468 = vmatpush1.bf16.msra.mxu0 0
  %4469 = vmatprep.subr.bf16.mxu0 0
  %4470 = vmatpush1.bf16.msra.mxu0 0
  %4471 = vmatprep.subr.bf16.mxu0 0
  %4472 = vmatpush1.bf16.msra.mxu0 0
  %4473 = vmatprep.subr.bf16.mxu0 0
  %4474 = vmatpush1.bf16.msra.mxu0 0
  %4475 = vmatprep.subr.bf16.mxu0 0
  %4476 = vmatpush1.bf16.msra.mxu0 0
  %4477 = vmatprep.mubr.bf16.mxu0 0
  %4478 = vmatmul.mubr.bf16.gmra.mrb[0].mxu0 %v3704
  %v4479 = vpop.f32.mrb[0].mxu0
  %v4480 = vadd.f32 %v4439, %v4479
  %v4481 = vpop.f32.mrb[0].mxu0
  %v4482 = vpop.f32.mrb[0].mxu0
  %v4483 = vadd.f32 %v4442, %v4482
  %v4484 = vpop.f32.mrb[0].mxu0
  %4485 = vdwg.mxu0
  %vm4486 = vcmask 1043456
  %v4487 = vsel %vm4486, %v4483, 0.0
  %v4488 = vadd.f32 %v4480, %v4487
  %v4489 = vrot.slane %v4488, 4
  %v4490 = vadd.f32 %v4488, %v4489
  %v4491 = vrot.slane %v4490, 2
  %v4492 = vadd.f32 %v4490, %v4491
  %v4493 = vrot.slane %v4492, 1
  %v4494 = vadd.f32 %v4492, %v4493
  %v4495 = vmul.f32 %v4480, %v4480
  %v4496 = vmul.f32 %v4483, %v4483
  %v4497 = vsel %vm4486, %v4496, 0.0
  %v4498 = vadd.f32 %v4495, %v4497
  %v4499 = vrot.slane %v4498, 4
  %v4500 = vadd.f32 %v4498, %v4499
  %v4501 = vrot.slane %v4500, 2
  %v4502 = vadd.f32 %v4500, %v4501
  %v4503 = vrot.slane %v4502, 1
  %v4504 = vadd.f32 %v4502, %v4503
  %v4505 = vmul.f32 %v4494, 0.083333336
  %v4506 = vmul.f32 %v4504, 0.083333336
  %v4507 = vmul.f32 %v4505, %v4505
  %v4508 = vsub.f32 %v4506, %v4507
  %v4509 = vmax.f32 %v4508, 0.0
  %v4510 = vsub.f32 %v4480, %v4505
  %v4511 = vsub.f32 %v4483, %v4505
  %v4512 = vadd.f32 %v4509, 1e-05
  %v4513 = vrsqrt.pop %v4512
  %v4514 = vmul.f32 %v4510, %v4513
  %v4515 = vmul.f32 %v4511, %v4513
  %vm4516 = vcmp.ge.f32.partialorder %v4514, 0.0
  %vm4517 = vcmp.ge.f32.partialorder %v4515, 0.0
  %v4518 = vmul.f32 %v4514, 0.2
  %v4519 = vmul.f32 %v4515, 0.2
  %v4520 = vsel %vm4516, %v4514, %v4518
  %v4521 = vsel %vm4517, %v4515, %v4519
  %vm4522 = vcmask 516096
  %4523 = vst.msk [vmem:[#allocation7] sm:$0x1] %vm4522, %v4520
  %v4526 = vunpack.c.l.s4 1983009808
  %v4527 = vunpack.c.0.s8 %v4526
  %v4528 = vlaneseq
  %v4529 = vshrl.u32 %v4528, 7
  %v4530 = vsub.s32 %v4527, %v4529
  %v4531 = vrot.slane %v4520, %v4530
  %v4532 = vrot.slane %v4531, 7
  %v4533 = vrot.slane %v4532, 2
  %4534 = vrot.lane.b32.xlu0 %v4533, 64
  %v4535 = vpop.permute.xlu0 %4534
  %vm4537 = vcmask 1040896
  %4538 = vst.msk [vmem:[#allocation7] sm:$0x1] %vm4537, %v4535
  %v4539 = vcombine.high %v4531, %v4531
  %4541 = vst.msk [vmem:[#allocation7 + $0x2] sm:$0x1] %vm4522, %v4539
  %v4542 = vrot.slane %v4539, 7
  %v4543 = vrot.slane %v4542, 2
  %4544 = vrot.lane.b32.xlu0 %v4543, 64
  %v4545 = vpop.permute.xlu0 %4544
  %4547 = vst.msk [vmem:[#allocation7 + $0x2] sm:$0x1] %vm4537, %v4545
  %v4548 = vcombine.high %v4520, %v4520
  %v4550 = vunpack.c.l.s4 1983009808
  %v4551 = vunpack.c.0.s8 %v4550
  %v4552 = vlaneseq
  %v4553 = vshrl.u32 %v4552, 7
  %v4554 = vsub.s32 %v4551, %v4553
  %v4555 = vrot.slane %v4548, %v4554
  %4557 = vst.msk [vmem:[#allocation7 + $0x4] sm:$0x1] %vm4522, %v4555
  %v4558 = vrot.slane %v4555, 7
  %v4559 = vrot.slane %v4558, 2
  %4560 = vrot.lane.b32.xlu0 %v4559, 64
  %v4561 = vpop.permute.xlu0 %4560
  %4563 = vst.msk [vmem:[#allocation7 + $0x4] sm:$0x1] %vm4537, %v4561
  %v4564 = vcombine.high %v4555, %v4555
  %4566 = vst.msk [vmem:[#allocation7 + $0x1] sm:$0x1] %vm4522, %v4564
  %v4567 = vrot.slane %v4564, 7
  %v4568 = vrot.slane %v4567, 2
  %4569 = vrot.lane.b32.xlu0 %v4568, 64
  %v4570 = vpop.permute.xlu0 %4569
  %4572 = vst.msk [vmem:[#allocation7 + $0x1] sm:$0x1] %vm4537, %v4570
  %4573 = vst.msk [vmem:[#allocation7 + $0x3] sm:$0x1] %vm4522, %v4521
  %v4576 = vunpack.c.l.s4 1983009808
  %v4577 = vunpack.c.0.s8 %v4576
  %v4578 = vlaneseq
  %v4579 = vshrl.u32 %v4578, 7
  %v4580 = vsub.s32 %v4577, %v4579
  %v4581 = vrot.slane %v4521, %v4580
  %v4582 = vrot.slane %v4581, 7
  %v4583 = vrot.slane %v4582, 2
  %4584 = vrot.lane.b32.xlu0 %v4583, 64
  %v4585 = vpop.permute.xlu0 %4584
  %4587 = vst.msk [vmem:[#allocation7 + $0x3] sm:$0x1] %vm4537, %v4585
  %v4588 = vcombine.high %v4581, %v4581
  %4590 = vst.msk [vmem:[#allocation7 + $0x5] sm:$0x1] %vm4522, %v4588
  %v4591 = vrot.slane %v4588, 7
  %v4592 = vrot.slane %v4591, 2
  %4593 = vrot.lane.b32.xlu0 %v4592, 64
  %v4594 = vpop.permute.xlu0 %4593
  %4596 = vst.msk [vmem:[#allocation7 + $0x5] sm:$0x1] %vm4537, %v4594
  %v4597 = vld [vmem:[#allocation7] sm:$0x3f]
  %v4599 = vcombine.high %v4597, %v4597
  %v4601 = vunpack.c.l.s4 1983009808
  %v4602 = vunpack.c.0.s8 %v4601
  %v4603 = vlaneseq
  %v4604 = vshrl.u32 %v4603, 7
  %v4605 = vsub.s32 %v4602, %v4604
  %v4606 = vrot.slane %v4597, %v4605
  %v4608 = vunpack.c.l.s4 1983009808
  %v4609 = vunpack.c.0.s8 %v4608
  %v4610 = vlaneseq
  %v4611 = vshrl.u32 %v4610, 7
  %v4612 = vsub.s32 %v4609, %v4611
  %v4613 = vrot.slane %v4599, %v4612
  %v4614 = vcombine.high %v4606, %v4606
  %v4618 = vpack.c.bf16 %v4606, %v4606
  %v4619 = vpack.c.bf16 %v4614, %v4614
  %v4620 = vpack.c.bf16 %v4613, %v4613
  %v4621 = vld [vmem:[%s4] sm:$0xf]
  %v4622 = vld [vmem:[%s4 + $0x4] sm:$0xf]
  %v4623 = vld [vmem:[%s4 + $0x8] sm:$0xf]
  %v4624 = vld [vmem:[%s4 + $0xc] sm:$0xf]
  %v4625 = vld [vmem:[%s4 + $0x10] sm:$0xf]
  %v4626 = vld [vmem:[%s4 + $0x14] sm:$0xf]
  %v4627 = vld [vmem:[%s4 + $0x18] sm:$0xf]
  %v4628 = vld [vmem:[%s4 + $0x1c] sm:$0xf]
  %v4629 = vld [vmem:[%s4 + $0x20] sm:$0xf]
  %v4630 = vld [vmem:[%s4 + $0x24] sm:$0xf]
  %v4631 = vld [vmem:[%s4 + $0x28] sm:$0xf]
  %v4632 = vld [vmem:[%s4 + $0x2c] sm:$0xf]
  %v4633 = vld [vmem:[%s4 + $0x30] sm:$0xf]
  %v4634 = vld [vmem:[%s4 + $0x34] sm:$0xf]
  %v4635 = vld [vmem:[%s4 + $0x38] sm:$0xf]
  %v4636 = vld [vmem:[%s4 + $0x3c] sm:$0xf]
  %v4637 = vld [vmem:[%s4 + $0x40] sm:$0xf]
  %v4638 = vld [vmem:[%s4 + $0x44] sm:$0xf]
  %v4639 = vld [vmem:[%s4 + $0x48] sm:$0xf]
  %v4640 = vld [vmem:[%s4 + $0x4c] sm:$0xf]
  %v4641 = vld [vmem:[%s4 + $0x50] sm:$0xf]
  %v4642 = vld [vmem:[%s4 + $0x54] sm:$0xf]
  %v4643 = vld [vmem:[%s4 + $0x58] sm:$0xf]
  %v4644 = vld [vmem:[%s4 + $0x5c] sm:$0xf]
  %v4645 = vld [vmem:[%s4 + $0x60] sm:$0xf]
  %v4646 = vld [vmem:[%s4 + $0x64] sm:$0xf]
  %v4647 = vld [vmem:[%s4 + $0x68] sm:$0xf]
  %v4648 = vld [vmem:[%s4 + $0x6c] sm:$0xf]
  %v4649 = vld [vmem:[%s4 + $0x70] sm:$0xf]
  %v4650 = vld [vmem:[%s4 + $0x74] sm:$0xf]
  %v4651 = vld [vmem:[%s4 + $0x78] sm:$0xf]
  %v4652 = vld [vmem:[%s4 + $0x7c] sm:$0xf]
  %v4653 = vld [vmem:[%s4 + $0x80] sm:$0xf]
  %v4654 = vld [vmem:[%s4 + $0x84] sm:$0xf]
  %v4655 = vld [vmem:[%s4 + $0x88] sm:$0xf]
  %v4656 = vld [vmem:[%s4 + $0x8c] sm:$0xf]
  %v4657 = vld [vmem:[%s4 + $0x90] sm:$0xf]
  %v4658 = vld [vmem:[%s4 + $0x94] sm:$0xf]
  %v4659 = vld [vmem:[%s4 + $0x98] sm:$0xf]
  %v4660 = vld [vmem:[%s4 + $0x9c] sm:$0xf]
  %v4661 = vld [vmem:[%s4 + $0xa0] sm:$0xf]
  %v4662 = vld [vmem:[%s4 + $0xa4] sm:$0xf]
  %v4663 = vld [vmem:[%s4 + $0xa8] sm:$0xf]
  %v4664 = vld [vmem:[%s4 + $0xac] sm:$0xf]
  %v4665 = vld [vmem:[%s4 + $0xb0] sm:$0xf]
  %v4666 = vld [vmem:[%s4 + $0xb4] sm:$0xf]
  %v4667 = vld [vmem:[%s4 + $0xb8] sm:$0xf]
  %v4668 = vld [vmem:[%s4 + $0xbc] sm:$0xf]
  %v4717 = vunpack.c.l.b16 %v4621
  %v4718 = vunpack.c.l.b16 %v4622
  %v4719 = vunpack.c.l.b16 %v4623
  %v4720 = vunpack.c.l.b16 %v4624
  %v4721 = vunpack.c.l.b16 %v4625
  %v4722 = vunpack.c.l.b16 %v4626
  %v4723 = vunpack.c.l.b16 %v4627
  %v4724 = vunpack.c.l.b16 %v4628
  %v4725 = vunpack.c.l.b16 %v4629
  %v4726 = vunpack.c.l.b16 %v4630
  %v4727 = vunpack.c.l.b16 %v4631
  %v4728 = vunpack.c.l.b16 %v4632
  %v4729 = vunpack.c.l.b16 %v4633
  %v4730 = vunpack.c.l.b16 %v4634
  %v4731 = vunpack.c.l.b16 %v4635
  %v4732 = vunpack.c.l.b16 %v4636
  %v4733 = vunpack.c.l.b16 %v4637
  %v4734 = vunpack.c.l.b16 %v4638
  %v4735 = vunpack.c.l.b16 %v4639
  %v4736 = vunpack.c.l.b16 %v4640
  %v4737 = vunpack.c.l.b16 %v4641
  %v4738 = vunpack.c.l.b16 %v4642
  %v4739 = vunpack.c.l.b16 %v4643
  %v4740 = vunpack.c.l.b16 %v4644
  %v4741 = vunpack.c.l.b16 %v4645
  %v4742 = vunpack.c.l.b16 %v4646
  %v4743 = vunpack.c.l.b16 %v4647
  %v4744 = vunpack.c.l.b16 %v4648
  %v4745 = vunpack.c.l.b16 %v4649
  %v4746 = vunpack.c.l.b16 %v4650
  %v4747 = vunpack.c.l.b16 %v4651
  %v4748 = vunpack.c.l.b16 %v4652
  %v4749 = vunpack.c.l.b16 %v4653
  %v4750 = vunpack.c.l.b16 %v4654
  %v4751 = vunpack.c.l.b16 %v4655
  %v4752 = vunpack.c.l.b16 %v4656
  %v4753 = vunpack.c.l.b16 %v4657
  %v4754 = vunpack.c.l.b16 %v4658
  %v4755 = vunpack.c.l.b16 %v4659
  %v4756 = vunpack.c.l.b16 %v4660
  %v4757 = vunpack.c.l.b16 %v4661
  %v4758 = vunpack.c.l.b16 %v4662
  %v4759 = vunpack.c.l.b16 %v4663
  %v4760 = vunpack.c.l.b16 %v4664
  %v4761 = vunpack.c.l.b16 %v4665
  %v4762 = vunpack.c.l.b16 %v4666
  %v4763 = vunpack.c.l.b16 %v4667
  %v4764 = vunpack.c.l.b16 %v4668
  %v4765 = vpack.c.b16 %v4718, %v4717
  %v4766 = vpack.c.b16 %v4720, %v4719
  %v4767 = vpack.c.b16 %v4722, %v4721
  %v4768 = vpack.c.b16 %v4724, %v4723
  %v4769 = vpack.c.b16 %v4726, %v4725
  %v4770 = vpack.c.b16 %v4728, %v4727
  %v4771 = vpack.c.b16 %v4730, %v4729
  %v4772 = vpack.c.b16 %v4732, %v4731
  %v4773 = vpack.c.b16 %v4734, %v4733
  %v4774 = vpack.c.b16 %v4736, %v4735
  %v4775 = vpack.c.b16 %v4738, %v4737
  %v4776 = vpack.c.b16 %v4740, %v4739
  %v4777 = vpack.c.b16 %v4742, %v4741
  %v4778 = vpack.c.b16 %v4744, %v4743
  %v4779 = vpack.c.b16 %v4746, %v4745
  %v4780 = vpack.c.b16 %v4748, %v4747
  %v4781 = vpack.c.b16 %v4750, %v4749
  %v4782 = vpack.c.b16 %v4752, %v4751
  %v4783 = vpack.c.b16 %v4754, %v4753
  %v4784 = vpack.c.b16 %v4756, %v4755
  %v4785 = vpack.c.b16 %v4758, %v4757
  %v4786 = vpack.c.b16 %v4760, %v4759
  %v4787 = vpack.c.b16 %v4762, %v4761
  %v4788 = vpack.c.b16 %v4764, %v4763
  %4813 = vmatprep.subr.bf16.mxu0 0
  %4814 = vmatpush1.bf16.msra.mxu0 %v4765
  %4815 = vmatprep.subr.bf16.mxu0 0
  %4816 = vmatpush1.bf16.msra.mxu0 %v4766
  %4817 = vmatprep.subr.bf16.mxu0 0
  %4818 = vmatpush1.bf16.msra.mxu0 %v4767
  %4819 = vmatprep.subr.bf16.mxu0 0
  %4820 = vmatpush1.bf16.msra.mxu0 %v4768
  %4821 = vmatprep.subr.bf16.mxu0 0
  %4822 = vmatpush1.bf16.msra.mxu0 %v4769
  %4823 = vmatprep.subr.bf16.mxu0 0
  %4824 = vmatpush1.bf16.msra.mxu0 %v4770
  %4825 = vmatprep.subr.bf16.mxu0 0
  %4826 = vmatpush1.bf16.msra.mxu0 %v4771
  %4827 = vmatprep.subr.bf16.mxu0 0
  %4828 = vmatpush1.bf16.msra.mxu0 %v4772
  %4829 = vmatprep.subr.bf16.mxu0 0
  %4830 = vmatpush1.bf16.msra.mxu0 %v4773
  %4831 = vmatprep.subr.bf16.mxu0 0
  %4832 = vmatpush1.bf16.msra.mxu0 %v4774
  %4833 = vmatprep.subr.bf16.mxu0 0
  %4834 = vmatpush1.bf16.msra.mxu0 %v4775
  %4835 = vmatprep.subr.bf16.mxu0 0
  %4836 = vmatpush1.bf16.msra.mxu0 %v4776
  %4837 = vmatprep.subr.bf16.mxu0 0
  %4838 = vmatpush1.bf16.msra.mxu0 %v4777
  %4839 = vmatprep.subr.bf16.mxu0 0
  %4840 = vmatpush1.bf16.msra.mxu0 %v4778
  %4841 = vmatprep.subr.bf16.mxu0 0
  %4842 = vmatpush1.bf16.msra.mxu0 %v4779
  %4843 = vmatprep.subr.bf16.mxu0 0
  %4844 = vmatpush1.bf16.msra.mxu0 %v4780
  %4845 = vmatprep.mubr.bf16.mxu0 %v4619
  %4846 = vmatmul.mubr.bf16.gmra.mrb[0].mxu0 %v4618
  %v4847 = vpop.f32.mrb[0].mxu0
  %v4848 = vadd.f32 0.0, %v4847
  %v4849 = vpop.f32.mrb[0].mxu0
  %v4850 = vpop.f32.mrb[0].mxu0
  %v4851 = vpop.f32.mrb[0].mxu0
  %4852 = vdwg.mxu0
  %4853 = vmatprep.subr.bf16.mxu0 0
  %4854 = vmatpush1.bf16.msra.mxu0 %v4781
  %4855 = vmatprep.subr.bf16.mxu0 0
  %4856 = vmatpush1.bf16.msra.mxu0 %v4782
  %4857 = vmatprep.subr.bf16.mxu0 0
  %4858 = vmatpush1.bf16.msra.mxu0 %v4783
  %4859 = vmatprep.subr.bf16.mxu0 0
  %4860 = vmatpush1.bf16.msra.mxu0 %v4784
  %4861 = vmatprep.subr.bf16.mxu0 0
  %4862 = vmatpush1.bf16.msra.mxu0 %v4785
  %4863 = vmatprep.subr.bf16.mxu0 0
  %4864 = vmatpush1.bf16.msra.mxu0 %v4786
  %4865 = vmatprep.subr.bf16.mxu0 0
  %4866 = vmatpush1.bf16.msra.mxu0 %v4787
  %4867 = vmatprep.subr.bf16.mxu0 0
  %4868 = vmatpush1.bf16.msra.mxu0 %v4788
  %4869 = vmatprep.subr.bf16.mxu0 0
  %4870 = vmatpush1.bf16.msra.mxu0 0
  %4871 = vmatprep.subr.bf16.mxu0 0
  %4872 = vmatpush1.bf16.msra.mxu0 0
  %4873 = vmatprep.subr.bf16.mxu0 0
  %4874 = vmatpush1.bf16.msra.mxu0 0
  %4875 = vmatprep.subr.bf16.mxu0 0
  %4876 = vmatpush1.bf16.msra.mxu0 0
  %4877 = vmatprep.subr.bf16.mxu0 0
  %4878 = vmatpush1.bf16.msra.mxu0 0
  %4879 = vmatprep.subr.bf16.mxu0 0
  %4880 = vmatpush1.bf16.msra.mxu0 0
  %4881 = vmatprep.subr.bf16.mxu0 0
  %4882 = vmatpush1.bf16.msra.mxu0 0
  %4883 = vmatprep.subr.bf16.mxu0 0
  %4884 = vmatpush1.bf16.msra.mxu0 0
  %4885 = vmatprep.mubr.bf16.mxu0 0
  %4886 = vmatmul.mubr.bf16.gmra.mrb[0].mxu0 %v4620
  %v4887 = vpop.f32.mrb[0].mxu0
  %v4888 = vadd.f32 %v4848, %v4887
  %v4889 = vpop.f32.mrb[0].mxu0
  %v4890 = vpop.f32.mrb[0].mxu0
  %v4891 = vpop.f32.mrb[0].mxu0
  %4892 = vdwg.mxu0
  %vm4893 = vcmp.ge.f32.partialorder %v4888, 0.0
  %v4894 = vmul.f32 %v4888, 0.2
  %v4895 = vsel %vm4893, %v4888, %v4894
  %v4896 = vpack.c.bf16 %v4895, %v4895
  %v4897 = vld [vmem:[%s5] sm:$0xf]
  %v4898 = vld [vmem:[%s5 + $0x4] sm:$0xf]
  %v4899 = vld [vmem:[%s5 + $0x8] sm:$0xf]
  %v4900 = vld [vmem:[%s5 + $0xc] sm:$0xf]
  %v4901 = vld [vmem:[%s5 + $0x10] sm:$0xf]
  %v4902 = vld [vmem:[%s5 + $0x14] sm:$0xf]
  %v4903 = vld [vmem:[%s5 + $0x18] sm:$0xf]
  %v4904 = vld [vmem:[%s5 + $0x1c] sm:$0xf]
  %v4913 = vunpack.c.l.b16 %v4897
  %v4914 = vunpack.c.l.b16 %v4898
  %v4915 = vunpack.c.l.b16 %v4899
  %v4916 = vunpack.c.l.b16 %v4900
  %v4917 = vunpack.c.l.b16 %v4901
  %v4918 = vunpack.c.l.b16 %v4902
  %v4919 = vunpack.c.l.b16 %v4903
  %v4920 = vunpack.c.l.b16 %v4904
  %v4921 = vpack.c.b16 %v4914, %v4913
  %v4922 = vpack.c.b16 %v4916, %v4915
  %v4923 = vpack.c.b16 %v4918, %v4917
  %v4924 = vpack.c.b16 %v4920, %v4919
  %vm4929 = vcmask 523264
  %v4931 = vsel %vm4929, %v4896, 0
  %4933 = vmatprep.subr.bf16.mxu0 0
  %4934 = vmatpush1.bf16.msra.mxu0 %v4921
  %4935 = vmatprep.subr.bf16.mxu0 0
  %4936 = vmatpush1.bf16.msra.mxu0 %v4922
  %4937 = vmatprep.subr.bf16.mxu0 0
  %4938 = vmatpush1.bf16.msra.mxu0 %v4923
  %4939 = vmatprep.subr.bf16.mxu0 0
  %4940 = vmatpush1.bf16.msra.mxu0 %v4924
  %4941 = vmatprep.subr.bf16.mxu0 0
  %4942 = vmatpush1.bf16.msra.mxu0 0
  %4943 = vmatprep.subr.bf16.mxu0 0
  %4944 = vmatpush1.bf16.msra.mxu0 0
  %4945 = vmatprep.subr.bf16.mxu0 0
  %4946 = vmatpush1.bf16.msra.mxu0 0
  %4947 = vmatprep.subr.bf16.mxu0 0
  %4948 = vmatpush1.bf16.msra.mxu0 0
  %4949 = vmatprep.subr.bf16.mxu0 0
  %4950 = vmatpush1.bf16.msra.mxu0 0
  %4951 = vmatprep.subr.bf16.mxu0 0
  %4952 = vmatpush1.bf16.msra.mxu0 0
  %4953 = vmatprep.subr.bf16.mxu0 0
  %4954 = vmatpush1.bf16.msra.mxu0 0
  %4955 = vmatprep.subr.bf16.mxu0 0
  %4956 = vmatpush1.bf16.msra.mxu0 0
  %4957 = vmatprep.subr.bf16.mxu0 0
  %4958 = vmatpush1.bf16.msra.mxu0 0
  %4959 = vmatprep.subr.bf16.mxu0 0
  %4960 = vmatpush1.bf16.msra.mxu0 0
  %4961 = vmatprep.subr.bf16.mxu0 0
  %4962 = vmatpush1.bf16.msra.mxu0 0
  %4963 = vmatprep.subr.bf16.mxu0 0
  %4964 = vmatpush1.bf16.msra.mxu0 0
  %4965 = vmatprep.mubr.bf16.mxu0 0
  %4966 = vmatmul.mubr.bf16.gmra.mrb[0].mxu0 %v4931
  %v4967 = vpop.f32.mrb[0].mxu0
  %v4968 = vadd.f32 0.0, %v4967
  %v4969 = vpop.f32.mrb[0].mxu0
  %v4970 = vpop.f32.mrb[0].mxu0
  %v4971 = vpop.f32.mrb[0].mxu0
  %4972 = vdwg.mxu0
  %vm4973 = vcmp.ge.f32.partialorder %v4968, 0.0
  %v4974 = vmul.f32 %v4968, 0.2
  %v4975 = vsel %vm4973, %v4968, %v4974
  %v4976 = vld [vmem:[%s6] sm:$0x1]
  %v4978 = vlaneseq
  %v4979 = vshrl.u32 %v4978, 7
  %v4980 = vsub.s32 0, %v4979
  %v4981 = vrot.slane %v4976, %v4980
  %v4983 = vmul.f32 %v4975, %v4981
  %vm4984 = vcmask 254976
  %v4985 = vsel %vm4984, %v4983, 0.0
  %4986 = vadd.xlane.f32.xlu0 %v4985
  %v4987 = vpop.xlane.xlu0 %4986
  %v4988 = vsub.f32 0.0, %v4987
  %v4989 = vmul.f32 %v4988, 1.442695
  %v4990 = vpow.pop %v4989
  %v4991 = vadd.f32 %v4990, 1.0
  %v4992 = vrcp.pop %v4991
  %v4993 = vmul.f32 1.0, %v4992
  %vm4994 = vcmask 1024
  %4995 = vst.msk [vmem:[%s7] sm:$0x3] %vm4994, %v4993
  // Predicated region
  $region30: #{discriminator_forward.1} parent=0 // pred_check
    _
  $region31: #{discriminator_forward.1} parent=0 // pred_check_branch
    %4997 = sbr.rel (0) target = $region33
  $region32: #{discriminator_forward.1} parent=0 // pred_region
    _
  $region33: #{discriminator_forward.1} parent=0 // pred_fallthru
    _
  // Predicated region
  $region34: #{discriminator_forward.1} parent=0 // pred_check
    _
  $region35: #{discriminator_forward.1} parent=0 // pred_check_branch
    %4999 = sbr.rel (0) target = $region37
  $region36: #{discriminator_forward.1} parent=0 // pred_region
    _
  $region37: #{discriminator_forward.1} parent=0 // pred_fallthru
    _

</llo_original>
